<compile_context>
chip_gen: v5e
topology: v5e:2x2
jax: 0.10.0
libtpu: 0.0.40
codegen_flags: <defaults>
</compile_context>

<pallas_src>
import functools
import math

import jax
import jax.numpy as jnp
from jax.experimental import pallas as pl
from jax.experimental.pallas import tpu as pltpu


@functools.lru_cache(maxsize=None)
def _vmem_limit_bytes() -> int:
    """Generation-aware scoped-VMEM limit (128 MiB on v5e/v6e, 64 MiB on v7x)."""
    try:
        cap = int(pltpu.get_tpu_info().vmem_capacity_bytes)
    except Exception:
        cap = 64 * 1024 * 1024  # conservative (v7x-sized) fallback
    return min(int(cap * 0.6), 96 * 1024 * 1024)


def _pick_tile(dim: int, target: int, align: int) -> int:
    """Largest tile <= target that exactly divides `dim` (or the full dim)."""
    # TODO(synk): for badly-factorable dims, pad + edge-mask instead of
    # falling back to a single full-dim block.
    if dim <= target:
        return dim
    t = (target // align) * align
    while t >= align:
        if dim % t == 0:
            return t
        t -= align
    return dim


# ---------------------------------------------------------------------------
# Fused LayerNorm (PyTorch module semantics: unbiased std, scalar affine)
# + matmul (+ optional ReLU).  K (= d_model) is a single block so the row
# statistics are computed on the full feature dimension inside the kernel.
# ---------------------------------------------------------------------------
def _ln_linear_kernel(x_ref, w_ref, b_ref, alpha_ref, beta_ref, o_ref, *,
                      eps, activation):
    x = x_ref[...].astype(jnp.float32)
    d = x.shape[-1]
    mean = jnp.mean(x, axis=-1, keepdims=True)
    c = x - mean
    # torch.Tensor.std() defaults to the unbiased estimator (divide by d - 1).
    std = jnp.sqrt(jnp.sum(c * c, axis=-1, keepdims=True) / (d - 1))
    n = alpha_ref[0] * c / (std + eps) + beta_ref[0]
    out = jnp.dot(n, w_ref[...].astype(jnp.float32),
                  preferred_element_type=jnp.float32)
    out = out + b_ref[...].astype(jnp.float32)
    if activation == "relu":
        out = jnp.maximum(out, 0.0)
    o_ref[...] = out.astype(o_ref.dtype)


def ln_linear(x2d, ln_alpha, ln_beta, w_t, b, *, activation=None, eps=1e-6,
              tm_target=256, tn_target=512):
    """y = act(LayerNorm(x) @ w_t + b); x2d: (M, d); w_t: (d, N)."""
    m, d = x2d.shape
    n = w_t.shape[1]
    tm = _pick_tile(m, tm_target, 8)
    tn_tgt = tn_target
    if m // tm < 2 and n >= 256:           # feed both v7x TensorCores
        tn_tgt = min(tn_tgt, max(128, (n // 2) // 128 * 128))
    tn = _pick_tile(n, tn_tgt, 128)
    b2d = b.reshape(1, n)

    return pl.pallas_call(
        functools.partial(_ln_linear_kernel, eps=eps, activation=activation),
        out_shape=jax.ShapeDtypeStruct((m, n), jnp.float32),
        grid_spec=pltpu.PrefetchScalarGridSpec(
            num_scalar_prefetch=0,
            grid=(m // tm, n // tn),
            in_specs=[
                pl.BlockSpec((tm, d), lambda i, j: (i, 0)),
                pl.BlockSpec((d, tn), lambda i, j: (0, j)),
                pl.BlockSpec((1, tn), lambda i, j: (0, j)),
                pl.BlockSpec(memory_space=pltpu.MemorySpace.SMEM),  # alpha (1,)
                pl.BlockSpec(memory_space=pltpu.MemorySpace.SMEM),  # beta  (1,)
            ],
            out_specs=pl.BlockSpec((tm, tn), lambda i, j: (i, j)),
        ),
        compiler_params=pltpu.CompilerParams(
            dimension_semantics=("parallel", "parallel"),
            vmem_limit_bytes=_vmem_limit_bytes(),
        ),
        cost_estimate=pl.CostEstimate(
            flops=2 * m * n * d, transcendentals=0,
            bytes_accessed=int(4 * (m * d + d * n + n + m * n)),
        ),
    )(x2d, w_t, b2d, ln_alpha, ln_beta)


# ---------------------------------------------------------------------------
# Tiled linear: y = act(x @ w_t + b) [+ residual].
# f32 output accumulates directly into o_ref (resident across K) - no scratch.
# ---------------------------------------------------------------------------
def _linear_kernel(x_ref, w_ref, b_ref, o_ref, *, activation):
    k = pl.program_id(2)

    @pl.when(k == 0)
    def _():
        o_ref[...] = jnp.zeros_like(o_ref)

    o_ref[...] += jnp.dot(x_ref[...], w_ref[...],
                          preferred_element_type=jnp.float32)

    @pl.when(k == pl.num_programs(2) - 1)
    def _():
        out = o_ref[...] + b_ref[...].astype(jnp.float32)
        if activation == "relu":
            out = jnp.maximum(out, 0.0)
        o_ref[...] = out


def _linear_residual_kernel(x_ref, w_ref, b_ref, r_ref, o_ref, *, activation):
    k = pl.program_id(2)

    @pl.when(k == 0)
    def _():
        o_ref[...] = jnp.zeros_like(o_ref)

    o_ref[...] += jnp.dot(x_ref[...], w_ref[...],
                          preferred_element_type=jnp.float32)

    @pl.when(k == pl.num_programs(2) - 1)
    def _():
        out = o_ref[...] + b_ref[...].astype(jnp.float32)
        if activation == "relu":
            out = jnp.maximum(out, 0.0)
        o_ref[...] = out + r_ref[...].astype(jnp.float32)


def linear(x2d, w_t, b, *, residual=None, activation=None,
           tm_target=256, tn_target=512, tk_target=512):
    """x2d: (M, K); w_t: (K, N) (= PyTorch weight.T); b: (N,). f32 output."""
    m, kdim = x2d.shape
    n = w_t.shape[1]
    tm = _pick_tile(m, tm_target, 8)
    tn_tgt = tn_target
    if m // tm < 2 and n >= 256:            # feed both v7x TensorCores
        tn_tgt = min(tn_tgt, max(128, (n // 2) // 128 * 128))
    tn = _pick_tile(n, tn_tgt, 128)
    tk = _pick_tile(kdim, tk_target, 128)
    grid = (m // tm, n // tn, kdim // tk)
    b2d = b.reshape(1, n)

    in_specs = [
        pl.BlockSpec((tm, tk), lambda i, j, k: (i, k)),
        pl.BlockSpec((tk, tn), lambda i, j, k: (k, j)),
        pl.BlockSpec((1, tn), lambda i, j, k: (0, j)),
    ]
    args = [x2d, w_t, b2d]
    if residual is not None:
        in_specs.append(pl.BlockSpec((tm, tn), lambda i, j, k: (i, j)))
        args.append(residual)
        kernel = functools.partial(_linear_residual_kernel, activation=activation)
    else:
        kernel = functools.partial(_linear_kernel, activation=activation)

    bytes_accessed = 4 * (m * kdim + kdim * n + n + m * n
                          + (m * n if residual is not None else 0))

    return pl.pallas_call(
        kernel,
        out_shape=jax.ShapeDtypeStruct((m, n), jnp.float32),
        grid_spec=pltpu.PrefetchScalarGridSpec(
            num_scalar_prefetch=0,
            grid=grid,
            in_specs=in_specs,
            out_specs=pl.BlockSpec((tm, tn), lambda i, j, k: (i, j)),
        ),
        compiler_params=pltpu.CompilerParams(
            dimension_semantics=("parallel", "parallel", "arbitrary"),
            vmem_limit_bytes=_vmem_limit_bytes(),
        ),
        cost_estimate=pl.CostEstimate(
            flops=2 * m * n * kdim, transcendentals=0,
            bytes_accessed=int(bytes_accessed),
        ),
    )(*args)


# ---------------------------------------------------------------------------
# Multi-head attention on un-transposed projection outputs.
# Grid = (batch, q-tiles); heads looped (statically) inside the kernel over
# column slices of the fused projection; output written in (B, Sq, d_model).
# ---------------------------------------------------------------------------
def _attention_kernel(q_ref, kv_ref, m_ref, o_ref, *, num_heads, dk, scale,
                      q_off, k_off, v_off):
    q_all = q_ref[0]          # (tq, q_width)
    kv_all = kv_ref[0]        # (Sk, kv_width)
    msk = m_ref[0]            # (tq or 1, Sk) — broadcasts against scores
    neg = jnp.float32(-1e9)
    outs = []
    for h in range(num_heads):
        qh = q_all[:, q_off + h * dk: q_off + (h + 1) * dk].astype(jnp.float32)
        kh = kv_all[:, k_off + h * dk: k_off + (h + 1) * dk].astype(jnp.float32)
        vh = kv_all[:, v_off + h * dk: v_off + (h + 1) * dk]
        # fold 1/sqrt(dk) into q: O(tq*dk) instead of O(tq*Sk) multiplies
        s = jax.lax.dot_general(qh * scale, kh, (((1,), (1,)), ((), ())),
                                preferred_element_type=jnp.float32)
        s = jnp.where(msk == 0, neg, s)
        mx = jnp.max(s, axis=-1, keepdims=True)
        p = jnp.exp(s - mx)
        denom = jnp.sum(p, axis=-1, keepdims=True)
        p = p * pl.reciprocal(denom, approx=True)
        outs.append(jnp.dot(p.astype(vh.dtype), vh,
                            preferred_element_type=jnp.float32))
    o_ref[0] = jnp.concatenate(outs, axis=-1).astype(o_ref.dtype)


def multi_head_attention_core(q_arr, kv_arr, mask4, *, num_heads, d_model,
                              q_off, k_off, v_off, tq_target=256):
    """q_arr: (B, Sq, qw); kv_arr: (B, Sk, kvw); mask4: (mb, 1, mq, Sk)."""
    b, sq, qw = q_arr.shape
    _, sk, kvw = kv_arr.shape
    dk = d_model // num_heads
    scale = 1.0 / math.sqrt(dk)
    tq = _pick_tile(sq, tq_target, 8)

    mb, mh, mq, mk = mask4.shape
    assert mh == 1 and mk == sk and mq in (1, sq)
    mask3 = mask4.reshape(mb, mq, mk).astype(jnp.int32)   # tiny, no b*h copy
    m_b = 1 if mb == b else 0
    m_q = 1 if mq == sq else 0
    mask_block_q = tq if mq == sq else 1

    return pl.pallas_call(
        functools.partial(_attention_kernel, num_heads=num_heads, dk=dk,
                          scale=scale, q_off=q_off, k_off=k_off, v_off=v_off),
        out_shape=jax.ShapeDtypeStruct((b, sq, d_model), jnp.float32),
        grid_spec=pltpu.PrefetchScalarGridSpec(
            num_scalar_prefetch=0,
            grid=(b, sq // tq),
            in_specs=[
                pl.BlockSpec((1, tq, qw), lambda bi, qi: (bi, qi, 0)),
                pl.BlockSpec((1, sk, kvw), lambda bi, qi: (bi, 0, 0)),
                pl.BlockSpec((1, mask_block_q, sk),
                             lambda bi, qi, _b=m_b, _q=m_q: (bi * _b, qi * _q, 0)),
            ],
            out_specs=pl.BlockSpec((1, tq, d_model),
                                   lambda bi, qi: (bi, qi, 0)),
        ),
        compiler_params=pltpu.CompilerParams(
            dimension_semantics=("parallel", "parallel"),
            vmem_limit_bytes=_vmem_limit_bytes(),
        ),
        cost_estimate=pl.CostEstimate(
            flops=4 * b * sq * sk * d_model,
            transcendentals=b * num_heads * sq * sk,
            bytes_accessed=int(4 * b * (sq * qw + sk * kvw + sq * d_model)
                               + 4 * mb * mq * mk),
        ),
    )(q_arr, kv_arr, mask3)


# ---------------------------------------------------------------------------
# DecoderBlock forward (kernel-side params use fused QKV / KV weights)
# ---------------------------------------------------------------------------
def decoder_block_forward(x, encoder_output, src_mask, tgt_mask, params, *,
                          num_heads):
    b, sq, d = x.shape
    sk = encoder_output.shape[1]
    x2d = x.reshape(b * sq, d)
    enc2d = encoder_output.reshape(b * sk, d)

    # --- residual 0: self-attention(LN(x)) with tgt_mask -------------------
    sa = params["self_attn"]
    qkv = ln_linear(x2d, params["ln0_alpha"], params["ln0_bias"],
                    sa["wqkv_t"], sa["bqkv"])                  # (b*sq, 3d)
    qkv3 = qkv.reshape(b, sq, 3 * d)
    attn = multi_head_attention_core(qkv3, qkv3, tgt_mask,
                                     num_heads=num_heads, d_model=d,
                                     q_off=0, k_off=d, v_off=2 * d)
    x2d = linear(attn.reshape(b * sq, d), sa["wout_t"], sa["bout"],
                 residual=x2d)

    # --- residual 1: cross-attention(LN(x), enc, enc) with src_mask --------
    ca = params["cross_attn"]
    q = ln_linear(x2d, params["ln1_alpha"], params["ln1_bias"],
                  ca["wq_t"], ca["bq"])                        # (b*sq, d)
    kv = linear(enc2d, ca["wkv_t"], ca["bkv"])                 # (b*sk, 2d)
    attn = multi_head_attention_core(q.reshape(b, sq, d),
                                     kv.reshape(b, sk, 2 * d), src_mask,
                                     num_heads=num_heads, d_model=d,
                                     q_off=0, k_off=0, v_off=d)
    x2d = linear(attn.reshape(b * sq, d), ca["wout_t"], ca["bout"],
                 residual=x2d)

    # --- residual 2: FFN(LN(x)) — ReLU fused into w1, residual into w2 -----
    fp = params["ffn"]
    hdn = ln_linear(x2d, params["ln2_alpha"], params["ln2_bias"],
                    fp["w1_t"], fp["b1"], activation="relu")
    x2d = linear(hdn, fp["w2_t"], fp["b2"], residual=x2d)

    return x2d.reshape(b, sq, d)


def prepare_decoder_params(p):
    """Build fused-weight params (wq|wk|wv and wk|wv) from per-layer weights."""
    def fuse(mp):
        return {
            "wqkv_t": jnp.concatenate([mp["wq_t"], mp["wk_t"], mp["wv_t"]], 1),
            "bqkv": jnp.concatenate([mp["bq"], mp["bk"], mp["bv"]]),
            "wq_t": mp["wq_t"], "bq": mp["bq"],
            "wkv_t": jnp.concatenate([mp["wk_t"], mp["wv_t"]], 1),
            "bkv": jnp.concatenate([mp["bk"], mp["bv"]]),
            "wout_t": mp["wout_t"], "bout": mp["bout"],
        }
    out = dict(p)
    out["self_attn"] = fuse(p["self_attn"])
    out["cross_attn"] = fuse(p["cross_attn"])
    return out


# ---------------------------------------------------------------------------
# Pure-JAX reference (mirrors the PyTorch module, dropout = identity)
# ---------------------------------------------------------------------------
def _ref_layernorm(x, alpha, bias, eps=1e-6):
    mean = jnp.mean(x, axis=-1, keepdims=True)
    c = x - mean
    std = jnp.sqrt(jnp.sum(c * c, axis=-1, keepdims=True) / (x.shape[-1] - 1))
    return alpha * c / (std + eps) + bias


def _ref_mha(q_in, kv_in, mask, p, h):
    b, sq, d = q_in.shape
    sk = kv_in.shape[1]
    dk = d // h
    q = (q_in @ p["wq_t"] + p["bq"]).reshape(b, sq, h, dk).transpose(0, 2, 1, 3)
    k = (kv_in @ p["wk_t"] + p["bk"]).reshape(b, sk, h, dk).transpose(0, 2, 1, 3)
    v = (kv_in @ p["wv_t"] + p["bv"]).reshape(b, sk, h, dk).transpose(0, 2, 1, 3)
    s = (q @ jnp.swapaxes(k, -1, -2)) / math.sqrt(dk)
    s = jnp.where(mask == 0, -1e9, s)
    a = jax.nn.softmax(s, axis=-1)
    o = (a @ v).transpose(0, 2, 1, 3).reshape(b, sq, d)
    return o @ p["wout_t"] + p["bout"]


def _ref_decoder_block(x, enc, src_mask, tgt_mask, params, h):
    n = _ref_layernorm(x, params["ln0_alpha"], params["ln0_bias"])
    x = x + _ref_mha(n, n, tgt_mask, params["self_attn"], h)
    n = _ref_layernorm(x, params["ln1_alpha"], params["ln1_bias"])
    x = x + _ref_mha(n, enc, src_mask, params["cross_attn"], h)
    n = _ref_layernorm(x, params["ln2_alpha"], params["ln2_bias"])
    ff = jnp.maximum(n @ params["ffn"]["w1_t"] + params["ffn"]["b1"], 0.0)
    x = x + (ff @ params["ffn"]["w2_t"] + params["ffn"]["b2"])
    return x


if __name__ == "__main__":
    # Make the XLA reference matmuls full-f32 so they match the in-kernel
    # f32 MXU matmuls.
    jax.config.update("jax_default_matmul_precision", "highest")

    batch, tgt_seq, src_seq = 2, 8, 8
    d_model, num_heads, d_ff = 32, 4, 64

    key = jax.random.PRNGKey(0)
    keys = jax.random.split(key, 24)

    def linear_init(kw, kb, fan_in, fan_out):
        bound = 1.0 / math.sqrt(fan_in)
        w_t = jax.random.uniform(kw, (fan_in, fan_out), jnp.float32,
                                 minval=-bound, maxval=bound)
        bb = jax.random.uniform(kb, (fan_out,), jnp.float32,
                                minval=-bound, maxval=bound)
        return w_t, bb

    def mha_init(ks):
        wq_t, bq = linear_init(ks[0], ks[1], d_model, d_model)
        wk_t, bk = linear_init(ks[2], ks[3], d_model, d_model)
        wv_t, bv = linear_init(ks[4], ks[5], d_model, d_model)
        wo_t, bo = linear_init(ks[6], ks[7], d_model, d_model)
        return {"wq_t": wq_t, "bq": bq, "wk_t": wk_t, "bk": bk,
                "wv_t": wv_t, "bv": bv, "wout_t": wo_t, "bout": bo}

    w1_t, b1 = linear_init(keys[16], keys[17], d_model, d_ff)
    w2_t, b2 = linear_init(keys[18], keys[19], d_ff, d_model)

    raw_params = {
        "self_attn": mha_init(keys[0:8]),
        "cross_attn": mha_init(keys[8:16]),
        "ffn": {"w1_t": w1_t, "b1": b1, "w2_t": w2_t, "b2": b2},
        # LayerNormalization: alpha = ones(1), bias = zeros(1) (module init)
        "ln0_alpha": jnp.ones((1,), jnp.float32),
        "ln0_bias": jnp.zeros((1,), jnp.float32),
        "ln1_alpha": jnp.ones((1,), jnp.float32),
        "ln1_bias": jnp.zeros((1,), jnp.float32),
        "ln2_alpha": jnp.ones((1,), jnp.float32),
        "ln2_bias": jnp.zeros((1,), jnp.float32),
    }
    kernel_params = prepare_decoder_params(raw_params)   # fused QKV / KV

    x = jax.random.normal(keys[20], (batch, tgt_seq, d_model), jnp.float32)
    enc = jax.random.normal(keys[21], (batch, src_seq, d_model), jnp.float32)
    tgt_mask = jnp.tril(jnp.ones((tgt_seq, tgt_seq), jnp.int32))[None, None]
    src_mask = jnp.ones((batch, 1, 1, src_seq), jnp.int32)

    fwd = jax.jit(functools.partial(decoder_block_forward, num_heads=num_heads))
    out = jax.block_until_ready(fwd(x, enc, src_mask, tgt_mask, kernel_params))

    ref = _ref_decoder_block(x, enc, src_mask, tgt_mask, raw_params, num_heads)
    assert out.shape == (batch, tgt_seq, d_model)
    err = jnp.max(jnp.abs(out - ref))
    assert jnp.allclose(out, ref, atol=2e-3, rtol=2e-3), f"max abs err = {err}"

    print("KERNEL_OK")
</pallas_src>

<mosaic_0001>
module attributes {stable_mosaic.version = 11 : i64} {
  func.func @_ln_linear_kernel(%arg0: i32, %arg1: i32, %arg2: memref<16x32xf32, #tpu.memory_space<vmem>>, %arg3: memref<32x96xf32, #tpu.memory_space<vmem>>, %arg4: memref<1x96xf32, #tpu.memory_space<vmem>>, %arg5: memref<1xf32, #tpu.memory_space<smem>>, %arg6: memref<1xf32, #tpu.memory_space<smem>>, %arg7: memref<16x96xf32, #tpu.memory_space<vmem>>) attributes {dimension_semantics = [#tpu.dimension_semantics<parallel>, #tpu.dimension_semantics<parallel>], iteration_bounds = array<i64: 1, 1>, scalar_prefetch = 0 : i64, scratch_operands = 0 : i64, tpu.core_type = #tpu.core_type<tc>, window_params = [{transform_indices = @transform_0, window_bounds = array<i64: 16, 32>}, {transform_indices = @transform_1, window_bounds = array<i64: 32, 96>}, {transform_indices = @transform_2, window_bounds = array<i64: 1, 96>}, {transform_indices = @transform_3, window_bounds = array<i64: 1>}, {transform_indices = @transform_4, window_bounds = array<i64: 1>}, {transform_indices = @transform_5, window_bounds = array<i64: 16, 96>}]} {
    %c0 = arith.constant 0 : index
    %c0_0 = arith.constant 0 : index
    %0 = vector.load %arg2[%c0, %c0_0] : memref<16x32xf32, #tpu.memory_space<vmem>>, vector<16x32xf32>
    %cst = arith.constant dense<0.000000e+00> : vector<16xf32>
    %1 = vector.multi_reduction <add>, %0, %cst [1] : vector<16x32xf32> to vector<16xf32>
    %2 = vector.shape_cast %1 : vector<16xf32> to vector<16x1xf32>
    %cst_1 = arith.constant 3.200000e+01 : f32
    %3 = vector.broadcast %cst_1 : f32 to vector<16x1xf32>
    %4 = arith.divf %2, %3 : vector<16x1xf32>
    %5 = vector.broadcast %4 : vector<16x1xf32> to vector<16x32xf32>
    %6 = arith.subf %0, %5 : vector<16x32xf32>
    %7 = arith.mulf %6, %6 : vector<16x32xf32>
    %cst_2 = arith.constant dense<0.000000e+00> : vector<16xf32>
    %8 = vector.multi_reduction <add>, %7, %cst_2 [1] : vector<16x32xf32> to vector<16xf32>
    %9 = vector.shape_cast %8 : vector<16xf32> to vector<16x1xf32>
    %cst_3 = arith.constant 3.100000e+01 : f32
    %10 = vector.broadcast %cst_3 : f32 to vector<16x1xf32>
    %11 = arith.divf %9, %10 : vector<16x1xf32>
    %12 = math.sqrt %11 : vector<16x1xf32>
    %c0_4 = arith.constant 0 : index
    %13 = memref.load %arg5[%c0_4] : memref<1xf32, #tpu.memory_space<smem>>
    %14 = vector.broadcast %13 : f32 to vector<16x32xf32>
    %15 = arith.mulf %14, %6 : vector<16x32xf32>
    %cst_5 = arith.constant 9.99999997E-7 : f32
    %16 = vector.broadcast %cst_5 : f32 to vector<16x1xf32>
    %17 = arith.addf %12, %16 : vector<16x1xf32>
    %18 = vector.broadcast %17 : vector<16x1xf32> to vector<16x32xf32>
    %19 = arith.divf %15, %18 : vector<16x32xf32>
    %c0_6 = arith.constant 0 : index
    %20 = memref.load %arg6[%c0_6] : memref<1xf32, #tpu.memory_space<smem>>
    %21 = vector.broadcast %20 : f32 to vector<16x32xf32>
    %22 = arith.addf %19, %21 : vector<16x32xf32>
    %c0_7 = arith.constant 0 : index
    %c0_8 = arith.constant 0 : index
    %23 = vector.load %arg3[%c0_7, %c0_8] : memref<32x96xf32, #tpu.memory_space<vmem>>, vector<32x96xf32>
    %cst_9 = arith.constant dense<0.000000e+00> : vector<16x96xf32>
    %24 = tpu.matmul %22, %23, %cst_9 {dimension_numbers = #tpu.dot_dimension_numbers<[1], [0], [0], [1], [0, 0, 1, 1], [], []>, precision = #tpu.contract_precision<fp32>} : vector<16x32xf32>, vector<32x96xf32>, vector<16x96xf32> -> vector<16x96xf32>
    %c0_10 = arith.constant 0 : index
    %c0_11 = arith.constant 0 : index
    %25 = vector.load %arg4[%c0_10, %c0_11] : memref<1x96xf32, #tpu.memory_space<vmem>>, vector<1x96xf32>
    %26 = vector.broadcast %25 : vector<1x96xf32> to vector<16x96xf32>
    %27 = arith.addf %24, %26 : vector<16x96xf32>
    %c0_12 = arith.constant 0 : index
    %c0_13 = arith.constant 0 : index
    %28 = vector.load %arg7[%c0_12, %c0_13] : memref<16x96xf32, #tpu.memory_space<vmem>>, vector<16x96xf32>
    tpu.vector_store %arg7[%c0_12, %c0_13], %27 {strides = array<i32>} : memref<16x96xf32, #tpu.memory_space<vmem>>, vector<16x96xf32>,
    return
  }
  func.func @transform_0(%arg0: i32, %arg1: i32) -> (i32, i32) {
    %c0_i32 = arith.constant 0 : i32
    %c0_i32_0 = arith.constant 0 : i32
    return %arg0, %c0_i32 : i32, i32
  }
  func.func @transform_1(%arg0: i32, %arg1: i32) -> (i32, i32) {
    %c0_i32 = arith.constant 0 : i32
    %c0_i32_0 = arith.constant 0 : i32
    return %c0_i32, %arg1 : i32, i32
  }
  func.func @transform_2(%arg0: i32, %arg1: i32) -> (i32, i32) {
    %c0_i32 = arith.constant 0 : i32
    %c0_i32_0 = arith.constant 0 : i32
    return %c0_i32, %arg1 : i32, i32
  }
  func.func @transform_3(%arg0: i32, %arg1: i32) -> i32 {
    %c0_i32 = arith.constant 0 : i32
    %c0_i32_0 = arith.constant 0 : i32
    return %c0_i32 : i32
  }
  func.func @transform_4(%arg0: i32, %arg1: i32) -> i32 {
    %c0_i32 = arith.constant 0 : i32
    %c0_i32_0 = arith.constant 0 : i32
    return %c0_i32 : i32
  }
  func.func @transform_5(%arg0: i32, %arg1: i32) -> (i32, i32) {
    %c0_i32 = arith.constant 0 : i32
    return %arg0, %arg1 : i32, i32
  }
}

module attributes {stable_mosaic.version = 11 : i64} {
  func.func @_ln_linear_kernel(%arg0: i32, %arg1: i32, %arg2: memref<16x32xf32, #tpu.memory_space<vmem>>, %arg3: memref<32x32xf32, #tpu.memory_space<vmem>>, %arg4: memref<1x32xf32, #tpu.memory_space<vmem>>, %arg5: memref<1xf32, #tpu.memory_space<smem>>, %arg6: memref<1xf32, #tpu.memory_space<smem>>, %arg7: memref<16x32xf32, #tpu.memory_space<vmem>>) attributes {dimension_semantics = [#tpu.dimension_semantics<parallel>, #tpu.dimension_semantics<parallel>], iteration_bounds = array<i64: 1, 1>, scalar_prefetch = 0 : i64, scratch_operands = 0 : i64, tpu.core_type = #tpu.core_type<tc>, window_params = [{transform_indices = @transform_0, window_bounds = array<i64: 16, 32>}, {transform_indices = @transform_1, window_bounds = array<i64: 32, 32>}, {transform_indices = @transform_2, window_bounds = array<i64: 1, 32>}, {transform_indices = @transform_3, window_bounds = array<i64: 1>}, {transform_indices = @transform_4, window_bounds = array<i64: 1>}, {transform_indices = @transform_5, window_bounds = array<i64: 16, 32>}]} {
    %c0 = arith.constant 0 : index
    %c0_0 = arith.constant 0 : index
    %0 = vector.load %arg2[%c0, %c0_0] : memref<16x32xf32, #tpu.memory_space<vmem>>, vector<16x32xf32>
    %cst = arith.constant dense<0.000000e+00> : vector<16xf32>
    %1 = vector.multi_reduction <add>, %0, %cst [1] : vector<16x32xf32> to vector<16xf32>
    %2 = vector.shape_cast %1 : vector<16xf32> to vector<16x1xf32>
    %cst_1 = arith.constant 3.200000e+01 : f32
    %3 = vector.broadcast %cst_1 : f32 to vector<16x1xf32>
    %4 = arith.divf %2, %3 : vector<16x1xf32>
    %5 = vector.broadcast %4 : vector<16x1xf32> to vector<16x32xf32>
    %6 = arith.subf %0, %5 : vector<16x32xf32>
    %7 = arith.mulf %6, %6 : vector<16x32xf32>
    %cst_2 = arith.constant dense<0.000000e+00> : vector<16xf32>
    %8 = vector.multi_reduction <add>, %7, %cst_2 [1] : vector<16x32xf32> to vector<16xf32>
    %9 = vector.shape_cast %8 : vector<16xf32> to vector<16x1xf32>
    %cst_3 = arith.constant 3.100000e+01 : f32
    %10 = vector.broadcast %cst_3 : f32 to vector<16x1xf32>
    %11 = arith.divf %9, %10 : vector<16x1xf32>
    %12 = math.sqrt %11 : vector<16x1xf32>
    %c0_4 = arith.constant 0 : index
    %13 = memref.load %arg5[%c0_4] : memref<1xf32, #tpu.memory_space<smem>>
    %14 = vector.broadcast %13 : f32 to vector<16x32xf32>
    %15 = arith.mulf %14, %6 : vector<16x32xf32>
    %cst_5 = arith.constant 9.99999997E-7 : f32
    %16 = vector.broadcast %cst_5 : f32 to vector<16x1xf32>
    %17 = arith.addf %12, %16 : vector<16x1xf32>
    %18 = vector.broadcast %17 : vector<16x1xf32> to vector<16x32xf32>
    %19 = arith.divf %15, %18 : vector<16x32xf32>
    %c0_6 = arith.constant 0 : index
    %20 = memref.load %arg6[%c0_6] : memref<1xf32, #tpu.memory_space<smem>>
    %21 = vector.broadcast %20 : f32 to vector<16x32xf32>
    %22 = arith.addf %19, %21 : vector<16x32xf32>
    %c0_7 = arith.constant 0 : index
    %c0_8 = arith.constant 0 : index
    %23 = vector.load %arg3[%c0_7, %c0_8] : memref<32x32xf32, #tpu.memory_space<vmem>>, vector<32x32xf32>
    %cst_9 = arith.constant dense<0.000000e+00> : vector<16x32xf32>
    %24 = tpu.matmul %22, %23, %cst_9 {dimension_numbers = #tpu.dot_dimension_numbers<[1], [0], [0], [1], [0, 0, 1, 1], [], []>, precision = #tpu.contract_precision<fp32>} : vector<16x32xf32>, vector<32x32xf32>, vector<16x32xf32> -> vector<16x32xf32>
    %c0_10 = arith.constant 0 : index
    %c0_11 = arith.constant 0 : index
    %25 = vector.load %arg4[%c0_10, %c0_11] : memref<1x32xf32, #tpu.memory_space<vmem>>, vector<1x32xf32>
    %26 = vector.broadcast %25 : vector<1x32xf32> to vector<16x32xf32>
    %27 = arith.addf %24, %26 : vector<16x32xf32>
    %c0_12 = arith.constant 0 : index
    %c0_13 = arith.constant 0 : index
    %28 = vector.load %arg7[%c0_12, %c0_13] : memref<16x32xf32, #tpu.memory_space<vmem>>, vector<16x32xf32>
    tpu.vector_store %arg7[%c0_12, %c0_13], %27 {strides = array<i32>} : memref<16x32xf32, #tpu.memory_space<vmem>>, vector<16x32xf32>,
    return
  }
  func.func @transform_0(%arg0: i32, %arg1: i32) -> (i32, i32) {
    %c0_i32 = arith.constant 0 : i32
    %c0_i32_0 = arith.constant 0 : i32
    return %arg0, %c0_i32 : i32, i32
  }
  func.func @transform_1(%arg0: i32, %arg1: i32) -> (i32, i32) {
    %c0_i32 = arith.constant 0 : i32
    %c0_i32_0 = arith.constant 0 : i32
    return %c0_i32, %arg1 : i32, i32
  }
  func.func @transform_2(%arg0: i32, %arg1: i32) -> (i32, i32) {
    %c0_i32 = arith.constant 0 : i32
    %c0_i32_0 = arith.constant 0 : i32
    return %c0_i32, %arg1 : i32, i32
  }
  func.func @transform_3(%arg0: i32, %arg1: i32) -> i32 {
    %c0_i32 = arith.constant 0 : i32
    %c0_i32_0 = arith.constant 0 : i32
    return %c0_i32 : i32
  }
  func.func @transform_4(%arg0: i32, %arg1: i32) -> i32 {
    %c0_i32 = arith.constant 0 : i32
    %c0_i32_0 = arith.constant 0 : i32
    return %c0_i32 : i32
  }
  func.func @transform_5(%arg0: i32, %arg1: i32) -> (i32, i32) {
    %c0_i32 = arith.constant 0 : i32
    return %arg0, %arg1 : i32, i32
  }
}

module attributes {stable_mosaic.version = 11 : i64} {
  func.func @_linear_residual_kernel(%arg0: i32, %arg1: i32, %arg2: i32, %arg3: memref<16x32xf32, #tpu.memory_space<vmem>>, %arg4: memref<32x32xf32, #tpu.memory_space<vmem>>, %arg5: memref<1x32xf32, #tpu.memory_space<vmem>>, %arg6: memref<16x32xf32, #tpu.memory_space<vmem>>, %arg7: memref<16x32xf32, #tpu.memory_space<vmem>>) attributes {dimension_semantics = [#tpu.dimension_semantics<parallel>, #tpu.dimension_semantics<parallel>, #tpu.dimension_semantics<arbitrary>], iteration_bounds = array<i64: 1, 1, 1>, scalar_prefetch = 0 : i64, scratch_operands = 0 : i64, tpu.core_type = #tpu.core_type<tc>, window_params = [{transform_indices = @transform_0, window_bounds = array<i64: 16, 32>}, {transform_indices = @transform_1, window_bounds = array<i64: 32, 32>}, {transform_indices = @transform_2, window_bounds = array<i64: 1, 32>}, {transform_indices = @transform_3, window_bounds = array<i64: 16, 32>}, {transform_indices = @transform_4, window_bounds = array<i64: 16, 32>}]} {
    %c0_i32 = arith.constant 0 : i32
    %0 = arith.cmpi eq, %arg2, %c0_i32 : i32
    %1 = arith.extui %0 : i1 to i32
    %c0_i32_0 = arith.constant 0 : i32
    %2 = arith.cmpi ne, %1, %c0_i32_0 : i32
    scf.if %2 {
      %cst_10 = arith.constant 0.000000e+00 : f32
      %12 = vector.broadcast %cst_10 : f32 to vector<16x32xf32>
      %c0_11 = arith.constant 0 : index
      %c0_12 = arith.constant 0 : index
      %13 = vector.load %arg7[%c0_11, %c0_12] : memref<16x32xf32, #tpu.memory_space<vmem>>, vector<16x32xf32>
      tpu.vector_store %arg7[%c0_11, %c0_12], %12 {strides = array<i32>} : memref<16x32xf32, #tpu.memory_space<vmem>>, vector<16x32xf32>,
    } else {
    }
    %c0 = arith.constant 0 : index
    %c0_1 = arith.constant 0 : index
    %3 = vector.load %arg7[%c0, %c0_1] : memref<16x32xf32, #tpu.memory_space<vmem>>, vector<16x32xf32>
    %c0_2 = arith.constant 0 : index
    %c0_3 = arith.constant 0 : index
    %4 = vector.load %arg3[%c0_2, %c0_3] : memref<16x32xf32, #tpu.memory_space<vmem>>, vector<16x32xf32>
    %c0_4 = arith.constant 0 : index
    %c0_5 = arith.constant 0 : index
    %5 = vector.load %arg4[%c0_4, %c0_5] : memref<32x32xf32, #tpu.memory_space<vmem>>, vector<32x32xf32>
    %cst = arith.constant dense<0.000000e+00> : vector<16x32xf32>
    %6 = tpu.matmul %4, %5, %cst {dimension_numbers = #tpu.dot_dimension_numbers<[1], [0], [0], [1], [0, 0, 1, 1], [], []>, precision = #tpu.contract_precision<fp32>} : vector<16x32xf32>, vector<32x32xf32>, vector<16x32xf32> -> vector<16x32xf32>
    %7 = arith.addf %3, %6 : vector<16x32xf32>
    %c0_6 = arith.constant 0 : index
    %c0_7 = arith.constant 0 : index
    %8 = vector.load %arg7[%c0_6, %c0_7] : memref<16x32xf32, #tpu.memory_space<vmem>>, vector<16x32xf32>
    tpu.vector_store %arg7[%c0_6, %c0_7], %7 {strides = array<i32>} : memref<16x32xf32, #tpu.memory_space<vmem>>, vector<16x32xf32>,
    %c0_i32_8 = arith.constant 0 : i32
    %9 = arith.cmpi eq, %arg2, %c0_i32_8 : i32
    %10 = arith.extui %9 : i1 to i32
    %c0_i32_9 = arith.constant 0 : i32
    %11 = arith.cmpi ne, %10, %c0_i32_9 : i32
    scf.if %11 {
      %c0_10 = arith.constant 0 : index
      %c0_11 = arith.constant 0 : index
      %12 = vector.load %arg7[%c0_10, %c0_11] : memref<16x32xf32, #tpu.memory_space<vmem>>, vector<16x32xf32>
      %c0_12 = arith.constant 0 : index
      %c0_13 = arith.constant 0 : index
      %13 = vector.load %arg5[%c0_12, %c0_13] : memref<1x32xf32, #tpu.memory_space<vmem>>, vector<1x32xf32>
      %14 = vector.broadcast %13 : vector<1x32xf32> to vector<16x32xf32>
      %15 = arith.addf %12, %14 : vector<16x32xf32>
      %c0_14 = arith.constant 0 : index
      %c0_15 = arith.constant 0 : index
      %16 = vector.load %arg6[%c0_14, %c0_15] : memref<16x32xf32, #tpu.memory_space<vmem>>, vector<16x32xf32>
      %17 = arith.addf %15, %16 : vector<16x32xf32>
      %c0_16 = arith.constant 0 : index
      %c0_17 = arith.constant 0 : index
      %18 = vector.load %arg7[%c0_16, %c0_17] : memref<16x32xf32, #tpu.memory_space<vmem>>, vector<16x32xf32>
      tpu.vector_store %arg7[%c0_16, %c0_17], %17 {strides = array<i32>} : memref<16x32xf32, #tpu.memory_space<vmem>>, vector<16x32xf32>,
    } else {
    }
    return
  }
  func.func @transform_0(%arg0: i32, %arg1: i32, %arg2: i32) -> (i32, i32) {
    %c0_i32 = arith.constant 0 : i32
    return %arg0, %arg2 : i32, i32
  }
  func.func @transform_1(%arg0: i32, %arg1: i32, %arg2: i32) -> (i32, i32) {
    %c0_i32 = arith.constant 0 : i32
    return %arg2, %arg1 : i32, i32
  }
  func.func @transform_2(%arg0: i32, %arg1: i32, %arg2: i32) -> (i32, i32) {
    %c0_i32 = arith.constant 0 : i32
    %c0_i32_0 = arith.constant 0 : i32
    return %c0_i32, %arg1 : i32, i32
  }
  func.func @transform_3(%arg0: i32, %arg1: i32, %arg2: i32) -> (i32, i32) {
    %c0_i32 = arith.constant 0 : i32
    return %arg0, %arg1 : i32, i32
  }
  func.func @transform_4(%arg0: i32, %arg1: i32, %arg2: i32) -> (i32, i32) {
    %c0_i32 = arith.constant 0 : i32
    return %arg0, %arg1 : i32, i32
  }
}

module attributes {stable_mosaic.version = 11 : i64} {
  func.func @_attention_kernel(%arg0: i32, %arg1: i32, %arg2: memref<1x8x96xf32, #tpu.memory_space<vmem>>, %arg3: memref<1x8x96xf32, #tpu.memory_space<vmem>>, %arg4: memref<1x8x8xi32, #tpu.memory_space<vmem>>, %arg5: memref<1x8x32xf32, #tpu.memory_space<vmem>>) attributes {dimension_semantics = [#tpu.dimension_semantics<parallel>, #tpu.dimension_semantics<parallel>], iteration_bounds = array<i64: 2, 1>, scalar_prefetch = 0 : i64, scratch_operands = 0 : i64, tpu.core_type = #tpu.core_type<tc>, window_params = [{transform_indices = @transform_0, window_bounds = array<i64: 1, 8, 96>}, {transform_indices = @transform_1, window_bounds = array<i64: 1, 8, 96>}, {transform_indices = @transform_2, window_bounds = array<i64: 1, 8, 8>}, {transform_indices = @transform_3, window_bounds = array<i64: 1, 8, 32>}]} {
    %c0 = arith.constant 0 : index
    %c0_0 = arith.constant 0 : index
    %c0_1 = arith.constant 0 : index
    %0 = vector.load %arg2[%c0, %c0_0, %c0_1] : memref<1x8x96xf32, #tpu.memory_space<vmem>>, vector<1x8x96xf32>
    %1 = vector.shape_cast %0 : vector<1x8x96xf32> to vector<8x96xf32>
    %c0_2 = arith.constant 0 : index
    %c0_3 = arith.constant 0 : index
    %c0_4 = arith.constant 0 : index
    %2 = vector.load %arg3[%c0_2, %c0_3, %c0_4] : memref<1x8x96xf32, #tpu.memory_space<vmem>>, vector<1x8x96xf32>
    %3 = vector.shape_cast %2 : vector<1x8x96xf32> to vector<8x96xf32>
    %c0_5 = arith.constant 0 : index
    %c0_6 = arith.constant 0 : index
    %c0_7 = arith.constant 0 : index
    %4 = vector.load %arg4[%c0_5, %c0_6, %c0_7] : memref<1x8x8xi32, #tpu.memory_space<vmem>>, vector<1x8x8xi32>
    %5 = vector.shape_cast %4 : vector<1x8x8xi32> to vector<8x8xi32>
    %6 = vector.extract_strided_slice %1 {offsets = [0, 0], sizes = [8, 8], strides = [1, 1]} : vector<8x96xf32> to vector<8x8xf32>
    %7 = vector.extract_strided_slice %3 {offsets = [0, 32], sizes = [8, 8], strides = [1, 1]} : vector<8x96xf32> to vector<8x8xf32>
    %8 = vector.extract_strided_slice %3 {offsets = [0, 64], sizes = [8, 8], strides = [1, 1]} : vector<8x96xf32> to vector<8x8xf32>
    %cst = arith.constant 0.353553385 : f32
    %9 = vector.broadcast %cst : f32 to vector<8x8xf32>
    %10 = arith.mulf %6, %9 : vector<8x8xf32>
    %cst_8 = arith.constant dense<0.000000e+00> : vector<8x8xf32>
    %11 = tpu.matmul %10, %7, %cst_8 {dimension_numbers = #tpu.dot_dimension_numbers<[1], [1], [0], [0], [0, 0, 1, 0], [], []>, precision = #tpu.contract_precision<fp32>} : vector<8x8xf32>, vector<8x8xf32>, vector<8x8xf32> -> vector<8x8xf32>
    %c0_i32 = arith.constant 0 : i32
    %12 = vector.broadcast %c0_i32 : i32 to vector<8x8xi32>
    %13 = arith.cmpi eq, %5, %12 : vector<8x8xi32>
    %cst_9 = arith.constant -1.000000e+09 : f32
    %14 = vector.broadcast %cst_9 : f32 to vector<8x8xf32>
    %15 = arith.select %13, %14, %11 : vector<8x8xi1>, vector<8x8xf32>
    %cst_10 = arith.constant dense<0xFF800000> : vector<8xf32>
    %16 = vector.multi_reduction <maximumf>, %15, %cst_10 [1] : vector<8x8xf32> to vector<8xf32>
    %17 = vector.shape_cast %16 : vector<8xf32> to vector<8x1xf32>
    %18 = vector.broadcast %17 : vector<8x1xf32> to vector<8x8xf32>
    %19 = arith.subf %15, %18 : vector<8x8xf32>
    %20 = math.exp %19 : vector<8x8xf32>
    %cst_11 = arith.constant dense<0.000000e+00> : vector<8xf32>
    %21 = vector.multi_reduction <add>, %20, %cst_11 [1] : vector<8x8xf32> to vector<8xf32>
    %22 = vector.shape_cast %21 : vector<8xf32> to vector<8x1xf32>
    %23 = tpu.reciprocal %22 {approx = true} : vector<8x1xf32> -> vector<8x1xf32>
    %24 = vector.broadcast %23 : vector<8x1xf32> to vector<8x8xf32>
    %25 = arith.mulf %20, %24 : vector<8x8xf32>
    %cst_12 = arith.constant dense<0.000000e+00> : vector<8x8xf32>
    %26 = tpu.matmul %25, %8, %cst_12 {dimension_numbers = #tpu.dot_dimension_numbers<[1], [0], [0], [1], [0, 0, 1, 1], [], []>, precision = #tpu.contract_precision<fp32>} : vector<8x8xf32>, vector<8x8xf32>, vector<8x8xf32> -> vector<8x8xf32>
    %27 = vector.extract_strided_slice %1 {offsets = [0, 8], sizes = [8, 8], strides = [1, 1]} : vector<8x96xf32> to vector<8x8xf32>
    %28 = vector.extract_strided_slice %3 {offsets = [0, 40], sizes = [8, 8], strides = [1, 1]} : vector<8x96xf32> to vector<8x8xf32>
    %29 = vector.extract_strided_slice %3 {offsets = [0, 72], sizes = [8, 8], strides = [1, 1]} : vector<8x96xf32> to vector<8x8xf32>
    %cst_13 = arith.constant 0.353553385 : f32
    %30 = vector.broadcast %cst_13 : f32 to vector<8x8xf32>
    %31 = arith.mulf %27, %30 : vector<8x8xf32>
    %cst_14 = arith.constant dense<0.000000e+00> : vector<8x8xf32>
    %32 = tpu.matmul %31, %28, %cst_14 {dimension_numbers = #tpu.dot_dimension_numbers<[1], [1], [0], [0], [0, 0, 1, 0], [], []>, precision = #tpu.contract_precision<fp32>} : vector<8x8xf32>, vector<8x8xf32>, vector<8x8xf32> -> vector<8x8xf32>
    %c0_i32_15 = arith.constant 0 : i32
    %33 = vector.broadcast %c0_i32_15 : i32 to vector<8x8xi32>
    %34 = arith.cmpi eq, %5, %33 : vector<8x8xi32>
    %cst_16 = arith.constant -1.000000e+09 : f32
    %35 = vector.broadcast %cst_16 : f32 to vector<8x8xf32>
    %36 = arith.select %34, %35, %32 : vector<8x8xi1>, vector<8x8xf32>
    %cst_17 = arith.constant dense<0xFF800000> : vector<8xf32>
    %37 = vector.multi_reduction <maximumf>, %36, %cst_17 [1] : vector<8x8xf32> to vector<8xf32>
    %38 = vector.shape_cast %37 : vector<8xf32> to vector<8x1xf32>
    %39 = vector.broadcast %38 : vector<8x1xf32> to vector<8x8xf32>
    %40 = arith.subf %36, %39 : vector<8x8xf32>
    %41 = math.exp %40 : vector<8x8xf32>
    %cst_18 = arith.constant dense<0.000000e+00> : vector<8xf32>
    %42 = vector.multi_reduction <add>, %41, %cst_18 [1] : vector<8x8xf32> to vector<8xf32>
    %43 = vector.shape_cast %42 : vector<8xf32> to vector<8x1xf32>
    %44 = tpu.reciprocal %43 {approx = true} : vector<8x1xf32> -> vector<8x1xf32>
    %45 = vector.broadcast %44 : vector<8x1xf32> to vector<8x8xf32>
    %46 = arith.mulf %41, %45 : vector<8x8xf32>
    %cst_19 = arith.constant dense<0.000000e+00> : vector<8x8xf32>
    %47 = tpu.matmul %46, %29, %cst_19 {dimension_numbers = #tpu.dot_dimension_numbers<[1], [0], [0], [1], [0, 0, 1, 1], [], []>, precision = #tpu.contract_precision<fp32>} : vector<8x8xf32>, vector<8x8xf32>, vector<8x8xf32> -> vector<8x8xf32>
    %48 = vector.extract_strided_slice %1 {offsets = [0, 16], sizes = [8, 8], strides = [1, 1]} : vector<8x96xf32> to vector<8x8xf32>
    %49 = vector.extract_strided_slice %3 {offsets = [0, 48], sizes = [8, 8], strides = [1, 1]} : vector<8x96xf32> to vector<8x8xf32>
    %50 = vector.extract_strided_slice %3 {offsets = [0, 80], sizes = [8, 8], strides = [1, 1]} : vector<8x96xf32> to vector<8x8xf32>
    %cst_20 = arith.constant 0.353553385 : f32
    %51 = vector.broadcast %cst_20 : f32 to vector<8x8xf32>
    %52 = arith.mulf %48, %51 : vector<8x8xf32>
    %cst_21 = arith.constant dense<0.000000e+00> : vector<8x8xf32>
    %53 = tpu.matmul %52, %49, %cst_21 {dimension_numbers = #tpu.dot_dimension_numbers<[1], [1], [0], [0], [0, 0, 1, 0], [], []>, precision = #tpu.contract_precision<fp32>} : vector<8x8xf32>, vector<8x8xf32>, vector<8x8xf32> -> vector<8x8xf32>
    %c0_i32_22 = arith.constant 0 : i32
    %54 = vector.broadcast %c0_i32_22 : i32 to vector<8x8xi32>
    %55 = arith.cmpi eq, %5, %54 : vector<8x8xi32>
    %cst_23 = arith.constant -1.000000e+09 : f32
    %56 = vector.broadcast %cst_23 : f32 to vector<8x8xf32>
    %57 = arith.select %55, %56, %53 : vector<8x8xi1>, vector<8x8xf32>
    %cst_24 = arith.constant dense<0xFF800000> : vector<8xf32>
    %58 = vector.multi_reduction <maximumf>, %57, %cst_24 [1] : vector<8x8xf32> to vector<8xf32>
    %59 = vector.shape_cast %58 : vector<8xf32> to vector<8x1xf32>
    %60 = vector.broadcast %59 : vector<8x1xf32> to vector<8x8xf32>
    %61 = arith.subf %57, %60 : vector<8x8xf32>
    %62 = math.exp %61 : vector<8x8xf32>
    %cst_25 = arith.constant dense<0.000000e+00> : vector<8xf32>
    %63 = vector.multi_reduction <add>, %62, %cst_25 [1] : vector<8x8xf32> to vector<8xf32>
    %64 = vector.shape_cast %63 : vector<8xf32> to vector<8x1xf32>
    %65 = tpu.reciprocal %64 {approx = true} : vector<8x1xf32> -> vector<8x1xf32>
    %66 = vector.broadcast %65 : vector<8x1xf32> to vector<8x8xf32>
    %67 = arith.mulf %62, %66 : vector<8x8xf32>
    %cst_26 = arith.constant dense<0.000000e+00> : vector<8x8xf32>
    %68 = tpu.matmul %67, %50, %cst_26 {dimension_numbers = #tpu.dot_dimension_numbers<[1], [0], [0], [1], [0, 0, 1, 1], [], []>, precision = #tpu.contract_precision<fp32>} : vector<8x8xf32>, vector<8x8xf32>, vector<8x8xf32> -> vector<8x8xf32>
    %69 = vector.extract_strided_slice %1 {offsets = [0, 24], sizes = [8, 8], strides = [1, 1]} : vector<8x96xf32> to vector<8x8xf32>
    %70 = vector.extract_strided_slice %3 {offsets = [0, 56], sizes = [8, 8], strides = [1, 1]} : vector<8x96xf32> to vector<8x8xf32>
    %71 = vector.extract_strided_slice %3 {offsets = [0, 88], sizes = [8, 8], strides = [1, 1]} : vector<8x96xf32> to vector<8x8xf32>
    %cst_27 = arith.constant 0.353553385 : f32
    %72 = vector.broadcast %cst_27 : f32 to vector<8x8xf32>
    %73 = arith.mulf %69, %72 : vector<8x8xf32>
    %cst_28 = arith.constant dense<0.000000e+00> : vector<8x8xf32>
    %74 = tpu.matmul %73, %70, %cst_28 {dimension_numbers = #tpu.dot_dimension_numbers<[1], [1], [0], [0], [0, 0, 1, 0], [], []>, precision = #tpu.contract_precision<fp32>} : vector<8x8xf32>, vector<8x8xf32>, vector<8x8xf32> -> vector<8x8xf32>
    %c0_i32_29 = arith.constant 0 : i32
    %75 = vector.broadcast %c0_i32_29 : i32 to vector<8x8xi32>
    %76 = arith.cmpi eq, %5, %75 : vector<8x8xi32>
    %cst_30 = arith.constant -1.000000e+09 : f32
    %77 = vector.broadcast %cst_30 : f32 to vector<8x8xf32>
    %78 = arith.select %76, %77, %74 : vector<8x8xi1>, vector<8x8xf32>
    %cst_31 = arith.constant dense<0xFF800000> : vector<8xf32>
    %79 = vector.multi_reduction <maximumf>, %78, %cst_31 [1] : vector<8x8xf32> to vector<8xf32>
    %80 = vector.shape_cast %79 : vector<8xf32> to vector<8x1xf32>
    %81 = vector.broadcast %80 : vector<8x1xf32> to vector<8x8xf32>
    %82 = arith.subf %78, %81 : vector<8x8xf32>
    %83 = math.exp %82 : vector<8x8xf32>
    %cst_32 = arith.constant dense<0.000000e+00> : vector<8xf32>
    %84 = vector.multi_reduction <add>, %83, %cst_32 [1] : vector<8x8xf32> to vector<8xf32>
    %85 = vector.shape_cast %84 : vector<8xf32> to vector<8x1xf32>
    %86 = tpu.reciprocal %85 {approx = true} : vector<8x1xf32> -> vector<8x1xf32>
    %87 = vector.broadcast %86 : vector<8x1xf32> to vector<8x8xf32>
    %88 = arith.mulf %83, %87 : vector<8x8xf32>
    %cst_33 = arith.constant dense<0.000000e+00> : vector<8x8xf32>
    %89 = tpu.matmul %88, %71, %cst_33 {dimension_numbers = #tpu.dot_dimension_numbers<[1], [0], [0], [1], [0, 0, 1, 1], [], []>, precision = #tpu.contract_precision<fp32>} : vector<8x8xf32>, vector<8x8xf32>, vector<8x8xf32> -> vector<8x8xf32>
    %90 = tpu.concatenate %26, %47, %68, %89 in 1 : vector<8x8xf32>, vector<8x8xf32>, vector<8x8xf32>, vector<8x8xf32> -> vector<8x32xf32>
    %c0_34 = arith.constant 0 : index
    %c0_35 = arith.constant 0 : index
    %c0_36 = arith.constant 0 : index
    %91 = vector.load %arg5[%c0_34, %c0_35, %c0_36] : memref<1x8x32xf32, #tpu.memory_space<vmem>>, vector<1x8x32xf32>
    %92 = vector.shape_cast %91 : vector<1x8x32xf32> to vector<8x32xf32>
    %93 = vector.shape_cast %90 : vector<8x32xf32> to vector<1x8x32xf32>
    tpu.vector_store %arg5[%c0_34, %c0_35, %c0_36], %93 {strides = array<i32>} : memref<1x8x32xf32, #tpu.memory_space<vmem>>, vector<1x8x32xf32>,
    return
  }
  func.func @transform_0(%arg0: i32, %arg1: i32) -> (i32, i32, i32) {
    %c0_i32 = arith.constant 0 : i32
    %c0_i32_0 = arith.constant 0 : i32
    return %arg0, %arg1, %c0_i32 : i32, i32, i32
  }
  func.func @transform_1(%arg0: i32, %arg1: i32) -> (i32, i32, i32) {
    %c0_i32 = arith.constant 0 : i32
    %c0_i32_0 = arith.constant 0 : i32
    %c0_i32_1 = arith.constant 0 : i32
    return %arg0, %c0_i32, %c0_i32_0 : i32, i32, i32
  }
  func.func @transform_2(%arg0: i32, %arg1: i32) -> (i32, i32, i32) {
    %c0_i32 = arith.constant 0 : i32
    %0 = arith.muli %arg0, %c0_i32 : i32
    %c1_i32 = arith.constant 1 : i32
    %1 = arith.muli %arg1, %c1_i32 : i32
    %c0_i32_0 = arith.constant 0 : i32
    %c0_i32_1 = arith.constant 0 : i32
    return %0, %1, %c0_i32_0 : i32, i32, i32
  }
  func.func @transform_3(%arg0: i32, %arg1: i32) -> (i32, i32, i32) {
    %c0_i32 = arith.constant 0 : i32
    %c0_i32_0 = arith.constant 0 : i32
    return %arg0, %arg1, %c0_i32 : i32, i32, i32
  }
}

module attributes {stable_mosaic.version = 11 : i64} {
  func.func @_linear_kernel(%arg0: i32, %arg1: i32, %arg2: i32, %arg3: memref<16x32xf32, #tpu.memory_space<vmem>>, %arg4: memref<32x64xf32, #tpu.memory_space<vmem>>, %arg5: memref<1x64xf32, #tpu.memory_space<vmem>>, %arg6: memref<16x64xf32, #tpu.memory_space<vmem>>) attributes {dimension_semantics = [#tpu.dimension_semantics<parallel>, #tpu.dimension_semantics<parallel>, #tpu.dimension_semantics<arbitrary>], iteration_bounds = array<i64: 1, 1, 1>, scalar_prefetch = 0 : i64, scratch_operands = 0 : i64, tpu.core_type = #tpu.core_type<tc>, window_params = [{transform_indices = @transform_0, window_bounds = array<i64: 16, 32>}, {transform_indices = @transform_1, window_bounds = array<i64: 32, 64>}, {transform_indices = @transform_2, window_bounds = array<i64: 1, 64>}, {transform_indices = @transform_3, window_bounds = array<i64: 16, 64>}]} {
    %c0_i32 = arith.constant 0 : i32
    %0 = arith.cmpi eq, %arg2, %c0_i32 : i32
    %1 = arith.extui %0 : i1 to i32
    %c0_i32_0 = arith.constant 0 : i32
    %2 = arith.cmpi ne, %1, %c0_i32_0 : i32
    scf.if %2 {
      %cst_10 = arith.constant 0.000000e+00 : f32
      %12 = vector.broadcast %cst_10 : f32 to vector<16x64xf32>
      %c0_11 = arith.constant 0 : index
      %c0_12 = arith.constant 0 : index
      %13 = vector.load %arg6[%c0_11, %c0_12] : memref<16x64xf32, #tpu.memory_space<vmem>>, vector<16x64xf32>
      tpu.vector_store %arg6[%c0_11, %c0_12], %12 {strides = array<i32>} : memref<16x64xf32, #tpu.memory_space<vmem>>, vector<16x64xf32>,
    } else {
    }
    %c0 = arith.constant 0 : index
    %c0_1 = arith.constant 0 : index
    %3 = vector.load %arg6[%c0, %c0_1] : memref<16x64xf32, #tpu.memory_space<vmem>>, vector<16x64xf32>
    %c0_2 = arith.constant 0 : index
    %c0_3 = arith.constant 0 : index
    %4 = vector.load %arg3[%c0_2, %c0_3] : memref<16x32xf32, #tpu.memory_space<vmem>>, vector<16x32xf32>
    %c0_4 = arith.constant 0 : index
    %c0_5 = arith.constant 0 : index
    %5 = vector.load %arg4[%c0_4, %c0_5] : memref<32x64xf32, #tpu.memory_space<vmem>>, vector<32x64xf32>
    %cst = arith.constant dense<0.000000e+00> : vector<16x64xf32>
    %6 = tpu.matmul %4, %5, %cst {dimension_numbers = #tpu.dot_dimension_numbers<[1], [0], [0], [1], [0, 0, 1, 1], [], []>, precision = #tpu.contract_precision<fp32>} : vector<16x32xf32>, vector<32x64xf32>, vector<16x64xf32> -> vector<16x64xf32>
    %7 = arith.addf %3, %6 : vector<16x64xf32>
    %c0_6 = arith.constant 0 : index
    %c0_7 = arith.constant 0 : index
    %8 = vector.load %arg6[%c0_6, %c0_7] : memref<16x64xf32, #tpu.memory_space<vmem>>, vector<16x64xf32>
    tpu.vector_store %arg6[%c0_6, %c0_7], %7 {strides = array<i32>} : memref<16x64xf32, #tpu.memory_space<vmem>>, vector<16x64xf32>,
    %c0_i32_8 = arith.constant 0 : i32
    %9 = arith.cmpi eq, %arg2, %c0_i32_8 : i32
    %10 = arith.extui %9 : i1 to i32
    %c0_i32_9 = arith.constant 0 : i32
    %11 = arith.cmpi ne, %10, %c0_i32_9 : i32
    scf.if %11 {
      %c0_10 = arith.constant 0 : index
      %c0_11 = arith.constant 0 : index
      %12 = vector.load %arg6[%c0_10, %c0_11] : memref<16x64xf32, #tpu.memory_space<vmem>>, vector<16x64xf32>
      %c0_12 = arith.constant 0 : index
      %c0_13 = arith.constant 0 : index
      %13 = vector.load %arg5[%c0_12, %c0_13] : memref<1x64xf32, #tpu.memory_space<vmem>>, vector<1x64xf32>
      %14 = vector.broadcast %13 : vector<1x64xf32> to vector<16x64xf32>
      %15 = arith.addf %12, %14 : vector<16x64xf32>
      %c0_14 = arith.constant 0 : index
      %c0_15 = arith.constant 0 : index
      %16 = vector.load %arg6[%c0_14, %c0_15] : memref<16x64xf32, #tpu.memory_space<vmem>>, vector<16x64xf32>
      tpu.vector_store %arg6[%c0_14, %c0_15], %15 {strides = array<i32>} : memref<16x64xf32, #tpu.memory_space<vmem>>, vector<16x64xf32>,
    } else {
    }
    return
  }
  func.func @transform_0(%arg0: i32, %arg1: i32, %arg2: i32) -> (i32, i32) {
    %c0_i32 = arith.constant 0 : i32
    return %arg0, %arg2 : i32, i32
  }
  func.func @transform_1(%arg0: i32, %arg1: i32, %arg2: i32) -> (i32, i32) {
    %c0_i32 = arith.constant 0 : i32
    return %arg2, %arg1 : i32, i32
  }
  func.func @transform_2(%arg0: i32, %arg1: i32, %arg2: i32) -> (i32, i32) {
    %c0_i32 = arith.constant 0 : i32
    %c0_i32_0 = arith.constant 0 : i32
    return %c0_i32, %arg1 : i32, i32
  }
  func.func @transform_3(%arg0: i32, %arg1: i32, %arg2: i32) -> (i32, i32) {
    %c0_i32 = arith.constant 0 : i32
    return %arg0, %arg1 : i32, i32
  }
}

module attributes {stable_mosaic.version = 11 : i64} {
  func.func @_linear_residual_kernel(%arg0: i32, %arg1: i32, %arg2: i32, %arg3: memref<16x32xf32, #tpu.memory_space<vmem>>, %arg4: memref<32x32xf32, #tpu.memory_space<vmem>>, %arg5: memref<1x32xf32, #tpu.memory_space<vmem>>, %arg6: memref<16x32xf32, #tpu.memory_space<vmem>>, %arg7: memref<16x32xf32, #tpu.memory_space<vmem>>) attributes {dimension_semantics = [#tpu.dimension_semantics<parallel>, #tpu.dimension_semantics<parallel>, #tpu.dimension_semantics<arbitrary>], iteration_bounds = array<i64: 1, 1, 1>, scalar_prefetch = 0 : i64, scratch_operands = 0 : i64, tpu.core_type = #tpu.core_type<tc>, window_params = [{transform_indices = @transform_0, window_bounds = array<i64: 16, 32>}, {transform_indices = @transform_1, window_bounds = array<i64: 32, 32>}, {transform_indices = @transform_2, window_bounds = array<i64: 1, 32>}, {transform_indices = @transform_3, window_bounds = array<i64: 16, 32>}, {transform_indices = @transform_4, window_bounds = array<i64: 16, 32>}]} {
    %c0_i32 = arith.constant 0 : i32
    %0 = arith.cmpi eq, %arg2, %c0_i32 : i32
    %1 = arith.extui %0 : i1 to i32
    %c0_i32_0 = arith.constant 0 : i32
    %2 = arith.cmpi ne, %1, %c0_i32_0 : i32
    scf.if %2 {
      %cst_10 = arith.constant 0.000000e+00 : f32
      %12 = vector.broadcast %cst_10 : f32 to vector<16x32xf32>
      %c0_11 = arith.constant 0 : index
      %c0_12 = arith.constant 0 : index
      %13 = vector.load %arg7[%c0_11, %c0_12] : memref<16x32xf32, #tpu.memory_space<vmem>>, vector<16x32xf32>
      tpu.vector_store %arg7[%c0_11, %c0_12], %12 {strides = array<i32>} : memref<16x32xf32, #tpu.memory_space<vmem>>, vector<16x32xf32>,
    } else {
    }
    %c0 = arith.constant 0 : index
    %c0_1 = arith.constant 0 : index
    %3 = vector.load %arg7[%c0, %c0_1] : memref<16x32xf32, #tpu.memory_space<vmem>>, vector<16x32xf32>
    %c0_2 = arith.constant 0 : index
    %c0_3 = arith.constant 0 : index
    %4 = vector.load %arg3[%c0_2, %c0_3] : memref<16x32xf32, #tpu.memory_space<vmem>>, vector<16x32xf32>
    %c0_4 = arith.constant 0 : index
    %c0_5 = arith.constant 0 : index
    %5 = vector.load %arg4[%c0_4, %c0_5] : memref<32x32xf32, #tpu.memory_space<vmem>>, vector<32x32xf32>
    %cst = arith.constant dense<0.000000e+00> : vector<16x32xf32>
    %6 = tpu.matmul %4, %5, %cst {dimension_numbers = #tpu.dot_dimension_numbers<[1], [0], [0], [1], [0, 0, 1, 1], [], []>, precision = #tpu.contract_precision<fp32>} : vector<16x32xf32>, vector<32x32xf32>, vector<16x32xf32> -> vector<16x32xf32>
    %7 = arith.addf %3, %6 : vector<16x32xf32>
    %c0_6 = arith.constant 0 : index
    %c0_7 = arith.constant 0 : index
    %8 = vector.load %arg7[%c0_6, %c0_7] : memref<16x32xf32, #tpu.memory_space<vmem>>, vector<16x32xf32>
    tpu.vector_store %arg7[%c0_6, %c0_7], %7 {strides = array<i32>} : memref<16x32xf32, #tpu.memory_space<vmem>>, vector<16x32xf32>,
    %c0_i32_8 = arith.constant 0 : i32
    %9 = arith.cmpi eq, %arg2, %c0_i32_8 : i32
    %10 = arith.extui %9 : i1 to i32
    %c0_i32_9 = arith.constant 0 : i32
    %11 = arith.cmpi ne, %10, %c0_i32_9 : i32
    scf.if %11 {
      %c0_10 = arith.constant 0 : index
      %c0_11 = arith.constant 0 : index
      %12 = vector.load %arg7[%c0_10, %c0_11] : memref<16x32xf32, #tpu.memory_space<vmem>>, vector<16x32xf32>
      %c0_12 = arith.constant 0 : index
      %c0_13 = arith.constant 0 : index
      %13 = vector.load %arg5[%c0_12, %c0_13] : memref<1x32xf32, #tpu.memory_space<vmem>>, vector<1x32xf32>
      %14 = vector.broadcast %13 : vector<1x32xf32> to vector<16x32xf32>
      %15 = arith.addf %12, %14 : vector<16x32xf32>
      %c0_14 = arith.constant 0 : index
      %c0_15 = arith.constant 0 : index
      %16 = vector.load %arg6[%c0_14, %c0_15] : memref<16x32xf32, #tpu.memory_space<vmem>>, vector<16x32xf32>
      %17 = arith.addf %15, %16 : vector<16x32xf32>
      %c0_16 = arith.constant 0 : index
      %c0_17 = arith.constant 0 : index
      %18 = vector.load %arg7[%c0_16, %c0_17] : memref<16x32xf32, #tpu.memory_space<vmem>>, vector<16x32xf32>
      tpu.vector_store %arg7[%c0_16, %c0_17], %17 {strides = array<i32>} : memref<16x32xf32, #tpu.memory_space<vmem>>, vector<16x32xf32>,
    } else {
    }
    return
  }
  func.func @transform_0(%arg0: i32, %arg1: i32, %arg2: i32) -> (i32, i32) {
    %c0_i32 = arith.constant 0 : i32
    return %arg0, %arg2 : i32, i32
  }
  func.func @transform_1(%arg0: i32, %arg1: i32, %arg2: i32) -> (i32, i32) {
    %c0_i32 = arith.constant 0 : i32
    return %arg2, %arg1 : i32, i32
  }
  func.func @transform_2(%arg0: i32, %arg1: i32, %arg2: i32) -> (i32, i32) {
    %c0_i32 = arith.constant 0 : i32
    %c0_i32_0 = arith.constant 0 : i32
    return %c0_i32, %arg1 : i32, i32
  }
  func.func @transform_3(%arg0: i32, %arg1: i32, %arg2: i32) -> (i32, i32) {
    %c0_i32 = arith.constant 0 : i32
    return %arg0, %arg1 : i32, i32
  }
  func.func @transform_4(%arg0: i32, %arg1: i32, %arg2: i32) -> (i32, i32) {
    %c0_i32 = arith.constant 0 : i32
    return %arg0, %arg1 : i32, i32
  }
}

module attributes {stable_mosaic.version = 11 : i64} {
  func.func @_attention_kernel(%arg0: i32, %arg1: i32, %arg2: memref<1x8x32xf32, #tpu.memory_space<vmem>>, %arg3: memref<1x8x64xf32, #tpu.memory_space<vmem>>, %arg4: memref<1x1x8xi32, #tpu.memory_space<vmem>>, %arg5: memref<1x8x32xf32, #tpu.memory_space<vmem>>) attributes {dimension_semantics = [#tpu.dimension_semantics<parallel>, #tpu.dimension_semantics<parallel>], iteration_bounds = array<i64: 2, 1>, scalar_prefetch = 0 : i64, scratch_operands = 0 : i64, tpu.core_type = #tpu.core_type<tc>, window_params = [{transform_indices = @transform_0, window_bounds = array<i64: 1, 8, 32>}, {transform_indices = @transform_1, window_bounds = array<i64: 1, 8, 64>}, {transform_indices = @transform_2, window_bounds = array<i64: 1, 1, 8>}, {transform_indices = @transform_3, window_bounds = array<i64: 1, 8, 32>}]} {
    %c0 = arith.constant 0 : index
    %c0_0 = arith.constant 0 : index
    %c0_1 = arith.constant 0 : index
    %0 = vector.load %arg2[%c0, %c0_0, %c0_1] : memref<1x8x32xf32, #tpu.memory_space<vmem>>, vector<1x8x32xf32>
    %1 = vector.shape_cast %0 : vector<1x8x32xf32> to vector<8x32xf32>
    %c0_2 = arith.constant 0 : index
    %c0_3 = arith.constant 0 : index
    %c0_4 = arith.constant 0 : index
    %2 = vector.load %arg3[%c0_2, %c0_3, %c0_4] : memref<1x8x64xf32, #tpu.memory_space<vmem>>, vector<1x8x64xf32>
    %3 = vector.shape_cast %2 : vector<1x8x64xf32> to vector<8x64xf32>
    %c0_5 = arith.constant 0 : index
    %c0_6 = arith.constant 0 : index
    %c0_7 = arith.constant 0 : index
    %4 = vector.load %arg4[%c0_5, %c0_6, %c0_7] : memref<1x1x8xi32, #tpu.memory_space<vmem>>, vector<1x1x8xi32>
    %5 = vector.shape_cast %4 : vector<1x1x8xi32> to vector<1x8xi32>
    %6 = vector.extract_strided_slice %1 {offsets = [0, 0], sizes = [8, 8], strides = [1, 1]} : vector<8x32xf32> to vector<8x8xf32>
    %7 = vector.extract_strided_slice %3 {offsets = [0, 0], sizes = [8, 8], strides = [1, 1]} : vector<8x64xf32> to vector<8x8xf32>
    %8 = vector.extract_strided_slice %3 {offsets = [0, 32], sizes = [8, 8], strides = [1, 1]} : vector<8x64xf32> to vector<8x8xf32>
    %cst = arith.constant 0.353553385 : f32
    %9 = vector.broadcast %cst : f32 to vector<8x8xf32>
    %10 = arith.mulf %6, %9 : vector<8x8xf32>
    %cst_8 = arith.constant dense<0.000000e+00> : vector<8x8xf32>
    %11 = tpu.matmul %10, %7, %cst_8 {dimension_numbers = #tpu.dot_dimension_numbers<[1], [1], [0], [0], [0, 0, 1, 0], [], []>, precision = #tpu.contract_precision<fp32>} : vector<8x8xf32>, vector<8x8xf32>, vector<8x8xf32> -> vector<8x8xf32>
    %c0_i32 = arith.constant 0 : i32
    %12 = vector.broadcast %c0_i32 : i32 to vector<1x8xi32>
    %13 = arith.cmpi eq, %5, %12 : vector<1x8xi32>
    %cst_9 = arith.constant -1.000000e+09 : f32
    %14 = vector.shape_cast %13 : vector<1x8xi1> to vector<1x8xi1>
    %15 = vector.broadcast %14 : vector<1x8xi1> to vector<8x8xi1>
    %16 = vector.broadcast %cst_9 : f32 to vector<8x8xf32>
    %17 = arith.select %15, %16, %11 : vector<8x8xi1>, vector<8x8xf32>
    %cst_10 = arith.constant dense<0xFF800000> : vector<8xf32>
    %18 = vector.multi_reduction <maximumf>, %17, %cst_10 [1] : vector<8x8xf32> to vector<8xf32>
    %19 = vector.shape_cast %18 : vector<8xf32> to vector<8x1xf32>
    %20 = vector.broadcast %19 : vector<8x1xf32> to vector<8x8xf32>
    %21 = arith.subf %17, %20 : vector<8x8xf32>
    %22 = math.exp %21 : vector<8x8xf32>
    %cst_11 = arith.constant dense<0.000000e+00> : vector<8xf32>
    %23 = vector.multi_reduction <add>, %22, %cst_11 [1] : vector<8x8xf32> to vector<8xf32>
    %24 = vector.shape_cast %23 : vector<8xf32> to vector<8x1xf32>
    %25 = tpu.reciprocal %24 {approx = true} : vector<8x1xf32> -> vector<8x1xf32>
    %26 = vector.broadcast %25 : vector<8x1xf32> to vector<8x8xf32>
    %27 = arith.mulf %22, %26 : vector<8x8xf32>
    %cst_12 = arith.constant dense<0.000000e+00> : vector<8x8xf32>
    %28 = tpu.matmul %27, %8, %cst_12 {dimension_numbers = #tpu.dot_dimension_numbers<[1], [0], [0], [1], [0, 0, 1, 1], [], []>, precision = #tpu.contract_precision<fp32>} : vector<8x8xf32>, vector<8x8xf32>, vector<8x8xf32> -> vector<8x8xf32>
    %29 = vector.extract_strided_slice %1 {offsets = [0, 8], sizes = [8, 8], strides = [1, 1]} : vector<8x32xf32> to vector<8x8xf32>
    %30 = vector.extract_strided_slice %3 {offsets = [0, 8], sizes = [8, 8], strides = [1, 1]} : vector<8x64xf32> to vector<8x8xf32>
    %31 = vector.extract_strided_slice %3 {offsets = [0, 40], sizes = [8, 8], strides = [1, 1]} : vector<8x64xf32> to vector<8x8xf32>
    %cst_13 = arith.constant 0.353553385 : f32
    %32 = vector.broadcast %cst_13 : f32 to vector<8x8xf32>
    %33 = arith.mulf %29, %32 : vector<8x8xf32>
    %cst_14 = arith.constant dense<0.000000e+00> : vector<8x8xf32>
    %34 = tpu.matmul %33, %30, %cst_14 {dimension_numbers = #tpu.dot_dimension_numbers<[1], [1], [0], [0], [0, 0, 1, 0], [], []>, precision = #tpu.contract_precision<fp32>} : vector<8x8xf32>, vector<8x8xf32>, vector<8x8xf32> -> vector<8x8xf32>
    %c0_i32_15 = arith.constant 0 : i32
    %35 = vector.broadcast %c0_i32_15 : i32 to vector<1x8xi32>
    %36 = arith.cmpi eq, %5, %35 : vector<1x8xi32>
    %cst_16 = arith.constant -1.000000e+09 : f32
    %37 = vector.shape_cast %36 : vector<1x8xi1> to vector<1x8xi1>
    %38 = vector.broadcast %37 : vector<1x8xi1> to vector<8x8xi1>
    %39 = vector.broadcast %cst_16 : f32 to vector<8x8xf32>
    %40 = arith.select %38, %39, %34 : vector<8x8xi1>, vector<8x8xf32>
    %cst_17 = arith.constant dense<0xFF800000> : vector<8xf32>
    %41 = vector.multi_reduction <maximumf>, %40, %cst_17 [1] : vector<8x8xf32> to vector<8xf32>
    %42 = vector.shape_cast %41 : vector<8xf32> to vector<8x1xf32>
    %43 = vector.broadcast %42 : vector<8x1xf32> to vector<8x8xf32>
    %44 = arith.subf %40, %43 : vector<8x8xf32>
    %45 = math.exp %44 : vector<8x8xf32>
    %cst_18 = arith.constant dense<0.000000e+00> : vector<8xf32>
    %46 = vector.multi_reduction <add>, %45, %cst_18 [1] : vector<8x8xf32> to vector<8xf32>
    %47 = vector.shape_cast %46 : vector<8xf32> to vector<8x1xf32>
    %48 = tpu.reciprocal %47 {approx = true} : vector<8x1xf32> -> vector<8x1xf32>
    %49 = vector.broadcast %48 : vector<8x1xf32> to vector<8x8xf32>
    %50 = arith.mulf %45, %49 : vector<8x8xf32>
    %cst_19 = arith.constant dense<0.000000e+00> : vector<8x8xf32>
    %51 = tpu.matmul %50, %31, %cst_19 {dimension_numbers = #tpu.dot_dimension_numbers<[1], [0], [0], [1], [0, 0, 1, 1], [], []>, precision = #tpu.contract_precision<fp32>} : vector<8x8xf32>, vector<8x8xf32>, vector<8x8xf32> -> vector<8x8xf32>
    %52 = vector.extract_strided_slice %1 {offsets = [0, 16], sizes = [8, 8], strides = [1, 1]} : vector<8x32xf32> to vector<8x8xf32>
    %53 = vector.extract_strided_slice %3 {offsets = [0, 16], sizes = [8, 8], strides = [1, 1]} : vector<8x64xf32> to vector<8x8xf32>
    %54 = vector.extract_strided_slice %3 {offsets = [0, 48], sizes = [8, 8], strides = [1, 1]} : vector<8x64xf32> to vector<8x8xf32>
    %cst_20 = arith.constant 0.353553385 : f32
    %55 = vector.broadcast %cst_20 : f32 to vector<8x8xf32>
    %56 = arith.mulf %52, %55 : vector<8x8xf32>
    %cst_21 = arith.constant dense<0.000000e+00> : vector<8x8xf32>
    %57 = tpu.matmul %56, %53, %cst_21 {dimension_numbers = #tpu.dot_dimension_numbers<[1], [1], [0], [0], [0, 0, 1, 0], [], []>, precision = #tpu.contract_precision<fp32>} : vector<8x8xf32>, vector<8x8xf32>, vector<8x8xf32> -> vector<8x8xf32>
    %c0_i32_22 = arith.constant 0 : i32
    %58 = vector.broadcast %c0_i32_22 : i32 to vector<1x8xi32>
    %59 = arith.cmpi eq, %5, %58 : vector<1x8xi32>
    %cst_23 = arith.constant -1.000000e+09 : f32
    %60 = vector.shape_cast %59 : vector<1x8xi1> to vector<1x8xi1>
    %61 = vector.broadcast %60 : vector<1x8xi1> to vector<8x8xi1>
    %62 = vector.broadcast %cst_23 : f32 to vector<8x8xf32>
    %63 = arith.select %61, %62, %57 : vector<8x8xi1>, vector<8x8xf32>
    %cst_24 = arith.constant dense<0xFF800000> : vector<8xf32>
    %64 = vector.multi_reduction <maximumf>, %63, %cst_24 [1] : vector<8x8xf32> to vector<8xf32>
    %65 = vector.shape_cast %64 : vector<8xf32> to vector<8x1xf32>
    %66 = vector.broadcast %65 : vector<8x1xf32> to vector<8x8xf32>
    %67 = arith.subf %63, %66 : vector<8x8xf32>
    %68 = math.exp %67 : vector<8x8xf32>
    %cst_25 = arith.constant dense<0.000000e+00> : vector<8xf32>
    %69 = vector.multi_reduction <add>, %68, %cst_25 [1] : vector<8x8xf32> to vector<8xf32>
    %70 = vector.shape_cast %69 : vector<8xf32> to vector<8x1xf32>
    %71 = tpu.reciprocal %70 {approx = true} : vector<8x1xf32> -> vector<8x1xf32>
    %72 = vector.broadcast %71 : vector<8x1xf32> to vector<8x8xf32>
    %73 = arith.mulf %68, %72 : vector<8x8xf32>
    %cst_26 = arith.constant dense<0.000000e+00> : vector<8x8xf32>
    %74 = tpu.matmul %73, %54, %cst_26 {dimension_numbers = #tpu.dot_dimension_numbers<[1], [0], [0], [1], [0, 0, 1, 1], [], []>, precision = #tpu.contract_precision<fp32>} : vector<8x8xf32>, vector<8x8xf32>, vector<8x8xf32> -> vector<8x8xf32>
    %75 = vector.extract_strided_slice %1 {offsets = [0, 24], sizes = [8, 8], strides = [1, 1]} : vector<8x32xf32> to vector<8x8xf32>
    %76 = vector.extract_strided_slice %3 {offsets = [0, 24], sizes = [8, 8], strides = [1, 1]} : vector<8x64xf32> to vector<8x8xf32>
    %77 = vector.extract_strided_slice %3 {offsets = [0, 56], sizes = [8, 8], strides = [1, 1]} : vector<8x64xf32> to vector<8x8xf32>
    %cst_27 = arith.constant 0.353553385 : f32
    %78 = vector.broadcast %cst_27 : f32 to vector<8x8xf32>
    %79 = arith.mulf %75, %78 : vector<8x8xf32>
    %cst_28 = arith.constant dense<0.000000e+00> : vector<8x8xf32>
    %80 = tpu.matmul %79, %76, %cst_28 {dimension_numbers = #tpu.dot_dimension_numbers<[1], [1], [0], [0], [0, 0, 1, 0], [], []>, precision = #tpu.contract_precision<fp32>} : vector<8x8xf32>, vector<8x8xf32>, vector<8x8xf32> -> vector<8x8xf32>
    %c0_i32_29 = arith.constant 0 : i32
    %81 = vector.broadcast %c0_i32_29 : i32 to vector<1x8xi32>
    %82 = arith.cmpi eq, %5, %81 : vector<1x8xi32>
    %cst_30 = arith.constant -1.000000e+09 : f32
    %83 = vector.shape_cast %82 : vector<1x8xi1> to vector<1x8xi1>
    %84 = vector.broadcast %83 : vector<1x8xi1> to vector<8x8xi1>
    %85 = vector.broadcast %cst_30 : f32 to vector<8x8xf32>
    %86 = arith.select %84, %85, %80 : vector<8x8xi1>, vector<8x8xf32>
    %cst_31 = arith.constant dense<0xFF800000> : vector<8xf32>
    %87 = vector.multi_reduction <maximumf>, %86, %cst_31 [1] : vector<8x8xf32> to vector<8xf32>
    %88 = vector.shape_cast %87 : vector<8xf32> to vector<8x1xf32>
    %89 = vector.broadcast %88 : vector<8x1xf32> to vector<8x8xf32>
    %90 = arith.subf %86, %89 : vector<8x8xf32>
    %91 = math.exp %90 : vector<8x8xf32>
    %cst_32 = arith.constant dense<0.000000e+00> : vector<8xf32>
    %92 = vector.multi_reduction <add>, %91, %cst_32 [1] : vector<8x8xf32> to vector<8xf32>
    %93 = vector.shape_cast %92 : vector<8xf32> to vector<8x1xf32>
    %94 = tpu.reciprocal %93 {approx = true} : vector<8x1xf32> -> vector<8x1xf32>
    %95 = vector.broadcast %94 : vector<8x1xf32> to vector<8x8xf32>
    %96 = arith.mulf %91, %95 : vector<8x8xf32>
    %cst_33 = arith.constant dense<0.000000e+00> : vector<8x8xf32>
    %97 = tpu.matmul %96, %77, %cst_33 {dimension_numbers = #tpu.dot_dimension_numbers<[1], [0], [0], [1], [0, 0, 1, 1], [], []>, precision = #tpu.contract_precision<fp32>} : vector<8x8xf32>, vector<8x8xf32>, vector<8x8xf32> -> vector<8x8xf32>
    %98 = tpu.concatenate %28, %51, %74, %97 in 1 : vector<8x8xf32>, vector<8x8xf32>, vector<8x8xf32>, vector<8x8xf32> -> vector<8x32xf32>
    %c0_34 = arith.constant 0 : index
    %c0_35 = arith.constant 0 : index
    %c0_36 = arith.constant 0 : index
    %99 = vector.load %arg5[%c0_34, %c0_35, %c0_36] : memref<1x8x32xf32, #tpu.memory_space<vmem>>, vector<1x8x32xf32>
    %100 = vector.shape_cast %99 : vector<1x8x32xf32> to vector<8x32xf32>
    %101 = vector.shape_cast %98 : vector<8x32xf32> to vector<1x8x32xf32>
    tpu.vector_store %arg5[%c0_34, %c0_35, %c0_36], %101 {strides = array<i32>} : memref<1x8x32xf32, #tpu.memory_space<vmem>>, vector<1x8x32xf32>,
    return
  }
  func.func @transform_0(%arg0: i32, %arg1: i32) -> (i32, i32, i32) {
    %c0_i32 = arith.constant 0 : i32
    %c0_i32_0 = arith.constant 0 : i32
    return %arg0, %arg1, %c0_i32 : i32, i32, i32
  }
  func.func @transform_1(%arg0: i32, %arg1: i32) -> (i32, i32, i32) {
    %c0_i32 = arith.constant 0 : i32
    %c0_i32_0 = arith.constant 0 : i32
    %c0_i32_1 = arith.constant 0 : i32
    return %arg0, %c0_i32, %c0_i32_0 : i32, i32, i32
  }
  func.func @transform_2(%arg0: i32, %arg1: i32) -> (i32, i32, i32) {
    %c1_i32 = arith.constant 1 : i32
    %0 = arith.muli %arg0, %c1_i32 : i32
    %c0_i32 = arith.constant 0 : i32
    %1 = arith.muli %arg1, %c0_i32 : i32
    %c0_i32_0 = arith.constant 0 : i32
    %c0_i32_1 = arith.constant 0 : i32
    return %0, %1, %c0_i32_0 : i32, i32, i32
  }
  func.func @transform_3(%arg0: i32, %arg1: i32) -> (i32, i32, i32) {
    %c0_i32 = arith.constant 0 : i32
    %c0_i32_0 = arith.constant 0 : i32
    return %arg0, %arg1, %c0_i32 : i32, i32, i32
  }
}

module attributes {stable_mosaic.version = 11 : i64} {
  func.func @_ln_linear_kernel(%arg0: i32, %arg1: i32, %arg2: memref<16x32xf32, #tpu.memory_space<vmem>>, %arg3: memref<32x64xf32, #tpu.memory_space<vmem>>, %arg4: memref<1x64xf32, #tpu.memory_space<vmem>>, %arg5: memref<1xf32, #tpu.memory_space<smem>>, %arg6: memref<1xf32, #tpu.memory_space<smem>>, %arg7: memref<16x64xf32, #tpu.memory_space<vmem>>) attributes {dimension_semantics = [#tpu.dimension_semantics<parallel>, #tpu.dimension_semantics<parallel>], iteration_bounds = array<i64: 1, 1>, scalar_prefetch = 0 : i64, scratch_operands = 0 : i64, tpu.core_type = #tpu.core_type<tc>, window_params = [{transform_indices = @transform_0, window_bounds = array<i64: 16, 32>}, {transform_indices = @transform_1, window_bounds = array<i64: 32, 64>}, {transform_indices = @transform_2, window_bounds = array<i64: 1, 64>}, {transform_indices = @transform_3, window_bounds = array<i64: 1>}, {transform_indices = @transform_4, window_bounds = array<i64: 1>}, {transform_indices = @transform_5, window_bounds = array<i64: 16, 64>}]} {
    %c0 = arith.constant 0 : index
    %c0_0 = arith.constant 0 : index
    %0 = vector.load %arg2[%c0, %c0_0] : memref<16x32xf32, #tpu.memory_space<vmem>>, vector<16x32xf32>
    %cst = arith.constant dense<0.000000e+00> : vector<16xf32>
    %1 = vector.multi_reduction <add>, %0, %cst [1] : vector<16x32xf32> to vector<16xf32>
    %2 = vector.shape_cast %1 : vector<16xf32> to vector<16x1xf32>
    %cst_1 = arith.constant 3.200000e+01 : f32
    %3 = vector.broadcast %cst_1 : f32 to vector<16x1xf32>
    %4 = arith.divf %2, %3 : vector<16x1xf32>
    %5 = vector.broadcast %4 : vector<16x1xf32> to vector<16x32xf32>
    %6 = arith.subf %0, %5 : vector<16x32xf32>
    %7 = arith.mulf %6, %6 : vector<16x32xf32>
    %cst_2 = arith.constant dense<0.000000e+00> : vector<16xf32>
    %8 = vector.multi_reduction <add>, %7, %cst_2 [1] : vector<16x32xf32> to vector<16xf32>
    %9 = vector.shape_cast %8 : vector<16xf32> to vector<16x1xf32>
    %cst_3 = arith.constant 3.100000e+01 : f32
    %10 = vector.broadcast %cst_3 : f32 to vector<16x1xf32>
    %11 = arith.divf %9, %10 : vector<16x1xf32>
    %12 = math.sqrt %11 : vector<16x1xf32>
    %c0_4 = arith.constant 0 : index
    %13 = memref.load %arg5[%c0_4] : memref<1xf32, #tpu.memory_space<smem>>
    %14 = vector.broadcast %13 : f32 to vector<16x32xf32>
    %15 = arith.mulf %14, %6 : vector<16x32xf32>
    %cst_5 = arith.constant 9.99999997E-7 : f32
    %16 = vector.broadcast %cst_5 : f32 to vector<16x1xf32>
    %17 = arith.addf %12, %16 : vector<16x1xf32>
    %18 = vector.broadcast %17 : vector<16x1xf32> to vector<16x32xf32>
    %19 = arith.divf %15, %18 : vector<16x32xf32>
    %c0_6 = arith.constant 0 : index
    %20 = memref.load %arg6[%c0_6] : memref<1xf32, #tpu.memory_space<smem>>
    %21 = vector.broadcast %20 : f32 to vector<16x32xf32>
    %22 = arith.addf %19, %21 : vector<16x32xf32>
    %c0_7 = arith.constant 0 : index
    %c0_8 = arith.constant 0 : index
    %23 = vector.load %arg3[%c0_7, %c0_8] : memref<32x64xf32, #tpu.memory_space<vmem>>, vector<32x64xf32>
    %cst_9 = arith.constant dense<0.000000e+00> : vector<16x64xf32>
    %24 = tpu.matmul %22, %23, %cst_9 {dimension_numbers = #tpu.dot_dimension_numbers<[1], [0], [0], [1], [0, 0, 1, 1], [], []>, precision = #tpu.contract_precision<fp32>} : vector<16x32xf32>, vector<32x64xf32>, vector<16x64xf32> -> vector<16x64xf32>
    %c0_10 = arith.constant 0 : index
    %c0_11 = arith.constant 0 : index
    %25 = vector.load %arg4[%c0_10, %c0_11] : memref<1x64xf32, #tpu.memory_space<vmem>>, vector<1x64xf32>
    %26 = vector.broadcast %25 : vector<1x64xf32> to vector<16x64xf32>
    %27 = arith.addf %24, %26 : vector<16x64xf32>
    %cst_12 = arith.constant 0.000000e+00 : f32
    %28 = vector.broadcast %cst_12 : f32 to vector<16x64xf32>
    %29 = arith.maximumf %27, %28 : vector<16x64xf32>
    %c0_13 = arith.constant 0 : index
    %c0_14 = arith.constant 0 : index
    %30 = vector.load %arg7[%c0_13, %c0_14] : memref<16x64xf32, #tpu.memory_space<vmem>>, vector<16x64xf32>
    tpu.vector_store %arg7[%c0_13, %c0_14], %29 {strides = array<i32>} : memref<16x64xf32, #tpu.memory_space<vmem>>, vector<16x64xf32>,
    return
  }
  func.func @transform_0(%arg0: i32, %arg1: i32) -> (i32, i32) {
    %c0_i32 = arith.constant 0 : i32
    %c0_i32_0 = arith.constant 0 : i32
    return %arg0, %c0_i32 : i32, i32
  }
  func.func @transform_1(%arg0: i32, %arg1: i32) -> (i32, i32) {
    %c0_i32 = arith.constant 0 : i32
    %c0_i32_0 = arith.constant 0 : i32
    return %c0_i32, %arg1 : i32, i32
  }
  func.func @transform_2(%arg0: i32, %arg1: i32) -> (i32, i32) {
    %c0_i32 = arith.constant 0 : i32
    %c0_i32_0 = arith.constant 0 : i32
    return %c0_i32, %arg1 : i32, i32
  }
  func.func @transform_3(%arg0: i32, %arg1: i32) -> i32 {
    %c0_i32 = arith.constant 0 : i32
    %c0_i32_0 = arith.constant 0 : i32
    return %c0_i32 : i32
  }
  func.func @transform_4(%arg0: i32, %arg1: i32) -> i32 {
    %c0_i32 = arith.constant 0 : i32
    %c0_i32_0 = arith.constant 0 : i32
    return %c0_i32 : i32
  }
  func.func @transform_5(%arg0: i32, %arg1: i32) -> (i32, i32) {
    %c0_i32 = arith.constant 0 : i32
    return %arg0, %arg1 : i32, i32
  }
}

module attributes {stable_mosaic.version = 11 : i64} {
  func.func @_linear_residual_kernel(%arg0: i32, %arg1: i32, %arg2: i32, %arg3: memref<16x64xf32, #tpu.memory_space<vmem>>, %arg4: memref<64x32xf32, #tpu.memory_space<vmem>>, %arg5: memref<1x32xf32, #tpu.memory_space<vmem>>, %arg6: memref<16x32xf32, #tpu.memory_space<vmem>>, %arg7: memref<16x32xf32, #tpu.memory_space<vmem>>) attributes {dimension_semantics = [#tpu.dimension_semantics<parallel>, #tpu.dimension_semantics<parallel>, #tpu.dimension_semantics<arbitrary>], iteration_bounds = array<i64: 1, 1, 1>, scalar_prefetch = 0 : i64, scratch_operands = 0 : i64, tpu.core_type = #tpu.core_type<tc>, window_params = [{transform_indices = @transform_0, window_bounds = array<i64: 16, 64>}, {transform_indices = @transform_1, window_bounds = array<i64: 64, 32>}, {transform_indices = @transform_2, window_bounds = array<i64: 1, 32>}, {transform_indices = @transform_3, window_bounds = array<i64: 16, 32>}, {transform_indices = @transform_4, window_bounds = array<i64: 16, 32>}]} {
    %c0_i32 = arith.constant 0 : i32
    %0 = arith.cmpi eq, %arg2, %c0_i32 : i32
    %1 = arith.extui %0 : i1 to i32
    %c0_i32_0 = arith.constant 0 : i32
    %2 = arith.cmpi ne, %1, %c0_i32_0 : i32
    scf.if %2 {
      %cst_10 = arith.constant 0.000000e+00 : f32
      %12 = vector.broadcast %cst_10 : f32 to vector<16x32xf32>
      %c0_11 = arith.constant 0 : index
      %c0_12 = arith.constant 0 : index
      %13 = vector.load %arg7[%c0_11, %c0_12] : memref<16x32xf32, #tpu.memory_space<vmem>>, vector<16x32xf32>
      tpu.vector_store %arg7[%c0_11, %c0_12], %12 {strides = array<i32>} : memref<16x32xf32, #tpu.memory_space<vmem>>, vector<16x32xf32>,
    } else {
    }
    %c0 = arith.constant 0 : index
    %c0_1 = arith.constant 0 : index
    %3 = vector.load %arg7[%c0, %c0_1] : memref<16x32xf32, #tpu.memory_space<vmem>>, vector<16x32xf32>
    %c0_2 = arith.constant 0 : index
    %c0_3 = arith.constant 0 : index
    %4 = vector.load %arg3[%c0_2, %c0_3] : memref<16x64xf32, #tpu.memory_space<vmem>>, vector<16x64xf32>
    %c0_4 = arith.constant 0 : index
    %c0_5 = arith.constant 0 : index
    %5 = vector.load %arg4[%c0_4, %c0_5] : memref<64x32xf32, #tpu.memory_space<vmem>>, vector<64x32xf32>
    %cst = arith.constant dense<0.000000e+00> : vector<16x32xf32>
    %6 = tpu.matmul %4, %5, %cst {dimension_numbers = #tpu.dot_dimension_numbers<[1], [0], [0], [1], [0, 0, 1, 1], [], []>, precision = #tpu.contract_precision<fp32>} : vector<16x64xf32>, vector<64x32xf32>, vector<16x32xf32> -> vector<16x32xf32>
    %7 = arith.addf %3, %6 : vector<16x32xf32>
    %c0_6 = arith.constant 0 : index
    %c0_7 = arith.constant 0 : index
    %8 = vector.load %arg7[%c0_6, %c0_7] : memref<16x32xf32, #tpu.memory_space<vmem>>, vector<16x32xf32>
    tpu.vector_store %arg7[%c0_6, %c0_7], %7 {strides = array<i32>} : memref<16x32xf32, #tpu.memory_space<vmem>>, vector<16x32xf32>,
    %c0_i32_8 = arith.constant 0 : i32
    %9 = arith.cmpi eq, %arg2, %c0_i32_8 : i32
    %10 = arith.extui %9 : i1 to i32
    %c0_i32_9 = arith.constant 0 : i32
    %11 = arith.cmpi ne, %10, %c0_i32_9 : i32
    scf.if %11 {
      %c0_10 = arith.constant 0 : index
      %c0_11 = arith.constant 0 : index
      %12 = vector.load %arg7[%c0_10, %c0_11] : memref<16x32xf32, #tpu.memory_space<vmem>>, vector<16x32xf32>
      %c0_12 = arith.constant 0 : index
      %c0_13 = arith.constant 0 : index
      %13 = vector.load %arg5[%c0_12, %c0_13] : memref<1x32xf32, #tpu.memory_space<vmem>>, vector<1x32xf32>
      %14 = vector.broadcast %13 : vector<1x32xf32> to vector<16x32xf32>
      %15 = arith.addf %12, %14 : vector<16x32xf32>
      %c0_14 = arith.constant 0 : index
      %c0_15 = arith.constant 0 : index
      %16 = vector.load %arg6[%c0_14, %c0_15] : memref<16x32xf32, #tpu.memory_space<vmem>>, vector<16x32xf32>
      %17 = arith.addf %15, %16 : vector<16x32xf32>
      %c0_16 = arith.constant 0 : index
      %c0_17 = arith.constant 0 : index
      %18 = vector.load %arg7[%c0_16, %c0_17] : memref<16x32xf32, #tpu.memory_space<vmem>>, vector<16x32xf32>
      tpu.vector_store %arg7[%c0_16, %c0_17], %17 {strides = array<i32>} : memref<16x32xf32, #tpu.memory_space<vmem>>, vector<16x32xf32>,
    } else {
    }
    return
  }
  func.func @transform_0(%arg0: i32, %arg1: i32, %arg2: i32) -> (i32, i32) {
    %c0_i32 = arith.constant 0 : i32
    return %arg0, %arg2 : i32, i32
  }
  func.func @transform_1(%arg0: i32, %arg1: i32, %arg2: i32) -> (i32, i32) {
    %c0_i32 = arith.constant 0 : i32
    return %arg2, %arg1 : i32, i32
  }
  func.func @transform_2(%arg0: i32, %arg1: i32, %arg2: i32) -> (i32, i32) {
    %c0_i32 = arith.constant 0 : i32
    %c0_i32_0 = arith.constant 0 : i32
    return %c0_i32, %arg1 : i32, i32
  }
  func.func @transform_3(%arg0: i32, %arg1: i32, %arg2: i32) -> (i32, i32) {
    %c0_i32 = arith.constant 0 : i32
    return %arg0, %arg1 : i32, i32
  }
  func.func @transform_4(%arg0: i32, %arg1: i32, %arg2: i32) -> (i32, i32) {
    %c0_i32 = arith.constant 0 : i32
    return %arg0, %arg1 : i32, i32
  }
}

</mosaic_0001>

<llo_original>
// kernel: decoder_block_forward.11
$region0: #{decoder_block_forward.11}
  #allocation0 [shape = 'u32[]', space=smem, size = 0x4, offset = 0x4, fixed_abs, tag = 'smem constant byte address 0x4 - core index']
  #allocation1 [shape = 'u32[72,128]{1,0:T(1,128)}', space=vmem, size = 0x9000, scoped, tag = 'internal scratch']
  %s0 = inlined_call_operand.vmem [shape: f32[16,32], index: 0, kind: input, shape index: {}]
  %s1 = inlined_call_operand.vmem [shape: f32[32,32], index: 1, kind: input, shape index: {}]
  %s2 = inlined_call_operand.vmem [shape: f32[1,32], index: 2, kind: input, shape index: {}]
  %s3 = inlined_call_operand.vmem [shape: f32[16,32], index: 3, kind: input, shape index: {}]
  %s4 = inlined_call_operand.vmem [shape: f32[16,32], index: 4, kind: output, shape index: {}]
  %s5 = sld [smem:[#allocation0]]
  $region34: #{decoder_block_forward.11} parent=0
    _
  %s7 = ssub.s32 1, %s5
  %s8 = scalar_select 0, %s7, %s5
  // Predicated region
  $region2: #{decoder_block_forward.11} parent=0 // pred_check
    _
  $region3: #{decoder_block_forward.11} parent=0 // pred_check_branch
    %10 = sbr.rel (0) target = $region5
  $region4: #{decoder_block_forward.11} parent=0 // pred_region
    _
  $region5: #{decoder_block_forward.11} parent=0 // pred_fallthru
    _
  // Predicated region
  $region6: #{decoder_block_forward.11} parent=0 // pred_check
    _
  $region7: #{decoder_block_forward.11} parent=0 // pred_check_branch
    %12 = sbr.rel (0) target = $region9
  $region8: #{decoder_block_forward.11} parent=0 // pred_region
    _
  $region9: #{decoder_block_forward.11} parent=0 // pred_fallthru
    _
  // Predicated region
  $region10: #{decoder_block_forward.11} parent=0 // pred_check
    _
  $region11: #{decoder_block_forward.11} parent=0 // pred_check_branch
    %14 = sbr.rel (0) target = $region13
  $region12: #{decoder_block_forward.11} parent=0 // pred_region
    _
  $region13: #{decoder_block_forward.11} parent=0 // pred_fallthru
    _
  // Predicated region
  $region14: #{decoder_block_forward.11} parent=0 // pred_check
    _
  $region15: #{decoder_block_forward.11} parent=0 // pred_check_branch
    %16 = sbr.rel (0) target = $region17
  $region16: #{decoder_block_forward.11} parent=0 // pred_region
    _
  $region17: #{decoder_block_forward.11} parent=0 // pred_fallthru
    _
  %p17 = scmp.eq.s32.totalorder 0, 0
  // Predicated region
  $region18: #{decoder_block_forward.11} parent=0 // pred_check
    %p18 = pneg %p17
  $region19: #{decoder_block_forward.11} parent=0 // pred_check_branch
    %20 = sbr.rel (%p18) target = $region21
  $region20: #{decoder_block_forward.11} parent=0 // pred_region
    %vm21 = vcmask 261120
    %22 = vst.msk [vmem:[%s4] sm:$0xff] %vm21, 0.0
    %23 = vst.msk [vmem:[%s4 + $0x8] sm:$0xff] %vm21, 0.0
  $region21: #{decoder_block_forward.11} parent=0 // pred_fallthru
    _
  %v24 = vld [vmem:[%s4] sm:$0xff]
  %v25 = vld [vmem:[%s4 + $0x8] sm:$0xff]
  %v26 = vld [vmem:[%s0] sm:$0xff]
  %v27 = vld [vmem:[%s0 + $0x8] sm:$0xff]
  %v28 = vld [vmem:[%s1] sm:$0xff]
  %v29 = vld [vmem:[%s1 + $0x8] sm:$0xff]
  %v30 = vld [vmem:[%s1 + $0x10] sm:$0xff]
  %v31 = vld [vmem:[%s1 + $0x18] sm:$0xff]
  %vm32 = vcmask 261120
  %v34 = vsel %vm32, %v26, 0
  %v37 = vsel %vm32, %v27, 0
  %39 = vmatpush.msra.mxu0 0.0
  %40 = vmatpush.msra.mxu0 0.0
  %41 = vmatpush.msra.mxu0 0.0
  %42 = vmatpush.msra.mxu0 0.0
  %43 = vmatpush.msra.mxu0 0.0
  %44 = vmatpush.msra.mxu0 0.0
  %45 = vmatpush.msra.mxu0 0.0
  %46 = vmatpush.msra.mxu0 0.0
  %47 = vmatpush.msra.mxu0 0.0
  %48 = vmatpush.msra.mxu0 0.0
  %49 = vmatpush.msra.mxu0 0.0
  %50 = vmatpush.msra.mxu0 0.0
  %v51 = vand.u32 %v31, 4294901760
  %52 = vmatpush.msra.mxu0 %v51
  %v53 = vand.u32 %v30, 4294901760
  %54 = vmatpush.msra.mxu0 %v53
  %v55 = vand.u32 %v29, 4294901760
  %56 = vmatpush.msra.mxu0 %v55
  %v57 = vand.u32 %v28, 4294901760
  %58 = vmatpush.msra.mxu0 %v57
  %v59 = vand.u32 %v34, 4294901760
  %v60 = vsub.f32 %v34, %v59
  %v61 = vand.u32 %v60, 4294901760
  %v62 = vsub.f32 %v60, %v61
  %v63 = vand.u32 %v62, 4294901760
  %64 = vmatmul.f32.gmra.mxu0 %v63
  %v65 = vpop.f32.mrf.mxu0
  %v66 = vadd.f32 0.0, %v65
  %v67 = vand.u32 %v37, 4294901760
  %v68 = vsub.f32 %v37, %v67
  %v69 = vand.u32 %v68, 4294901760
  %v70 = vsub.f32 %v68, %v69
  %v71 = vand.u32 %v70, 4294901760
  %72 = vmatmul.f32.gmra.mxu0 %v71
  %v73 = vpop.f32.mrf.mxu0
  %v74 = vadd.f32 0.0, %v73
  %75 = vdwg.mxu0
  %76 = vmatpush.msra.mxu0 0.0
  %77 = vmatpush.msra.mxu0 0.0
  %78 = vmatpush.msra.mxu0 0.0
  %79 = vmatpush.msra.mxu0 0.0
  %80 = vmatpush.msra.mxu0 0.0
  %81 = vmatpush.msra.mxu0 0.0
  %82 = vmatpush.msra.mxu0 0.0
  %83 = vmatpush.msra.mxu0 0.0
  %84 = vmatpush.msra.mxu0 0.0
  %85 = vmatpush.msra.mxu0 0.0
  %86 = vmatpush.msra.mxu0 0.0
  %87 = vmatpush.msra.mxu0 0.0
  %v88 = vand.u32 %v31, 4294901760
  %v89 = vsub.f32 %v31, %v88
  %v90 = vand.u32 %v89, 4294901760
  %v91 = vsub.f32 %v89, %v90
  %v92 = vand.u32 %v91, 4294901760
  %93 = vmatpush.msra.mxu0 %v92
  %v94 = vand.u32 %v30, 4294901760
  %v95 = vsub.f32 %v30, %v94
  %v96 = vand.u32 %v95, 4294901760
  %v97 = vsub.f32 %v95, %v96
  %v98 = vand.u32 %v97, 4294901760
  %99 = vmatpush.msra.mxu0 %v98
  %v100 = vand.u32 %v29, 4294901760
  %v101 = vsub.f32 %v29, %v100
  %v102 = vand.u32 %v101, 4294901760
  %v103 = vsub.f32 %v101, %v102
  %v104 = vand.u32 %v103, 4294901760
  %105 = vmatpush.msra.mxu0 %v104
  %v106 = vand.u32 %v28, 4294901760
  %v107 = vsub.f32 %v28, %v106
  %v108 = vand.u32 %v107, 4294901760
  %v109 = vsub.f32 %v107, %v108
  %v110 = vand.u32 %v109, 4294901760
  %111 = vmatpush.msra.mxu0 %v110
  %v112 = vand.u32 %v34, 4294901760
  %113 = vmatmul.f32.gmra.mxu0 %v112
  %v114 = vpop.f32.mrf.mxu0
  %v115 = vadd.f32 %v66, %v114
  %v116 = vand.u32 %v37, 4294901760
  %117 = vmatmul.f32.gmra.mxu0 %v116
  %v118 = vpop.f32.mrf.mxu0
  %v119 = vadd.f32 %v74, %v118
  %120 = vdwg.mxu0
  %121 = vmatpush.msra.mxu0 0.0
  %122 = vmatpush.msra.mxu0 0.0
  %123 = vmatpush.msra.mxu0 0.0
  %124 = vmatpush.msra.mxu0 0.0
  %125 = vmatpush.msra.mxu0 0.0
  %126 = vmatpush.msra.mxu0 0.0
  %127 = vmatpush.msra.mxu0 0.0
  %128 = vmatpush.msra.mxu0 0.0
  %129 = vmatpush.msra.mxu0 0.0
  %130 = vmatpush.msra.mxu0 0.0
  %131 = vmatpush.msra.mxu0 0.0
  %132 = vmatpush.msra.mxu0 0.0
  %v133 = vand.u32 %v31, 4294901760
  %v134 = vsub.f32 %v31, %v133
  %135 = vmatpush.msra.mxu0 %v134
  %v136 = vand.u32 %v30, 4294901760
  %v137 = vsub.f32 %v30, %v136
  %138 = vmatpush.msra.mxu0 %v137
  %v139 = vand.u32 %v29, 4294901760
  %v140 = vsub.f32 %v29, %v139
  %141 = vmatpush.msra.mxu0 %v140
  %v142 = vand.u32 %v28, 4294901760
  %v143 = vsub.f32 %v28, %v142
  %144 = vmatpush.msra.mxu0 %v143
  %v145 = vand.u32 %v34, 4294901760
  %v146 = vsub.f32 %v34, %v145
  %147 = vmatmul.f32.gmra.mxu0 %v146
  %v148 = vpop.f32.mrf.mxu0
  %v149 = vadd.f32 %v115, %v148
  %v150 = vand.u32 %v37, 4294901760
  %v151 = vsub.f32 %v37, %v150
  %152 = vmatmul.f32.gmra.mxu0 %v151
  %v153 = vpop.f32.mrf.mxu0
  %v154 = vadd.f32 %v119, %v153
  %155 = vdwg.mxu0
  %156 = vmatpush.msra.mxu0 0.0
  %157 = vmatpush.msra.mxu0 0.0
  %158 = vmatpush.msra.mxu0 0.0
  %159 = vmatpush.msra.mxu0 0.0
  %160 = vmatpush.msra.mxu0 0.0
  %161 = vmatpush.msra.mxu0 0.0
  %162 = vmatpush.msra.mxu0 0.0
  %163 = vmatpush.msra.mxu0 0.0
  %164 = vmatpush.msra.mxu0 0.0
  %165 = vmatpush.msra.mxu0 0.0
  %166 = vmatpush.msra.mxu0 0.0
  %167 = vmatpush.msra.mxu0 0.0
  %v168 = vand.u32 %v31, 4294901760
  %169 = vmatpush.msra.mxu0 %v168
  %v170 = vand.u32 %v30, 4294901760
  %171 = vmatpush.msra.mxu0 %v170
  %v172 = vand.u32 %v29, 4294901760
  %173 = vmatpush.msra.mxu0 %v172
  %v174 = vand.u32 %v28, 4294901760
  %175 = vmatpush.msra.mxu0 %v174
  %v176 = vand.u32 %v34, 4294901760
  %v177 = vsub.f32 %v34, %v176
  %v178 = vand.u32 %v177, 4294901760
  %179 = vmatmul.f32.gmra.mxu0 %v178
  %v180 = vpop.f32.mrf.mxu0
  %v181 = vadd.f32 %v149, %v180
  %v182 = vand.u32 %v37, 4294901760
  %v183 = vsub.f32 %v37, %v182
  %v184 = vand.u32 %v183, 4294901760
  %185 = vmatmul.f32.gmra.mxu0 %v184
  %v186 = vpop.f32.mrf.mxu0
  %v187 = vadd.f32 %v154, %v186
  %188 = vdwg.mxu0
  %189 = vmatpush.msra.mxu0 0.0
  %190 = vmatpush.msra.mxu0 0.0
  %191 = vmatpush.msra.mxu0 0.0
  %192 = vmatpush.msra.mxu0 0.0
  %193 = vmatpush.msra.mxu0 0.0
  %194 = vmatpush.msra.mxu0 0.0
  %195 = vmatpush.msra.mxu0 0.0
  %196 = vmatpush.msra.mxu0 0.0
  %197 = vmatpush.msra.mxu0 0.0
  %198 = vmatpush.msra.mxu0 0.0
  %199 = vmatpush.msra.mxu0 0.0
  %200 = vmatpush.msra.mxu0 0.0
  %v201 = vand.u32 %v31, 4294901760
  %v202 = vsub.f32 %v31, %v201
  %v203 = vand.u32 %v202, 4294901760
  %204 = vmatpush.msra.mxu0 %v203
  %v205 = vand.u32 %v30, 4294901760
  %v206 = vsub.f32 %v30, %v205
  %v207 = vand.u32 %v206, 4294901760
  %208 = vmatpush.msra.mxu0 %v207
  %v209 = vand.u32 %v29, 4294901760
  %v210 = vsub.f32 %v29, %v209
  %v211 = vand.u32 %v210, 4294901760
  %212 = vmatpush.msra.mxu0 %v211
  %v213 = vand.u32 %v28, 4294901760
  %v214 = vsub.f32 %v28, %v213
  %v215 = vand.u32 %v214, 4294901760
  %216 = vmatpush.msra.mxu0 %v215
  %v217 = vand.u32 %v34, 4294901760
  %218 = vmatmul.f32.gmra.mxu0 %v217
  %v219 = vpop.f32.mrf.mxu0
  %v220 = vadd.f32 %v181, %v219
  %v221 = vand.u32 %v37, 4294901760
  %222 = vmatmul.f32.gmra.mxu0 %v221
  %v223 = vpop.f32.mrf.mxu0
  %v224 = vadd.f32 %v187, %v223
  %225 = vdwg.mxu0
  %226 = vmatpush.msra.mxu0 0.0
  %227 = vmatpush.msra.mxu0 0.0
  %228 = vmatpush.msra.mxu0 0.0
  %229 = vmatpush.msra.mxu0 0.0
  %230 = vmatpush.msra.mxu0 0.0
  %231 = vmatpush.msra.mxu0 0.0
  %232 = vmatpush.msra.mxu0 0.0
  %233 = vmatpush.msra.mxu0 0.0
  %234 = vmatpush.msra.mxu0 0.0
  %235 = vmatpush.msra.mxu0 0.0
  %236 = vmatpush.msra.mxu0 0.0
  %237 = vmatpush.msra.mxu0 0.0
  %v238 = vand.u32 %v31, 4294901760
  %239 = vmatpush.msra.mxu0 %v238
  %v240 = vand.u32 %v30, 4294901760
  %241 = vmatpush.msra.mxu0 %v240
  %v242 = vand.u32 %v29, 4294901760
  %243 = vmatpush.msra.mxu0 %v242
  %v244 = vand.u32 %v28, 4294901760
  %245 = vmatpush.msra.mxu0 %v244
  %v246 = vand.u32 %v34, 4294901760
  %247 = vmatmul.f32.gmra.mxu0 %v246
  %v248 = vpop.f32.mrf.mxu0
  %v249 = vadd.f32 %v220, %v248
  %v250 = vand.u32 %v37, 4294901760
  %251 = vmatmul.f32.gmra.mxu0 %v250
  %v252 = vpop.f32.mrf.mxu0
  %v253 = vadd.f32 %v224, %v252
  %254 = vdwg.mxu0
  %v255 = vadd.f32 %v24, %v249
  %v256 = vadd.f32 %v25, %v253
  %257 = vst.msk [vmem:[%s4] sm:$0xff] %vm32, %v255
  %258 = vst.msk [vmem:[%s4 + $0x8] sm:$0xff] %vm32, %v256
  // Predicated region
  $region22: #{decoder_block_forward.11} parent=0 // pred_check
    %p259 = pneg %p17
  $region23: #{decoder_block_forward.11} parent=0 // pred_check_branch
    %261 = sbr.rel (%p259) target = $region25
  $region24: #{decoder_block_forward.11} parent=0 // pred_region
    %v262 = vld [vmem:[%s4] sm:$0xff]
    %v263 = vld [vmem:[%s4 + $0x8] sm:$0xff]
    %v264 = vld [vmem:[%s2] sm:$0x1]
    %v266 = vperm.slane %v264, 0
    %v268 = vadd.f32 %v262, %v266
    %v269 = vadd.f32 %v263, %v266
    %v270 = vld [vmem:[%s3] sm:$0xff]
    %v271 = vld [vmem:[%s3 + $0x8] sm:$0xff]
    %v272 = vadd.f32 %v268, %v270
    %v273 = vadd.f32 %v269, %v271
    %274 = vst.msk [vmem:[%s4] sm:$0xff] %vm32, %v272
    %275 = vst.msk [vmem:[%s4 + $0x8] sm:$0xff] %vm32, %v273
  $region25: #{decoder_block_forward.11} parent=0 // pred_fallthru
    _
  // Predicated region
  $region26: #{decoder_block_forward.11} parent=0 // pred_check
    _
  $region27: #{decoder_block_forward.11} parent=0 // pred_check_branch
    %277 = sbr.rel (0) target = $region29
  $region28: #{decoder_block_forward.11} parent=0 // pred_region
    _
  $region29: #{decoder_block_forward.11} parent=0 // pred_fallthru
    _
  // Predicated region
  $region30: #{decoder_block_forward.11} parent=0 // pred_check
    _
  $region31: #{decoder_block_forward.11} parent=0 // pred_check_branch
    %279 = sbr.rel (0) target = $region33
  $region32: #{decoder_block_forward.11} parent=0 // pred_region
    _
  $region33: #{decoder_block_forward.11} parent=0 // pred_fallthru
    _

// kernel: decoder_block_forward.12
$region0: #{decoder_block_forward.12}
  #allocation0 [shape = 'u32[]', space=smem, size = 0x4, offset = 0x4, fixed_abs, tag = 'smem constant byte address 0x4 - core index']
  #allocation1 [shape = 'u32[72,128]{1,0:T(1,128)}', space=vmem, size = 0x9000, scoped, tag = 'internal scratch']
  #allocation2 [shape = 'f32[1]{0:T(128)S(6)}', space=smem, size = 0x200, scoped, tag = 'scoped memory for decoder_block_forward.12']
  #allocation3 [shape = 'f32[1]{0:T(128)S(6)}', space=smem, size = 0x200, scoped, tag = 'scoped memory for decoder_block_forward.12']
  %s0 = inlined_call_operand.vmem [shape: f32[16,32], index: 0, kind: input, shape index: {}]
  %s1 = inlined_call_operand.vmem [shape: f32[32,32], index: 1, kind: input, shape index: {}]
  %s2 = inlined_call_operand.vmem [shape: f32[1,32], index: 2, kind: input, shape index: {}]
  %s3 = inlined_call_operand.<no memory space> [shape: f32[1], index: 3, kind: input, shape index: {}]
  %s4 = inlined_call_operand.<no memory space> [shape: f32[1], index: 4, kind: input, shape index: {}]
  %s5 = inlined_call_operand.vmem [shape: f32[16,32], index: 5, kind: output, shape index: {}]
  %s6 = sld [smem:[#allocation0]]
  $region30: #{decoder_block_forward.12} parent=0
    _
  %s8 = ssub.s32 1, %s6
  %s9 = scalar_select 0, %s8, %s6
  %10 = sst [smem:[#allocation2]] %s3
  %11 = sst [smem:[#allocation3]] %s4
  // Predicated region
  $region2: #{decoder_block_forward.12} parent=0 // pred_check
    _
  $region3: #{decoder_block_forward.12} parent=0 // pred_check_branch
    %13 = sbr.rel (0) target = $region5
  $region4: #{decoder_block_forward.12} parent=0 // pred_region
    _
  $region5: #{decoder_block_forward.12} parent=0 // pred_fallthru
    _
  // Predicated region
  $region6: #{decoder_block_forward.12} parent=0 // pred_check
    _
  $region7: #{decoder_block_forward.12} parent=0 // pred_check_branch
    %15 = sbr.rel (0) target = $region9
  $region8: #{decoder_block_forward.12} parent=0 // pred_region
    _
  $region9: #{decoder_block_forward.12} parent=0 // pred_fallthru
    _
  // Predicated region
  $region10: #{decoder_block_forward.12} parent=0 // pred_check
    _
  $region11: #{decoder_block_forward.12} parent=0 // pred_check_branch
    %17 = sbr.rel (0) target = $region13
  $region12: #{decoder_block_forward.12} parent=0 // pred_region
    _
  $region13: #{decoder_block_forward.12} parent=0 // pred_fallthru
    _
  // Predicated region
  $region14: #{decoder_block_forward.12} parent=0 // pred_check
    _
  $region15: #{decoder_block_forward.12} parent=0 // pred_check_branch
    %19 = sbr.rel (0) target = $region17
  $region16: #{decoder_block_forward.12} parent=0 // pred_region
    _
  $region17: #{decoder_block_forward.12} parent=0 // pred_fallthru
    _
  // Predicated region
  $region18: #{decoder_block_forward.12} parent=0 // pred_check
    _
  $region19: #{decoder_block_forward.12} parent=0 // pred_check_branch
    %21 = sbr.rel (0) target = $region21
  $region20: #{decoder_block_forward.12} parent=0 // pred_region
    _
  $region21: #{decoder_block_forward.12} parent=0 // pred_fallthru
    _
  %v22 = vld [vmem:[%s0] sm:$0xff]
  %v23 = vld [vmem:[%s0 + $0x8] sm:$0xff]
  %vm24 = vcmask 261120
  %v25 = vsel %vm24, %v22, 0.0
  %26 = vadd.xlane.f32.xlu0 %v25
  %v27 = vpop.xlane.xlu0 %26
  %v28 = vsel %vm24, %v23, 0.0
  %29 = vadd.xlane.f32.xlu0 %v28
  %v30 = vpop.xlane.xlu0 %29
  %v31 = vrcp.pop 32.0
  %v32 = vmul.f32 32.0, %v31
  %v33 = vsub.f32 1.0, %v32
  %v34 = vmul.f32 %v31, %v33
  %v35 = vadd.f32 %v31, %v34
  %vm36 = vweird.f32 %v31
  %v37 = vsel %vm36, %v31, %v35
  %v38 = vmul.f32 %v27, %v37
  %v39 = vmul.f32 %v30, %v37
  %v40 = vsub.f32 %v22, %v38
  %v41 = vsub.f32 %v23, %v39
  %v42 = vmul.f32 %v40, %v40
  %v43 = vmul.f32 %v41, %v41
  %v44 = vsel %vm24, %v42, 0.0
  %45 = vadd.xlane.f32.xlu0 %v44
  %v46 = vpop.xlane.xlu0 %45
  %v47 = vsel %vm24, %v43, 0.0
  %48 = vadd.xlane.f32.xlu0 %v47
  %v49 = vpop.xlane.xlu0 %48
  %v50 = vrcp.pop 31.0
  %v51 = vmul.f32 31.0, %v50
  %v52 = vsub.f32 1.0, %v51
  %v53 = vmul.f32 %v50, %v52
  %v54 = vadd.f32 %v50, %v53
  %vm55 = vweird.f32 %v50
  %v56 = vsel %vm55, %v50, %v54
  %v57 = vmul.f32 %v46, %v56
  %v58 = vmul.f32 %v49, %v56
  %v59 = vrsqrt.pop %v57
  %v60 = vmul.f32 %v59, %v57
  %v61 = vmul.f32 %v60, %v59
  %v62 = vmul.f32 0.5, %v61
  %v63 = vsub.f32 1.5, %v62
  %v64 = vmul.f32 %v59, %v63
  %v65 = vmul.f32 %v57, %v64
  %vm66 = vcmp.eq.f32.partialorder %v57, inf
  %v67 = vsel %vm66, %v57, %v65
  %vm68 = vcmp.eq.f32.partialorder %v57, 0.0
  %v69 = vand.u32 %v57, 2147483648
  %v70 = vsel %vm68, %v69, %v67
  %v71 = vrsqrt.pop %v58
  %v72 = vmul.f32 %v71, %v58
  %v73 = vmul.f32 %v72, %v71
  %v74 = vmul.f32 0.5, %v73
  %v75 = vsub.f32 1.5, %v74
  %v76 = vmul.f32 %v71, %v75
  %v77 = vmul.f32 %v58, %v76
  %vm78 = vcmp.eq.f32.partialorder %v58, inf
  %v79 = vsel %vm78, %v58, %v77
  %vm80 = vcmp.eq.f32.partialorder %v58, 0.0
  %v81 = vand.u32 %v58, 2147483648
  %v82 = vsel %vm80, %v81, %v79
  %s83 = sld [smem:[#allocation2]]
  %v84 = vstv %s83
  %v85 = vmul.f32 %v84, %v40
  %v86 = vmul.f32 %v84, %v41
  %v87 = vadd.f32 %v70, 1e-06
  %v88 = vadd.f32 %v82, 1e-06
  %v89 = vrcp.pop %v87
  %v90 = vmul.f32 %v87, %v89
  %v91 = vsub.f32 1.0, %v90
  %v92 = vmul.f32 %v89, %v91
  %v93 = vadd.f32 %v89, %v92
  %vm94 = vweird.f32 %v87
  %vm95 = vweird.f32 %v89
  %vm96 = vmor %vm94, %vm95
  %v97 = vsel %vm96, %v89, %v93
  %v98 = vand.u32 2147483647, %v87
  %vm99 = vcmp.eq.f32.partialorder %v98, 8.507059e+37
  %v100 = vand.u32 %v87, 2147483648
  %v101 = vor.u32 1.1754944e-38, %v100
  %v102 = vsel %vm99, %v101, %v97
  %v103 = vmul.f32 %v85, %v102
  %v104 = vrcp.pop %v88
  %v105 = vmul.f32 %v88, %v104
  %v106 = vsub.f32 1.0, %v105
  %v107 = vmul.f32 %v104, %v106
  %v108 = vadd.f32 %v104, %v107
  %vm109 = vweird.f32 %v88
  %vm110 = vweird.f32 %v104
  %vm111 = vmor %vm109, %vm110
  %v112 = vsel %vm111, %v104, %v108
  %v113 = vand.u32 2147483647, %v88
  %vm114 = vcmp.eq.f32.partialorder %v113, 8.507059e+37
  %v115 = vand.u32 %v88, 2147483648
  %v116 = vor.u32 1.1754944e-38, %v115
  %v117 = vsel %vm114, %v116, %v112
  %v118 = vmul.f32 %v86, %v117
  %s119 = sld [smem:[#allocation3]]
  %v120 = vstv %s119
  %v121 = vadd.f32 %v103, %v120
  %v122 = vadd.f32 %v118, %v120
  %v123 = vld [vmem:[%s1] sm:$0xff]
  %v124 = vld [vmem:[%s1 + $0x8] sm:$0xff]
  %v125 = vld [vmem:[%s1 + $0x10] sm:$0xff]
  %v126 = vld [vmem:[%s1 + $0x18] sm:$0xff]
  %v127 = vld [vmem:[%s2] sm:$0x1]
  %v129 = vperm.slane %v127, 0
  %v132 = vsel %vm24, %v121, 0
  %v135 = vsel %vm24, %v122, 0
  %137 = vmatpush.msra.mxu0 0.0
  %138 = vmatpush.msra.mxu0 0.0
  %139 = vmatpush.msra.mxu0 0.0
  %140 = vmatpush.msra.mxu0 0.0
  %141 = vmatpush.msra.mxu0 0.0
  %142 = vmatpush.msra.mxu0 0.0
  %143 = vmatpush.msra.mxu0 0.0
  %144 = vmatpush.msra.mxu0 0.0
  %145 = vmatpush.msra.mxu0 0.0
  %146 = vmatpush.msra.mxu0 0.0
  %147 = vmatpush.msra.mxu0 0.0
  %148 = vmatpush.msra.mxu0 0.0
  %v149 = vand.u32 %v126, 4294901760
  %150 = vmatpush.msra.mxu0 %v149
  %v151 = vand.u32 %v125, 4294901760
  %152 = vmatpush.msra.mxu0 %v151
  %v153 = vand.u32 %v124, 4294901760
  %154 = vmatpush.msra.mxu0 %v153
  %v155 = vand.u32 %v123, 4294901760
  %156 = vmatpush.msra.mxu0 %v155
  %v157 = vand.u32 %v132, 4294901760
  %v158 = vsub.f32 %v132, %v157
  %v159 = vand.u32 %v158, 4294901760
  %v160 = vsub.f32 %v158, %v159
  %v161 = vand.u32 %v160, 4294901760
  %162 = vmatmul.f32.gmra.mxu0 %v161
  %v163 = vpop.f32.mrf.mxu0
  %v164 = vadd.f32 %v129, %v163
  %v165 = vand.u32 %v135, 4294901760
  %v166 = vsub.f32 %v135, %v165
  %v167 = vand.u32 %v166, 4294901760
  %v168 = vsub.f32 %v166, %v167
  %v169 = vand.u32 %v168, 4294901760
  %170 = vmatmul.f32.gmra.mxu0 %v169
  %v171 = vpop.f32.mrf.mxu0
  %v172 = vadd.f32 %v129, %v171
  %173 = vdwg.mxu0
  %174 = vmatpush.msra.mxu0 0.0
  %175 = vmatpush.msra.mxu0 0.0
  %176 = vmatpush.msra.mxu0 0.0
  %177 = vmatpush.msra.mxu0 0.0
  %178 = vmatpush.msra.mxu0 0.0
  %179 = vmatpush.msra.mxu0 0.0
  %180 = vmatpush.msra.mxu0 0.0
  %181 = vmatpush.msra.mxu0 0.0
  %182 = vmatpush.msra.mxu0 0.0
  %183 = vmatpush.msra.mxu0 0.0
  %184 = vmatpush.msra.mxu0 0.0
  %185 = vmatpush.msra.mxu0 0.0
  %v186 = vand.u32 %v126, 4294901760
  %v187 = vsub.f32 %v126, %v186
  %v188 = vand.u32 %v187, 4294901760
  %v189 = vsub.f32 %v187, %v188
  %v190 = vand.u32 %v189, 4294901760
  %191 = vmatpush.msra.mxu0 %v190
  %v192 = vand.u32 %v125, 4294901760
  %v193 = vsub.f32 %v125, %v192
  %v194 = vand.u32 %v193, 4294901760
  %v195 = vsub.f32 %v193, %v194
  %v196 = vand.u32 %v195, 4294901760
  %197 = vmatpush.msra.mxu0 %v196
  %v198 = vand.u32 %v124, 4294901760
  %v199 = vsub.f32 %v124, %v198
  %v200 = vand.u32 %v199, 4294901760
  %v201 = vsub.f32 %v199, %v200
  %v202 = vand.u32 %v201, 4294901760
  %203 = vmatpush.msra.mxu0 %v202
  %v204 = vand.u32 %v123, 4294901760
  %v205 = vsub.f32 %v123, %v204
  %v206 = vand.u32 %v205, 4294901760
  %v207 = vsub.f32 %v205, %v206
  %v208 = vand.u32 %v207, 4294901760
  %209 = vmatpush.msra.mxu0 %v208
  %v210 = vand.u32 %v132, 4294901760
  %211 = vmatmul.f32.gmra.mxu0 %v210
  %v212 = vpop.f32.mrf.mxu0
  %v213 = vadd.f32 %v164, %v212
  %v214 = vand.u32 %v135, 4294901760
  %215 = vmatmul.f32.gmra.mxu0 %v214
  %v216 = vpop.f32.mrf.mxu0
  %v217 = vadd.f32 %v172, %v216
  %218 = vdwg.mxu0
  %219 = vmatpush.msra.mxu0 0.0
  %220 = vmatpush.msra.mxu0 0.0
  %221 = vmatpush.msra.mxu0 0.0
  %222 = vmatpush.msra.mxu0 0.0
  %223 = vmatpush.msra.mxu0 0.0
  %224 = vmatpush.msra.mxu0 0.0
  %225 = vmatpush.msra.mxu0 0.0
  %226 = vmatpush.msra.mxu0 0.0
  %227 = vmatpush.msra.mxu0 0.0
  %228 = vmatpush.msra.mxu0 0.0
  %229 = vmatpush.msra.mxu0 0.0
  %230 = vmatpush.msra.mxu0 0.0
  %v231 = vand.u32 %v126, 4294901760
  %v232 = vsub.f32 %v126, %v231
  %233 = vmatpush.msra.mxu0 %v232
  %v234 = vand.u32 %v125, 4294901760
  %v235 = vsub.f32 %v125, %v234
  %236 = vmatpush.msra.mxu0 %v235
  %v237 = vand.u32 %v124, 4294901760
  %v238 = vsub.f32 %v124, %v237
  %239 = vmatpush.msra.mxu0 %v238
  %v240 = vand.u32 %v123, 4294901760
  %v241 = vsub.f32 %v123, %v240
  %242 = vmatpush.msra.mxu0 %v241
  %v243 = vand.u32 %v132, 4294901760
  %v244 = vsub.f32 %v132, %v243
  %245 = vmatmul.f32.gmra.mxu0 %v244
  %v246 = vpop.f32.mrf.mxu0
  %v247 = vadd.f32 %v213, %v246
  %v248 = vand.u32 %v135, 4294901760
  %v249 = vsub.f32 %v135, %v248
  %250 = vmatmul.f32.gmra.mxu0 %v249
  %v251 = vpop.f32.mrf.mxu0
  %v252 = vadd.f32 %v217, %v251
  %253 = vdwg.mxu0
  %254 = vmatpush.msra.mxu0 0.0
  %255 = vmatpush.msra.mxu0 0.0
  %256 = vmatpush.msra.mxu0 0.0
  %257 = vmatpush.msra.mxu0 0.0
  %258 = vmatpush.msra.mxu0 0.0
  %259 = vmatpush.msra.mxu0 0.0
  %260 = vmatpush.msra.mxu0 0.0
  %261 = vmatpush.msra.mxu0 0.0
  %262 = vmatpush.msra.mxu0 0.0
  %263 = vmatpush.msra.mxu0 0.0
  %264 = vmatpush.msra.mxu0 0.0
  %265 = vmatpush.msra.mxu0 0.0
  %v266 = vand.u32 %v126, 4294901760
  %267 = vmatpush.msra.mxu0 %v266
  %v268 = vand.u32 %v125, 4294901760
  %269 = vmatpush.msra.mxu0 %v268
  %v270 = vand.u32 %v124, 4294901760
  %271 = vmatpush.msra.mxu0 %v270
  %v272 = vand.u32 %v123, 4294901760
  %273 = vmatpush.msra.mxu0 %v272
  %v274 = vand.u32 %v132, 4294901760
  %v275 = vsub.f32 %v132, %v274
  %v276 = vand.u32 %v275, 4294901760
  %277 = vmatmul.f32.gmra.mxu0 %v276
  %v278 = vpop.f32.mrf.mxu0
  %v279 = vadd.f32 %v247, %v278
  %v280 = vand.u32 %v135, 4294901760
  %v281 = vsub.f32 %v135, %v280
  %v282 = vand.u32 %v281, 4294901760
  %283 = vmatmul.f32.gmra.mxu0 %v282
  %v284 = vpop.f32.mrf.mxu0
  %v285 = vadd.f32 %v252, %v284
  %286 = vdwg.mxu0
  %287 = vmatpush.msra.mxu0 0.0
  %288 = vmatpush.msra.mxu0 0.0
  %289 = vmatpush.msra.mxu0 0.0
  %290 = vmatpush.msra.mxu0 0.0
  %291 = vmatpush.msra.mxu0 0.0
  %292 = vmatpush.msra.mxu0 0.0
  %293 = vmatpush.msra.mxu0 0.0
  %294 = vmatpush.msra.mxu0 0.0
  %295 = vmatpush.msra.mxu0 0.0
  %296 = vmatpush.msra.mxu0 0.0
  %297 = vmatpush.msra.mxu0 0.0
  %298 = vmatpush.msra.mxu0 0.0
  %v299 = vand.u32 %v126, 4294901760
  %v300 = vsub.f32 %v126, %v299
  %v301 = vand.u32 %v300, 4294901760
  %302 = vmatpush.msra.mxu0 %v301
  %v303 = vand.u32 %v125, 4294901760
  %v304 = vsub.f32 %v125, %v303
  %v305 = vand.u32 %v304, 4294901760
  %306 = vmatpush.msra.mxu0 %v305
  %v307 = vand.u32 %v124, 4294901760
  %v308 = vsub.f32 %v124, %v307
  %v309 = vand.u32 %v308, 4294901760
  %310 = vmatpush.msra.mxu0 %v309
  %v311 = vand.u32 %v123, 4294901760
  %v312 = vsub.f32 %v123, %v311
  %v313 = vand.u32 %v312, 4294901760
  %314 = vmatpush.msra.mxu0 %v313
  %v315 = vand.u32 %v132, 4294901760
  %316 = vmatmul.f32.gmra.mxu0 %v315
  %v317 = vpop.f32.mrf.mxu0
  %v318 = vadd.f32 %v279, %v317
  %v319 = vand.u32 %v135, 4294901760
  %320 = vmatmul.f32.gmra.mxu0 %v319
  %v321 = vpop.f32.mrf.mxu0
  %v322 = vadd.f32 %v285, %v321
  %323 = vdwg.mxu0
  %324 = vmatpush.msra.mxu0 0.0
  %325 = vmatpush.msra.mxu0 0.0
  %326 = vmatpush.msra.mxu0 0.0
  %327 = vmatpush.msra.mxu0 0.0
  %328 = vmatpush.msra.mxu0 0.0
  %329 = vmatpush.msra.mxu0 0.0
  %330 = vmatpush.msra.mxu0 0.0
  %331 = vmatpush.msra.mxu0 0.0
  %332 = vmatpush.msra.mxu0 0.0
  %333 = vmatpush.msra.mxu0 0.0
  %334 = vmatpush.msra.mxu0 0.0
  %335 = vmatpush.msra.mxu0 0.0
  %v336 = vand.u32 %v126, 4294901760
  %337 = vmatpush.msra.mxu0 %v336
  %v338 = vand.u32 %v125, 4294901760
  %339 = vmatpush.msra.mxu0 %v338
  %v340 = vand.u32 %v124, 4294901760
  %341 = vmatpush.msra.mxu0 %v340
  %v342 = vand.u32 %v123, 4294901760
  %343 = vmatpush.msra.mxu0 %v342
  %v344 = vand.u32 %v132, 4294901760
  %345 = vmatmul.f32.gmra.mxu0 %v344
  %v346 = vpop.f32.mrf.mxu0
  %v347 = vadd.f32 %v318, %v346
  %v348 = vand.u32 %v135, 4294901760
  %349 = vmatmul.f32.gmra.mxu0 %v348
  %v350 = vpop.f32.mrf.mxu0
  %v351 = vadd.f32 %v322, %v350
  %352 = vdwg.mxu0
  %353 = vst.msk [vmem:[%s5] sm:$0xff] %vm24, %v347
  %354 = vst.msk [vmem:[%s5 + $0x8] sm:$0xff] %vm24, %v351
  // Predicated region
  $region22: #{decoder_block_forward.12} parent=0 // pred_check
    _
  $region23: #{decoder_block_forward.12} parent=0 // pred_check_branch
    %356 = sbr.rel (0) target = $region25
  $region24: #{decoder_block_forward.12} parent=0 // pred_region
    _
  $region25: #{decoder_block_forward.12} parent=0 // pred_fallthru
    _
  // Predicated region
  $region26: #{decoder_block_forward.12} parent=0 // pred_check
    _
  $region27: #{decoder_block_forward.12} parent=0 // pred_check_branch
    %358 = sbr.rel (0) target = $region29
  $region28: #{decoder_block_forward.12} parent=0 // pred_region
    _
  $region29: #{decoder_block_forward.12} parent=0 // pred_fallthru
    _

// kernel: decoder_block_forward.9
$region0: #{decoder_block_forward.9}
  #allocation0 [shape = 'u32[]', space=smem, size = 0x4, offset = 0x4, fixed_abs, tag = 'smem constant byte address 0x4 - core index']
  #allocation1 [shape = 'u32[72,128]{1,0:T(1,128)}', space=vmem, size = 0x9000, scoped, tag = 'internal scratch']
  #allocation2 [shape = 'f32[1]{0:T(128)S(6)}', space=smem, size = 0x200, scoped, tag = 'scoped memory for decoder_block_forward.9']
  #allocation3 [shape = 'f32[1]{0:T(128)S(6)}', space=smem, size = 0x200, scoped, tag = 'scoped memory for decoder_block_forward.9']
  %s0 = inlined_call_operand.vmem [shape: f32[16,32], index: 0, kind: input, shape index: {}]
  %s1 = inlined_call_operand.hbm [shape: f32[32,96], index: 1, kind: input, shape index: {}]
  %s2 = inlined_call_operand.vmem [shape: f32[1,96], index: 2, kind: input, shape index: {}]
  %s3 = inlined_call_operand.<no memory space> [shape: f32[1], index: 3, kind: input, shape index: {}]
  %s4 = inlined_call_operand.<no memory space> [shape: f32[1], index: 4, kind: input, shape index: {}]
  %s5 = inlined_call_operand.vmem [shape: f32[16,96], index: 5, kind: output, shape index: {}]
  %s6 = sld [smem:[#allocation0]]
  $region34: #{decoder_block_forward.9} parent=0
    _
  %s8 = ssub.s32 1, %s6
  %s9 = scalar_select 0, %s8, %s6
  %10 = sst [smem:[#allocation2]] %s3
  %11 = sst [smem:[#allocation3]] %s4
  $region1: #{decoder_block_forward.9} parent=0
    #allocation4 [shape = 'u8[16384]{0}', space=vmem, size = 0x4000, scoped, tag = 'input window, operand 1, single buffered']
    #allocation5 [shape = 's32[1]{0}', space=sflag, size = 0x4, scoped, tag = 'scoped memory for decoder_block_forward.9']
    %12 = vsyncpa [#allocation5], 0
    // Predicated region
    $region2: #{decoder_block_forward.9} parent=1 // pred_check
      _
    $region3: #{decoder_block_forward.9} parent=1 // pred_check_branch
      %14 = sbr.rel (0) target = $region5
    $region4: #{decoder_block_forward.9} parent=1 // pred_region
      _
    $region5: #{decoder_block_forward.9} parent=1 // pred_fallthru
      _
    // Predicated region
    $region6: #{decoder_block_forward.9} parent=1 // pred_check
      _
    $region7: #{decoder_block_forward.9} parent=1 // pred_check_branch
      %16 = sbr.rel (0) target = $region9
    $region8: #{decoder_block_forward.9} parent=1 // pred_region
      %18 = vsyncadd [#allocation5], 0
      %s19 = sshll.u32 %s1, 4
      %s20 = int_to_ptr.hbm [resolvable:$true] %s19
      %s21 = sshll.u32 [#allocation4], 4
      %s22 = int_to_ptr.vmem [resolvable:$true] %s21
      %27 = dma.hbm_to_vmem [thread:$0]  %s20, 512, %s22, [#allocation5], 128, 128, 8
    $region9: #{decoder_block_forward.9} parent=1 // pred_fallthru
      _
    // Predicated region
    $region10: #{decoder_block_forward.9} parent=1 // pred_check
      _
    $region11: #{decoder_block_forward.9} parent=1 // pred_check_branch
      %29 = sbr.rel (0) target = $region13
    $region12: #{decoder_block_forward.9} parent=1 // pred_region
      _
    $region13: #{decoder_block_forward.9} parent=1 // pred_fallthru
      _
    // Predicated region
    $region14: #{decoder_block_forward.9} parent=1 // pred_check
      _
    $region15: #{decoder_block_forward.9} parent=1 // pred_check_branch
      %31 = sbr.rel (0) target = $region17
    $region16: #{decoder_block_forward.9} parent=1 // pred_region
      _
    $region17: #{decoder_block_forward.9} parent=1 // pred_fallthru
      _
    // Predicated region
    $region18: #{decoder_block_forward.9} parent=1 // pred_check
      _
    $region19: #{decoder_block_forward.9} parent=1 // pred_check_branch
      %33 = sbr.rel (0) target = $region21
    $region20: #{decoder_block_forward.9} parent=1 // pred_region
      _
    $region21: #{decoder_block_forward.9} parent=1 // pred_fallthru
      _
    // Predicated region
    $region22: #{decoder_block_forward.9} parent=1 // pred_check
      _
    $region23: #{decoder_block_forward.9} parent=1 // pred_check_branch
      %35 = sbr.rel (0) target = $region25
    $region24: #{decoder_block_forward.9} parent=1 // pred_region
      %37 = dma.done [#allocation5], 512
    $region25: #{decoder_block_forward.9} parent=1 // pred_fallthru
      _
    %v38 = vld [vmem:[%s0] sm:$0xff]
    %v39 = vld [vmem:[%s0 + $0x8] sm:$0xff]
    %vm40 = vcmask 261120
    %v41 = vsel %vm40, %v38, 0.0
    %42 = vadd.xlane.f32.xlu0 %v41
    %v43 = vpop.xlane.xlu0 %42
    %v44 = vsel %vm40, %v39, 0.0
    %45 = vadd.xlane.f32.xlu0 %v44
    %v46 = vpop.xlane.xlu0 %45
    %v47 = vrcp.pop 32.0
    %v48 = vmul.f32 32.0, %v47
    %v49 = vsub.f32 1.0, %v48
    %v50 = vmul.f32 %v47, %v49
    %v51 = vadd.f32 %v47, %v50
    %vm52 = vweird.f32 %v47
    %v53 = vsel %vm52, %v47, %v51
    %v54 = vmul.f32 %v43, %v53
    %v55 = vmul.f32 %v46, %v53
    %v56 = vsub.f32 %v38, %v54
    %v57 = vsub.f32 %v39, %v55
    %v58 = vmul.f32 %v56, %v56
    %v59 = vmul.f32 %v57, %v57
    %v60 = vsel %vm40, %v58, 0.0
    %61 = vadd.xlane.f32.xlu0 %v60
    %v62 = vpop.xlane.xlu0 %61
    %v63 = vsel %vm40, %v59, 0.0
    %64 = vadd.xlane.f32.xlu0 %v63
    %v65 = vpop.xlane.xlu0 %64
    %v66 = vrcp.pop 31.0
    %v67 = vmul.f32 31.0, %v66
    %v68 = vsub.f32 1.0, %v67
    %v69 = vmul.f32 %v66, %v68
    %v70 = vadd.f32 %v66, %v69
    %vm71 = vweird.f32 %v66
    %v72 = vsel %vm71, %v66, %v70
    %v73 = vmul.f32 %v62, %v72
    %v74 = vmul.f32 %v65, %v72
    %v75 = vrsqrt.pop %v73
    %v76 = vmul.f32 %v75, %v73
    %v77 = vmul.f32 %v76, %v75
    %v78 = vmul.f32 0.5, %v77
    %v79 = vsub.f32 1.5, %v78
    %v80 = vmul.f32 %v75, %v79
    %v81 = vmul.f32 %v73, %v80
    %vm82 = vcmp.eq.f32.partialorder %v73, inf
    %v83 = vsel %vm82, %v73, %v81
    %vm84 = vcmp.eq.f32.partialorder %v73, 0.0
    %v85 = vand.u32 %v73, 2147483648
    %v86 = vsel %vm84, %v85, %v83
    %v87 = vrsqrt.pop %v74
    %v88 = vmul.f32 %v87, %v74
    %v89 = vmul.f32 %v88, %v87
    %v90 = vmul.f32 0.5, %v89
    %v91 = vsub.f32 1.5, %v90
    %v92 = vmul.f32 %v87, %v91
    %v93 = vmul.f32 %v74, %v92
    %vm94 = vcmp.eq.f32.partialorder %v74, inf
    %v95 = vsel %vm94, %v74, %v93
    %vm96 = vcmp.eq.f32.partialorder %v74, 0.0
    %v97 = vand.u32 %v74, 2147483648
    %v98 = vsel %vm96, %v97, %v95
    %s99 = sld [smem:[#allocation2]]
    %v100 = vstv %s99
    %v101 = vmul.f32 %v100, %v56
    %v102 = vmul.f32 %v100, %v57
    %v103 = vadd.f32 %v86, 1e-06
    %v104 = vadd.f32 %v98, 1e-06
    %v105 = vrcp.pop %v103
    %v106 = vmul.f32 %v103, %v105
    %v107 = vsub.f32 1.0, %v106
    %v108 = vmul.f32 %v105, %v107
    %v109 = vadd.f32 %v105, %v108
    %vm110 = vweird.f32 %v103
    %vm111 = vweird.f32 %v105
    %vm112 = vmor %vm110, %vm111
    %v113 = vsel %vm112, %v105, %v109
    %v114 = vand.u32 2147483647, %v103
    %vm115 = vcmp.eq.f32.partialorder %v114, 8.507059e+37
    %v116 = vand.u32 %v103, 2147483648
    %v117 = vor.u32 1.1754944e-38, %v116
    %v118 = vsel %vm115, %v117, %v113
    %v119 = vmul.f32 %v101, %v118
    %v120 = vrcp.pop %v104
    %v121 = vmul.f32 %v104, %v120
    %v122 = vsub.f32 1.0, %v121
    %v123 = vmul.f32 %v120, %v122
    %v124 = vadd.f32 %v120, %v123
    %vm125 = vweird.f32 %v104
    %vm126 = vweird.f32 %v120
    %vm127 = vmor %vm125, %vm126
    %v128 = vsel %vm127, %v120, %v124
    %v129 = vand.u32 2147483647, %v104
    %vm130 = vcmp.eq.f32.partialorder %v129, 8.507059e+37
    %v131 = vand.u32 %v104, 2147483648
    %v132 = vor.u32 1.1754944e-38, %v131
    %v133 = vsel %vm130, %v132, %v128
    %v134 = vmul.f32 %v102, %v133
    %s135 = sld [smem:[#allocation3]]
    %v136 = vstv %s135
    %v137 = vadd.f32 %v119, %v136
    %v138 = vadd.f32 %v134, %v136
    %v139 = vld [vmem:[#allocation4] sm:$0xff]
    %v140 = vld [vmem:[#allocation4 + $0x8] sm:$0xff]
    %v141 = vld [vmem:[#allocation4 + $0x10] sm:$0xff]
    %v142 = vld [vmem:[#allocation4 + $0x18] sm:$0xff]
    %v143 = vld [vmem:[%s2] sm:$0x1]
    %v145 = vperm.slane %v143, 0
    %v148 = vsel %vm40, %v137, 0
    %v151 = vsel %vm40, %v138, 0
    %153 = vmatpush.msra.mxu0 0.0
    %154 = vmatpush.msra.mxu0 0.0
    %155 = vmatpush.msra.mxu0 0.0
    %156 = vmatpush.msra.mxu0 0.0
    %157 = vmatpush.msra.mxu0 0.0
    %158 = vmatpush.msra.mxu0 0.0
    %159 = vmatpush.msra.mxu0 0.0
    %160 = vmatpush.msra.mxu0 0.0
    %161 = vmatpush.msra.mxu0 0.0
    %162 = vmatpush.msra.mxu0 0.0
    %163 = vmatpush.msra.mxu0 0.0
    %164 = vmatpush.msra.mxu0 0.0
    %v165 = vand.u32 %v142, 4294901760
    %166 = vmatpush.msra.mxu0 %v165
    %v167 = vand.u32 %v141, 4294901760
    %168 = vmatpush.msra.mxu0 %v167
    %v169 = vand.u32 %v140, 4294901760
    %170 = vmatpush.msra.mxu0 %v169
    %v171 = vand.u32 %v139, 4294901760
    %172 = vmatpush.msra.mxu0 %v171
    %v173 = vand.u32 %v148, 4294901760
    %v174 = vsub.f32 %v148, %v173
    %v175 = vand.u32 %v174, 4294901760
    %v176 = vsub.f32 %v174, %v175
    %v177 = vand.u32 %v176, 4294901760
    %178 = vmatmul.f32.gmra.mxu0 %v177
    %v179 = vpop.f32.mrf.mxu0
    %v180 = vadd.f32 %v145, %v179
    %v181 = vand.u32 %v151, 4294901760
    %v182 = vsub.f32 %v151, %v181
    %v183 = vand.u32 %v182, 4294901760
    %v184 = vsub.f32 %v182, %v183
    %v185 = vand.u32 %v184, 4294901760
    %186 = vmatmul.f32.gmra.mxu0 %v185
    %v187 = vpop.f32.mrf.mxu0
    %v188 = vadd.f32 %v145, %v187
    %189 = vdwg.mxu0
    %190 = vmatpush.msra.mxu0 0.0
    %191 = vmatpush.msra.mxu0 0.0
    %192 = vmatpush.msra.mxu0 0.0
    %193 = vmatpush.msra.mxu0 0.0
    %194 = vmatpush.msra.mxu0 0.0
    %195 = vmatpush.msra.mxu0 0.0
    %196 = vmatpush.msra.mxu0 0.0
    %197 = vmatpush.msra.mxu0 0.0
    %198 = vmatpush.msra.mxu0 0.0
    %199 = vmatpush.msra.mxu0 0.0
    %200 = vmatpush.msra.mxu0 0.0
    %201 = vmatpush.msra.mxu0 0.0
    %v202 = vand.u32 %v142, 4294901760
    %v203 = vsub.f32 %v142, %v202
    %v204 = vand.u32 %v203, 4294901760
    %v205 = vsub.f32 %v203, %v204
    %v206 = vand.u32 %v205, 4294901760
    %207 = vmatpush.msra.mxu0 %v206
    %v208 = vand.u32 %v141, 4294901760
    %v209 = vsub.f32 %v141, %v208
    %v210 = vand.u32 %v209, 4294901760
    %v211 = vsub.f32 %v209, %v210
    %v212 = vand.u32 %v211, 4294901760
    %213 = vmatpush.msra.mxu0 %v212
    %v214 = vand.u32 %v140, 4294901760
    %v215 = vsub.f32 %v140, %v214
    %v216 = vand.u32 %v215, 4294901760
    %v217 = vsub.f32 %v215, %v216
    %v218 = vand.u32 %v217, 4294901760
    %219 = vmatpush.msra.mxu0 %v218
    %v220 = vand.u32 %v139, 4294901760
    %v221 = vsub.f32 %v139, %v220
    %v222 = vand.u32 %v221, 4294901760
    %v223 = vsub.f32 %v221, %v222
    %v224 = vand.u32 %v223, 4294901760
    %225 = vmatpush.msra.mxu0 %v224
    %v226 = vand.u32 %v148, 4294901760
    %227 = vmatmul.f32.gmra.mxu0 %v226
    %v228 = vpop.f32.mrf.mxu0
    %v229 = vadd.f32 %v180, %v228
    %v230 = vand.u32 %v151, 4294901760
    %231 = vmatmul.f32.gmra.mxu0 %v230
    %v232 = vpop.f32.mrf.mxu0
    %v233 = vadd.f32 %v188, %v232
    %234 = vdwg.mxu0
    %235 = vmatpush.msra.mxu0 0.0
    %236 = vmatpush.msra.mxu0 0.0
    %237 = vmatpush.msra.mxu0 0.0
    %238 = vmatpush.msra.mxu0 0.0
    %239 = vmatpush.msra.mxu0 0.0
    %240 = vmatpush.msra.mxu0 0.0
    %241 = vmatpush.msra.mxu0 0.0
    %242 = vmatpush.msra.mxu0 0.0
    %243 = vmatpush.msra.mxu0 0.0
    %244 = vmatpush.msra.mxu0 0.0
    %245 = vmatpush.msra.mxu0 0.0
    %246 = vmatpush.msra.mxu0 0.0
    %v247 = vand.u32 %v142, 4294901760
    %v248 = vsub.f32 %v142, %v247
    %249 = vmatpush.msra.mxu0 %v248
    %v250 = vand.u32 %v141, 4294901760
    %v251 = vsub.f32 %v141, %v250
    %252 = vmatpush.msra.mxu0 %v251
    %v253 = vand.u32 %v140, 4294901760
    %v254 = vsub.f32 %v140, %v253
    %255 = vmatpush.msra.mxu0 %v254
    %v256 = vand.u32 %v139, 4294901760
    %v257 = vsub.f32 %v139, %v256
    %258 = vmatpush.msra.mxu0 %v257
    %v259 = vand.u32 %v148, 4294901760
    %v260 = vsub.f32 %v148, %v259
    %261 = vmatmul.f32.gmra.mxu0 %v260
    %v262 = vpop.f32.mrf.mxu0
    %v263 = vadd.f32 %v229, %v262
    %v264 = vand.u32 %v151, 4294901760
    %v265 = vsub.f32 %v151, %v264
    %266 = vmatmul.f32.gmra.mxu0 %v265
    %v267 = vpop.f32.mrf.mxu0
    %v268 = vadd.f32 %v233, %v267
    %269 = vdwg.mxu0
    %270 = vmatpush.msra.mxu0 0.0
    %271 = vmatpush.msra.mxu0 0.0
    %272 = vmatpush.msra.mxu0 0.0
    %273 = vmatpush.msra.mxu0 0.0
    %274 = vmatpush.msra.mxu0 0.0
    %275 = vmatpush.msra.mxu0 0.0
    %276 = vmatpush.msra.mxu0 0.0
    %277 = vmatpush.msra.mxu0 0.0
    %278 = vmatpush.msra.mxu0 0.0
    %279 = vmatpush.msra.mxu0 0.0
    %280 = vmatpush.msra.mxu0 0.0
    %281 = vmatpush.msra.mxu0 0.0
    %v282 = vand.u32 %v142, 4294901760
    %283 = vmatpush.msra.mxu0 %v282
    %v284 = vand.u32 %v141, 4294901760
    %285 = vmatpush.msra.mxu0 %v284
    %v286 = vand.u32 %v140, 4294901760
    %287 = vmatpush.msra.mxu0 %v286
    %v288 = vand.u32 %v139, 4294901760
    %289 = vmatpush.msra.mxu0 %v288
    %v290 = vand.u32 %v148, 4294901760
    %v291 = vsub.f32 %v148, %v290
    %v292 = vand.u32 %v291, 4294901760
    %293 = vmatmul.f32.gmra.mxu0 %v292
    %v294 = vpop.f32.mrf.mxu0
    %v295 = vadd.f32 %v263, %v294
    %v296 = vand.u32 %v151, 4294901760
    %v297 = vsub.f32 %v151, %v296
    %v298 = vand.u32 %v297, 4294901760
    %299 = vmatmul.f32.gmra.mxu0 %v298
    %v300 = vpop.f32.mrf.mxu0
    %v301 = vadd.f32 %v268, %v300
    %302 = vdwg.mxu0
    %303 = vmatpush.msra.mxu0 0.0
    %304 = vmatpush.msra.mxu0 0.0
    %305 = vmatpush.msra.mxu0 0.0
    %306 = vmatpush.msra.mxu0 0.0
    %307 = vmatpush.msra.mxu0 0.0
    %308 = vmatpush.msra.mxu0 0.0
    %309 = vmatpush.msra.mxu0 0.0
    %310 = vmatpush.msra.mxu0 0.0
    %311 = vmatpush.msra.mxu0 0.0
    %312 = vmatpush.msra.mxu0 0.0
    %313 = vmatpush.msra.mxu0 0.0
    %314 = vmatpush.msra.mxu0 0.0
    %v315 = vand.u32 %v142, 4294901760
    %v316 = vsub.f32 %v142, %v315
    %v317 = vand.u32 %v316, 4294901760
    %318 = vmatpush.msra.mxu0 %v317
    %v319 = vand.u32 %v141, 4294901760
    %v320 = vsub.f32 %v141, %v319
    %v321 = vand.u32 %v320, 4294901760
    %322 = vmatpush.msra.mxu0 %v321
    %v323 = vand.u32 %v140, 4294901760
    %v324 = vsub.f32 %v140, %v323
    %v325 = vand.u32 %v324, 4294901760
    %326 = vmatpush.msra.mxu0 %v325
    %v327 = vand.u32 %v139, 4294901760
    %v328 = vsub.f32 %v139, %v327
    %v329 = vand.u32 %v328, 4294901760
    %330 = vmatpush.msra.mxu0 %v329
    %v331 = vand.u32 %v148, 4294901760
    %332 = vmatmul.f32.gmra.mxu0 %v331
    %v333 = vpop.f32.mrf.mxu0
    %v334 = vadd.f32 %v295, %v333
    %v335 = vand.u32 %v151, 4294901760
    %336 = vmatmul.f32.gmra.mxu0 %v335
    %v337 = vpop.f32.mrf.mxu0
    %v338 = vadd.f32 %v301, %v337
    %339 = vdwg.mxu0
    %340 = vmatpush.msra.mxu0 0.0
    %341 = vmatpush.msra.mxu0 0.0
    %342 = vmatpush.msra.mxu0 0.0
    %343 = vmatpush.msra.mxu0 0.0
    %344 = vmatpush.msra.mxu0 0.0
    %345 = vmatpush.msra.mxu0 0.0
    %346 = vmatpush.msra.mxu0 0.0
    %347 = vmatpush.msra.mxu0 0.0
    %348 = vmatpush.msra.mxu0 0.0
    %349 = vmatpush.msra.mxu0 0.0
    %350 = vmatpush.msra.mxu0 0.0
    %351 = vmatpush.msra.mxu0 0.0
    %v352 = vand.u32 %v142, 4294901760
    %353 = vmatpush.msra.mxu0 %v352
    %v354 = vand.u32 %v141, 4294901760
    %355 = vmatpush.msra.mxu0 %v354
    %v356 = vand.u32 %v140, 4294901760
    %357 = vmatpush.msra.mxu0 %v356
    %v358 = vand.u32 %v139, 4294901760
    %359 = vmatpush.msra.mxu0 %v358
    %v360 = vand.u32 %v148, 4294901760
    %361 = vmatmul.f32.gmra.mxu0 %v360
    %v362 = vpop.f32.mrf.mxu0
    %v363 = vadd.f32 %v334, %v362
    %v364 = vand.u32 %v151, 4294901760
    %365 = vmatmul.f32.gmra.mxu0 %v364
    %v366 = vpop.f32.mrf.mxu0
    %v367 = vadd.f32 %v338, %v366
    %368 = vdwg.mxu0
    %vm369 = vcmask 785408
    %370 = vst.msk [vmem:[%s5] sm:$0xff] %vm369, %v363
    %371 = vst.msk [vmem:[%s5 + $0x8] sm:$0xff] %vm369, %v367
    // Predicated region
    $region26: #{decoder_block_forward.9} parent=1 // pred_check
      _
    $region27: #{decoder_block_forward.9} parent=1 // pred_check_branch
      %373 = sbr.rel (0) target = $region29
    $region28: #{decoder_block_forward.9} parent=1 // pred_region
      _
    $region29: #{decoder_block_forward.9} parent=1 // pred_fallthru
      _
    // Predicated region
    $region30: #{decoder_block_forward.9} parent=1 // pred_check
      _
    $region31: #{decoder_block_forward.9} parent=1 // pred_check_branch
      %375 = sbr.rel (0) target = $region33
    $region32: #{decoder_block_forward.9} parent=1 // pred_region
      _
    $region33: #{decoder_block_forward.9} parent=1 // pred_fallthru
      _
    %376 = vsyncpa [#allocation5], 1

// kernel: decoder_block_forward.10
$region0: #{decoder_block_forward.10}
  #allocation0 [shape = 'u32[]', space=smem, size = 0x4, offset = 0x4, fixed_abs, tag = 'smem constant byte address 0x4 - core index']
  #allocation1 [shape = 'u32[72,128]{1,0:T(1,128)}', space=vmem, size = 0x9000, scoped, tag = 'internal scratch']
  %s0 = inlined_call_operand.vmem [shape: f32[2,8,96], index: 0, kind: input, shape index: {}, may-alias: {0,1}]
  %s1 = inlined_call_operand.vmem [shape: f32[2,8,96], index: 1, kind: input, shape index: {}, may-alias: {0,1}]
  %s2 = inlined_call_operand.hbm [shape: s32[1,8,8], index: 2, kind: input, shape index: {}]
  %s3 = inlined_call_operand.vmem [shape: f32[2,8,32], index: 3, kind: output, shape index: {}]
  %s4 = sld [smem:[#allocation0]]
  $region49: #{decoder_block_forward.10} parent=0
    _
  %s6 = ssub.s32 1, %s4
  %s7 = scalar_select 0, %s6, %s4
  $region1: #{decoder_block_forward.10} parent=0
    #allocation2 [shape = 'u8[4096]{0}', space=vmem, size = 0x1000, scoped, tag = 'input window, operand 2, single buffered']
    #allocation3 [shape = 's32[2]{0}', space=sflag, size = 0x8, scoped, tag = 'scoped memory for decoder_block_forward.10']
    %8 = vsyncpa [#allocation3], 0
    loop: start=0, step=1, limit=4
    $region2: #{decoder_block_forward.10} parent=1 // loop_pre_header
      _
    $region3: #{decoder_block_forward.10} parent=1 // loop_header
      %s10 = sphi 0, %s14
      %p11 = scmp.ge.s32.totalorder %s10, 4
      %s17 = sphi 0, %s29
      %s18 = sphi 0, %s25
      %s19 = sphi 0, %s17
      %s20 = sphi 0, %s18
      %s21 = sphi 0, %s19
      %s22 = sphi 0, %s20
      %s34 = sphi 0, %s36
      %s37 = sphi 0, %s34
      %s38 = sphi 0, %s37
      %s54 = sphi 0, %s38
      %s60 = sphi 0, %s62
      %s63 = sphi 0, %s60
      %s64 = sphi 0, %s63
      %s80 = sphi 0, %s64
      %s86 = sphi 0, %s88
      %s89 = sphi 0, %s86
      %s90 = sphi 0, %s89
      %s106 = sphi 0, %s90
      %s114 = sphi 0, %s116
      %s117 = sphi 0, %s114
      %s118 = sphi 0, %s117
      %s134 = sphi 0, %s118
    $region4: #{decoder_block_forward.10} parent=1 // loop_header_branch
      %13 = sbr.rel (%p11) target = $region8
    $region5: #{decoder_block_forward.10} parent=1 // loop_body
      %s15 = ssub.s32 %s10, 1
      %s16 = ssub.s32 %s10, 2
      %s23 = sadd.s32 1, %s18
      %p24 = scmp.ge.s32.totalorder %s23, 1
      %s25 = scalar_select %p24, 0, %s23
      %s26 = sadd.s32 1, %s17
      %s27 = scalar_select %p24, %s26, %s17
      %p28 = scmp.ge.s32.totalorder %s27, 2
      %s29 = scalar_select %p28, 0, %s27
      %s30 = ssub.s32 %s17, %s29
      %s31 = ssub.s32 %s18, %s25
      %s32 = sor.u32 %s30, %s31
      %p33 = scmp.eq.s32.totalorder %s32, 0
      %s35 = sadd.s32 %s34, 1
      %s36 = scalar_select %p33, %s34, %s35
      %p39 = pneg %p33
      %p40 = scmp.eq.s32.totalorder %s10, 1
      %p41 = por %p39, %p40
      %p42 = scmp.ne.s32.totalorder %s34, %s37
      %p43 = scmp.eq.s32.totalorder %s10, 0
      %p44 = por %p42, %p43
      %p45 = scmp.ne.s32.totalorder %s34, %s37
      %p46 = scmp.eq.s32.totalorder %s15, 1
      %p47 = por %p45, %p46
      %p48 = scmp.ne.s32.totalorder %s37, %s38
      %p49 = scmp.eq.s32.totalorder %s15, 0
      %p50 = por %p48, %p49
      %p51 = scmp.ne.s32.totalorder %s37, %s38
      %p52 = scmp.eq.s32.totalorder %s16, 1
      %p53 = por %p51, %p52
      %p55 = scmp.ne.s32.totalorder %s38, %s54
      %p56 = scmp.eq.s32.totalorder %s16, 0
      %p57 = por %p55, %p56
      %s58 = ssub.s32 %s17, %s29
      %p59 = scmp.eq.s32.totalorder %s58, 0
      %s61 = sadd.s32 %s60, 1
      %s62 = scalar_select %p59, %s60, %s61
      %p65 = pneg %p59
      %p66 = scmp.eq.s32.totalorder %s10, 1
      %p67 = por %p65, %p66
      %p68 = scmp.ne.s32.totalorder %s60, %s63
      %p69 = scmp.eq.s32.totalorder %s10, 0
      %p70 = por %p68, %p69
      %p71 = scmp.ne.s32.totalorder %s60, %s63
      %p72 = scmp.eq.s32.totalorder %s15, 1
      %p73 = por %p71, %p72
      %p74 = scmp.ne.s32.totalorder %s63, %s64
      %p75 = scmp.eq.s32.totalorder %s15, 0
      %p76 = por %p74, %p75
      %p77 = scmp.ne.s32.totalorder %s63, %s64
      %p78 = scmp.eq.s32.totalorder %s16, 1
      %p79 = por %p77, %p78
      %p81 = scmp.ne.s32.totalorder %s64, %s80
      %p82 = scmp.eq.s32.totalorder %s16, 0
      %p83 = por %p81, %p82
      %s84 = ssub.s32 %s18, %s25
      %p85 = scmp.eq.s32.totalorder %s84, 0
      %s87 = sadd.s32 %s86, 1
      %s88 = scalar_select %p85, %s86, %s87
      %p91 = pneg %p85
      %p92 = scmp.eq.s32.totalorder %s10, 1
      %p93 = por %p91, %p92
      %p94 = scmp.ne.s32.totalorder %s86, %s89
      %p95 = scmp.eq.s32.totalorder %s10, 0
      %p96 = por %p94, %p95
      %p97 = scmp.ne.s32.totalorder %s86, %s89
      %p98 = scmp.eq.s32.totalorder %s15, 1
      %p99 = por %p97, %p98
      %p100 = scmp.ne.s32.totalorder %s89, %s90
      %p101 = scmp.eq.s32.totalorder %s15, 0
      %p102 = por %p100, %p101
      %p103 = scmp.ne.s32.totalorder %s89, %s90
      %p104 = scmp.eq.s32.totalorder %s16, 1
      %p105 = por %p103, %p104
      %p107 = scmp.ne.s32.totalorder %s90, %s106
      %p108 = scmp.eq.s32.totalorder %s16, 0
      %p109 = por %p107, %p108
      %s110 = ssub.s32 %s17, %s29
      %s111 = ssub.s32 %s18, %s25
      %s112 = sor.u32 %s110, %s111
      %p113 = scmp.eq.s32.totalorder %s112, 0
      %s115 = sadd.s32 %s114, 1
      %s116 = scalar_select %p113, %s114, %s115
      %p119 = pneg %p113
      %p120 = scmp.eq.s32.totalorder %s10, 1
      %p121 = por %p119, %p120
      %p122 = scmp.ne.s32.totalorder %s114, %s117
      %p123 = scmp.eq.s32.totalorder %s10, 0
      %p124 = por %p122, %p123
      %p125 = scmp.ne.s32.totalorder %s114, %s117
      %p126 = scmp.eq.s32.totalorder %s15, 1
      %p127 = por %p125, %p126
      %p128 = scmp.ne.s32.totalorder %s117, %s118
      %p129 = scmp.eq.s32.totalorder %s15, 0
      %p130 = por %p128, %p129
      %p131 = scmp.ne.s32.totalorder %s117, %s118
      %p132 = scmp.eq.s32.totalorder %s16, 1
      %p133 = por %p131, %p132
      %p135 = scmp.ne.s32.totalorder %s118, %s134
      %p136 = scmp.eq.s32.totalorder %s16, 0
      %p137 = por %p135, %p136
      %p138 = scmp.le.s32.totalorder 1, %s10
      %p139 = scmp.lt.s32.totalorder %s10, 3
      %p140 = pnand %p138, %p139
      %p141 = pneg %p140
      // Predicated region
      $region9: #{decoder_block_forward.10} parent=5 // pred_check
        _
      $region10: #{decoder_block_forward.10} parent=5 // pred_check_branch
        %143 = sbr.rel (%p140) target = $region12
      $region11: #{decoder_block_forward.10} parent=5 // pred_region
        %s144 = ssub.s32 %s10, 1
        // Predicated region
        $region13: #{decoder_block_forward.10} parent=11 // pred_check
          %p145 = pneg %p102
        $region14: #{decoder_block_forward.10} parent=11 // pred_check_branch
          %147 = sbr.rel (%p145) target = $region16
        $region15: #{decoder_block_forward.10} parent=11 // pred_region
          %149 = vsyncadd [#allocation3], 0
          %s150 = smul.addr %s20, 8
          %s151 = scalar_lea.hbm %s2, %s150
          %s153 = sshll.u32 %s151, 4
          %s154 = int_to_ptr.hbm [resolvable:$true] %s153
          %s155 = sshll.u32 [#allocation2], 4
          %s156 = int_to_ptr.vmem [resolvable:$true] %s155
          %158 = dma.hbm_to_vmem [thread:$0]  %s154, 128, %s156, [#allocation3]
        $region16: #{decoder_block_forward.10} parent=11 // pred_fallthru
          _
      $region12: #{decoder_block_forward.10} parent=5 // pred_fallthru
        _
      %p159 = scmp.lt.s32.totalorder %s10, 2
      // Predicated region
      $region17: #{decoder_block_forward.10} parent=5 // pred_check
        %p160 = pneg %p159
      $region18: #{decoder_block_forward.10} parent=5 // pred_check_branch
        %162 = sbr.rel (%p160) target = $region20
      $region19: #{decoder_block_forward.10} parent=5 // pred_region
        // Predicated region
        $region21: #{decoder_block_forward.10} parent=19 // pred_check
          %p163 = pneg %p44
        $region22: #{decoder_block_forward.10} parent=19 // pred_check_branch
          %165 = sbr.rel (%p163) target = $region24
        $region23: #{decoder_block_forward.10} parent=19 // pred_region
          %p166 = scmp.lt.s32.totalorder %s17, 1
          %s167 = scalar_select %p166, %s17, 1
          %p168 = scmp.lt.s32.totalorder %s18, 0
          %s169 = scalar_select %p168, %s18, 0
          %s170 = sadd.s32 %s169, %s167
          %s171 = smul.addr %s170, 8
          %s172 = scalar_lea.vmem %s0, %s171
        $region24: #{decoder_block_forward.10} parent=19 // pred_fallthru
          _
        // Predicated region
        $region25: #{decoder_block_forward.10} parent=19 // pred_check
          %p173 = pneg %p70
        $region26: #{decoder_block_forward.10} parent=19 // pred_check_branch
          %175 = sbr.rel (%p173) target = $region28
        $region27: #{decoder_block_forward.10} parent=19 // pred_region
          %p176 = scmp.lt.s32.totalorder %s17, 1
          %s177 = scalar_select %p176, %s17, 1
          %s178 = smul.addr %s177, 8
          %s179 = scalar_lea.vmem %s1, %s178
        $region28: #{decoder_block_forward.10} parent=19 // pred_fallthru
          _
      $region20: #{decoder_block_forward.10} parent=5 // pred_fallthru
        _
      %p180 = scmp.le.s32.totalorder 1, %s10
      %p181 = scmp.lt.s32.totalorder %s10, 3
      %p182 = pnand %p180, %p181
      %p183 = pneg %p182
      // Predicated region
      $region29: #{decoder_block_forward.10} parent=5 // pred_check
        _
      $region30: #{decoder_block_forward.10} parent=5 // pred_check_branch
        %185 = sbr.rel (%p182) target = $region32
      $region31: #{decoder_block_forward.10} parent=5 // pred_region
        %s186 = ssub.s32 %s10, 1
        // Predicated region
        $region33: #{decoder_block_forward.10} parent=31 // pred_check
          %p187 = pneg %p102
        $region34: #{decoder_block_forward.10} parent=31 // pred_check_branch
          %189 = sbr.rel (%p187) target = $region36
        $region35: #{decoder_block_forward.10} parent=31 // pred_region
          %191 = dma.done [#allocation3], 128
        $region36: #{decoder_block_forward.10} parent=31 // pred_fallthru
          _
        %p192 = scmp.lt.s32.totalorder %s19, 1
        %s193 = scalar_select %p192, %s19, 1
        %p194 = scmp.lt.s32.totalorder %s20, 0
        %s195 = scalar_select %p194, %s20, 0
        %s196 = sadd.s32 %s195, %s193
        %s197 = smul.addr %s196, 8
        %s198 = scalar_lea.vmem %s0, %s197
        %p199 = pneg %p50
        %p200 = pneg %p47
        %p201 = scmp.lt.s32.totalorder %s19, 1
        %s202 = scalar_select %p201, %s19, 1
        %s203 = smul.addr %s202, 8
        %s204 = scalar_lea.vmem %s1, %s203
        %p205 = pneg %p76
        %p206 = pneg %p73
        %p207 = pneg %p102
        %p208 = pneg %p99
        %p209 = pneg %p130
        %p210 = pneg %p127
        %p211 = scmp.lt.s32.totalorder %s19, 1
        %s212 = scalar_select %p211, %s19, 1
        %p213 = scmp.lt.s32.totalorder %s20, 0
        %s214 = scalar_select %p213, %s20, 0
        %s215 = sadd.s32 %s214, %s212
        %s216 = smul.addr %s215, 8
        %s217 = scalar_lea.vmem %s3, %s216
        %p218 = scmp.lt.s32.totalorder %s19, 1
        %s219 = scalar_select %p218, %s19, 1
        %p220 = scmp.lt.s32.totalorder %s20, 0
        %s221 = scalar_select %p220, %s20, 0
        %s222 = sadd.s32 %s221, %s219
        %s223 = smul.addr %s222, 8
        %s224 = scalar_lea.vmem %s0, %s223
        %p225 = scmp.lt.s32.totalorder %s19, 1
        %s226 = scalar_select %p225, %s19, 1
        %s227 = smul.addr %s226, 8
        %s228 = scalar_lea.vmem %s1, %s227
        %p229 = scmp.lt.s32.totalorder %s19, 1
        %s230 = scalar_select %p229, %s19, 1
        %p231 = scmp.lt.s32.totalorder %s20, 0
        %s232 = scalar_select %p231, %s20, 0
        %s233 = sadd.s32 %s232, %s230
        %s234 = smul.addr %s233, 8
        %s235 = scalar_lea.vmem %s3, %s234
        %v236 = vld [vmem:[%s224] sm:$0xff]
        %v237 = vld [vmem:[%s228] sm:$0xff]
        %v238 = vld [vmem:[#allocation2] sm:$0xff]
        %v239 = vmul.f32 %v236, 0.35355338
        %241 = vrot.lane.b32.xlu0 %v237, 96
        %v242 = vpop.permute.xlu0 %241
        %vm243 = vcmask 64512
        %v245 = vsel %vm243, %v239, 0
        %v247 = vsel %vm243, %v242, 0
        %249 = vmatpush.xpose.msra.mxu0 0.0
        %250 = vmatpush.xpose.msra.mxu0 0.0
        %251 = vmatpush.xpose.msra.mxu0 0.0
        %252 = vmatpush.xpose.msra.mxu0 0.0
        %253 = vmatpush.xpose.msra.mxu0 0.0
        %254 = vmatpush.xpose.msra.mxu0 0.0
        %255 = vmatpush.xpose.msra.mxu0 0.0
        %256 = vmatpush.xpose.msra.mxu0 0.0
        %257 = vmatpush.xpose.msra.mxu0 0.0
        %258 = vmatpush.xpose.msra.mxu0 0.0
        %259 = vmatpush.xpose.msra.mxu0 0.0
        %260 = vmatpush.xpose.msra.mxu0 0.0
        %261 = vmatpush.xpose.msra.mxu0 0.0
        %262 = vmatpush.xpose.msra.mxu0 0.0
        %263 = vmatpush.xpose.msra.mxu0 0.0
        %v264 = vand.u32 %v247, 4294901760
        %265 = vmatpush.xpose.msra.mxu0 %v264
        %v266 = vand.u32 %v245, 4294901760
        %v267 = vsub.f32 %v245, %v266
        %v268 = vand.u32 %v267, 4294901760
        %v269 = vsub.f32 %v267, %v268
        %v270 = vand.u32 %v269, 4294901760
        %271 = vmatmul.f32.gmra.mxu0 %v270
        %v272 = vpop.f32.mrf.mxu0
        %v273 = vadd.f32 0.0, %v272
        %274 = vdwg.mxu0
        %275 = vmatpush.xpose.msra.mxu0 0.0
        %276 = vmatpush.xpose.msra.mxu0 0.0
        %277 = vmatpush.xpose.msra.mxu0 0.0
        %278 = vmatpush.xpose.msra.mxu0 0.0
        %279 = vmatpush.xpose.msra.mxu0 0.0
        %280 = vmatpush.xpose.msra.mxu0 0.0
        %281 = vmatpush.xpose.msra.mxu0 0.0
        %282 = vmatpush.xpose.msra.mxu0 0.0
        %283 = vmatpush.xpose.msra.mxu0 0.0
        %284 = vmatpush.xpose.msra.mxu0 0.0
        %285 = vmatpush.xpose.msra.mxu0 0.0
        %286 = vmatpush.xpose.msra.mxu0 0.0
        %287 = vmatpush.xpose.msra.mxu0 0.0
        %288 = vmatpush.xpose.msra.mxu0 0.0
        %289 = vmatpush.xpose.msra.mxu0 0.0
        %v290 = vand.u32 %v247, 4294901760
        %v291 = vsub.f32 %v247, %v290
        %v292 = vand.u32 %v291, 4294901760
        %v293 = vsub.f32 %v291, %v292
        %v294 = vand.u32 %v293, 4294901760
        %295 = vmatpush.xpose.msra.mxu0 %v294
        %v296 = vand.u32 %v245, 4294901760
        %297 = vmatmul.f32.gmra.mxu0 %v296
        %v298 = vpop.f32.mrf.mxu0
        %v299 = vadd.f32 %v273, %v298
        %300 = vdwg.mxu0
        %301 = vmatpush.xpose.msra.mxu0 0.0
        %302 = vmatpush.xpose.msra.mxu0 0.0
        %303 = vmatpush.xpose.msra.mxu0 0.0
        %304 = vmatpush.xpose.msra.mxu0 0.0
        %305 = vmatpush.xpose.msra.mxu0 0.0
        %306 = vmatpush.xpose.msra.mxu0 0.0
        %307 = vmatpush.xpose.msra.mxu0 0.0
        %308 = vmatpush.xpose.msra.mxu0 0.0
        %309 = vmatpush.xpose.msra.mxu0 0.0
        %310 = vmatpush.xpose.msra.mxu0 0.0
        %311 = vmatpush.xpose.msra.mxu0 0.0
        %312 = vmatpush.xpose.msra.mxu0 0.0
        %313 = vmatpush.xpose.msra.mxu0 0.0
        %314 = vmatpush.xpose.msra.mxu0 0.0
        %315 = vmatpush.xpose.msra.mxu0 0.0
        %v316 = vand.u32 %v247, 4294901760
        %v317 = vsub.f32 %v247, %v316
        %318 = vmatpush.xpose.msra.mxu0 %v317
        %v319 = vand.u32 %v245, 4294901760
        %v320 = vsub.f32 %v245, %v319
        %321 = vmatmul.f32.gmra.mxu0 %v320
        %v322 = vpop.f32.mrf.mxu0
        %v323 = vadd.f32 %v299, %v322
        %324 = vdwg.mxu0
        %325 = vmatpush.xpose.msra.mxu0 0.0
        %326 = vmatpush.xpose.msra.mxu0 0.0
        %327 = vmatpush.xpose.msra.mxu0 0.0
        %328 = vmatpush.xpose.msra.mxu0 0.0
        %329 = vmatpush.xpose.msra.mxu0 0.0
        %330 = vmatpush.xpose.msra.mxu0 0.0
        %331 = vmatpush.xpose.msra.mxu0 0.0
        %332 = vmatpush.xpose.msra.mxu0 0.0
        %333 = vmatpush.xpose.msra.mxu0 0.0
        %334 = vmatpush.xpose.msra.mxu0 0.0
        %335 = vmatpush.xpose.msra.mxu0 0.0
        %336 = vmatpush.xpose.msra.mxu0 0.0
        %337 = vmatpush.xpose.msra.mxu0 0.0
        %338 = vmatpush.xpose.msra.mxu0 0.0
        %339 = vmatpush.xpose.msra.mxu0 0.0
        %v340 = vand.u32 %v247, 4294901760
        %341 = vmatpush.xpose.msra.mxu0 %v340
        %v342 = vand.u32 %v245, 4294901760
        %v343 = vsub.f32 %v245, %v342
        %v344 = vand.u32 %v343, 4294901760
        %345 = vmatmul.f32.gmra.mxu0 %v344
        %v346 = vpop.f32.mrf.mxu0
        %v347 = vadd.f32 %v323, %v346
        %348 = vdwg.mxu0
        %349 = vmatpush.xpose.msra.mxu0 0.0
        %350 = vmatpush.xpose.msra.mxu0 0.0
        %351 = vmatpush.xpose.msra.mxu0 0.0
        %352 = vmatpush.xpose.msra.mxu0 0.0
        %353 = vmatpush.xpose.msra.mxu0 0.0
        %354 = vmatpush.xpose.msra.mxu0 0.0
        %355 = vmatpush.xpose.msra.mxu0 0.0
        %356 = vmatpush.xpose.msra.mxu0 0.0
        %357 = vmatpush.xpose.msra.mxu0 0.0
        %358 = vmatpush.xpose.msra.mxu0 0.0
        %359 = vmatpush.xpose.msra.mxu0 0.0
        %360 = vmatpush.xpose.msra.mxu0 0.0
        %361 = vmatpush.xpose.msra.mxu0 0.0
        %362 = vmatpush.xpose.msra.mxu0 0.0
        %363 = vmatpush.xpose.msra.mxu0 0.0
        %v364 = vand.u32 %v247, 4294901760
        %v365 = vsub.f32 %v247, %v364
        %v366 = vand.u32 %v365, 4294901760
        %367 = vmatpush.xpose.msra.mxu0 %v366
        %v368 = vand.u32 %v245, 4294901760
        %369 = vmatmul.f32.gmra.mxu0 %v368
        %v370 = vpop.f32.mrf.mxu0
        %v371 = vadd.f32 %v347, %v370
        %372 = vdwg.mxu0
        %373 = vmatpush.xpose.msra.mxu0 0.0
        %374 = vmatpush.xpose.msra.mxu0 0.0
        %375 = vmatpush.xpose.msra.mxu0 0.0
        %376 = vmatpush.xpose.msra.mxu0 0.0
        %377 = vmatpush.xpose.msra.mxu0 0.0
        %378 = vmatpush.xpose.msra.mxu0 0.0
        %379 = vmatpush.xpose.msra.mxu0 0.0
        %380 = vmatpush.xpose.msra.mxu0 0.0
        %381 = vmatpush.xpose.msra.mxu0 0.0
        %382 = vmatpush.xpose.msra.mxu0 0.0
        %383 = vmatpush.xpose.msra.mxu0 0.0
        %384 = vmatpush.xpose.msra.mxu0 0.0
        %385 = vmatpush.xpose.msra.mxu0 0.0
        %386 = vmatpush.xpose.msra.mxu0 0.0
        %387 = vmatpush.xpose.msra.mxu0 0.0
        %v388 = vand.u32 %v247, 4294901760
        %389 = vmatpush.xpose.msra.mxu0 %v388
        %v390 = vand.u32 %v245, 4294901760
        %391 = vmatmul.f32.gmra.mxu0 %v390
        %v392 = vpop.f32.mrf.mxu0
        %v393 = vadd.f32 %v371, %v392
        %394 = vdwg.mxu0
        %vm395 = vcmp.eq.s32.totalorder %v238, 0
        %v396 = vsel %vm395, -1e+09, %v393
        %v397 = vsel %vm243, %v396, -inf
        %398 = vmax.xlane.f32.xlu0 %v397
        %v399 = vpop.xlane.xlu0 %398
        %v400 = vsub.f32 %v396, %v399
        %v401 = vmul.f32 %v400, 1.442695
        %v402 = vpow.pop %v401
        %v403 = vsel %vm243, %v402, 0.0
        %404 = vadd.xlane.f32.xlu0 %v403
        %v405 = vpop.xlane.xlu0 %404
        %v406 = vrcp.pop %v405
        %v407 = vmul.f32 %v402, %v406
        %408 = vrot.lane.b32.xlu0 %v237, 64
        %v409 = vpop.permute.xlu0 %408
        %v412 = vsel %vm243, %v407, 0
        %414 = vmatpush.msra.mxu0 0.0
        %415 = vmatpush.msra.mxu0 0.0
        %416 = vmatpush.msra.mxu0 0.0
        %417 = vmatpush.msra.mxu0 0.0
        %418 = vmatpush.msra.mxu0 0.0
        %419 = vmatpush.msra.mxu0 0.0
        %420 = vmatpush.msra.mxu0 0.0
        %421 = vmatpush.msra.mxu0 0.0
        %422 = vmatpush.msra.mxu0 0.0
        %423 = vmatpush.msra.mxu0 0.0
        %424 = vmatpush.msra.mxu0 0.0
        %425 = vmatpush.msra.mxu0 0.0
        %426 = vmatpush.msra.mxu0 0.0
        %427 = vmatpush.msra.mxu0 0.0
        %428 = vmatpush.msra.mxu0 0.0
        %v429 = vand.u32 %v409, 4294901760
        %430 = vmatpush.msra.mxu0 %v429
        %v431 = vand.u32 %v412, 4294901760
        %v432 = vsub.f32 %v412, %v431
        %v433 = vand.u32 %v432, 4294901760
        %v434 = vsub.f32 %v432, %v433
        %v435 = vand.u32 %v434, 4294901760
        %436 = vmatmul.f32.gmra.mxu0 %v435
        %v437 = vpop.f32.mrf.mxu0
        %v438 = vadd.f32 0.0, %v437
        %439 = vdwg.mxu0
        %440 = vmatpush.msra.mxu0 0.0
        %441 = vmatpush.msra.mxu0 0.0
        %442 = vmatpush.msra.mxu0 0.0
        %443 = vmatpush.msra.mxu0 0.0
        %444 = vmatpush.msra.mxu0 0.0
        %445 = vmatpush.msra.mxu0 0.0
        %446 = vmatpush.msra.mxu0 0.0
        %447 = vmatpush.msra.mxu0 0.0
        %448 = vmatpush.msra.mxu0 0.0
        %449 = vmatpush.msra.mxu0 0.0
        %450 = vmatpush.msra.mxu0 0.0
        %451 = vmatpush.msra.mxu0 0.0
        %452 = vmatpush.msra.mxu0 0.0
        %453 = vmatpush.msra.mxu0 0.0
        %454 = vmatpush.msra.mxu0 0.0
        %v455 = vand.u32 %v409, 4294901760
        %v456 = vsub.f32 %v409, %v455
        %v457 = vand.u32 %v456, 4294901760
        %v458 = vsub.f32 %v456, %v457
        %v459 = vand.u32 %v458, 4294901760
        %460 = vmatpush.msra.mxu0 %v459
        %v461 = vand.u32 %v412, 4294901760
        %462 = vmatmul.f32.gmra.mxu0 %v461
        %v463 = vpop.f32.mrf.mxu0
        %v464 = vadd.f32 %v438, %v463
        %465 = vdwg.mxu0
        %466 = vmatpush.msra.mxu0 0.0
        %467 = vmatpush.msra.mxu0 0.0
        %468 = vmatpush.msra.mxu0 0.0
        %469 = vmatpush.msra.mxu0 0.0
        %470 = vmatpush.msra.mxu0 0.0
        %471 = vmatpush.msra.mxu0 0.0
        %472 = vmatpush.msra.mxu0 0.0
        %473 = vmatpush.msra.mxu0 0.0
        %474 = vmatpush.msra.mxu0 0.0
        %475 = vmatpush.msra.mxu0 0.0
        %476 = vmatpush.msra.mxu0 0.0
        %477 = vmatpush.msra.mxu0 0.0
        %478 = vmatpush.msra.mxu0 0.0
        %479 = vmatpush.msra.mxu0 0.0
        %480 = vmatpush.msra.mxu0 0.0
        %v481 = vand.u32 %v409, 4294901760
        %v482 = vsub.f32 %v409, %v481
        %483 = vmatpush.msra.mxu0 %v482
        %v484 = vand.u32 %v412, 4294901760
        %v485 = vsub.f32 %v412, %v484
        %486 = vmatmul.f32.gmra.mxu0 %v485
        %v487 = vpop.f32.mrf.mxu0
        %v488 = vadd.f32 %v464, %v487
        %489 = vdwg.mxu0
        %490 = vmatpush.msra.mxu0 0.0
        %491 = vmatpush.msra.mxu0 0.0
        %492 = vmatpush.msra.mxu0 0.0
        %493 = vmatpush.msra.mxu0 0.0
        %494 = vmatpush.msra.mxu0 0.0
        %495 = vmatpush.msra.mxu0 0.0
        %496 = vmatpush.msra.mxu0 0.0
        %497 = vmatpush.msra.mxu0 0.0
        %498 = vmatpush.msra.mxu0 0.0
        %499 = vmatpush.msra.mxu0 0.0
        %500 = vmatpush.msra.mxu0 0.0
        %501 = vmatpush.msra.mxu0 0.0
        %502 = vmatpush.msra.mxu0 0.0
        %503 = vmatpush.msra.mxu0 0.0
        %504 = vmatpush.msra.mxu0 0.0
        %v505 = vand.u32 %v409, 4294901760
        %506 = vmatpush.msra.mxu0 %v505
        %v507 = vand.u32 %v412, 4294901760
        %v508 = vsub.f32 %v412, %v507
        %v509 = vand.u32 %v508, 4294901760
        %510 = vmatmul.f32.gmra.mxu0 %v509
        %v511 = vpop.f32.mrf.mxu0
        %v512 = vadd.f32 %v488, %v511
        %513 = vdwg.mxu0
        %514 = vmatpush.msra.mxu0 0.0
        %515 = vmatpush.msra.mxu0 0.0
        %516 = vmatpush.msra.mxu0 0.0
        %517 = vmatpush.msra.mxu0 0.0
        %518 = vmatpush.msra.mxu0 0.0
        %519 = vmatpush.msra.mxu0 0.0
        %520 = vmatpush.msra.mxu0 0.0
        %521 = vmatpush.msra.mxu0 0.0
        %522 = vmatpush.msra.mxu0 0.0
        %523 = vmatpush.msra.mxu0 0.0
        %524 = vmatpush.msra.mxu0 0.0
        %525 = vmatpush.msra.mxu0 0.0
        %526 = vmatpush.msra.mxu0 0.0
        %527 = vmatpush.msra.mxu0 0.0
        %528 = vmatpush.msra.mxu0 0.0
        %v529 = vand.u32 %v409, 4294901760
        %v530 = vsub.f32 %v409, %v529
        %v531 = vand.u32 %v530, 4294901760
        %532 = vmatpush.msra.mxu0 %v531
        %v533 = vand.u32 %v412, 4294901760
        %534 = vmatmul.f32.gmra.mxu0 %v533
        %v535 = vpop.f32.mrf.mxu0
        %v536 = vadd.f32 %v512, %v535
        %537 = vdwg.mxu0
        %538 = vmatpush.msra.mxu0 0.0
        %539 = vmatpush.msra.mxu0 0.0
        %540 = vmatpush.msra.mxu0 0.0
        %541 = vmatpush.msra.mxu0 0.0
        %542 = vmatpush.msra.mxu0 0.0
        %543 = vmatpush.msra.mxu0 0.0
        %544 = vmatpush.msra.mxu0 0.0
        %545 = vmatpush.msra.mxu0 0.0
        %546 = vmatpush.msra.mxu0 0.0
        %547 = vmatpush.msra.mxu0 0.0
        %548 = vmatpush.msra.mxu0 0.0
        %549 = vmatpush.msra.mxu0 0.0
        %550 = vmatpush.msra.mxu0 0.0
        %551 = vmatpush.msra.mxu0 0.0
        %552 = vmatpush.msra.mxu0 0.0
        %v553 = vand.u32 %v409, 4294901760
        %554 = vmatpush.msra.mxu0 %v553
        %v555 = vand.u32 %v412, 4294901760
        %556 = vmatmul.f32.gmra.mxu0 %v555
        %v557 = vpop.f32.mrf.mxu0
        %v558 = vadd.f32 %v536, %v557
        %559 = vdwg.mxu0
        %560 = vrot.lane.b32.xlu0 %v239, 120
        %v561 = vpop.permute.xlu0 %560
        %562 = vrot.lane.b32.xlu0 %v237, 88
        %v563 = vpop.permute.xlu0 %562
        %v564 = vsel %vm243, %v561, 0
        %v566 = vsel %vm243, %v563, 0
        %568 = vmatpush.xpose.msra.mxu0 0.0
        %569 = vmatpush.xpose.msra.mxu0 0.0
        %570 = vmatpush.xpose.msra.mxu0 0.0
        %571 = vmatpush.xpose.msra.mxu0 0.0
        %572 = vmatpush.xpose.msra.mxu0 0.0
        %573 = vmatpush.xpose.msra.mxu0 0.0
        %574 = vmatpush.xpose.msra.mxu0 0.0
        %575 = vmatpush.xpose.msra.mxu0 0.0
        %576 = vmatpush.xpose.msra.mxu0 0.0
        %577 = vmatpush.xpose.msra.mxu0 0.0
        %578 = vmatpush.xpose.msra.mxu0 0.0
        %579 = vmatpush.xpose.msra.mxu0 0.0
        %580 = vmatpush.xpose.msra.mxu0 0.0
        %581 = vmatpush.xpose.msra.mxu0 0.0
        %582 = vmatpush.xpose.msra.mxu0 0.0
        %v583 = vand.u32 %v566, 4294901760
        %584 = vmatpush.xpose.msra.mxu0 %v583
        %v585 = vand.u32 %v564, 4294901760
        %v586 = vsub.f32 %v564, %v585
        %v587 = vand.u32 %v586, 4294901760
        %v588 = vsub.f32 %v586, %v587
        %v589 = vand.u32 %v588, 4294901760
        %590 = vmatmul.f32.gmra.mxu0 %v589
        %v591 = vpop.f32.mrf.mxu0
        %v592 = vadd.f32 0.0, %v591
        %593 = vdwg.mxu0
        %594 = vmatpush.xpose.msra.mxu0 0.0
        %595 = vmatpush.xpose.msra.mxu0 0.0
        %596 = vmatpush.xpose.msra.mxu0 0.0
        %597 = vmatpush.xpose.msra.mxu0 0.0
        %598 = vmatpush.xpose.msra.mxu0 0.0
        %599 = vmatpush.xpose.msra.mxu0 0.0
        %600 = vmatpush.xpose.msra.mxu0 0.0
        %601 = vmatpush.xpose.msra.mxu0 0.0
        %602 = vmatpush.xpose.msra.mxu0 0.0
        %603 = vmatpush.xpose.msra.mxu0 0.0
        %604 = vmatpush.xpose.msra.mxu0 0.0
        %605 = vmatpush.xpose.msra.mxu0 0.0
        %606 = vmatpush.xpose.msra.mxu0 0.0
        %607 = vmatpush.xpose.msra.mxu0 0.0
        %608 = vmatpush.xpose.msra.mxu0 0.0
        %v609 = vand.u32 %v566, 4294901760
        %v610 = vsub.f32 %v566, %v609
        %v611 = vand.u32 %v610, 4294901760
        %v612 = vsub.f32 %v610, %v611
        %v613 = vand.u32 %v612, 4294901760
        %614 = vmatpush.xpose.msra.mxu0 %v613
        %v615 = vand.u32 %v564, 4294901760
        %616 = vmatmul.f32.gmra.mxu0 %v615
        %v617 = vpop.f32.mrf.mxu0
        %v618 = vadd.f32 %v592, %v617
        %619 = vdwg.mxu0
        %620 = vmatpush.xpose.msra.mxu0 0.0
        %621 = vmatpush.xpose.msra.mxu0 0.0
        %622 = vmatpush.xpose.msra.mxu0 0.0
        %623 = vmatpush.xpose.msra.mxu0 0.0
        %624 = vmatpush.xpose.msra.mxu0 0.0
        %625 = vmatpush.xpose.msra.mxu0 0.0
        %626 = vmatpush.xpose.msra.mxu0 0.0
        %627 = vmatpush.xpose.msra.mxu0 0.0
        %628 = vmatpush.xpose.msra.mxu0 0.0
        %629 = vmatpush.xpose.msra.mxu0 0.0
        %630 = vmatpush.xpose.msra.mxu0 0.0
        %631 = vmatpush.xpose.msra.mxu0 0.0
        %632 = vmatpush.xpose.msra.mxu0 0.0
        %633 = vmatpush.xpose.msra.mxu0 0.0
        %634 = vmatpush.xpose.msra.mxu0 0.0
        %v635 = vand.u32 %v566, 4294901760
        %v636 = vsub.f32 %v566, %v635
        %637 = vmatpush.xpose.msra.mxu0 %v636
        %v638 = vand.u32 %v564, 4294901760
        %v639 = vsub.f32 %v564, %v638
        %640 = vmatmul.f32.gmra.mxu0 %v639
        %v641 = vpop.f32.mrf.mxu0
        %v642 = vadd.f32 %v618, %v641
        %643 = vdwg.mxu0
        %644 = vmatpush.xpose.msra.mxu0 0.0
        %645 = vmatpush.xpose.msra.mxu0 0.0
        %646 = vmatpush.xpose.msra.mxu0 0.0
        %647 = vmatpush.xpose.msra.mxu0 0.0
        %648 = vmatpush.xpose.msra.mxu0 0.0
        %649 = vmatpush.xpose.msra.mxu0 0.0
        %650 = vmatpush.xpose.msra.mxu0 0.0
        %651 = vmatpush.xpose.msra.mxu0 0.0
        %652 = vmatpush.xpose.msra.mxu0 0.0
        %653 = vmatpush.xpose.msra.mxu0 0.0
        %654 = vmatpush.xpose.msra.mxu0 0.0
        %655 = vmatpush.xpose.msra.mxu0 0.0
        %656 = vmatpush.xpose.msra.mxu0 0.0
        %657 = vmatpush.xpose.msra.mxu0 0.0
        %658 = vmatpush.xpose.msra.mxu0 0.0
        %v659 = vand.u32 %v566, 4294901760
        %660 = vmatpush.xpose.msra.mxu0 %v659
        %v661 = vand.u32 %v564, 4294901760
        %v662 = vsub.f32 %v564, %v661
        %v663 = vand.u32 %v662, 4294901760
        %664 = vmatmul.f32.gmra.mxu0 %v663
        %v665 = vpop.f32.mrf.mxu0
        %v666 = vadd.f32 %v642, %v665
        %667 = vdwg.mxu0
        %668 = vmatpush.xpose.msra.mxu0 0.0
        %669 = vmatpush.xpose.msra.mxu0 0.0
        %670 = vmatpush.xpose.msra.mxu0 0.0
        %671 = vmatpush.xpose.msra.mxu0 0.0
        %672 = vmatpush.xpose.msra.mxu0 0.0
        %673 = vmatpush.xpose.msra.mxu0 0.0
        %674 = vmatpush.xpose.msra.mxu0 0.0
        %675 = vmatpush.xpose.msra.mxu0 0.0
        %676 = vmatpush.xpose.msra.mxu0 0.0
        %677 = vmatpush.xpose.msra.mxu0 0.0
        %678 = vmatpush.xpose.msra.mxu0 0.0
        %679 = vmatpush.xpose.msra.mxu0 0.0
        %680 = vmatpush.xpose.msra.mxu0 0.0
        %681 = vmatpush.xpose.msra.mxu0 0.0
        %682 = vmatpush.xpose.msra.mxu0 0.0
        %v683 = vand.u32 %v566, 4294901760
        %v684 = vsub.f32 %v566, %v683
        %v685 = vand.u32 %v684, 4294901760
        %686 = vmatpush.xpose.msra.mxu0 %v685
        %v687 = vand.u32 %v564, 4294901760
        %688 = vmatmul.f32.gmra.mxu0 %v687
        %v689 = vpop.f32.mrf.mxu0
        %v690 = vadd.f32 %v666, %v689
        %691 = vdwg.mxu0
        %692 = vmatpush.xpose.msra.mxu0 0.0
        %693 = vmatpush.xpose.msra.mxu0 0.0
        %694 = vmatpush.xpose.msra.mxu0 0.0
        %695 = vmatpush.xpose.msra.mxu0 0.0
        %696 = vmatpush.xpose.msra.mxu0 0.0
        %697 = vmatpush.xpose.msra.mxu0 0.0
        %698 = vmatpush.xpose.msra.mxu0 0.0
        %699 = vmatpush.xpose.msra.mxu0 0.0
        %700 = vmatpush.xpose.msra.mxu0 0.0
        %701 = vmatpush.xpose.msra.mxu0 0.0
        %702 = vmatpush.xpose.msra.mxu0 0.0
        %703 = vmatpush.xpose.msra.mxu0 0.0
        %704 = vmatpush.xpose.msra.mxu0 0.0
        %705 = vmatpush.xpose.msra.mxu0 0.0
        %706 = vmatpush.xpose.msra.mxu0 0.0
        %v707 = vand.u32 %v566, 4294901760
        %708 = vmatpush.xpose.msra.mxu0 %v707
        %v709 = vand.u32 %v564, 4294901760
        %710 = vmatmul.f32.gmra.mxu0 %v709
        %v711 = vpop.f32.mrf.mxu0
        %v712 = vadd.f32 %v690, %v711
        %713 = vdwg.mxu0
        %v714 = vsel %vm395, -1e+09, %v712
        %v715 = vsel %vm243, %v714, -inf
        %716 = vmax.xlane.f32.xlu0 %v715
        %v717 = vpop.xlane.xlu0 %716
        %v718 = vsub.f32 %v714, %v717
        %v719 = vmul.f32 %v718, 1.442695
        %v720 = vpow.pop %v719
        %v721 = vsel %vm243, %v720, 0.0
        %722 = vadd.xlane.f32.xlu0 %v721
        %v723 = vpop.xlane.xlu0 %722
        %v724 = vrcp.pop %v723
        %v725 = vmul.f32 %v720, %v724
        %726 = vrot.lane.b32.xlu0 %v237, 56
        %v727 = vpop.permute.xlu0 %726
        %v730 = vsel %vm243, %v725, 0
        %732 = vmatpush.msra.mxu0 0.0
        %733 = vmatpush.msra.mxu0 0.0
        %734 = vmatpush.msra.mxu0 0.0
        %735 = vmatpush.msra.mxu0 0.0
        %736 = vmatpush.msra.mxu0 0.0
        %737 = vmatpush.msra.mxu0 0.0
        %738 = vmatpush.msra.mxu0 0.0
        %739 = vmatpush.msra.mxu0 0.0
        %740 = vmatpush.msra.mxu0 0.0
        %741 = vmatpush.msra.mxu0 0.0
        %742 = vmatpush.msra.mxu0 0.0
        %743 = vmatpush.msra.mxu0 0.0
        %744 = vmatpush.msra.mxu0 0.0
        %745 = vmatpush.msra.mxu0 0.0
        %746 = vmatpush.msra.mxu0 0.0
        %v747 = vand.u32 %v727, 4294901760
        %748 = vmatpush.msra.mxu0 %v747
        %v749 = vand.u32 %v730, 4294901760
        %v750 = vsub.f32 %v730, %v749
        %v751 = vand.u32 %v750, 4294901760
        %v752 = vsub.f32 %v750, %v751
        %v753 = vand.u32 %v752, 4294901760
        %754 = vmatmul.f32.gmra.mxu0 %v753
        %v755 = vpop.f32.mrf.mxu0
        %v756 = vadd.f32 0.0, %v755
        %757 = vdwg.mxu0
        %758 = vmatpush.msra.mxu0 0.0
        %759 = vmatpush.msra.mxu0 0.0
        %760 = vmatpush.msra.mxu0 0.0
        %761 = vmatpush.msra.mxu0 0.0
        %762 = vmatpush.msra.mxu0 0.0
        %763 = vmatpush.msra.mxu0 0.0
        %764 = vmatpush.msra.mxu0 0.0
        %765 = vmatpush.msra.mxu0 0.0
        %766 = vmatpush.msra.mxu0 0.0
        %767 = vmatpush.msra.mxu0 0.0
        %768 = vmatpush.msra.mxu0 0.0
        %769 = vmatpush.msra.mxu0 0.0
        %770 = vmatpush.msra.mxu0 0.0
        %771 = vmatpush.msra.mxu0 0.0
        %772 = vmatpush.msra.mxu0 0.0
        %v773 = vand.u32 %v727, 4294901760
        %v774 = vsub.f32 %v727, %v773
        %v775 = vand.u32 %v774, 4294901760
        %v776 = vsub.f32 %v774, %v775
        %v777 = vand.u32 %v776, 4294901760
        %778 = vmatpush.msra.mxu0 %v777
        %v779 = vand.u32 %v730, 4294901760
        %780 = vmatmul.f32.gmra.mxu0 %v779
        %v781 = vpop.f32.mrf.mxu0
        %v782 = vadd.f32 %v756, %v781
        %783 = vdwg.mxu0
        %784 = vmatpush.msra.mxu0 0.0
        %785 = vmatpush.msra.mxu0 0.0
        %786 = vmatpush.msra.mxu0 0.0
        %787 = vmatpush.msra.mxu0 0.0
        %788 = vmatpush.msra.mxu0 0.0
        %789 = vmatpush.msra.mxu0 0.0
        %790 = vmatpush.msra.mxu0 0.0
        %791 = vmatpush.msra.mxu0 0.0
        %792 = vmatpush.msra.mxu0 0.0
        %793 = vmatpush.msra.mxu0 0.0
        %794 = vmatpush.msra.mxu0 0.0
        %795 = vmatpush.msra.mxu0 0.0
        %796 = vmatpush.msra.mxu0 0.0
        %797 = vmatpush.msra.mxu0 0.0
        %798 = vmatpush.msra.mxu0 0.0
        %v799 = vand.u32 %v727, 4294901760
        %v800 = vsub.f32 %v727, %v799
        %801 = vmatpush.msra.mxu0 %v800
        %v802 = vand.u32 %v730, 4294901760
        %v803 = vsub.f32 %v730, %v802
        %804 = vmatmul.f32.gmra.mxu0 %v803
        %v805 = vpop.f32.mrf.mxu0
        %v806 = vadd.f32 %v782, %v805
        %807 = vdwg.mxu0
        %808 = vmatpush.msra.mxu0 0.0
        %809 = vmatpush.msra.mxu0 0.0
        %810 = vmatpush.msra.mxu0 0.0
        %811 = vmatpush.msra.mxu0 0.0
        %812 = vmatpush.msra.mxu0 0.0
        %813 = vmatpush.msra.mxu0 0.0
        %814 = vmatpush.msra.mxu0 0.0
        %815 = vmatpush.msra.mxu0 0.0
        %816 = vmatpush.msra.mxu0 0.0
        %817 = vmatpush.msra.mxu0 0.0
        %818 = vmatpush.msra.mxu0 0.0
        %819 = vmatpush.msra.mxu0 0.0
        %820 = vmatpush.msra.mxu0 0.0
        %821 = vmatpush.msra.mxu0 0.0
        %822 = vmatpush.msra.mxu0 0.0
        %v823 = vand.u32 %v727, 4294901760
        %824 = vmatpush.msra.mxu0 %v823
        %v825 = vand.u32 %v730, 4294901760
        %v826 = vsub.f32 %v730, %v825
        %v827 = vand.u32 %v826, 4294901760
        %828 = vmatmul.f32.gmra.mxu0 %v827
        %v829 = vpop.f32.mrf.mxu0
        %v830 = vadd.f32 %v806, %v829
        %831 = vdwg.mxu0
        %832 = vmatpush.msra.mxu0 0.0
        %833 = vmatpush.msra.mxu0 0.0
        %834 = vmatpush.msra.mxu0 0.0
        %835 = vmatpush.msra.mxu0 0.0
        %836 = vmatpush.msra.mxu0 0.0
        %837 = vmatpush.msra.mxu0 0.0
        %838 = vmatpush.msra.mxu0 0.0
        %839 = vmatpush.msra.mxu0 0.0
        %840 = vmatpush.msra.mxu0 0.0
        %841 = vmatpush.msra.mxu0 0.0
        %842 = vmatpush.msra.mxu0 0.0
        %843 = vmatpush.msra.mxu0 0.0
        %844 = vmatpush.msra.mxu0 0.0
        %845 = vmatpush.msra.mxu0 0.0
        %846 = vmatpush.msra.mxu0 0.0
        %v847 = vand.u32 %v727, 4294901760
        %v848 = vsub.f32 %v727, %v847
        %v849 = vand.u32 %v848, 4294901760
        %850 = vmatpush.msra.mxu0 %v849
        %v851 = vand.u32 %v730, 4294901760
        %852 = vmatmul.f32.gmra.mxu0 %v851
        %v853 = vpop.f32.mrf.mxu0
        %v854 = vadd.f32 %v830, %v853
        %855 = vdwg.mxu0
        %856 = vmatpush.msra.mxu0 0.0
        %857 = vmatpush.msra.mxu0 0.0
        %858 = vmatpush.msra.mxu0 0.0
        %859 = vmatpush.msra.mxu0 0.0
        %860 = vmatpush.msra.mxu0 0.0
        %861 = vmatpush.msra.mxu0 0.0
        %862 = vmatpush.msra.mxu0 0.0
        %863 = vmatpush.msra.mxu0 0.0
        %864 = vmatpush.msra.mxu0 0.0
        %865 = vmatpush.msra.mxu0 0.0
        %866 = vmatpush.msra.mxu0 0.0
        %867 = vmatpush.msra.mxu0 0.0
        %868 = vmatpush.msra.mxu0 0.0
        %869 = vmatpush.msra.mxu0 0.0
        %870 = vmatpush.msra.mxu0 0.0
        %v871 = vand.u32 %v727, 4294901760
        %872 = vmatpush.msra.mxu0 %v871
        %v873 = vand.u32 %v730, 4294901760
        %874 = vmatmul.f32.gmra.mxu0 %v873
        %v875 = vpop.f32.mrf.mxu0
        %v876 = vadd.f32 %v854, %v875
        %877 = vdwg.mxu0
        %878 = vrot.lane.b32.xlu0 %v239, 112
        %v879 = vpop.permute.xlu0 %878
        %880 = vrot.lane.b32.xlu0 %v237, 80
        %v881 = vpop.permute.xlu0 %880
        %v882 = vsel %vm243, %v879, 0
        %v884 = vsel %vm243, %v881, 0
        %886 = vmatpush.xpose.msra.mxu0 0.0
        %887 = vmatpush.xpose.msra.mxu0 0.0
        %888 = vmatpush.xpose.msra.mxu0 0.0
        %889 = vmatpush.xpose.msra.mxu0 0.0
        %890 = vmatpush.xpose.msra.mxu0 0.0
        %891 = vmatpush.xpose.msra.mxu0 0.0
        %892 = vmatpush.xpose.msra.mxu0 0.0
        %893 = vmatpush.xpose.msra.mxu0 0.0
        %894 = vmatpush.xpose.msra.mxu0 0.0
        %895 = vmatpush.xpose.msra.mxu0 0.0
        %896 = vmatpush.xpose.msra.mxu0 0.0
        %897 = vmatpush.xpose.msra.mxu0 0.0
        %898 = vmatpush.xpose.msra.mxu0 0.0
        %899 = vmatpush.xpose.msra.mxu0 0.0
        %900 = vmatpush.xpose.msra.mxu0 0.0
        %v901 = vand.u32 %v884, 4294901760
        %902 = vmatpush.xpose.msra.mxu0 %v901
        %v903 = vand.u32 %v882, 4294901760
        %v904 = vsub.f32 %v882, %v903
        %v905 = vand.u32 %v904, 4294901760
        %v906 = vsub.f32 %v904, %v905
        %v907 = vand.u32 %v906, 4294901760
        %908 = vmatmul.f32.gmra.mxu0 %v907
        %v909 = vpop.f32.mrf.mxu0
        %v910 = vadd.f32 0.0, %v909
        %911 = vdwg.mxu0
        %912 = vmatpush.xpose.msra.mxu0 0.0
        %913 = vmatpush.xpose.msra.mxu0 0.0
        %914 = vmatpush.xpose.msra.mxu0 0.0
        %915 = vmatpush.xpose.msra.mxu0 0.0
        %916 = vmatpush.xpose.msra.mxu0 0.0
        %917 = vmatpush.xpose.msra.mxu0 0.0
        %918 = vmatpush.xpose.msra.mxu0 0.0
        %919 = vmatpush.xpose.msra.mxu0 0.0
        %920 = vmatpush.xpose.msra.mxu0 0.0
        %921 = vmatpush.xpose.msra.mxu0 0.0
        %922 = vmatpush.xpose.msra.mxu0 0.0
        %923 = vmatpush.xpose.msra.mxu0 0.0
        %924 = vmatpush.xpose.msra.mxu0 0.0
        %925 = vmatpush.xpose.msra.mxu0 0.0
        %926 = vmatpush.xpose.msra.mxu0 0.0
        %v927 = vand.u32 %v884, 4294901760
        %v928 = vsub.f32 %v884, %v927
        %v929 = vand.u32 %v928, 4294901760
        %v930 = vsub.f32 %v928, %v929
        %v931 = vand.u32 %v930, 4294901760
        %932 = vmatpush.xpose.msra.mxu0 %v931
        %v933 = vand.u32 %v882, 4294901760
        %934 = vmatmul.f32.gmra.mxu0 %v933
        %v935 = vpop.f32.mrf.mxu0
        %v936 = vadd.f32 %v910, %v935
        %937 = vdwg.mxu0
        %938 = vmatpush.xpose.msra.mxu0 0.0
        %939 = vmatpush.xpose.msra.mxu0 0.0
        %940 = vmatpush.xpose.msra.mxu0 0.0
        %941 = vmatpush.xpose.msra.mxu0 0.0
        %942 = vmatpush.xpose.msra.mxu0 0.0
        %943 = vmatpush.xpose.msra.mxu0 0.0
        %944 = vmatpush.xpose.msra.mxu0 0.0
        %945 = vmatpush.xpose.msra.mxu0 0.0
        %946 = vmatpush.xpose.msra.mxu0 0.0
        %947 = vmatpush.xpose.msra.mxu0 0.0
        %948 = vmatpush.xpose.msra.mxu0 0.0
        %949 = vmatpush.xpose.msra.mxu0 0.0
        %950 = vmatpush.xpose.msra.mxu0 0.0
        %951 = vmatpush.xpose.msra.mxu0 0.0
        %952 = vmatpush.xpose.msra.mxu0 0.0
        %v953 = vand.u32 %v884, 4294901760
        %v954 = vsub.f32 %v884, %v953
        %955 = vmatpush.xpose.msra.mxu0 %v954
        %v956 = vand.u32 %v882, 4294901760
        %v957 = vsub.f32 %v882, %v956
        %958 = vmatmul.f32.gmra.mxu0 %v957
        %v959 = vpop.f32.mrf.mxu0
        %v960 = vadd.f32 %v936, %v959
        %961 = vdwg.mxu0
        %962 = vmatpush.xpose.msra.mxu0 0.0
        %963 = vmatpush.xpose.msra.mxu0 0.0
        %964 = vmatpush.xpose.msra.mxu0 0.0
        %965 = vmatpush.xpose.msra.mxu0 0.0
        %966 = vmatpush.xpose.msra.mxu0 0.0
        %967 = vmatpush.xpose.msra.mxu0 0.0
        %968 = vmatpush.xpose.msra.mxu0 0.0
        %969 = vmatpush.xpose.msra.mxu0 0.0
        %970 = vmatpush.xpose.msra.mxu0 0.0
        %971 = vmatpush.xpose.msra.mxu0 0.0
        %972 = vmatpush.xpose.msra.mxu0 0.0
        %973 = vmatpush.xpose.msra.mxu0 0.0
        %974 = vmatpush.xpose.msra.mxu0 0.0
        %975 = vmatpush.xpose.msra.mxu0 0.0
        %976 = vmatpush.xpose.msra.mxu0 0.0
        %v977 = vand.u32 %v884, 4294901760
        %978 = vmatpush.xpose.msra.mxu0 %v977
        %v979 = vand.u32 %v882, 4294901760
        %v980 = vsub.f32 %v882, %v979
        %v981 = vand.u32 %v980, 4294901760
        %982 = vmatmul.f32.gmra.mxu0 %v981
        %v983 = vpop.f32.mrf.mxu0
        %v984 = vadd.f32 %v960, %v983
        %985 = vdwg.mxu0
        %986 = vmatpush.xpose.msra.mxu0 0.0
        %987 = vmatpush.xpose.msra.mxu0 0.0
        %988 = vmatpush.xpose.msra.mxu0 0.0
        %989 = vmatpush.xpose.msra.mxu0 0.0
        %990 = vmatpush.xpose.msra.mxu0 0.0
        %991 = vmatpush.xpose.msra.mxu0 0.0
        %992 = vmatpush.xpose.msra.mxu0 0.0
        %993 = vmatpush.xpose.msra.mxu0 0.0
        %994 = vmatpush.xpose.msra.mxu0 0.0
        %995 = vmatpush.xpose.msra.mxu0 0.0
        %996 = vmatpush.xpose.msra.mxu0 0.0
        %997 = vmatpush.xpose.msra.mxu0 0.0
        %998 = vmatpush.xpose.msra.mxu0 0.0
        %999 = vmatpush.xpose.msra.mxu0 0.0
        %1000 = vmatpush.xpose.msra.mxu0 0.0
        %v1001 = vand.u32 %v884, 4294901760
        %v1002 = vsub.f32 %v884, %v1001
        %v1003 = vand.u32 %v1002, 4294901760
        %1004 = vmatpush.xpose.msra.mxu0 %v1003
        %v1005 = vand.u32 %v882, 4294901760
        %1006 = vmatmul.f32.gmra.mxu0 %v1005
        %v1007 = vpop.f32.mrf.mxu0
        %v1008 = vadd.f32 %v984, %v1007
        %1009 = vdwg.mxu0
        %1010 = vmatpush.xpose.msra.mxu0 0.0
        %1011 = vmatpush.xpose.msra.mxu0 0.0
        %1012 = vmatpush.xpose.msra.mxu0 0.0
        %1013 = vmatpush.xpose.msra.mxu0 0.0
        %1014 = vmatpush.xpose.msra.mxu0 0.0
        %1015 = vmatpush.xpose.msra.mxu0 0.0
        %1016 = vmatpush.xpose.msra.mxu0 0.0
        %1017 = vmatpush.xpose.msra.mxu0 0.0
        %1018 = vmatpush.xpose.msra.mxu0 0.0
        %1019 = vmatpush.xpose.msra.mxu0 0.0
        %1020 = vmatpush.xpose.msra.mxu0 0.0
        %1021 = vmatpush.xpose.msra.mxu0 0.0
        %1022 = vmatpush.xpose.msra.mxu0 0.0
        %1023 = vmatpush.xpose.msra.mxu0 0.0
        %1024 = vmatpush.xpose.msra.mxu0 0.0
        %v1025 = vand.u32 %v884, 4294901760
        %1026 = vmatpush.xpose.msra.mxu0 %v1025
        %v1027 = vand.u32 %v882, 4294901760
        %1028 = vmatmul.f32.gmra.mxu0 %v1027
        %v1029 = vpop.f32.mrf.mxu0
        %v1030 = vadd.f32 %v1008, %v1029
        %1031 = vdwg.mxu0
        %v1032 = vsel %vm395, -1e+09, %v1030
        %v1033 = vsel %vm243, %v1032, -inf
        %1034 = vmax.xlane.f32.xlu0 %v1033
        %v1035 = vpop.xlane.xlu0 %1034
        %v1036 = vsub.f32 %v1032, %v1035
        %v1037 = vmul.f32 %v1036, 1.442695
        %v1038 = vpow.pop %v1037
        %v1039 = vsel %vm243, %v1038, 0.0
        %1040 = vadd.xlane.f32.xlu0 %v1039
        %v1041 = vpop.xlane.xlu0 %1040
        %v1042 = vrcp.pop %v1041
        %v1043 = vmul.f32 %v1038, %v1042
        %1044 = vrot.lane.b32.xlu0 %v237, 48
        %v1045 = vpop.permute.xlu0 %1044
        %v1048 = vsel %vm243, %v1043, 0
        %1050 = vmatpush.msra.mxu0 0.0
        %1051 = vmatpush.msra.mxu0 0.0
        %1052 = vmatpush.msra.mxu0 0.0
        %1053 = vmatpush.msra.mxu0 0.0
        %1054 = vmatpush.msra.mxu0 0.0
        %1055 = vmatpush.msra.mxu0 0.0
        %1056 = vmatpush.msra.mxu0 0.0
        %1057 = vmatpush.msra.mxu0 0.0
        %1058 = vmatpush.msra.mxu0 0.0
        %1059 = vmatpush.msra.mxu0 0.0
        %1060 = vmatpush.msra.mxu0 0.0
        %1061 = vmatpush.msra.mxu0 0.0
        %1062 = vmatpush.msra.mxu0 0.0
        %1063 = vmatpush.msra.mxu0 0.0
        %1064 = vmatpush.msra.mxu0 0.0
        %v1065 = vand.u32 %v1045, 4294901760
        %1066 = vmatpush.msra.mxu0 %v1065
        %v1067 = vand.u32 %v1048, 4294901760
        %v1068 = vsub.f32 %v1048, %v1067
        %v1069 = vand.u32 %v1068, 4294901760
        %v1070 = vsub.f32 %v1068, %v1069
        %v1071 = vand.u32 %v1070, 4294901760
        %1072 = vmatmul.f32.gmra.mxu0 %v1071
        %v1073 = vpop.f32.mrf.mxu0
        %v1074 = vadd.f32 0.0, %v1073
        %1075 = vdwg.mxu0
        %1076 = vmatpush.msra.mxu0 0.0
        %1077 = vmatpush.msra.mxu0 0.0
        %1078 = vmatpush.msra.mxu0 0.0
        %1079 = vmatpush.msra.mxu0 0.0
        %1080 = vmatpush.msra.mxu0 0.0
        %1081 = vmatpush.msra.mxu0 0.0
        %1082 = vmatpush.msra.mxu0 0.0
        %1083 = vmatpush.msra.mxu0 0.0
        %1084 = vmatpush.msra.mxu0 0.0
        %1085 = vmatpush.msra.mxu0 0.0
        %1086 = vmatpush.msra.mxu0 0.0
        %1087 = vmatpush.msra.mxu0 0.0
        %1088 = vmatpush.msra.mxu0 0.0
        %1089 = vmatpush.msra.mxu0 0.0
        %1090 = vmatpush.msra.mxu0 0.0
        %v1091 = vand.u32 %v1045, 4294901760
        %v1092 = vsub.f32 %v1045, %v1091
        %v1093 = vand.u32 %v1092, 4294901760
        %v1094 = vsub.f32 %v1092, %v1093
        %v1095 = vand.u32 %v1094, 4294901760
        %1096 = vmatpush.msra.mxu0 %v1095
        %v1097 = vand.u32 %v1048, 4294901760
        %1098 = vmatmul.f32.gmra.mxu0 %v1097
        %v1099 = vpop.f32.mrf.mxu0
        %v1100 = vadd.f32 %v1074, %v1099
        %1101 = vdwg.mxu0
        %1102 = vmatpush.msra.mxu0 0.0
        %1103 = vmatpush.msra.mxu0 0.0
        %1104 = vmatpush.msra.mxu0 0.0
        %1105 = vmatpush.msra.mxu0 0.0
        %1106 = vmatpush.msra.mxu0 0.0
        %1107 = vmatpush.msra.mxu0 0.0
        %1108 = vmatpush.msra.mxu0 0.0
        %1109 = vmatpush.msra.mxu0 0.0
        %1110 = vmatpush.msra.mxu0 0.0
        %1111 = vmatpush.msra.mxu0 0.0
        %1112 = vmatpush.msra.mxu0 0.0
        %1113 = vmatpush.msra.mxu0 0.0
        %1114 = vmatpush.msra.mxu0 0.0
        %1115 = vmatpush.msra.mxu0 0.0
        %1116 = vmatpush.msra.mxu0 0.0
        %v1117 = vand.u32 %v1045, 4294901760
        %v1118 = vsub.f32 %v1045, %v1117
        %1119 = vmatpush.msra.mxu0 %v1118
        %v1120 = vand.u32 %v1048, 4294901760
        %v1121 = vsub.f32 %v1048, %v1120
        %1122 = vmatmul.f32.gmra.mxu0 %v1121
        %v1123 = vpop.f32.mrf.mxu0
        %v1124 = vadd.f32 %v1100, %v1123
        %1125 = vdwg.mxu0
        %1126 = vmatpush.msra.mxu0 0.0
        %1127 = vmatpush.msra.mxu0 0.0
        %1128 = vmatpush.msra.mxu0 0.0
        %1129 = vmatpush.msra.mxu0 0.0
        %1130 = vmatpush.msra.mxu0 0.0
        %1131 = vmatpush.msra.mxu0 0.0
        %1132 = vmatpush.msra.mxu0 0.0
        %1133 = vmatpush.msra.mxu0 0.0
        %1134 = vmatpush.msra.mxu0 0.0
        %1135 = vmatpush.msra.mxu0 0.0
        %1136 = vmatpush.msra.mxu0 0.0
        %1137 = vmatpush.msra.mxu0 0.0
        %1138 = vmatpush.msra.mxu0 0.0
        %1139 = vmatpush.msra.mxu0 0.0
        %1140 = vmatpush.msra.mxu0 0.0
        %v1141 = vand.u32 %v1045, 4294901760
        %1142 = vmatpush.msra.mxu0 %v1141
        %v1143 = vand.u32 %v1048, 4294901760
        %v1144 = vsub.f32 %v1048, %v1143
        %v1145 = vand.u32 %v1144, 4294901760
        %1146 = vmatmul.f32.gmra.mxu0 %v1145
        %v1147 = vpop.f32.mrf.mxu0
        %v1148 = vadd.f32 %v1124, %v1147
        %1149 = vdwg.mxu0
        %1150 = vmatpush.msra.mxu0 0.0
        %1151 = vmatpush.msra.mxu0 0.0
        %1152 = vmatpush.msra.mxu0 0.0
        %1153 = vmatpush.msra.mxu0 0.0
        %1154 = vmatpush.msra.mxu0 0.0
        %1155 = vmatpush.msra.mxu0 0.0
        %1156 = vmatpush.msra.mxu0 0.0
        %1157 = vmatpush.msra.mxu0 0.0
        %1158 = vmatpush.msra.mxu0 0.0
        %1159 = vmatpush.msra.mxu0 0.0
        %1160 = vmatpush.msra.mxu0 0.0
        %1161 = vmatpush.msra.mxu0 0.0
        %1162 = vmatpush.msra.mxu0 0.0
        %1163 = vmatpush.msra.mxu0 0.0
        %1164 = vmatpush.msra.mxu0 0.0
        %v1165 = vand.u32 %v1045, 4294901760
        %v1166 = vsub.f32 %v1045, %v1165
        %v1167 = vand.u32 %v1166, 4294901760
        %1168 = vmatpush.msra.mxu0 %v1167
        %v1169 = vand.u32 %v1048, 4294901760
        %1170 = vmatmul.f32.gmra.mxu0 %v1169
        %v1171 = vpop.f32.mrf.mxu0
        %v1172 = vadd.f32 %v1148, %v1171
        %1173 = vdwg.mxu0
        %1174 = vmatpush.msra.mxu0 0.0
        %1175 = vmatpush.msra.mxu0 0.0
        %1176 = vmatpush.msra.mxu0 0.0
        %1177 = vmatpush.msra.mxu0 0.0
        %1178 = vmatpush.msra.mxu0 0.0
        %1179 = vmatpush.msra.mxu0 0.0
        %1180 = vmatpush.msra.mxu0 0.0
        %1181 = vmatpush.msra.mxu0 0.0
        %1182 = vmatpush.msra.mxu0 0.0
        %1183 = vmatpush.msra.mxu0 0.0
        %1184 = vmatpush.msra.mxu0 0.0
        %1185 = vmatpush.msra.mxu0 0.0
        %1186 = vmatpush.msra.mxu0 0.0
        %1187 = vmatpush.msra.mxu0 0.0
        %1188 = vmatpush.msra.mxu0 0.0
        %v1189 = vand.u32 %v1045, 4294901760
        %1190 = vmatpush.msra.mxu0 %v1189
        %v1191 = vand.u32 %v1048, 4294901760
        %1192 = vmatmul.f32.gmra.mxu0 %v1191
        %v1193 = vpop.f32.mrf.mxu0
        %v1194 = vadd.f32 %v1172, %v1193
        %1195 = vdwg.mxu0
        %1196 = vrot.lane.b32.xlu0 %v239, 104
        %v1197 = vpop.permute.xlu0 %1196
        %1198 = vrot.lane.b32.xlu0 %v237, 72
        %v1199 = vpop.permute.xlu0 %1198
        %v1200 = vsel %vm243, %v1197, 0
        %v1202 = vsel %vm243, %v1199, 0
        %1204 = vmatpush.xpose.msra.mxu0 0.0
        %1205 = vmatpush.xpose.msra.mxu0 0.0
        %1206 = vmatpush.xpose.msra.mxu0 0.0
        %1207 = vmatpush.xpose.msra.mxu0 0.0
        %1208 = vmatpush.xpose.msra.mxu0 0.0
        %1209 = vmatpush.xpose.msra.mxu0 0.0
        %1210 = vmatpush.xpose.msra.mxu0 0.0
        %1211 = vmatpush.xpose.msra.mxu0 0.0
        %1212 = vmatpush.xpose.msra.mxu0 0.0
        %1213 = vmatpush.xpose.msra.mxu0 0.0
        %1214 = vmatpush.xpose.msra.mxu0 0.0
        %1215 = vmatpush.xpose.msra.mxu0 0.0
        %1216 = vmatpush.xpose.msra.mxu0 0.0
        %1217 = vmatpush.xpose.msra.mxu0 0.0
        %1218 = vmatpush.xpose.msra.mxu0 0.0
        %v1219 = vand.u32 %v1202, 4294901760
        %1220 = vmatpush.xpose.msra.mxu0 %v1219
        %v1221 = vand.u32 %v1200, 4294901760
        %v1222 = vsub.f32 %v1200, %v1221
        %v1223 = vand.u32 %v1222, 4294901760
        %v1224 = vsub.f32 %v1222, %v1223
        %v1225 = vand.u32 %v1224, 4294901760
        %1226 = vmatmul.f32.gmra.mxu0 %v1225
        %v1227 = vpop.f32.mrf.mxu0
        %v1228 = vadd.f32 0.0, %v1227
        %1229 = vdwg.mxu0
        %1230 = vmatpush.xpose.msra.mxu0 0.0
        %1231 = vmatpush.xpose.msra.mxu0 0.0
        %1232 = vmatpush.xpose.msra.mxu0 0.0
        %1233 = vmatpush.xpose.msra.mxu0 0.0
        %1234 = vmatpush.xpose.msra.mxu0 0.0
        %1235 = vmatpush.xpose.msra.mxu0 0.0
        %1236 = vmatpush.xpose.msra.mxu0 0.0
        %1237 = vmatpush.xpose.msra.mxu0 0.0
        %1238 = vmatpush.xpose.msra.mxu0 0.0
        %1239 = vmatpush.xpose.msra.mxu0 0.0
        %1240 = vmatpush.xpose.msra.mxu0 0.0
        %1241 = vmatpush.xpose.msra.mxu0 0.0
        %1242 = vmatpush.xpose.msra.mxu0 0.0
        %1243 = vmatpush.xpose.msra.mxu0 0.0
        %1244 = vmatpush.xpose.msra.mxu0 0.0
        %v1245 = vand.u32 %v1202, 4294901760
        %v1246 = vsub.f32 %v1202, %v1245
        %v1247 = vand.u32 %v1246, 4294901760
        %v1248 = vsub.f32 %v1246, %v1247
        %v1249 = vand.u32 %v1248, 4294901760
        %1250 = vmatpush.xpose.msra.mxu0 %v1249
        %v1251 = vand.u32 %v1200, 4294901760
        %1252 = vmatmul.f32.gmra.mxu0 %v1251
        %v1253 = vpop.f32.mrf.mxu0
        %v1254 = vadd.f32 %v1228, %v1253
        %1255 = vdwg.mxu0
        %1256 = vmatpush.xpose.msra.mxu0 0.0
        %1257 = vmatpush.xpose.msra.mxu0 0.0
        %1258 = vmatpush.xpose.msra.mxu0 0.0
        %1259 = vmatpush.xpose.msra.mxu0 0.0
        %1260 = vmatpush.xpose.msra.mxu0 0.0
        %1261 = vmatpush.xpose.msra.mxu0 0.0
        %1262 = vmatpush.xpose.msra.mxu0 0.0
        %1263 = vmatpush.xpose.msra.mxu0 0.0
        %1264 = vmatpush.xpose.msra.mxu0 0.0
        %1265 = vmatpush.xpose.msra.mxu0 0.0
        %1266 = vmatpush.xpose.msra.mxu0 0.0
        %1267 = vmatpush.xpose.msra.mxu0 0.0
        %1268 = vmatpush.xpose.msra.mxu0 0.0
        %1269 = vmatpush.xpose.msra.mxu0 0.0
        %1270 = vmatpush.xpose.msra.mxu0 0.0
        %v1271 = vand.u32 %v1202, 4294901760
        %v1272 = vsub.f32 %v1202, %v1271
        %1273 = vmatpush.xpose.msra.mxu0 %v1272
        %v1274 = vand.u32 %v1200, 4294901760
        %v1275 = vsub.f32 %v1200, %v1274
        %1276 = vmatmul.f32.gmra.mxu0 %v1275
        %v1277 = vpop.f32.mrf.mxu0
        %v1278 = vadd.f32 %v1254, %v1277
        %1279 = vdwg.mxu0
        %1280 = vmatpush.xpose.msra.mxu0 0.0
        %1281 = vmatpush.xpose.msra.mxu0 0.0
        %1282 = vmatpush.xpose.msra.mxu0 0.0
        %1283 = vmatpush.xpose.msra.mxu0 0.0
        %1284 = vmatpush.xpose.msra.mxu0 0.0
        %1285 = vmatpush.xpose.msra.mxu0 0.0
        %1286 = vmatpush.xpose.msra.mxu0 0.0
        %1287 = vmatpush.xpose.msra.mxu0 0.0
        %1288 = vmatpush.xpose.msra.mxu0 0.0
        %1289 = vmatpush.xpose.msra.mxu0 0.0
        %1290 = vmatpush.xpose.msra.mxu0 0.0
        %1291 = vmatpush.xpose.msra.mxu0 0.0
        %1292 = vmatpush.xpose.msra.mxu0 0.0
        %1293 = vmatpush.xpose.msra.mxu0 0.0
        %1294 = vmatpush.xpose.msra.mxu0 0.0
        %v1295 = vand.u32 %v1202, 4294901760
        %1296 = vmatpush.xpose.msra.mxu0 %v1295
        %v1297 = vand.u32 %v1200, 4294901760
        %v1298 = vsub.f32 %v1200, %v1297
        %v1299 = vand.u32 %v1298, 4294901760
        %1300 = vmatmul.f32.gmra.mxu0 %v1299
        %v1301 = vpop.f32.mrf.mxu0
        %v1302 = vadd.f32 %v1278, %v1301
        %1303 = vdwg.mxu0
        %1304 = vmatpush.xpose.msra.mxu0 0.0
        %1305 = vmatpush.xpose.msra.mxu0 0.0
        %1306 = vmatpush.xpose.msra.mxu0 0.0
        %1307 = vmatpush.xpose.msra.mxu0 0.0
        %1308 = vmatpush.xpose.msra.mxu0 0.0
        %1309 = vmatpush.xpose.msra.mxu0 0.0
        %1310 = vmatpush.xpose.msra.mxu0 0.0
        %1311 = vmatpush.xpose.msra.mxu0 0.0
        %1312 = vmatpush.xpose.msra.mxu0 0.0
        %1313 = vmatpush.xpose.msra.mxu0 0.0
        %1314 = vmatpush.xpose.msra.mxu0 0.0
        %1315 = vmatpush.xpose.msra.mxu0 0.0
        %1316 = vmatpush.xpose.msra.mxu0 0.0
        %1317 = vmatpush.xpose.msra.mxu0 0.0
        %1318 = vmatpush.xpose.msra.mxu0 0.0
        %v1319 = vand.u32 %v1202, 4294901760
        %v1320 = vsub.f32 %v1202, %v1319
        %v1321 = vand.u32 %v1320, 4294901760
        %1322 = vmatpush.xpose.msra.mxu0 %v1321
        %v1323 = vand.u32 %v1200, 4294901760
        %1324 = vmatmul.f32.gmra.mxu0 %v1323
        %v1325 = vpop.f32.mrf.mxu0
        %v1326 = vadd.f32 %v1302, %v1325
        %1327 = vdwg.mxu0
        %1328 = vmatpush.xpose.msra.mxu0 0.0
        %1329 = vmatpush.xpose.msra.mxu0 0.0
        %1330 = vmatpush.xpose.msra.mxu0 0.0
        %1331 = vmatpush.xpose.msra.mxu0 0.0
        %1332 = vmatpush.xpose.msra.mxu0 0.0
        %1333 = vmatpush.xpose.msra.mxu0 0.0
        %1334 = vmatpush.xpose.msra.mxu0 0.0
        %1335 = vmatpush.xpose.msra.mxu0 0.0
        %1336 = vmatpush.xpose.msra.mxu0 0.0
        %1337 = vmatpush.xpose.msra.mxu0 0.0
        %1338 = vmatpush.xpose.msra.mxu0 0.0
        %1339 = vmatpush.xpose.msra.mxu0 0.0
        %1340 = vmatpush.xpose.msra.mxu0 0.0
        %1341 = vmatpush.xpose.msra.mxu0 0.0
        %1342 = vmatpush.xpose.msra.mxu0 0.0
        %v1343 = vand.u32 %v1202, 4294901760
        %1344 = vmatpush.xpose.msra.mxu0 %v1343
        %v1345 = vand.u32 %v1200, 4294901760
        %1346 = vmatmul.f32.gmra.mxu0 %v1345
        %v1347 = vpop.f32.mrf.mxu0
        %v1348 = vadd.f32 %v1326, %v1347
        %1349 = vdwg.mxu0
        %v1350 = vsel %vm395, -1e+09, %v1348
        %v1351 = vsel %vm243, %v1350, -inf
        %1352 = vmax.xlane.f32.xlu0 %v1351
        %v1353 = vpop.xlane.xlu0 %1352
        %v1354 = vsub.f32 %v1350, %v1353
        %v1355 = vmul.f32 %v1354, 1.442695
        %v1356 = vpow.pop %v1355
        %v1357 = vsel %vm243, %v1356, 0.0
        %1358 = vadd.xlane.f32.xlu0 %v1357
        %v1359 = vpop.xlane.xlu0 %1358
        %v1360 = vrcp.pop %v1359
        %v1361 = vmul.f32 %v1356, %v1360
        %1362 = vrot.lane.b32.xlu0 %v237, 40
        %v1363 = vpop.permute.xlu0 %1362
        %v1366 = vsel %vm243, %v1361, 0
        %1368 = vmatpush.msra.mxu0 0.0
        %1369 = vmatpush.msra.mxu0 0.0
        %1370 = vmatpush.msra.mxu0 0.0
        %1371 = vmatpush.msra.mxu0 0.0
        %1372 = vmatpush.msra.mxu0 0.0
        %1373 = vmatpush.msra.mxu0 0.0
        %1374 = vmatpush.msra.mxu0 0.0
        %1375 = vmatpush.msra.mxu0 0.0
        %1376 = vmatpush.msra.mxu0 0.0
        %1377 = vmatpush.msra.mxu0 0.0
        %1378 = vmatpush.msra.mxu0 0.0
        %1379 = vmatpush.msra.mxu0 0.0
        %1380 = vmatpush.msra.mxu0 0.0
        %1381 = vmatpush.msra.mxu0 0.0
        %1382 = vmatpush.msra.mxu0 0.0
        %v1383 = vand.u32 %v1363, 4294901760
        %1384 = vmatpush.msra.mxu0 %v1383
        %v1385 = vand.u32 %v1366, 4294901760
        %v1386 = vsub.f32 %v1366, %v1385
        %v1387 = vand.u32 %v1386, 4294901760
        %v1388 = vsub.f32 %v1386, %v1387
        %v1389 = vand.u32 %v1388, 4294901760
        %1390 = vmatmul.f32.gmra.mxu0 %v1389
        %v1391 = vpop.f32.mrf.mxu0
        %v1392 = vadd.f32 0.0, %v1391
        %1393 = vdwg.mxu0
        %1394 = vmatpush.msra.mxu0 0.0
        %1395 = vmatpush.msra.mxu0 0.0
        %1396 = vmatpush.msra.mxu0 0.0
        %1397 = vmatpush.msra.mxu0 0.0
        %1398 = vmatpush.msra.mxu0 0.0
        %1399 = vmatpush.msra.mxu0 0.0
        %1400 = vmatpush.msra.mxu0 0.0
        %1401 = vmatpush.msra.mxu0 0.0
        %1402 = vmatpush.msra.mxu0 0.0
        %1403 = vmatpush.msra.mxu0 0.0
        %1404 = vmatpush.msra.mxu0 0.0
        %1405 = vmatpush.msra.mxu0 0.0
        %1406 = vmatpush.msra.mxu0 0.0
        %1407 = vmatpush.msra.mxu0 0.0
        %1408 = vmatpush.msra.mxu0 0.0
        %v1409 = vand.u32 %v1363, 4294901760
        %v1410 = vsub.f32 %v1363, %v1409
        %v1411 = vand.u32 %v1410, 4294901760
        %v1412 = vsub.f32 %v1410, %v1411
        %v1413 = vand.u32 %v1412, 4294901760
        %1414 = vmatpush.msra.mxu0 %v1413
        %v1415 = vand.u32 %v1366, 4294901760
        %1416 = vmatmul.f32.gmra.mxu0 %v1415
        %v1417 = vpop.f32.mrf.mxu0
        %v1418 = vadd.f32 %v1392, %v1417
        %1419 = vdwg.mxu0
        %1420 = vmatpush.msra.mxu0 0.0
        %1421 = vmatpush.msra.mxu0 0.0
        %1422 = vmatpush.msra.mxu0 0.0
        %1423 = vmatpush.msra.mxu0 0.0
        %1424 = vmatpush.msra.mxu0 0.0
        %1425 = vmatpush.msra.mxu0 0.0
        %1426 = vmatpush.msra.mxu0 0.0
        %1427 = vmatpush.msra.mxu0 0.0
        %1428 = vmatpush.msra.mxu0 0.0
        %1429 = vmatpush.msra.mxu0 0.0
        %1430 = vmatpush.msra.mxu0 0.0
        %1431 = vmatpush.msra.mxu0 0.0
        %1432 = vmatpush.msra.mxu0 0.0
        %1433 = vmatpush.msra.mxu0 0.0
        %1434 = vmatpush.msra.mxu0 0.0
        %v1435 = vand.u32 %v1363, 4294901760
        %v1436 = vsub.f32 %v1363, %v1435
        %1437 = vmatpush.msra.mxu0 %v1436
        %v1438 = vand.u32 %v1366, 4294901760
        %v1439 = vsub.f32 %v1366, %v1438
        %1440 = vmatmul.f32.gmra.mxu0 %v1439
        %v1441 = vpop.f32.mrf.mxu0
        %v1442 = vadd.f32 %v1418, %v1441
        %1443 = vdwg.mxu0
        %1444 = vmatpush.msra.mxu0 0.0
        %1445 = vmatpush.msra.mxu0 0.0
        %1446 = vmatpush.msra.mxu0 0.0
        %1447 = vmatpush.msra.mxu0 0.0
        %1448 = vmatpush.msra.mxu0 0.0
        %1449 = vmatpush.msra.mxu0 0.0
        %1450 = vmatpush.msra.mxu0 0.0
        %1451 = vmatpush.msra.mxu0 0.0
        %1452 = vmatpush.msra.mxu0 0.0
        %1453 = vmatpush.msra.mxu0 0.0
        %1454 = vmatpush.msra.mxu0 0.0
        %1455 = vmatpush.msra.mxu0 0.0
        %1456 = vmatpush.msra.mxu0 0.0
        %1457 = vmatpush.msra.mxu0 0.0
        %1458 = vmatpush.msra.mxu0 0.0
        %v1459 = vand.u32 %v1363, 4294901760
        %1460 = vmatpush.msra.mxu0 %v1459
        %v1461 = vand.u32 %v1366, 4294901760
        %v1462 = vsub.f32 %v1366, %v1461
        %v1463 = vand.u32 %v1462, 4294901760
        %1464 = vmatmul.f32.gmra.mxu0 %v1463
        %v1465 = vpop.f32.mrf.mxu0
        %v1466 = vadd.f32 %v1442, %v1465
        %1467 = vdwg.mxu0
        %1468 = vmatpush.msra.mxu0 0.0
        %1469 = vmatpush.msra.mxu0 0.0
        %1470 = vmatpush.msra.mxu0 0.0
        %1471 = vmatpush.msra.mxu0 0.0
        %1472 = vmatpush.msra.mxu0 0.0
        %1473 = vmatpush.msra.mxu0 0.0
        %1474 = vmatpush.msra.mxu0 0.0
        %1475 = vmatpush.msra.mxu0 0.0
        %1476 = vmatpush.msra.mxu0 0.0
        %1477 = vmatpush.msra.mxu0 0.0
        %1478 = vmatpush.msra.mxu0 0.0
        %1479 = vmatpush.msra.mxu0 0.0
        %1480 = vmatpush.msra.mxu0 0.0
        %1481 = vmatpush.msra.mxu0 0.0
        %1482 = vmatpush.msra.mxu0 0.0
        %v1483 = vand.u32 %v1363, 4294901760
        %v1484 = vsub.f32 %v1363, %v1483
        %v1485 = vand.u32 %v1484, 4294901760
        %1486 = vmatpush.msra.mxu0 %v1485
        %v1487 = vand.u32 %v1366, 4294901760
        %1488 = vmatmul.f32.gmra.mxu0 %v1487
        %v1489 = vpop.f32.mrf.mxu0
        %v1490 = vadd.f32 %v1466, %v1489
        %1491 = vdwg.mxu0
        %1492 = vmatpush.msra.mxu0 0.0
        %1493 = vmatpush.msra.mxu0 0.0
        %1494 = vmatpush.msra.mxu0 0.0
        %1495 = vmatpush.msra.mxu0 0.0
        %1496 = vmatpush.msra.mxu0 0.0
        %1497 = vmatpush.msra.mxu0 0.0
        %1498 = vmatpush.msra.mxu0 0.0
        %1499 = vmatpush.msra.mxu0 0.0
        %1500 = vmatpush.msra.mxu0 0.0
        %1501 = vmatpush.msra.mxu0 0.0
        %1502 = vmatpush.msra.mxu0 0.0
        %1503 = vmatpush.msra.mxu0 0.0
        %1504 = vmatpush.msra.mxu0 0.0
        %1505 = vmatpush.msra.mxu0 0.0
        %1506 = vmatpush.msra.mxu0 0.0
        %v1507 = vand.u32 %v1363, 4294901760
        %1508 = vmatpush.msra.mxu0 %v1507
        %v1509 = vand.u32 %v1366, 4294901760
        %1510 = vmatmul.f32.gmra.mxu0 %v1509
        %v1511 = vpop.f32.mrf.mxu0
        %v1512 = vadd.f32 %v1490, %v1511
        %1513 = vdwg.mxu0
        %1515 = vrot.lane.b32.xlu0 %v876, 8
        %v1516 = vpop.permute.xlu0 %1515
        %1519 = vrot.lane.b32.xlu0 %v1194, 16
        %v1520 = vpop.permute.xlu0 %1519
        %1523 = vrot.lane.b32.xlu0 %v1512, 24
        %v1524 = vpop.permute.xlu0 %1523
        %v1526 = vsel %vm243, %v558, %v1516
        %vm1527 = vcmask 130048
        %v1528 = vsel %vm1527, %v1526, %v1520
        %vm1529 = vcmask 195584
        %v1530 = vsel %vm1529, %v1528, %v1524
        %vm1531 = vcmask 261120
        %1532 = vst.msk [vmem:[%s235] sm:$0xff] %vm1531, %v1530
        %p1533 = scmp.lt.s32.totalorder %s19, 1
        %s1534 = scalar_select %p1533, %s19, 1
        %p1535 = scmp.lt.s32.totalorder %s20, 0
        %s1536 = scalar_select %p1535, %s20, 0
        %s1537 = sadd.s32 %s1536, %s1534
        %s1538 = smul.addr %s1537, 8
        %s1539 = scalar_lea.vmem %s3, %s1538
        // Predicated region
        $region37: #{decoder_block_forward.10} parent=31 // pred_check
          %p1540 = pneg %p127
        $region38: #{decoder_block_forward.10} parent=31 // pred_check_branch
          %1542 = sbr.rel (%p1540) target = $region40
        $region39: #{decoder_block_forward.10} parent=31 // pred_region
          _
        $region40: #{decoder_block_forward.10} parent=31 // pred_fallthru
          _
      $region32: #{decoder_block_forward.10} parent=5 // pred_fallthru
        _
      %p1543 = scmp.le.s32.totalorder 2, %s10
      // Predicated region
      $region41: #{decoder_block_forward.10} parent=5 // pred_check
        %p1544 = pneg %p1543
      $region42: #{decoder_block_forward.10} parent=5 // pred_check_branch
        %1546 = sbr.rel (%p1544) target = $region44
      $region43: #{decoder_block_forward.10} parent=5 // pred_region
        %s1547 = ssub.s32 %s10, 2
        // Predicated region
        $region45: #{decoder_block_forward.10} parent=43 // pred_check
          %p1548 = pneg %p133
        $region46: #{decoder_block_forward.10} parent=43 // pred_check_branch
          %1550 = sbr.rel (%p1548) target = $region48
        $region47: #{decoder_block_forward.10} parent=43 // pred_region
          %p1551 = scmp.lt.s32.totalorder %s21, 1
          %s1552 = scalar_select %p1551, %s21, 1
          %p1553 = scmp.lt.s32.totalorder %s22, 0
          %s1554 = scalar_select %p1553, %s22, 0
          %s1555 = sadd.s32 %s1554, %s1552
          %s1556 = smul.addr %s1555, 8
          %s1557 = scalar_lea.vmem %s3, %s1556
        $region48: #{decoder_block_forward.10} parent=43 // pred_fallthru
          _
      $region44: #{decoder_block_forward.10} parent=5 // pred_fallthru
        _
    $region6: #{decoder_block_forward.10} parent=1 // loop_footer
      %s14 = sadd.s32 1, %s10
    $region7: #{decoder_block_forward.10} parent=1 // loop_footer_branch
      %9 = sbr.rel target = $region3
    $region8: #{decoder_block_forward.10} parent=1 // loop_exit
      _
    %1558 = vsyncpa [#allocation3], 1
    %s1559 = scalar_lea.sflag [#allocation3], 1
    %1560 = vsyncpa %s1559, 1

// kernel: decoder_block_forward.13
$region0: #{decoder_block_forward.13}
  #allocation0 [shape = 'u32[]', space=smem, size = 0x4, offset = 0x4, fixed_abs, tag = 'smem constant byte address 0x4 - core index']
  #allocation1 [shape = 'u32[72,128]{1,0:T(1,128)}', space=vmem, size = 0x9000, scoped, tag = 'internal scratch']
  %s0 = inlined_call_operand.vmem [shape: f32[16,32], index: 0, kind: input, shape index: {}]
  %s1 = inlined_call_operand.vmem [shape: f32[32,64], index: 1, kind: input, shape index: {}]
  %s2 = inlined_call_operand.vmem [shape: f32[1,64], index: 2, kind: input, shape index: {}]
  %s3 = inlined_call_operand.vmem [shape: f32[16,64], index: 3, kind: output, shape index: {}]
  %s4 = sld [smem:[#allocation0]]
  $region30: #{decoder_block_forward.13} parent=0
    _
  %s6 = ssub.s32 1, %s4
  %s7 = scalar_select 0, %s6, %s4
  // Predicated region
  $region2: #{decoder_block_forward.13} parent=0 // pred_check
    _
  $region3: #{decoder_block_forward.13} parent=0 // pred_check_branch
    %9 = sbr.rel (0) target = $region5
  $region4: #{decoder_block_forward.13} parent=0 // pred_region
    _
  $region5: #{decoder_block_forward.13} parent=0 // pred_fallthru
    _
  // Predicated region
  $region6: #{decoder_block_forward.13} parent=0 // pred_check
    _
  $region7: #{decoder_block_forward.13} parent=0 // pred_check_branch
    %11 = sbr.rel (0) target = $region9
  $region8: #{decoder_block_forward.13} parent=0 // pred_region
    _
  $region9: #{decoder_block_forward.13} parent=0 // pred_fallthru
    _
  // Predicated region
  $region10: #{decoder_block_forward.13} parent=0 // pred_check
    _
  $region11: #{decoder_block_forward.13} parent=0 // pred_check_branch
    %13 = sbr.rel (0) target = $region13
  $region12: #{decoder_block_forward.13} parent=0 // pred_region
    _
  $region13: #{decoder_block_forward.13} parent=0 // pred_fallthru
    _
  %p14 = scmp.eq.s32.totalorder 0, 0
  // Predicated region
  $region14: #{decoder_block_forward.13} parent=0 // pred_check
    %p15 = pneg %p14
  $region15: #{decoder_block_forward.13} parent=0 // pred_check_branch
    %17 = sbr.rel (%p15) target = $region17
  $region16: #{decoder_block_forward.13} parent=0 // pred_region
    %vm18 = vcmask 523264
    %19 = vst.msk [vmem:[%s3] sm:$0xff] %vm18, 0.0
    %20 = vst.msk [vmem:[%s3 + $0x8] sm:$0xff] %vm18, 0.0
  $region17: #{decoder_block_forward.13} parent=0 // pred_fallthru
    _
  %v21 = vld [vmem:[%s3] sm:$0xff]
  %v22 = vld [vmem:[%s3 + $0x8] sm:$0xff]
  %v23 = vld [vmem:[%s0] sm:$0xff]
  %v24 = vld [vmem:[%s0 + $0x8] sm:$0xff]
  %v25 = vld [vmem:[%s1] sm:$0xff]
  %v26 = vld [vmem:[%s1 + $0x8] sm:$0xff]
  %v27 = vld [vmem:[%s1 + $0x10] sm:$0xff]
  %v28 = vld [vmem:[%s1 + $0x18] sm:$0xff]
  %vm29 = vcmask 261120
  %v31 = vsel %vm29, %v23, 0
  %v34 = vsel %vm29, %v24, 0
  %36 = vmatpush.msra.mxu0 0.0
  %37 = vmatpush.msra.mxu0 0.0
  %38 = vmatpush.msra.mxu0 0.0
  %39 = vmatpush.msra.mxu0 0.0
  %40 = vmatpush.msra.mxu0 0.0
  %41 = vmatpush.msra.mxu0 0.0
  %42 = vmatpush.msra.mxu0 0.0
  %43 = vmatpush.msra.mxu0 0.0
  %44 = vmatpush.msra.mxu0 0.0
  %45 = vmatpush.msra.mxu0 0.0
  %46 = vmatpush.msra.mxu0 0.0
  %47 = vmatpush.msra.mxu0 0.0
  %v48 = vand.u32 %v28, 4294901760
  %49 = vmatpush.msra.mxu0 %v48
  %v50 = vand.u32 %v27, 4294901760
  %51 = vmatpush.msra.mxu0 %v50
  %v52 = vand.u32 %v26, 4294901760
  %53 = vmatpush.msra.mxu0 %v52
  %v54 = vand.u32 %v25, 4294901760
  %55 = vmatpush.msra.mxu0 %v54
  %v56 = vand.u32 %v31, 4294901760
  %v57 = vsub.f32 %v31, %v56
  %v58 = vand.u32 %v57, 4294901760
  %v59 = vsub.f32 %v57, %v58
  %v60 = vand.u32 %v59, 4294901760
  %61 = vmatmul.f32.gmra.mxu0 %v60
  %v62 = vpop.f32.mrf.mxu0
  %v63 = vadd.f32 0.0, %v62
  %v64 = vand.u32 %v34, 4294901760
  %v65 = vsub.f32 %v34, %v64
  %v66 = vand.u32 %v65, 4294901760
  %v67 = vsub.f32 %v65, %v66
  %v68 = vand.u32 %v67, 4294901760
  %69 = vmatmul.f32.gmra.mxu0 %v68
  %v70 = vpop.f32.mrf.mxu0
  %v71 = vadd.f32 0.0, %v70
  %72 = vdwg.mxu0
  %73 = vmatpush.msra.mxu0 0.0
  %74 = vmatpush.msra.mxu0 0.0
  %75 = vmatpush.msra.mxu0 0.0
  %76 = vmatpush.msra.mxu0 0.0
  %77 = vmatpush.msra.mxu0 0.0
  %78 = vmatpush.msra.mxu0 0.0
  %79 = vmatpush.msra.mxu0 0.0
  %80 = vmatpush.msra.mxu0 0.0
  %81 = vmatpush.msra.mxu0 0.0
  %82 = vmatpush.msra.mxu0 0.0
  %83 = vmatpush.msra.mxu0 0.0
  %84 = vmatpush.msra.mxu0 0.0
  %v85 = vand.u32 %v28, 4294901760
  %v86 = vsub.f32 %v28, %v85
  %v87 = vand.u32 %v86, 4294901760
  %v88 = vsub.f32 %v86, %v87
  %v89 = vand.u32 %v88, 4294901760
  %90 = vmatpush.msra.mxu0 %v89
  %v91 = vand.u32 %v27, 4294901760
  %v92 = vsub.f32 %v27, %v91
  %v93 = vand.u32 %v92, 4294901760
  %v94 = vsub.f32 %v92, %v93
  %v95 = vand.u32 %v94, 4294901760
  %96 = vmatpush.msra.mxu0 %v95
  %v97 = vand.u32 %v26, 4294901760
  %v98 = vsub.f32 %v26, %v97
  %v99 = vand.u32 %v98, 4294901760
  %v100 = vsub.f32 %v98, %v99
  %v101 = vand.u32 %v100, 4294901760
  %102 = vmatpush.msra.mxu0 %v101
  %v103 = vand.u32 %v25, 4294901760
  %v104 = vsub.f32 %v25, %v103
  %v105 = vand.u32 %v104, 4294901760
  %v106 = vsub.f32 %v104, %v105
  %v107 = vand.u32 %v106, 4294901760
  %108 = vmatpush.msra.mxu0 %v107
  %v109 = vand.u32 %v31, 4294901760
  %110 = vmatmul.f32.gmra.mxu0 %v109
  %v111 = vpop.f32.mrf.mxu0
  %v112 = vadd.f32 %v63, %v111
  %v113 = vand.u32 %v34, 4294901760
  %114 = vmatmul.f32.gmra.mxu0 %v113
  %v115 = vpop.f32.mrf.mxu0
  %v116 = vadd.f32 %v71, %v115
  %117 = vdwg.mxu0
  %118 = vmatpush.msra.mxu0 0.0
  %119 = vmatpush.msra.mxu0 0.0
  %120 = vmatpush.msra.mxu0 0.0
  %121 = vmatpush.msra.mxu0 0.0
  %122 = vmatpush.msra.mxu0 0.0
  %123 = vmatpush.msra.mxu0 0.0
  %124 = vmatpush.msra.mxu0 0.0
  %125 = vmatpush.msra.mxu0 0.0
  %126 = vmatpush.msra.mxu0 0.0
  %127 = vmatpush.msra.mxu0 0.0
  %128 = vmatpush.msra.mxu0 0.0
  %129 = vmatpush.msra.mxu0 0.0
  %v130 = vand.u32 %v28, 4294901760
  %v131 = vsub.f32 %v28, %v130
  %132 = vmatpush.msra.mxu0 %v131
  %v133 = vand.u32 %v27, 4294901760
  %v134 = vsub.f32 %v27, %v133
  %135 = vmatpush.msra.mxu0 %v134
  %v136 = vand.u32 %v26, 4294901760
  %v137 = vsub.f32 %v26, %v136
  %138 = vmatpush.msra.mxu0 %v137
  %v139 = vand.u32 %v25, 4294901760
  %v140 = vsub.f32 %v25, %v139
  %141 = vmatpush.msra.mxu0 %v140
  %v142 = vand.u32 %v31, 4294901760
  %v143 = vsub.f32 %v31, %v142
  %144 = vmatmul.f32.gmra.mxu0 %v143
  %v145 = vpop.f32.mrf.mxu0
  %v146 = vadd.f32 %v112, %v145
  %v147 = vand.u32 %v34, 4294901760
  %v148 = vsub.f32 %v34, %v147
  %149 = vmatmul.f32.gmra.mxu0 %v148
  %v150 = vpop.f32.mrf.mxu0
  %v151 = vadd.f32 %v116, %v150
  %152 = vdwg.mxu0
  %153 = vmatpush.msra.mxu0 0.0
  %154 = vmatpush.msra.mxu0 0.0
  %155 = vmatpush.msra.mxu0 0.0
  %156 = vmatpush.msra.mxu0 0.0
  %157 = vmatpush.msra.mxu0 0.0
  %158 = vmatpush.msra.mxu0 0.0
  %159 = vmatpush.msra.mxu0 0.0
  %160 = vmatpush.msra.mxu0 0.0
  %161 = vmatpush.msra.mxu0 0.0
  %162 = vmatpush.msra.mxu0 0.0
  %163 = vmatpush.msra.mxu0 0.0
  %164 = vmatpush.msra.mxu0 0.0
  %v165 = vand.u32 %v28, 4294901760
  %166 = vmatpush.msra.mxu0 %v165
  %v167 = vand.u32 %v27, 4294901760
  %168 = vmatpush.msra.mxu0 %v167
  %v169 = vand.u32 %v26, 4294901760
  %170 = vmatpush.msra.mxu0 %v169
  %v171 = vand.u32 %v25, 4294901760
  %172 = vmatpush.msra.mxu0 %v171
  %v173 = vand.u32 %v31, 4294901760
  %v174 = vsub.f32 %v31, %v173
  %v175 = vand.u32 %v174, 4294901760
  %176 = vmatmul.f32.gmra.mxu0 %v175
  %v177 = vpop.f32.mrf.mxu0
  %v178 = vadd.f32 %v146, %v177
  %v179 = vand.u32 %v34, 4294901760
  %v180 = vsub.f32 %v34, %v179
  %v181 = vand.u32 %v180, 4294901760
  %182 = vmatmul.f32.gmra.mxu0 %v181
  %v183 = vpop.f32.mrf.mxu0
  %v184 = vadd.f32 %v151, %v183
  %185 = vdwg.mxu0
  %186 = vmatpush.msra.mxu0 0.0
  %187 = vmatpush.msra.mxu0 0.0
  %188 = vmatpush.msra.mxu0 0.0
  %189 = vmatpush.msra.mxu0 0.0
  %190 = vmatpush.msra.mxu0 0.0
  %191 = vmatpush.msra.mxu0 0.0
  %192 = vmatpush.msra.mxu0 0.0
  %193 = vmatpush.msra.mxu0 0.0
  %194 = vmatpush.msra.mxu0 0.0
  %195 = vmatpush.msra.mxu0 0.0
  %196 = vmatpush.msra.mxu0 0.0
  %197 = vmatpush.msra.mxu0 0.0
  %v198 = vand.u32 %v28, 4294901760
  %v199 = vsub.f32 %v28, %v198
  %v200 = vand.u32 %v199, 4294901760
  %201 = vmatpush.msra.mxu0 %v200
  %v202 = vand.u32 %v27, 4294901760
  %v203 = vsub.f32 %v27, %v202
  %v204 = vand.u32 %v203, 4294901760
  %205 = vmatpush.msra.mxu0 %v204
  %v206 = vand.u32 %v26, 4294901760
  %v207 = vsub.f32 %v26, %v206
  %v208 = vand.u32 %v207, 4294901760
  %209 = vmatpush.msra.mxu0 %v208
  %v210 = vand.u32 %v25, 4294901760
  %v211 = vsub.f32 %v25, %v210
  %v212 = vand.u32 %v211, 4294901760
  %213 = vmatpush.msra.mxu0 %v212
  %v214 = vand.u32 %v31, 4294901760
  %215 = vmatmul.f32.gmra.mxu0 %v214
  %v216 = vpop.f32.mrf.mxu0
  %v217 = vadd.f32 %v178, %v216
  %v218 = vand.u32 %v34, 4294901760
  %219 = vmatmul.f32.gmra.mxu0 %v218
  %v220 = vpop.f32.mrf.mxu0
  %v221 = vadd.f32 %v184, %v220
  %222 = vdwg.mxu0
  %223 = vmatpush.msra.mxu0 0.0
  %224 = vmatpush.msra.mxu0 0.0
  %225 = vmatpush.msra.mxu0 0.0
  %226 = vmatpush.msra.mxu0 0.0
  %227 = vmatpush.msra.mxu0 0.0
  %228 = vmatpush.msra.mxu0 0.0
  %229 = vmatpush.msra.mxu0 0.0
  %230 = vmatpush.msra.mxu0 0.0
  %231 = vmatpush.msra.mxu0 0.0
  %232 = vmatpush.msra.mxu0 0.0
  %233 = vmatpush.msra.mxu0 0.0
  %234 = vmatpush.msra.mxu0 0.0
  %v235 = vand.u32 %v28, 4294901760
  %236 = vmatpush.msra.mxu0 %v235
  %v237 = vand.u32 %v27, 4294901760
  %238 = vmatpush.msra.mxu0 %v237
  %v239 = vand.u32 %v26, 4294901760
  %240 = vmatpush.msra.mxu0 %v239
  %v241 = vand.u32 %v25, 4294901760
  %242 = vmatpush.msra.mxu0 %v241
  %v243 = vand.u32 %v31, 4294901760
  %244 = vmatmul.f32.gmra.mxu0 %v243
  %v245 = vpop.f32.mrf.mxu0
  %v246 = vadd.f32 %v217, %v245
  %v247 = vand.u32 %v34, 4294901760
  %248 = vmatmul.f32.gmra.mxu0 %v247
  %v249 = vpop.f32.mrf.mxu0
  %v250 = vadd.f32 %v221, %v249
  %251 = vdwg.mxu0
  %v252 = vadd.f32 %v21, %v246
  %v253 = vadd.f32 %v22, %v250
  %vm254 = vcmask 523264
  %255 = vst.msk [vmem:[%s3] sm:$0xff] %vm254, %v252
  %256 = vst.msk [vmem:[%s3 + $0x8] sm:$0xff] %vm254, %v253
  // Predicated region
  $region18: #{decoder_block_forward.13} parent=0 // pred_check
    %p257 = pneg %p14
  $region19: #{decoder_block_forward.13} parent=0 // pred_check_branch
    %259 = sbr.rel (%p257) target = $region21
  $region20: #{decoder_block_forward.13} parent=0 // pred_region
    %v260 = vld [vmem:[%s3] sm:$0xff]
    %v261 = vld [vmem:[%s3 + $0x8] sm:$0xff]
    %v262 = vld [vmem:[%s2] sm:$0x1]
    %v264 = vperm.slane %v262, 0
    %v266 = vadd.f32 %v260, %v264
    %v267 = vadd.f32 %v261, %v264
    %268 = vst.msk [vmem:[%s3] sm:$0xff] %vm254, %v266
    %269 = vst.msk [vmem:[%s3 + $0x8] sm:$0xff] %vm254, %v267
  $region21: #{decoder_block_forward.13} parent=0 // pred_fallthru
    _
  // Predicated region
  $region22: #{decoder_block_forward.13} parent=0 // pred_check
    _
  $region23: #{decoder_block_forward.13} parent=0 // pred_check_branch
    %271 = sbr.rel (0) target = $region25
  $region24: #{decoder_block_forward.13} parent=0 // pred_region
    _
  $region25: #{decoder_block_forward.13} parent=0 // pred_fallthru
    _
  // Predicated region
  $region26: #{decoder_block_forward.13} parent=0 // pred_check
    _
  $region27: #{decoder_block_forward.13} parent=0 // pred_check_branch
    %273 = sbr.rel (0) target = $region29
  $region28: #{decoder_block_forward.13} parent=0 // pred_region
    _
  $region29: #{decoder_block_forward.13} parent=0 // pred_fallthru
    _

// kernel: decoder_block_forward.15
$region0: #{decoder_block_forward.15}
  #allocation0 [shape = 'u32[]', space=smem, size = 0x4, offset = 0x4, fixed_abs, tag = 'smem constant byte address 0x4 - core index']
  #allocation1 [shape = 'u32[72,128]{1,0:T(1,128)}', space=vmem, size = 0x9000, scoped, tag = 'internal scratch']
  %s0 = inlined_call_operand.vmem [shape: f32[16,32], index: 0, kind: input, shape index: {}]
  %s1 = inlined_call_operand.vmem [shape: f32[32,32], index: 1, kind: input, shape index: {}]
  %s2 = inlined_call_operand.hbm [shape: f32[1,32], index: 2, kind: input, shape index: {}]
  %s3 = inlined_call_operand.vmem [shape: f32[16,32], index: 3, kind: input, shape index: {}]
  %s4 = inlined_call_operand.vmem [shape: f32[16,32], index: 4, kind: output, shape index: {}]
  %s5 = sld [smem:[#allocation0]]
  $region38: #{decoder_block_forward.15} parent=0
    _
  %s7 = ssub.s32 1, %s5
  %s8 = scalar_select 0, %s7, %s5
  $region1: #{decoder_block_forward.15} parent=0
    #allocation2 [shape = 'u8[512]{0}', space=vmem, size = 0x400, scoped, tag = 'input window, operand 2, single buffered']
    #allocation3 [shape = 's32[1]{0}', space=sflag, size = 0x4, scoped, tag = 'scoped memory for decoder_block_forward.15']
    %9 = vsyncpa [#allocation3], 0
    // Predicated region
    $region2: #{decoder_block_forward.15} parent=1 // pred_check
      _
    $region3: #{decoder_block_forward.15} parent=1 // pred_check_branch
      %11 = sbr.rel (0) target = $region5
    $region4: #{decoder_block_forward.15} parent=1 // pred_region
      _
    $region5: #{decoder_block_forward.15} parent=1 // pred_fallthru
      _
    // Predicated region
    $region6: #{decoder_block_forward.15} parent=1 // pred_check
      _
    $region7: #{decoder_block_forward.15} parent=1 // pred_check_branch
      %13 = sbr.rel (0) target = $region9
    $region8: #{decoder_block_forward.15} parent=1 // pred_region
      _
    $region9: #{decoder_block_forward.15} parent=1 // pred_fallthru
      _
    // Predicated region
    $region10: #{decoder_block_forward.15} parent=1 // pred_check
      _
    $region11: #{decoder_block_forward.15} parent=1 // pred_check_branch
      %15 = sbr.rel (0) target = $region13
    $region12: #{decoder_block_forward.15} parent=1 // pred_region
      %17 = vsyncadd [#allocation3], 0
      %s19 = sshll.u32 %s2, 4
      %s20 = int_to_ptr.hbm [resolvable:$true] %s19
      %s21 = sshll.u32 [#allocation2], 4
      %s22 = int_to_ptr.vmem [resolvable:$true] %s21
      %24 = dma.hbm_to_vmem [thread:$0]  %s20, 16, %s22, [#allocation3]
    $region13: #{decoder_block_forward.15} parent=1 // pred_fallthru
      _
    // Predicated region
    $region14: #{decoder_block_forward.15} parent=1 // pred_check
      _
    $region15: #{decoder_block_forward.15} parent=1 // pred_check_branch
      %26 = sbr.rel (0) target = $region17
    $region16: #{decoder_block_forward.15} parent=1 // pred_region
      _
    $region17: #{decoder_block_forward.15} parent=1 // pred_fallthru
      _
    // Predicated region
    $region18: #{decoder_block_forward.15} parent=1 // pred_check
      _
    $region19: #{decoder_block_forward.15} parent=1 // pred_check_branch
      %28 = sbr.rel (0) target = $region21
    $region20: #{decoder_block_forward.15} parent=1 // pred_region
      %30 = dma.done [#allocation3], 16
    $region21: #{decoder_block_forward.15} parent=1 // pred_fallthru
      _
    %p31 = scmp.eq.s32.totalorder 0, 0
    // Predicated region
    $region22: #{decoder_block_forward.15} parent=1 // pred_check
      %p32 = pneg %p31
    $region23: #{decoder_block_forward.15} parent=1 // pred_check_branch
      %34 = sbr.rel (%p32) target = $region25
    $region24: #{decoder_block_forward.15} parent=1 // pred_region
      %vm35 = vcmask 261120
      %36 = vst.msk [vmem:[%s4] sm:$0xff] %vm35, 0.0
      %37 = vst.msk [vmem:[%s4 + $0x8] sm:$0xff] %vm35, 0.0
    $region25: #{decoder_block_forward.15} parent=1 // pred_fallthru
      _
    %v38 = vld [vmem:[%s4] sm:$0xff]
    %v39 = vld [vmem:[%s4 + $0x8] sm:$0xff]
    %v40 = vld [vmem:[%s0] sm:$0xff]
    %v41 = vld [vmem:[%s0 + $0x8] sm:$0xff]
    %v42 = vld [vmem:[%s1] sm:$0xff]
    %v43 = vld [vmem:[%s1 + $0x8] sm:$0xff]
    %v44 = vld [vmem:[%s1 + $0x10] sm:$0xff]
    %v45 = vld [vmem:[%s1 + $0x18] sm:$0xff]
    %vm46 = vcmask 261120
    %v48 = vsel %vm46, %v40, 0
    %v51 = vsel %vm46, %v41, 0
    %53 = vmatpush.msra.mxu0 0.0
    %54 = vmatpush.msra.mxu0 0.0
    %55 = vmatpush.msra.mxu0 0.0
    %56 = vmatpush.msra.mxu0 0.0
    %57 = vmatpush.msra.mxu0 0.0
    %58 = vmatpush.msra.mxu0 0.0
    %59 = vmatpush.msra.mxu0 0.0
    %60 = vmatpush.msra.mxu0 0.0
    %61 = vmatpush.msra.mxu0 0.0
    %62 = vmatpush.msra.mxu0 0.0
    %63 = vmatpush.msra.mxu0 0.0
    %64 = vmatpush.msra.mxu0 0.0
    %v65 = vand.u32 %v45, 4294901760
    %66 = vmatpush.msra.mxu0 %v65
    %v67 = vand.u32 %v44, 4294901760
    %68 = vmatpush.msra.mxu0 %v67
    %v69 = vand.u32 %v43, 4294901760
    %70 = vmatpush.msra.mxu0 %v69
    %v71 = vand.u32 %v42, 4294901760
    %72 = vmatpush.msra.mxu0 %v71
    %v73 = vand.u32 %v48, 4294901760
    %v74 = vsub.f32 %v48, %v73
    %v75 = vand.u32 %v74, 4294901760
    %v76 = vsub.f32 %v74, %v75
    %v77 = vand.u32 %v76, 4294901760
    %78 = vmatmul.f32.gmra.mxu0 %v77
    %v79 = vpop.f32.mrf.mxu0
    %v80 = vadd.f32 0.0, %v79
    %v81 = vand.u32 %v51, 4294901760
    %v82 = vsub.f32 %v51, %v81
    %v83 = vand.u32 %v82, 4294901760
    %v84 = vsub.f32 %v82, %v83
    %v85 = vand.u32 %v84, 4294901760
    %86 = vmatmul.f32.gmra.mxu0 %v85
    %v87 = vpop.f32.mrf.mxu0
    %v88 = vadd.f32 0.0, %v87
    %89 = vdwg.mxu0
    %90 = vmatpush.msra.mxu0 0.0
    %91 = vmatpush.msra.mxu0 0.0
    %92 = vmatpush.msra.mxu0 0.0
    %93 = vmatpush.msra.mxu0 0.0
    %94 = vmatpush.msra.mxu0 0.0
    %95 = vmatpush.msra.mxu0 0.0
    %96 = vmatpush.msra.mxu0 0.0
    %97 = vmatpush.msra.mxu0 0.0
    %98 = vmatpush.msra.mxu0 0.0
    %99 = vmatpush.msra.mxu0 0.0
    %100 = vmatpush.msra.mxu0 0.0
    %101 = vmatpush.msra.mxu0 0.0
    %v102 = vand.u32 %v45, 4294901760
    %v103 = vsub.f32 %v45, %v102
    %v104 = vand.u32 %v103, 4294901760
    %v105 = vsub.f32 %v103, %v104
    %v106 = vand.u32 %v105, 4294901760
    %107 = vmatpush.msra.mxu0 %v106
    %v108 = vand.u32 %v44, 4294901760
    %v109 = vsub.f32 %v44, %v108
    %v110 = vand.u32 %v109, 4294901760
    %v111 = vsub.f32 %v109, %v110
    %v112 = vand.u32 %v111, 4294901760
    %113 = vmatpush.msra.mxu0 %v112
    %v114 = vand.u32 %v43, 4294901760
    %v115 = vsub.f32 %v43, %v114
    %v116 = vand.u32 %v115, 4294901760
    %v117 = vsub.f32 %v115, %v116
    %v118 = vand.u32 %v117, 4294901760
    %119 = vmatpush.msra.mxu0 %v118
    %v120 = vand.u32 %v42, 4294901760
    %v121 = vsub.f32 %v42, %v120
    %v122 = vand.u32 %v121, 4294901760
    %v123 = vsub.f32 %v121, %v122
    %v124 = vand.u32 %v123, 4294901760
    %125 = vmatpush.msra.mxu0 %v124
    %v126 = vand.u32 %v48, 4294901760
    %127 = vmatmul.f32.gmra.mxu0 %v126
    %v128 = vpop.f32.mrf.mxu0
    %v129 = vadd.f32 %v80, %v128
    %v130 = vand.u32 %v51, 4294901760
    %131 = vmatmul.f32.gmra.mxu0 %v130
    %v132 = vpop.f32.mrf.mxu0
    %v133 = vadd.f32 %v88, %v132
    %134 = vdwg.mxu0
    %135 = vmatpush.msra.mxu0 0.0
    %136 = vmatpush.msra.mxu0 0.0
    %137 = vmatpush.msra.mxu0 0.0
    %138 = vmatpush.msra.mxu0 0.0
    %139 = vmatpush.msra.mxu0 0.0
    %140 = vmatpush.msra.mxu0 0.0
    %141 = vmatpush.msra.mxu0 0.0
    %142 = vmatpush.msra.mxu0 0.0
    %143 = vmatpush.msra.mxu0 0.0
    %144 = vmatpush.msra.mxu0 0.0
    %145 = vmatpush.msra.mxu0 0.0
    %146 = vmatpush.msra.mxu0 0.0
    %v147 = vand.u32 %v45, 4294901760
    %v148 = vsub.f32 %v45, %v147
    %149 = vmatpush.msra.mxu0 %v148
    %v150 = vand.u32 %v44, 4294901760
    %v151 = vsub.f32 %v44, %v150
    %152 = vmatpush.msra.mxu0 %v151
    %v153 = vand.u32 %v43, 4294901760
    %v154 = vsub.f32 %v43, %v153
    %155 = vmatpush.msra.mxu0 %v154
    %v156 = vand.u32 %v42, 4294901760
    %v157 = vsub.f32 %v42, %v156
    %158 = vmatpush.msra.mxu0 %v157
    %v159 = vand.u32 %v48, 4294901760
    %v160 = vsub.f32 %v48, %v159
    %161 = vmatmul.f32.gmra.mxu0 %v160
    %v162 = vpop.f32.mrf.mxu0
    %v163 = vadd.f32 %v129, %v162
    %v164 = vand.u32 %v51, 4294901760
    %v165 = vsub.f32 %v51, %v164
    %166 = vmatmul.f32.gmra.mxu0 %v165
    %v167 = vpop.f32.mrf.mxu0
    %v168 = vadd.f32 %v133, %v167
    %169 = vdwg.mxu0
    %170 = vmatpush.msra.mxu0 0.0
    %171 = vmatpush.msra.mxu0 0.0
    %172 = vmatpush.msra.mxu0 0.0
    %173 = vmatpush.msra.mxu0 0.0
    %174 = vmatpush.msra.mxu0 0.0
    %175 = vmatpush.msra.mxu0 0.0
    %176 = vmatpush.msra.mxu0 0.0
    %177 = vmatpush.msra.mxu0 0.0
    %178 = vmatpush.msra.mxu0 0.0
    %179 = vmatpush.msra.mxu0 0.0
    %180 = vmatpush.msra.mxu0 0.0
    %181 = vmatpush.msra.mxu0 0.0
    %v182 = vand.u32 %v45, 4294901760
    %183 = vmatpush.msra.mxu0 %v182
    %v184 = vand.u32 %v44, 4294901760
    %185 = vmatpush.msra.mxu0 %v184
    %v186 = vand.u32 %v43, 4294901760
    %187 = vmatpush.msra.mxu0 %v186
    %v188 = vand.u32 %v42, 4294901760
    %189 = vmatpush.msra.mxu0 %v188
    %v190 = vand.u32 %v48, 4294901760
    %v191 = vsub.f32 %v48, %v190
    %v192 = vand.u32 %v191, 4294901760
    %193 = vmatmul.f32.gmra.mxu0 %v192
    %v194 = vpop.f32.mrf.mxu0
    %v195 = vadd.f32 %v163, %v194
    %v196 = vand.u32 %v51, 4294901760
    %v197 = vsub.f32 %v51, %v196
    %v198 = vand.u32 %v197, 4294901760
    %199 = vmatmul.f32.gmra.mxu0 %v198
    %v200 = vpop.f32.mrf.mxu0
    %v201 = vadd.f32 %v168, %v200
    %202 = vdwg.mxu0
    %203 = vmatpush.msra.mxu0 0.0
    %204 = vmatpush.msra.mxu0 0.0
    %205 = vmatpush.msra.mxu0 0.0
    %206 = vmatpush.msra.mxu0 0.0
    %207 = vmatpush.msra.mxu0 0.0
    %208 = vmatpush.msra.mxu0 0.0
    %209 = vmatpush.msra.mxu0 0.0
    %210 = vmatpush.msra.mxu0 0.0
    %211 = vmatpush.msra.mxu0 0.0
    %212 = vmatpush.msra.mxu0 0.0
    %213 = vmatpush.msra.mxu0 0.0
    %214 = vmatpush.msra.mxu0 0.0
    %v215 = vand.u32 %v45, 4294901760
    %v216 = vsub.f32 %v45, %v215
    %v217 = vand.u32 %v216, 4294901760
    %218 = vmatpush.msra.mxu0 %v217
    %v219 = vand.u32 %v44, 4294901760
    %v220 = vsub.f32 %v44, %v219
    %v221 = vand.u32 %v220, 4294901760
    %222 = vmatpush.msra.mxu0 %v221
    %v223 = vand.u32 %v43, 4294901760
    %v224 = vsub.f32 %v43, %v223
    %v225 = vand.u32 %v224, 4294901760
    %226 = vmatpush.msra.mxu0 %v225
    %v227 = vand.u32 %v42, 4294901760
    %v228 = vsub.f32 %v42, %v227
    %v229 = vand.u32 %v228, 4294901760
    %230 = vmatpush.msra.mxu0 %v229
    %v231 = vand.u32 %v48, 4294901760
    %232 = vmatmul.f32.gmra.mxu0 %v231
    %v233 = vpop.f32.mrf.mxu0
    %v234 = vadd.f32 %v195, %v233
    %v235 = vand.u32 %v51, 4294901760
    %236 = vmatmul.f32.gmra.mxu0 %v235
    %v237 = vpop.f32.mrf.mxu0
    %v238 = vadd.f32 %v201, %v237
    %239 = vdwg.mxu0
    %240 = vmatpush.msra.mxu0 0.0
    %241 = vmatpush.msra.mxu0 0.0
    %242 = vmatpush.msra.mxu0 0.0
    %243 = vmatpush.msra.mxu0 0.0
    %244 = vmatpush.msra.mxu0 0.0
    %245 = vmatpush.msra.mxu0 0.0
    %246 = vmatpush.msra.mxu0 0.0
    %247 = vmatpush.msra.mxu0 0.0
    %248 = vmatpush.msra.mxu0 0.0
    %249 = vmatpush.msra.mxu0 0.0
    %250 = vmatpush.msra.mxu0 0.0
    %251 = vmatpush.msra.mxu0 0.0
    %v252 = vand.u32 %v45, 4294901760
    %253 = vmatpush.msra.mxu0 %v252
    %v254 = vand.u32 %v44, 4294901760
    %255 = vmatpush.msra.mxu0 %v254
    %v256 = vand.u32 %v43, 4294901760
    %257 = vmatpush.msra.mxu0 %v256
    %v258 = vand.u32 %v42, 4294901760
    %259 = vmatpush.msra.mxu0 %v258
    %v260 = vand.u32 %v48, 4294901760
    %261 = vmatmul.f32.gmra.mxu0 %v260
    %v262 = vpop.f32.mrf.mxu0
    %v263 = vadd.f32 %v234, %v262
    %v264 = vand.u32 %v51, 4294901760
    %265 = vmatmul.f32.gmra.mxu0 %v264
    %v266 = vpop.f32.mrf.mxu0
    %v267 = vadd.f32 %v238, %v266
    %268 = vdwg.mxu0
    %v269 = vadd.f32 %v38, %v263
    %v270 = vadd.f32 %v39, %v267
    %271 = vst.msk [vmem:[%s4] sm:$0xff] %vm46, %v269
    %272 = vst.msk [vmem:[%s4 + $0x8] sm:$0xff] %vm46, %v270
    // Predicated region
    $region26: #{decoder_block_forward.15} parent=1 // pred_check
      %p273 = pneg %p31
    $region27: #{decoder_block_forward.15} parent=1 // pred_check_branch
      %275 = sbr.rel (%p273) target = $region29
    $region28: #{decoder_block_forward.15} parent=1 // pred_region
      %v276 = vld [vmem:[%s4] sm:$0xff]
      %v277 = vld [vmem:[%s4 + $0x8] sm:$0xff]
      %v278 = vld [vmem:[#allocation2] sm:$0x1]
      %v280 = vperm.slane %v278, 0
      %v282 = vadd.f32 %v276, %v280
      %v283 = vadd.f32 %v277, %v280
      %v284 = vld [vmem:[%s3] sm:$0xff]
      %v285 = vld [vmem:[%s3 + $0x8] sm:$0xff]
      %v286 = vadd.f32 %v282, %v284
      %v287 = vadd.f32 %v283, %v285
      %288 = vst.msk [vmem:[%s4] sm:$0xff] %vm46, %v286
      %289 = vst.msk [vmem:[%s4 + $0x8] sm:$0xff] %vm46, %v287
    $region29: #{decoder_block_forward.15} parent=1 // pred_fallthru
      _
    // Predicated region
    $region30: #{decoder_block_forward.15} parent=1 // pred_check
      _
    $region31: #{decoder_block_forward.15} parent=1 // pred_check_branch
      %291 = sbr.rel (0) target = $region33
    $region32: #{decoder_block_forward.15} parent=1 // pred_region
      _
    $region33: #{decoder_block_forward.15} parent=1 // pred_fallthru
      _
    // Predicated region
    $region34: #{decoder_block_forward.15} parent=1 // pred_check
      _
    $region35: #{decoder_block_forward.15} parent=1 // pred_check_branch
      %293 = sbr.rel (0) target = $region37
    $region36: #{decoder_block_forward.15} parent=1 // pred_region
      _
    $region37: #{decoder_block_forward.15} parent=1 // pred_fallthru
      _
    %294 = vsyncpa [#allocation3], 1

// kernel: decoder_block_forward.16
$region0: #{decoder_block_forward.16}
  #allocation0 [shape = 'u32[]', space=smem, size = 0x4, offset = 0x4, fixed_abs, tag = 'smem constant byte address 0x4 - core index']
  #allocation1 [shape = 'u32[72,128]{1,0:T(1,128)}', space=vmem, size = 0x9000, scoped, tag = 'internal scratch']
  #allocation2 [shape = 'f32[1]{0:T(128)S(6)}', space=smem, size = 0x200, scoped, tag = 'scoped memory for decoder_block_forward.16']
  #allocation3 [shape = 'f32[1]{0:T(128)S(6)}', space=smem, size = 0x200, scoped, tag = 'scoped memory for decoder_block_forward.16']
  %s0 = inlined_call_operand.vmem [shape: f32[16,32], index: 0, kind: input, shape index: {}]
  %s1 = inlined_call_operand.vmem [shape: f32[32,64], index: 1, kind: input, shape index: {}]
  %s2 = inlined_call_operand.vmem [shape: f32[1,64], index: 2, kind: input, shape index: {}]
  %s3 = inlined_call_operand.<no memory space> [shape: f32[1], index: 3, kind: input, shape index: {}]
  %s4 = inlined_call_operand.<no memory space> [shape: f32[1], index: 4, kind: input, shape index: {}]
  %s5 = inlined_call_operand.vmem [shape: f32[16,64], index: 5, kind: output, shape index: {}]
  %s6 = sld [smem:[#allocation0]]
  $region30: #{decoder_block_forward.16} parent=0
    _
  %s8 = ssub.s32 1, %s6
  %s9 = scalar_select 0, %s8, %s6
  %10 = sst [smem:[#allocation2]] %s3
  %11 = sst [smem:[#allocation3]] %s4
  // Predicated region
  $region2: #{decoder_block_forward.16} parent=0 // pred_check
    _
  $region3: #{decoder_block_forward.16} parent=0 // pred_check_branch
    %13 = sbr.rel (0) target = $region5
  $region4: #{decoder_block_forward.16} parent=0 // pred_region
    _
  $region5: #{decoder_block_forward.16} parent=0 // pred_fallthru
    _
  // Predicated region
  $region6: #{decoder_block_forward.16} parent=0 // pred_check
    _
  $region7: #{decoder_block_forward.16} parent=0 // pred_check_branch
    %15 = sbr.rel (0) target = $region9
  $region8: #{decoder_block_forward.16} parent=0 // pred_region
    _
  $region9: #{decoder_block_forward.16} parent=0 // pred_fallthru
    _
  // Predicated region
  $region10: #{decoder_block_forward.16} parent=0 // pred_check
    _
  $region11: #{decoder_block_forward.16} parent=0 // pred_check_branch
    %17 = sbr.rel (0) target = $region13
  $region12: #{decoder_block_forward.16} parent=0 // pred_region
    _
  $region13: #{decoder_block_forward.16} parent=0 // pred_fallthru
    _
  // Predicated region
  $region14: #{decoder_block_forward.16} parent=0 // pred_check
    _
  $region15: #{decoder_block_forward.16} parent=0 // pred_check_branch
    %19 = sbr.rel (0) target = $region17
  $region16: #{decoder_block_forward.16} parent=0 // pred_region
    _
  $region17: #{decoder_block_forward.16} parent=0 // pred_fallthru
    _
  // Predicated region
  $region18: #{decoder_block_forward.16} parent=0 // pred_check
    _
  $region19: #{decoder_block_forward.16} parent=0 // pred_check_branch
    %21 = sbr.rel (0) target = $region21
  $region20: #{decoder_block_forward.16} parent=0 // pred_region
    _
  $region21: #{decoder_block_forward.16} parent=0 // pred_fallthru
    _
  %v22 = vld [vmem:[%s0] sm:$0xff]
  %v23 = vld [vmem:[%s0 + $0x8] sm:$0xff]
  %vm24 = vcmask 261120
  %v25 = vsel %vm24, %v22, 0.0
  %26 = vadd.xlane.f32.xlu0 %v25
  %v27 = vpop.xlane.xlu0 %26
  %v28 = vsel %vm24, %v23, 0.0
  %29 = vadd.xlane.f32.xlu0 %v28
  %v30 = vpop.xlane.xlu0 %29
  %v31 = vrcp.pop 32.0
  %v32 = vmul.f32 32.0, %v31
  %v33 = vsub.f32 1.0, %v32
  %v34 = vmul.f32 %v31, %v33
  %v35 = vadd.f32 %v31, %v34
  %vm36 = vweird.f32 %v31
  %v37 = vsel %vm36, %v31, %v35
  %v38 = vmul.f32 %v27, %v37
  %v39 = vmul.f32 %v30, %v37
  %v40 = vsub.f32 %v22, %v38
  %v41 = vsub.f32 %v23, %v39
  %v42 = vmul.f32 %v40, %v40
  %v43 = vmul.f32 %v41, %v41
  %v44 = vsel %vm24, %v42, 0.0
  %45 = vadd.xlane.f32.xlu0 %v44
  %v46 = vpop.xlane.xlu0 %45
  %v47 = vsel %vm24, %v43, 0.0
  %48 = vadd.xlane.f32.xlu0 %v47
  %v49 = vpop.xlane.xlu0 %48
  %v50 = vrcp.pop 31.0
  %v51 = vmul.f32 31.0, %v50
  %v52 = vsub.f32 1.0, %v51
  %v53 = vmul.f32 %v50, %v52
  %v54 = vadd.f32 %v50, %v53
  %vm55 = vweird.f32 %v50
  %v56 = vsel %vm55, %v50, %v54
  %v57 = vmul.f32 %v46, %v56
  %v58 = vmul.f32 %v49, %v56
  %v59 = vrsqrt.pop %v57
  %v60 = vmul.f32 %v59, %v57
  %v61 = vmul.f32 %v60, %v59
  %v62 = vmul.f32 0.5, %v61
  %v63 = vsub.f32 1.5, %v62
  %v64 = vmul.f32 %v59, %v63
  %v65 = vmul.f32 %v57, %v64
  %vm66 = vcmp.eq.f32.partialorder %v57, inf
  %v67 = vsel %vm66, %v57, %v65
  %vm68 = vcmp.eq.f32.partialorder %v57, 0.0
  %v69 = vand.u32 %v57, 2147483648
  %v70 = vsel %vm68, %v69, %v67
  %v71 = vrsqrt.pop %v58
  %v72 = vmul.f32 %v71, %v58
  %v73 = vmul.f32 %v72, %v71
  %v74 = vmul.f32 0.5, %v73
  %v75 = vsub.f32 1.5, %v74
  %v76 = vmul.f32 %v71, %v75
  %v77 = vmul.f32 %v58, %v76
  %vm78 = vcmp.eq.f32.partialorder %v58, inf
  %v79 = vsel %vm78, %v58, %v77
  %vm80 = vcmp.eq.f32.partialorder %v58, 0.0
  %v81 = vand.u32 %v58, 2147483648
  %v82 = vsel %vm80, %v81, %v79
  %s83 = sld [smem:[#allocation2]]
  %v84 = vstv %s83
  %v85 = vmul.f32 %v84, %v40
  %v86 = vmul.f32 %v84, %v41
  %v87 = vadd.f32 %v70, 1e-06
  %v88 = vadd.f32 %v82, 1e-06
  %v89 = vrcp.pop %v87
  %v90 = vmul.f32 %v87, %v89
  %v91 = vsub.f32 1.0, %v90
  %v92 = vmul.f32 %v89, %v91
  %v93 = vadd.f32 %v89, %v92
  %vm94 = vweird.f32 %v87
  %vm95 = vweird.f32 %v89
  %vm96 = vmor %vm94, %vm95
  %v97 = vsel %vm96, %v89, %v93
  %v98 = vand.u32 2147483647, %v87
  %vm99 = vcmp.eq.f32.partialorder %v98, 8.507059e+37
  %v100 = vand.u32 %v87, 2147483648
  %v101 = vor.u32 1.1754944e-38, %v100
  %v102 = vsel %vm99, %v101, %v97
  %v103 = vmul.f32 %v85, %v102
  %v104 = vrcp.pop %v88
  %v105 = vmul.f32 %v88, %v104
  %v106 = vsub.f32 1.0, %v105
  %v107 = vmul.f32 %v104, %v106
  %v108 = vadd.f32 %v104, %v107
  %vm109 = vweird.f32 %v88
  %vm110 = vweird.f32 %v104
  %vm111 = vmor %vm109, %vm110
  %v112 = vsel %vm111, %v104, %v108
  %v113 = vand.u32 2147483647, %v88
  %vm114 = vcmp.eq.f32.partialorder %v113, 8.507059e+37
  %v115 = vand.u32 %v88, 2147483648
  %v116 = vor.u32 1.1754944e-38, %v115
  %v117 = vsel %vm114, %v116, %v112
  %v118 = vmul.f32 %v86, %v117
  %s119 = sld [smem:[#allocation3]]
  %v120 = vstv %s119
  %v121 = vadd.f32 %v103, %v120
  %v122 = vadd.f32 %v118, %v120
  %v123 = vld [vmem:[%s1] sm:$0xff]
  %v124 = vld [vmem:[%s1 + $0x8] sm:$0xff]
  %v125 = vld [vmem:[%s1 + $0x10] sm:$0xff]
  %v126 = vld [vmem:[%s1 + $0x18] sm:$0xff]
  %v127 = vld [vmem:[%s2] sm:$0x1]
  %v129 = vperm.slane %v127, 0
  %v132 = vsel %vm24, %v121, 0
  %v135 = vsel %vm24, %v122, 0
  %137 = vmatpush.msra.mxu0 0.0
  %138 = vmatpush.msra.mxu0 0.0
  %139 = vmatpush.msra.mxu0 0.0
  %140 = vmatpush.msra.mxu0 0.0
  %141 = vmatpush.msra.mxu0 0.0
  %142 = vmatpush.msra.mxu0 0.0
  %143 = vmatpush.msra.mxu0 0.0
  %144 = vmatpush.msra.mxu0 0.0
  %145 = vmatpush.msra.mxu0 0.0
  %146 = vmatpush.msra.mxu0 0.0
  %147 = vmatpush.msra.mxu0 0.0
  %148 = vmatpush.msra.mxu0 0.0
  %v149 = vand.u32 %v126, 4294901760
  %150 = vmatpush.msra.mxu0 %v149
  %v151 = vand.u32 %v125, 4294901760
  %152 = vmatpush.msra.mxu0 %v151
  %v153 = vand.u32 %v124, 4294901760
  %154 = vmatpush.msra.mxu0 %v153
  %v155 = vand.u32 %v123, 4294901760
  %156 = vmatpush.msra.mxu0 %v155
  %v157 = vand.u32 %v132, 4294901760
  %v158 = vsub.f32 %v132, %v157
  %v159 = vand.u32 %v158, 4294901760
  %v160 = vsub.f32 %v158, %v159
  %v161 = vand.u32 %v160, 4294901760
  %162 = vmatmul.f32.gmra.mxu0 %v161
  %v163 = vpop.f32.mrf.mxu0
  %v164 = vadd.f32 %v129, %v163
  %v165 = vand.u32 %v135, 4294901760
  %v166 = vsub.f32 %v135, %v165
  %v167 = vand.u32 %v166, 4294901760
  %v168 = vsub.f32 %v166, %v167
  %v169 = vand.u32 %v168, 4294901760
  %170 = vmatmul.f32.gmra.mxu0 %v169
  %v171 = vpop.f32.mrf.mxu0
  %v172 = vadd.f32 %v129, %v171
  %173 = vdwg.mxu0
  %174 = vmatpush.msra.mxu0 0.0
  %175 = vmatpush.msra.mxu0 0.0
  %176 = vmatpush.msra.mxu0 0.0
  %177 = vmatpush.msra.mxu0 0.0
  %178 = vmatpush.msra.mxu0 0.0
  %179 = vmatpush.msra.mxu0 0.0
  %180 = vmatpush.msra.mxu0 0.0
  %181 = vmatpush.msra.mxu0 0.0
  %182 = vmatpush.msra.mxu0 0.0
  %183 = vmatpush.msra.mxu0 0.0
  %184 = vmatpush.msra.mxu0 0.0
  %185 = vmatpush.msra.mxu0 0.0
  %v186 = vand.u32 %v126, 4294901760
  %v187 = vsub.f32 %v126, %v186
  %v188 = vand.u32 %v187, 4294901760
  %v189 = vsub.f32 %v187, %v188
  %v190 = vand.u32 %v189, 4294901760
  %191 = vmatpush.msra.mxu0 %v190
  %v192 = vand.u32 %v125, 4294901760
  %v193 = vsub.f32 %v125, %v192
  %v194 = vand.u32 %v193, 4294901760
  %v195 = vsub.f32 %v193, %v194
  %v196 = vand.u32 %v195, 4294901760
  %197 = vmatpush.msra.mxu0 %v196
  %v198 = vand.u32 %v124, 4294901760
  %v199 = vsub.f32 %v124, %v198
  %v200 = vand.u32 %v199, 4294901760
  %v201 = vsub.f32 %v199, %v200
  %v202 = vand.u32 %v201, 4294901760
  %203 = vmatpush.msra.mxu0 %v202
  %v204 = vand.u32 %v123, 4294901760
  %v205 = vsub.f32 %v123, %v204
  %v206 = vand.u32 %v205, 4294901760
  %v207 = vsub.f32 %v205, %v206
  %v208 = vand.u32 %v207, 4294901760
  %209 = vmatpush.msra.mxu0 %v208
  %v210 = vand.u32 %v132, 4294901760
  %211 = vmatmul.f32.gmra.mxu0 %v210
  %v212 = vpop.f32.mrf.mxu0
  %v213 = vadd.f32 %v164, %v212
  %v214 = vand.u32 %v135, 4294901760
  %215 = vmatmul.f32.gmra.mxu0 %v214
  %v216 = vpop.f32.mrf.mxu0
  %v217 = vadd.f32 %v172, %v216
  %218 = vdwg.mxu0
  %219 = vmatpush.msra.mxu0 0.0
  %220 = vmatpush.msra.mxu0 0.0
  %221 = vmatpush.msra.mxu0 0.0
  %222 = vmatpush.msra.mxu0 0.0
  %223 = vmatpush.msra.mxu0 0.0
  %224 = vmatpush.msra.mxu0 0.0
  %225 = vmatpush.msra.mxu0 0.0
  %226 = vmatpush.msra.mxu0 0.0
  %227 = vmatpush.msra.mxu0 0.0
  %228 = vmatpush.msra.mxu0 0.0
  %229 = vmatpush.msra.mxu0 0.0
  %230 = vmatpush.msra.mxu0 0.0
  %v231 = vand.u32 %v126, 4294901760
  %v232 = vsub.f32 %v126, %v231
  %233 = vmatpush.msra.mxu0 %v232
  %v234 = vand.u32 %v125, 4294901760
  %v235 = vsub.f32 %v125, %v234
  %236 = vmatpush.msra.mxu0 %v235
  %v237 = vand.u32 %v124, 4294901760
  %v238 = vsub.f32 %v124, %v237
  %239 = vmatpush.msra.mxu0 %v238
  %v240 = vand.u32 %v123, 4294901760
  %v241 = vsub.f32 %v123, %v240
  %242 = vmatpush.msra.mxu0 %v241
  %v243 = vand.u32 %v132, 4294901760
  %v244 = vsub.f32 %v132, %v243
  %245 = vmatmul.f32.gmra.mxu0 %v244
  %v246 = vpop.f32.mrf.mxu0
  %v247 = vadd.f32 %v213, %v246
  %v248 = vand.u32 %v135, 4294901760
  %v249 = vsub.f32 %v135, %v248
  %250 = vmatmul.f32.gmra.mxu0 %v249
  %v251 = vpop.f32.mrf.mxu0
  %v252 = vadd.f32 %v217, %v251
  %253 = vdwg.mxu0
  %254 = vmatpush.msra.mxu0 0.0
  %255 = vmatpush.msra.mxu0 0.0
  %256 = vmatpush.msra.mxu0 0.0
  %257 = vmatpush.msra.mxu0 0.0
  %258 = vmatpush.msra.mxu0 0.0
  %259 = vmatpush.msra.mxu0 0.0
  %260 = vmatpush.msra.mxu0 0.0
  %261 = vmatpush.msra.mxu0 0.0
  %262 = vmatpush.msra.mxu0 0.0
  %263 = vmatpush.msra.mxu0 0.0
  %264 = vmatpush.msra.mxu0 0.0
  %265 = vmatpush.msra.mxu0 0.0
  %v266 = vand.u32 %v126, 4294901760
  %267 = vmatpush.msra.mxu0 %v266
  %v268 = vand.u32 %v125, 4294901760
  %269 = vmatpush.msra.mxu0 %v268
  %v270 = vand.u32 %v124, 4294901760
  %271 = vmatpush.msra.mxu0 %v270
  %v272 = vand.u32 %v123, 4294901760
  %273 = vmatpush.msra.mxu0 %v272
  %v274 = vand.u32 %v132, 4294901760
  %v275 = vsub.f32 %v132, %v274
  %v276 = vand.u32 %v275, 4294901760
  %277 = vmatmul.f32.gmra.mxu0 %v276
  %v278 = vpop.f32.mrf.mxu0
  %v279 = vadd.f32 %v247, %v278
  %v280 = vand.u32 %v135, 4294901760
  %v281 = vsub.f32 %v135, %v280
  %v282 = vand.u32 %v281, 4294901760
  %283 = vmatmul.f32.gmra.mxu0 %v282
  %v284 = vpop.f32.mrf.mxu0
  %v285 = vadd.f32 %v252, %v284
  %286 = vdwg.mxu0
  %287 = vmatpush.msra.mxu0 0.0
  %288 = vmatpush.msra.mxu0 0.0
  %289 = vmatpush.msra.mxu0 0.0
  %290 = vmatpush.msra.mxu0 0.0
  %291 = vmatpush.msra.mxu0 0.0
  %292 = vmatpush.msra.mxu0 0.0
  %293 = vmatpush.msra.mxu0 0.0
  %294 = vmatpush.msra.mxu0 0.0
  %295 = vmatpush.msra.mxu0 0.0
  %296 = vmatpush.msra.mxu0 0.0
  %297 = vmatpush.msra.mxu0 0.0
  %298 = vmatpush.msra.mxu0 0.0
  %v299 = vand.u32 %v126, 4294901760
  %v300 = vsub.f32 %v126, %v299
  %v301 = vand.u32 %v300, 4294901760
  %302 = vmatpush.msra.mxu0 %v301
  %v303 = vand.u32 %v125, 4294901760
  %v304 = vsub.f32 %v125, %v303
  %v305 = vand.u32 %v304, 4294901760
  %306 = vmatpush.msra.mxu0 %v305
  %v307 = vand.u32 %v124, 4294901760
  %v308 = vsub.f32 %v124, %v307
  %v309 = vand.u32 %v308, 4294901760
  %310 = vmatpush.msra.mxu0 %v309
  %v311 = vand.u32 %v123, 4294901760
  %v312 = vsub.f32 %v123, %v311
  %v313 = vand.u32 %v312, 4294901760
  %314 = vmatpush.msra.mxu0 %v313
  %v315 = vand.u32 %v132, 4294901760
  %316 = vmatmul.f32.gmra.mxu0 %v315
  %v317 = vpop.f32.mrf.mxu0
  %v318 = vadd.f32 %v279, %v317
  %v319 = vand.u32 %v135, 4294901760
  %320 = vmatmul.f32.gmra.mxu0 %v319
  %v321 = vpop.f32.mrf.mxu0
  %v322 = vadd.f32 %v285, %v321
  %323 = vdwg.mxu0
  %324 = vmatpush.msra.mxu0 0.0
  %325 = vmatpush.msra.mxu0 0.0
  %326 = vmatpush.msra.mxu0 0.0
  %327 = vmatpush.msra.mxu0 0.0
  %328 = vmatpush.msra.mxu0 0.0
  %329 = vmatpush.msra.mxu0 0.0
  %330 = vmatpush.msra.mxu0 0.0
  %331 = vmatpush.msra.mxu0 0.0
  %332 = vmatpush.msra.mxu0 0.0
  %333 = vmatpush.msra.mxu0 0.0
  %334 = vmatpush.msra.mxu0 0.0
  %335 = vmatpush.msra.mxu0 0.0
  %v336 = vand.u32 %v126, 4294901760
  %337 = vmatpush.msra.mxu0 %v336
  %v338 = vand.u32 %v125, 4294901760
  %339 = vmatpush.msra.mxu0 %v338
  %v340 = vand.u32 %v124, 4294901760
  %341 = vmatpush.msra.mxu0 %v340
  %v342 = vand.u32 %v123, 4294901760
  %343 = vmatpush.msra.mxu0 %v342
  %v344 = vand.u32 %v132, 4294901760
  %345 = vmatmul.f32.gmra.mxu0 %v344
  %v346 = vpop.f32.mrf.mxu0
  %v347 = vadd.f32 %v318, %v346
  %v348 = vand.u32 %v135, 4294901760
  %349 = vmatmul.f32.gmra.mxu0 %v348
  %v350 = vpop.f32.mrf.mxu0
  %v351 = vadd.f32 %v322, %v350
  %352 = vdwg.mxu0
  %v353 = vmax.f32 %v347, 0.0
  %v354 = vmax.f32 %v351, 0.0
  %vm355 = vcmask 523264
  %356 = vst.msk [vmem:[%s5] sm:$0xff] %vm355, %v353
  %357 = vst.msk [vmem:[%s5 + $0x8] sm:$0xff] %vm355, %v354
  // Predicated region
  $region22: #{decoder_block_forward.16} parent=0 // pred_check
    _
  $region23: #{decoder_block_forward.16} parent=0 // pred_check_branch
    %359 = sbr.rel (0) target = $region25
  $region24: #{decoder_block_forward.16} parent=0 // pred_region
    _
  $region25: #{decoder_block_forward.16} parent=0 // pred_fallthru
    _
  // Predicated region
  $region26: #{decoder_block_forward.16} parent=0 // pred_check
    _
  $region27: #{decoder_block_forward.16} parent=0 // pred_check_branch
    %361 = sbr.rel (0) target = $region29
  $region28: #{decoder_block_forward.16} parent=0 // pred_region
    _
  $region29: #{decoder_block_forward.16} parent=0 // pred_fallthru
    _

// kernel: decoder_block_forward.14
$region0: #{decoder_block_forward.14}
  #allocation0 [shape = 'u32[]', space=smem, size = 0x4, offset = 0x4, fixed_abs, tag = 'smem constant byte address 0x4 - core index']
  #allocation1 [shape = 'u32[72,128]{1,0:T(1,128)}', space=vmem, size = 0x9000, scoped, tag = 'internal scratch']
  %s0 = inlined_call_operand.vmem [shape: f32[2,8,32], index: 0, kind: input, shape index: {}]
  %s1 = inlined_call_operand.vmem [shape: f32[2,8,64], index: 1, kind: input, shape index: {}]
  %s2 = inlined_call_operand.vmem [shape: s32[2,1,8], index: 2, kind: input, shape index: {}]
  %s3 = inlined_call_operand.vmem [shape: f32[2,8,32], index: 3, kind: output, shape index: {}]
  %s4 = sld [smem:[#allocation0]]
  $region45: #{decoder_block_forward.14} parent=0
    _
  %s6 = ssub.s32 1, %s4
  %s7 = scalar_select 0, %s6, %s4
  loop: start=0, step=1, limit=4
  $region2: #{decoder_block_forward.14} parent=0 // loop_pre_header
    _
  $region3: #{decoder_block_forward.14} parent=0 // loop_header
    %s9 = sphi 0, %s13
    %p10 = scmp.ge.s32.totalorder %s9, 4
    %s16 = sphi 0, %s28
    %s17 = sphi 0, %s24
    %s18 = sphi 0, %s16
    %s19 = sphi 0, %s17
    %s20 = sphi 0, %s18
    %s21 = sphi 0, %s19
    %s33 = sphi 0, %s35
    %s36 = sphi 0, %s33
    %s37 = sphi 0, %s36
    %s53 = sphi 0, %s37
    %s59 = sphi 0, %s61
    %s62 = sphi 0, %s59
    %s63 = sphi 0, %s62
    %s79 = sphi 0, %s63
    %s85 = sphi 0, %s87
    %s88 = sphi 0, %s85
    %s89 = sphi 0, %s88
    %s105 = sphi 0, %s89
    %s113 = sphi 0, %s115
    %s116 = sphi 0, %s113
    %s117 = sphi 0, %s116
    %s133 = sphi 0, %s117
  $region4: #{decoder_block_forward.14} parent=0 // loop_header_branch
    %12 = sbr.rel (%p10) target = $region8
  $region5: #{decoder_block_forward.14} parent=0 // loop_body
    %s14 = ssub.s32 %s9, 1
    %s15 = ssub.s32 %s9, 2
    %s22 = sadd.s32 1, %s17
    %p23 = scmp.ge.s32.totalorder %s22, 1
    %s24 = scalar_select %p23, 0, %s22
    %s25 = sadd.s32 1, %s16
    %s26 = scalar_select %p23, %s25, %s16
    %p27 = scmp.ge.s32.totalorder %s26, 2
    %s28 = scalar_select %p27, 0, %s26
    %s29 = ssub.s32 %s16, %s28
    %s30 = ssub.s32 %s17, %s24
    %s31 = sor.u32 %s29, %s30
    %p32 = scmp.eq.s32.totalorder %s31, 0
    %s34 = sadd.s32 %s33, 1
    %s35 = scalar_select %p32, %s33, %s34
    %p38 = pneg %p32
    %p39 = scmp.eq.s32.totalorder %s9, 1
    %p40 = por %p38, %p39
    %p41 = scmp.ne.s32.totalorder %s33, %s36
    %p42 = scmp.eq.s32.totalorder %s9, 0
    %p43 = por %p41, %p42
    %p44 = scmp.ne.s32.totalorder %s33, %s36
    %p45 = scmp.eq.s32.totalorder %s14, 1
    %p46 = por %p44, %p45
    %p47 = scmp.ne.s32.totalorder %s36, %s37
    %p48 = scmp.eq.s32.totalorder %s14, 0
    %p49 = por %p47, %p48
    %p50 = scmp.ne.s32.totalorder %s36, %s37
    %p51 = scmp.eq.s32.totalorder %s15, 1
    %p52 = por %p50, %p51
    %p54 = scmp.ne.s32.totalorder %s37, %s53
    %p55 = scmp.eq.s32.totalorder %s15, 0
    %p56 = por %p54, %p55
    %s57 = ssub.s32 %s16, %s28
    %p58 = scmp.eq.s32.totalorder %s57, 0
    %s60 = sadd.s32 %s59, 1
    %s61 = scalar_select %p58, %s59, %s60
    %p64 = pneg %p58
    %p65 = scmp.eq.s32.totalorder %s9, 1
    %p66 = por %p64, %p65
    %p67 = scmp.ne.s32.totalorder %s59, %s62
    %p68 = scmp.eq.s32.totalorder %s9, 0
    %p69 = por %p67, %p68
    %p70 = scmp.ne.s32.totalorder %s59, %s62
    %p71 = scmp.eq.s32.totalorder %s14, 1
    %p72 = por %p70, %p71
    %p73 = scmp.ne.s32.totalorder %s62, %s63
    %p74 = scmp.eq.s32.totalorder %s14, 0
    %p75 = por %p73, %p74
    %p76 = scmp.ne.s32.totalorder %s62, %s63
    %p77 = scmp.eq.s32.totalorder %s15, 1
    %p78 = por %p76, %p77
    %p80 = scmp.ne.s32.totalorder %s63, %s79
    %p81 = scmp.eq.s32.totalorder %s15, 0
    %p82 = por %p80, %p81
    %s83 = ssub.s32 %s16, %s28
    %p84 = scmp.eq.s32.totalorder %s83, 0
    %s86 = sadd.s32 %s85, 1
    %s87 = scalar_select %p84, %s85, %s86
    %p90 = pneg %p84
    %p91 = scmp.eq.s32.totalorder %s9, 1
    %p92 = por %p90, %p91
    %p93 = scmp.ne.s32.totalorder %s85, %s88
    %p94 = scmp.eq.s32.totalorder %s9, 0
    %p95 = por %p93, %p94
    %p96 = scmp.ne.s32.totalorder %s85, %s88
    %p97 = scmp.eq.s32.totalorder %s14, 1
    %p98 = por %p96, %p97
    %p99 = scmp.ne.s32.totalorder %s88, %s89
    %p100 = scmp.eq.s32.totalorder %s14, 0
    %p101 = por %p99, %p100
    %p102 = scmp.ne.s32.totalorder %s88, %s89
    %p103 = scmp.eq.s32.totalorder %s15, 1
    %p104 = por %p102, %p103
    %p106 = scmp.ne.s32.totalorder %s89, %s105
    %p107 = scmp.eq.s32.totalorder %s15, 0
    %p108 = por %p106, %p107
    %s109 = ssub.s32 %s16, %s28
    %s110 = ssub.s32 %s17, %s24
    %s111 = sor.u32 %s109, %s110
    %p112 = scmp.eq.s32.totalorder %s111, 0
    %s114 = sadd.s32 %s113, 1
    %s115 = scalar_select %p112, %s113, %s114
    %p118 = pneg %p112
    %p119 = scmp.eq.s32.totalorder %s9, 1
    %p120 = por %p118, %p119
    %p121 = scmp.ne.s32.totalorder %s113, %s116
    %p122 = scmp.eq.s32.totalorder %s9, 0
    %p123 = por %p121, %p122
    %p124 = scmp.ne.s32.totalorder %s113, %s116
    %p125 = scmp.eq.s32.totalorder %s14, 1
    %p126 = por %p124, %p125
    %p127 = scmp.ne.s32.totalorder %s116, %s117
    %p128 = scmp.eq.s32.totalorder %s14, 0
    %p129 = por %p127, %p128
    %p130 = scmp.ne.s32.totalorder %s116, %s117
    %p131 = scmp.eq.s32.totalorder %s15, 1
    %p132 = por %p130, %p131
    %p134 = scmp.ne.s32.totalorder %s117, %s133
    %p135 = scmp.eq.s32.totalorder %s15, 0
    %p136 = por %p134, %p135
    %p137 = scmp.le.s32.totalorder 1, %s9
    %p138 = scmp.lt.s32.totalorder %s9, 3
    %p139 = pnand %p137, %p138
    %p140 = pneg %p139
    // Predicated region
    $region9: #{decoder_block_forward.14} parent=5 // pred_check
      _
    $region10: #{decoder_block_forward.14} parent=5 // pred_check_branch
      %142 = sbr.rel (%p139) target = $region12
    $region11: #{decoder_block_forward.14} parent=5 // pred_region
      %s143 = ssub.s32 %s9, 1
    $region12: #{decoder_block_forward.14} parent=5 // pred_fallthru
      _
    %p144 = scmp.lt.s32.totalorder %s9, 2
    // Predicated region
    $region13: #{decoder_block_forward.14} parent=5 // pred_check
      %p145 = pneg %p144
    $region14: #{decoder_block_forward.14} parent=5 // pred_check_branch
      %147 = sbr.rel (%p145) target = $region16
    $region15: #{decoder_block_forward.14} parent=5 // pred_region
      // Predicated region
      $region17: #{decoder_block_forward.14} parent=15 // pred_check
        %p148 = pneg %p43
      $region18: #{decoder_block_forward.14} parent=15 // pred_check_branch
        %150 = sbr.rel (%p148) target = $region20
      $region19: #{decoder_block_forward.14} parent=15 // pred_region
        %p151 = scmp.lt.s32.totalorder %s16, 1
        %s152 = scalar_select %p151, %s16, 1
        %p153 = scmp.lt.s32.totalorder %s17, 0
        %s154 = scalar_select %p153, %s17, 0
        %s155 = sadd.s32 %s154, %s152
        %s156 = smul.addr %s155, 8
        %s157 = scalar_lea.vmem %s0, %s156
      $region20: #{decoder_block_forward.14} parent=15 // pred_fallthru
        _
      // Predicated region
      $region21: #{decoder_block_forward.14} parent=15 // pred_check
        %p158 = pneg %p69
      $region22: #{decoder_block_forward.14} parent=15 // pred_check_branch
        %160 = sbr.rel (%p158) target = $region24
      $region23: #{decoder_block_forward.14} parent=15 // pred_region
        %p161 = scmp.lt.s32.totalorder %s16, 1
        %s162 = scalar_select %p161, %s16, 1
        %s163 = smul.addr %s162, 8
        %s164 = scalar_lea.vmem %s1, %s163
      $region24: #{decoder_block_forward.14} parent=15 // pred_fallthru
        _
      // Predicated region
      $region25: #{decoder_block_forward.14} parent=15 // pred_check
        %p165 = pneg %p95
      $region26: #{decoder_block_forward.14} parent=15 // pred_check_branch
        %167 = sbr.rel (%p165) target = $region28
      $region27: #{decoder_block_forward.14} parent=15 // pred_region
        %p168 = scmp.lt.s32.totalorder %s16, 1
        %s169 = scalar_select %p168, %s16, 1
        %s170 = scalar_lea.vmem %s2, %s169
      $region28: #{decoder_block_forward.14} parent=15 // pred_fallthru
        _
    $region16: #{decoder_block_forward.14} parent=5 // pred_fallthru
      _
    %p171 = scmp.le.s32.totalorder 1, %s9
    %p172 = scmp.lt.s32.totalorder %s9, 3
    %p173 = pnand %p171, %p172
    %p174 = pneg %p173
    // Predicated region
    $region29: #{decoder_block_forward.14} parent=5 // pred_check
      _
    $region30: #{decoder_block_forward.14} parent=5 // pred_check_branch
      %176 = sbr.rel (%p173) target = $region32
    $region31: #{decoder_block_forward.14} parent=5 // pred_region
      %s177 = ssub.s32 %s9, 1
      %p178 = scmp.lt.s32.totalorder %s18, 1
      %s179 = scalar_select %p178, %s18, 1
      %p180 = scmp.lt.s32.totalorder %s19, 0
      %s181 = scalar_select %p180, %s19, 0
      %s182 = sadd.s32 %s181, %s179
      %s183 = smul.addr %s182, 8
      %s184 = scalar_lea.vmem %s0, %s183
      %p185 = pneg %p49
      %p186 = pneg %p46
      %p187 = scmp.lt.s32.totalorder %s18, 1
      %s188 = scalar_select %p187, %s18, 1
      %s189 = smul.addr %s188, 8
      %s190 = scalar_lea.vmem %s1, %s189
      %p191 = pneg %p75
      %p192 = pneg %p72
      %p193 = scmp.lt.s32.totalorder %s18, 1
      %s194 = scalar_select %p193, %s18, 1
      %s195 = scalar_lea.vmem %s2, %s194
      %p196 = pneg %p101
      %p197 = pneg %p98
      %p198 = pneg %p129
      %p199 = pneg %p126
      %p200 = scmp.lt.s32.totalorder %s18, 1
      %s201 = scalar_select %p200, %s18, 1
      %p202 = scmp.lt.s32.totalorder %s19, 0
      %s203 = scalar_select %p202, %s19, 0
      %s204 = sadd.s32 %s203, %s201
      %s205 = smul.addr %s204, 8
      %s206 = scalar_lea.vmem %s3, %s205
      %p207 = scmp.lt.s32.totalorder %s18, 1
      %s208 = scalar_select %p207, %s18, 1
      %p209 = scmp.lt.s32.totalorder %s19, 0
      %s210 = scalar_select %p209, %s19, 0
      %s211 = sadd.s32 %s210, %s208
      %s212 = smul.addr %s211, 8
      %s213 = scalar_lea.vmem %s0, %s212
      %p214 = scmp.lt.s32.totalorder %s18, 1
      %s215 = scalar_select %p214, %s18, 1
      %s216 = smul.addr %s215, 8
      %s217 = scalar_lea.vmem %s1, %s216
      %p218 = scmp.lt.s32.totalorder %s18, 1
      %s219 = scalar_select %p218, %s18, 1
      %s220 = scalar_lea.vmem %s2, %s219
      %p221 = scmp.lt.s32.totalorder %s18, 1
      %s222 = scalar_select %p221, %s18, 1
      %p223 = scmp.lt.s32.totalorder %s19, 0
      %s224 = scalar_select %p223, %s19, 0
      %s225 = sadd.s32 %s224, %s222
      %s226 = smul.addr %s225, 8
      %s227 = scalar_lea.vmem %s3, %s226
      %v228 = vld [vmem:[%s213] sm:$0xff]
      %v229 = vld [vmem:[%s217] sm:$0xff]
      %v230 = vld [vmem:[%s220] sm:$0x1]
      %v231 = vmul.f32 %v228, 0.35355338
      %vm232 = vcmask 64512
      %v234 = vsel %vm232, %v231, 0
      %v237 = vsel %vm232, %v229, 0
      %239 = vmatpush.xpose.msra.mxu0 0.0
      %240 = vmatpush.xpose.msra.mxu0 0.0
      %241 = vmatpush.xpose.msra.mxu0 0.0
      %242 = vmatpush.xpose.msra.mxu0 0.0
      %243 = vmatpush.xpose.msra.mxu0 0.0
      %244 = vmatpush.xpose.msra.mxu0 0.0
      %245 = vmatpush.xpose.msra.mxu0 0.0
      %246 = vmatpush.xpose.msra.mxu0 0.0
      %247 = vmatpush.xpose.msra.mxu0 0.0
      %248 = vmatpush.xpose.msra.mxu0 0.0
      %249 = vmatpush.xpose.msra.mxu0 0.0
      %250 = vmatpush.xpose.msra.mxu0 0.0
      %251 = vmatpush.xpose.msra.mxu0 0.0
      %252 = vmatpush.xpose.msra.mxu0 0.0
      %253 = vmatpush.xpose.msra.mxu0 0.0
      %v254 = vand.u32 %v237, 4294901760
      %255 = vmatpush.xpose.msra.mxu0 %v254
      %v256 = vand.u32 %v234, 4294901760
      %v257 = vsub.f32 %v234, %v256
      %v258 = vand.u32 %v257, 4294901760
      %v259 = vsub.f32 %v257, %v258
      %v260 = vand.u32 %v259, 4294901760
      %261 = vmatmul.f32.gmra.mxu0 %v260
      %v262 = vpop.f32.mrf.mxu0
      %v263 = vadd.f32 0.0, %v262
      %264 = vdwg.mxu0
      %265 = vmatpush.xpose.msra.mxu0 0.0
      %266 = vmatpush.xpose.msra.mxu0 0.0
      %267 = vmatpush.xpose.msra.mxu0 0.0
      %268 = vmatpush.xpose.msra.mxu0 0.0
      %269 = vmatpush.xpose.msra.mxu0 0.0
      %270 = vmatpush.xpose.msra.mxu0 0.0
      %271 = vmatpush.xpose.msra.mxu0 0.0
      %272 = vmatpush.xpose.msra.mxu0 0.0
      %273 = vmatpush.xpose.msra.mxu0 0.0
      %274 = vmatpush.xpose.msra.mxu0 0.0
      %275 = vmatpush.xpose.msra.mxu0 0.0
      %276 = vmatpush.xpose.msra.mxu0 0.0
      %277 = vmatpush.xpose.msra.mxu0 0.0
      %278 = vmatpush.xpose.msra.mxu0 0.0
      %279 = vmatpush.xpose.msra.mxu0 0.0
      %v280 = vand.u32 %v237, 4294901760
      %v281 = vsub.f32 %v237, %v280
      %v282 = vand.u32 %v281, 4294901760
      %v283 = vsub.f32 %v281, %v282
      %v284 = vand.u32 %v283, 4294901760
      %285 = vmatpush.xpose.msra.mxu0 %v284
      %v286 = vand.u32 %v234, 4294901760
      %287 = vmatmul.f32.gmra.mxu0 %v286
      %v288 = vpop.f32.mrf.mxu0
      %v289 = vadd.f32 %v263, %v288
      %290 = vdwg.mxu0
      %291 = vmatpush.xpose.msra.mxu0 0.0
      %292 = vmatpush.xpose.msra.mxu0 0.0
      %293 = vmatpush.xpose.msra.mxu0 0.0
      %294 = vmatpush.xpose.msra.mxu0 0.0
      %295 = vmatpush.xpose.msra.mxu0 0.0
      %296 = vmatpush.xpose.msra.mxu0 0.0
      %297 = vmatpush.xpose.msra.mxu0 0.0
      %298 = vmatpush.xpose.msra.mxu0 0.0
      %299 = vmatpush.xpose.msra.mxu0 0.0
      %300 = vmatpush.xpose.msra.mxu0 0.0
      %301 = vmatpush.xpose.msra.mxu0 0.0
      %302 = vmatpush.xpose.msra.mxu0 0.0
      %303 = vmatpush.xpose.msra.mxu0 0.0
      %304 = vmatpush.xpose.msra.mxu0 0.0
      %305 = vmatpush.xpose.msra.mxu0 0.0
      %v306 = vand.u32 %v237, 4294901760
      %v307 = vsub.f32 %v237, %v306
      %308 = vmatpush.xpose.msra.mxu0 %v307
      %v309 = vand.u32 %v234, 4294901760
      %v310 = vsub.f32 %v234, %v309
      %311 = vmatmul.f32.gmra.mxu0 %v310
      %v312 = vpop.f32.mrf.mxu0
      %v313 = vadd.f32 %v289, %v312
      %314 = vdwg.mxu0
      %315 = vmatpush.xpose.msra.mxu0 0.0
      %316 = vmatpush.xpose.msra.mxu0 0.0
      %317 = vmatpush.xpose.msra.mxu0 0.0
      %318 = vmatpush.xpose.msra.mxu0 0.0
      %319 = vmatpush.xpose.msra.mxu0 0.0
      %320 = vmatpush.xpose.msra.mxu0 0.0
      %321 = vmatpush.xpose.msra.mxu0 0.0
      %322 = vmatpush.xpose.msra.mxu0 0.0
      %323 = vmatpush.xpose.msra.mxu0 0.0
      %324 = vmatpush.xpose.msra.mxu0 0.0
      %325 = vmatpush.xpose.msra.mxu0 0.0
      %326 = vmatpush.xpose.msra.mxu0 0.0
      %327 = vmatpush.xpose.msra.mxu0 0.0
      %328 = vmatpush.xpose.msra.mxu0 0.0
      %329 = vmatpush.xpose.msra.mxu0 0.0
      %v330 = vand.u32 %v237, 4294901760
      %331 = vmatpush.xpose.msra.mxu0 %v330
      %v332 = vand.u32 %v234, 4294901760
      %v333 = vsub.f32 %v234, %v332
      %v334 = vand.u32 %v333, 4294901760
      %335 = vmatmul.f32.gmra.mxu0 %v334
      %v336 = vpop.f32.mrf.mxu0
      %v337 = vadd.f32 %v313, %v336
      %338 = vdwg.mxu0
      %339 = vmatpush.xpose.msra.mxu0 0.0
      %340 = vmatpush.xpose.msra.mxu0 0.0
      %341 = vmatpush.xpose.msra.mxu0 0.0
      %342 = vmatpush.xpose.msra.mxu0 0.0
      %343 = vmatpush.xpose.msra.mxu0 0.0
      %344 = vmatpush.xpose.msra.mxu0 0.0
      %345 = vmatpush.xpose.msra.mxu0 0.0
      %346 = vmatpush.xpose.msra.mxu0 0.0
      %347 = vmatpush.xpose.msra.mxu0 0.0
      %348 = vmatpush.xpose.msra.mxu0 0.0
      %349 = vmatpush.xpose.msra.mxu0 0.0
      %350 = vmatpush.xpose.msra.mxu0 0.0
      %351 = vmatpush.xpose.msra.mxu0 0.0
      %352 = vmatpush.xpose.msra.mxu0 0.0
      %353 = vmatpush.xpose.msra.mxu0 0.0
      %v354 = vand.u32 %v237, 4294901760
      %v355 = vsub.f32 %v237, %v354
      %v356 = vand.u32 %v355, 4294901760
      %357 = vmatpush.xpose.msra.mxu0 %v356
      %v358 = vand.u32 %v234, 4294901760
      %359 = vmatmul.f32.gmra.mxu0 %v358
      %v360 = vpop.f32.mrf.mxu0
      %v361 = vadd.f32 %v337, %v360
      %362 = vdwg.mxu0
      %363 = vmatpush.xpose.msra.mxu0 0.0
      %364 = vmatpush.xpose.msra.mxu0 0.0
      %365 = vmatpush.xpose.msra.mxu0 0.0
      %366 = vmatpush.xpose.msra.mxu0 0.0
      %367 = vmatpush.xpose.msra.mxu0 0.0
      %368 = vmatpush.xpose.msra.mxu0 0.0
      %369 = vmatpush.xpose.msra.mxu0 0.0
      %370 = vmatpush.xpose.msra.mxu0 0.0
      %371 = vmatpush.xpose.msra.mxu0 0.0
      %372 = vmatpush.xpose.msra.mxu0 0.0
      %373 = vmatpush.xpose.msra.mxu0 0.0
      %374 = vmatpush.xpose.msra.mxu0 0.0
      %375 = vmatpush.xpose.msra.mxu0 0.0
      %376 = vmatpush.xpose.msra.mxu0 0.0
      %377 = vmatpush.xpose.msra.mxu0 0.0
      %v378 = vand.u32 %v237, 4294901760
      %379 = vmatpush.xpose.msra.mxu0 %v378
      %v380 = vand.u32 %v234, 4294901760
      %381 = vmatmul.f32.gmra.mxu0 %v380
      %v382 = vpop.f32.mrf.mxu0
      %v383 = vadd.f32 %v361, %v382
      %384 = vdwg.mxu0
      %vm385 = vcmp.eq.s32.totalorder %v230, 0
      %v386 = vsel %vm385, 1, 0
      %v387 = vperm.slane %v386, 0
      %vm388 = vcmp.eq.s32.totalorder %v387, 1
      %v389 = vsel %vm388, -1e+09, %v383
      %v390 = vsel %vm232, %v389, -inf
      %391 = vmax.xlane.f32.xlu0 %v390
      %v392 = vpop.xlane.xlu0 %391
      %v393 = vsub.f32 %v389, %v392
      %v394 = vmul.f32 %v393, 1.442695
      %v395 = vpow.pop %v394
      %v396 = vsel %vm232, %v395, 0.0
      %397 = vadd.xlane.f32.xlu0 %v396
      %v398 = vpop.xlane.xlu0 %397
      %v399 = vrcp.pop %v398
      %v400 = vmul.f32 %v395, %v399
      %401 = vrot.lane.b32.xlu0 %v229, 96
      %v402 = vpop.permute.xlu0 %401
      %v405 = vsel %vm232, %v400, 0
      %407 = vmatpush.msra.mxu0 0.0
      %408 = vmatpush.msra.mxu0 0.0
      %409 = vmatpush.msra.mxu0 0.0
      %410 = vmatpush.msra.mxu0 0.0
      %411 = vmatpush.msra.mxu0 0.0
      %412 = vmatpush.msra.mxu0 0.0
      %413 = vmatpush.msra.mxu0 0.0
      %414 = vmatpush.msra.mxu0 0.0
      %415 = vmatpush.msra.mxu0 0.0
      %416 = vmatpush.msra.mxu0 0.0
      %417 = vmatpush.msra.mxu0 0.0
      %418 = vmatpush.msra.mxu0 0.0
      %419 = vmatpush.msra.mxu0 0.0
      %420 = vmatpush.msra.mxu0 0.0
      %421 = vmatpush.msra.mxu0 0.0
      %v422 = vand.u32 %v402, 4294901760
      %423 = vmatpush.msra.mxu0 %v422
      %v424 = vand.u32 %v405, 4294901760
      %v425 = vsub.f32 %v405, %v424
      %v426 = vand.u32 %v425, 4294901760
      %v427 = vsub.f32 %v425, %v426
      %v428 = vand.u32 %v427, 4294901760
      %429 = vmatmul.f32.gmra.mxu0 %v428
      %v430 = vpop.f32.mrf.mxu0
      %v431 = vadd.f32 0.0, %v430
      %432 = vdwg.mxu0
      %433 = vmatpush.msra.mxu0 0.0
      %434 = vmatpush.msra.mxu0 0.0
      %435 = vmatpush.msra.mxu0 0.0
      %436 = vmatpush.msra.mxu0 0.0
      %437 = vmatpush.msra.mxu0 0.0
      %438 = vmatpush.msra.mxu0 0.0
      %439 = vmatpush.msra.mxu0 0.0
      %440 = vmatpush.msra.mxu0 0.0
      %441 = vmatpush.msra.mxu0 0.0
      %442 = vmatpush.msra.mxu0 0.0
      %443 = vmatpush.msra.mxu0 0.0
      %444 = vmatpush.msra.mxu0 0.0
      %445 = vmatpush.msra.mxu0 0.0
      %446 = vmatpush.msra.mxu0 0.0
      %447 = vmatpush.msra.mxu0 0.0
      %v448 = vand.u32 %v402, 4294901760
      %v449 = vsub.f32 %v402, %v448
      %v450 = vand.u32 %v449, 4294901760
      %v451 = vsub.f32 %v449, %v450
      %v452 = vand.u32 %v451, 4294901760
      %453 = vmatpush.msra.mxu0 %v452
      %v454 = vand.u32 %v405, 4294901760
      %455 = vmatmul.f32.gmra.mxu0 %v454
      %v456 = vpop.f32.mrf.mxu0
      %v457 = vadd.f32 %v431, %v456
      %458 = vdwg.mxu0
      %459 = vmatpush.msra.mxu0 0.0
      %460 = vmatpush.msra.mxu0 0.0
      %461 = vmatpush.msra.mxu0 0.0
      %462 = vmatpush.msra.mxu0 0.0
      %463 = vmatpush.msra.mxu0 0.0
      %464 = vmatpush.msra.mxu0 0.0
      %465 = vmatpush.msra.mxu0 0.0
      %466 = vmatpush.msra.mxu0 0.0
      %467 = vmatpush.msra.mxu0 0.0
      %468 = vmatpush.msra.mxu0 0.0
      %469 = vmatpush.msra.mxu0 0.0
      %470 = vmatpush.msra.mxu0 0.0
      %471 = vmatpush.msra.mxu0 0.0
      %472 = vmatpush.msra.mxu0 0.0
      %473 = vmatpush.msra.mxu0 0.0
      %v474 = vand.u32 %v402, 4294901760
      %v475 = vsub.f32 %v402, %v474
      %476 = vmatpush.msra.mxu0 %v475
      %v477 = vand.u32 %v405, 4294901760
      %v478 = vsub.f32 %v405, %v477
      %479 = vmatmul.f32.gmra.mxu0 %v478
      %v480 = vpop.f32.mrf.mxu0
      %v481 = vadd.f32 %v457, %v480
      %482 = vdwg.mxu0
      %483 = vmatpush.msra.mxu0 0.0
      %484 = vmatpush.msra.mxu0 0.0
      %485 = vmatpush.msra.mxu0 0.0
      %486 = vmatpush.msra.mxu0 0.0
      %487 = vmatpush.msra.mxu0 0.0
      %488 = vmatpush.msra.mxu0 0.0
      %489 = vmatpush.msra.mxu0 0.0
      %490 = vmatpush.msra.mxu0 0.0
      %491 = vmatpush.msra.mxu0 0.0
      %492 = vmatpush.msra.mxu0 0.0
      %493 = vmatpush.msra.mxu0 0.0
      %494 = vmatpush.msra.mxu0 0.0
      %495 = vmatpush.msra.mxu0 0.0
      %496 = vmatpush.msra.mxu0 0.0
      %497 = vmatpush.msra.mxu0 0.0
      %v498 = vand.u32 %v402, 4294901760
      %499 = vmatpush.msra.mxu0 %v498
      %v500 = vand.u32 %v405, 4294901760
      %v501 = vsub.f32 %v405, %v500
      %v502 = vand.u32 %v501, 4294901760
      %503 = vmatmul.f32.gmra.mxu0 %v502
      %v504 = vpop.f32.mrf.mxu0
      %v505 = vadd.f32 %v481, %v504
      %506 = vdwg.mxu0
      %507 = vmatpush.msra.mxu0 0.0
      %508 = vmatpush.msra.mxu0 0.0
      %509 = vmatpush.msra.mxu0 0.0
      %510 = vmatpush.msra.mxu0 0.0
      %511 = vmatpush.msra.mxu0 0.0
      %512 = vmatpush.msra.mxu0 0.0
      %513 = vmatpush.msra.mxu0 0.0
      %514 = vmatpush.msra.mxu0 0.0
      %515 = vmatpush.msra.mxu0 0.0
      %516 = vmatpush.msra.mxu0 0.0
      %517 = vmatpush.msra.mxu0 0.0
      %518 = vmatpush.msra.mxu0 0.0
      %519 = vmatpush.msra.mxu0 0.0
      %520 = vmatpush.msra.mxu0 0.0
      %521 = vmatpush.msra.mxu0 0.0
      %v522 = vand.u32 %v402, 4294901760
      %v523 = vsub.f32 %v402, %v522
      %v524 = vand.u32 %v523, 4294901760
      %525 = vmatpush.msra.mxu0 %v524
      %v526 = vand.u32 %v405, 4294901760
      %527 = vmatmul.f32.gmra.mxu0 %v526
      %v528 = vpop.f32.mrf.mxu0
      %v529 = vadd.f32 %v505, %v528
      %530 = vdwg.mxu0
      %531 = vmatpush.msra.mxu0 0.0
      %532 = vmatpush.msra.mxu0 0.0
      %533 = vmatpush.msra.mxu0 0.0
      %534 = vmatpush.msra.mxu0 0.0
      %535 = vmatpush.msra.mxu0 0.0
      %536 = vmatpush.msra.mxu0 0.0
      %537 = vmatpush.msra.mxu0 0.0
      %538 = vmatpush.msra.mxu0 0.0
      %539 = vmatpush.msra.mxu0 0.0
      %540 = vmatpush.msra.mxu0 0.0
      %541 = vmatpush.msra.mxu0 0.0
      %542 = vmatpush.msra.mxu0 0.0
      %543 = vmatpush.msra.mxu0 0.0
      %544 = vmatpush.msra.mxu0 0.0
      %545 = vmatpush.msra.mxu0 0.0
      %v546 = vand.u32 %v402, 4294901760
      %547 = vmatpush.msra.mxu0 %v546
      %v548 = vand.u32 %v405, 4294901760
      %549 = vmatmul.f32.gmra.mxu0 %v548
      %v550 = vpop.f32.mrf.mxu0
      %v551 = vadd.f32 %v529, %v550
      %552 = vdwg.mxu0
      %553 = vrot.lane.b32.xlu0 %v231, 120
      %v554 = vpop.permute.xlu0 %553
      %555 = vrot.lane.b32.xlu0 %v229, 120
      %v556 = vpop.permute.xlu0 %555
      %v557 = vsel %vm232, %v554, 0
      %v559 = vsel %vm232, %v556, 0
      %561 = vmatpush.xpose.msra.mxu0 0.0
      %562 = vmatpush.xpose.msra.mxu0 0.0
      %563 = vmatpush.xpose.msra.mxu0 0.0
      %564 = vmatpush.xpose.msra.mxu0 0.0
      %565 = vmatpush.xpose.msra.mxu0 0.0
      %566 = vmatpush.xpose.msra.mxu0 0.0
      %567 = vmatpush.xpose.msra.mxu0 0.0
      %568 = vmatpush.xpose.msra.mxu0 0.0
      %569 = vmatpush.xpose.msra.mxu0 0.0
      %570 = vmatpush.xpose.msra.mxu0 0.0
      %571 = vmatpush.xpose.msra.mxu0 0.0
      %572 = vmatpush.xpose.msra.mxu0 0.0
      %573 = vmatpush.xpose.msra.mxu0 0.0
      %574 = vmatpush.xpose.msra.mxu0 0.0
      %575 = vmatpush.xpose.msra.mxu0 0.0
      %v576 = vand.u32 %v559, 4294901760
      %577 = vmatpush.xpose.msra.mxu0 %v576
      %v578 = vand.u32 %v557, 4294901760
      %v579 = vsub.f32 %v557, %v578
      %v580 = vand.u32 %v579, 4294901760
      %v581 = vsub.f32 %v579, %v580
      %v582 = vand.u32 %v581, 4294901760
      %583 = vmatmul.f32.gmra.mxu0 %v582
      %v584 = vpop.f32.mrf.mxu0
      %v585 = vadd.f32 0.0, %v584
      %586 = vdwg.mxu0
      %587 = vmatpush.xpose.msra.mxu0 0.0
      %588 = vmatpush.xpose.msra.mxu0 0.0
      %589 = vmatpush.xpose.msra.mxu0 0.0
      %590 = vmatpush.xpose.msra.mxu0 0.0
      %591 = vmatpush.xpose.msra.mxu0 0.0
      %592 = vmatpush.xpose.msra.mxu0 0.0
      %593 = vmatpush.xpose.msra.mxu0 0.0
      %594 = vmatpush.xpose.msra.mxu0 0.0
      %595 = vmatpush.xpose.msra.mxu0 0.0
      %596 = vmatpush.xpose.msra.mxu0 0.0
      %597 = vmatpush.xpose.msra.mxu0 0.0
      %598 = vmatpush.xpose.msra.mxu0 0.0
      %599 = vmatpush.xpose.msra.mxu0 0.0
      %600 = vmatpush.xpose.msra.mxu0 0.0
      %601 = vmatpush.xpose.msra.mxu0 0.0
      %v602 = vand.u32 %v559, 4294901760
      %v603 = vsub.f32 %v559, %v602
      %v604 = vand.u32 %v603, 4294901760
      %v605 = vsub.f32 %v603, %v604
      %v606 = vand.u32 %v605, 4294901760
      %607 = vmatpush.xpose.msra.mxu0 %v606
      %v608 = vand.u32 %v557, 4294901760
      %609 = vmatmul.f32.gmra.mxu0 %v608
      %v610 = vpop.f32.mrf.mxu0
      %v611 = vadd.f32 %v585, %v610
      %612 = vdwg.mxu0
      %613 = vmatpush.xpose.msra.mxu0 0.0
      %614 = vmatpush.xpose.msra.mxu0 0.0
      %615 = vmatpush.xpose.msra.mxu0 0.0
      %616 = vmatpush.xpose.msra.mxu0 0.0
      %617 = vmatpush.xpose.msra.mxu0 0.0
      %618 = vmatpush.xpose.msra.mxu0 0.0
      %619 = vmatpush.xpose.msra.mxu0 0.0
      %620 = vmatpush.xpose.msra.mxu0 0.0
      %621 = vmatpush.xpose.msra.mxu0 0.0
      %622 = vmatpush.xpose.msra.mxu0 0.0
      %623 = vmatpush.xpose.msra.mxu0 0.0
      %624 = vmatpush.xpose.msra.mxu0 0.0
      %625 = vmatpush.xpose.msra.mxu0 0.0
      %626 = vmatpush.xpose.msra.mxu0 0.0
      %627 = vmatpush.xpose.msra.mxu0 0.0
      %v628 = vand.u32 %v559, 4294901760
      %v629 = vsub.f32 %v559, %v628
      %630 = vmatpush.xpose.msra.mxu0 %v629
      %v631 = vand.u32 %v557, 4294901760
      %v632 = vsub.f32 %v557, %v631
      %633 = vmatmul.f32.gmra.mxu0 %v632
      %v634 = vpop.f32.mrf.mxu0
      %v635 = vadd.f32 %v611, %v634
      %636 = vdwg.mxu0
      %637 = vmatpush.xpose.msra.mxu0 0.0
      %638 = vmatpush.xpose.msra.mxu0 0.0
      %639 = vmatpush.xpose.msra.mxu0 0.0
      %640 = vmatpush.xpose.msra.mxu0 0.0
      %641 = vmatpush.xpose.msra.mxu0 0.0
      %642 = vmatpush.xpose.msra.mxu0 0.0
      %643 = vmatpush.xpose.msra.mxu0 0.0
      %644 = vmatpush.xpose.msra.mxu0 0.0
      %645 = vmatpush.xpose.msra.mxu0 0.0
      %646 = vmatpush.xpose.msra.mxu0 0.0
      %647 = vmatpush.xpose.msra.mxu0 0.0
      %648 = vmatpush.xpose.msra.mxu0 0.0
      %649 = vmatpush.xpose.msra.mxu0 0.0
      %650 = vmatpush.xpose.msra.mxu0 0.0
      %651 = vmatpush.xpose.msra.mxu0 0.0
      %v652 = vand.u32 %v559, 4294901760
      %653 = vmatpush.xpose.msra.mxu0 %v652
      %v654 = vand.u32 %v557, 4294901760
      %v655 = vsub.f32 %v557, %v654
      %v656 = vand.u32 %v655, 4294901760
      %657 = vmatmul.f32.gmra.mxu0 %v656
      %v658 = vpop.f32.mrf.mxu0
      %v659 = vadd.f32 %v635, %v658
      %660 = vdwg.mxu0
      %661 = vmatpush.xpose.msra.mxu0 0.0
      %662 = vmatpush.xpose.msra.mxu0 0.0
      %663 = vmatpush.xpose.msra.mxu0 0.0
      %664 = vmatpush.xpose.msra.mxu0 0.0
      %665 = vmatpush.xpose.msra.mxu0 0.0
      %666 = vmatpush.xpose.msra.mxu0 0.0
      %667 = vmatpush.xpose.msra.mxu0 0.0
      %668 = vmatpush.xpose.msra.mxu0 0.0
      %669 = vmatpush.xpose.msra.mxu0 0.0
      %670 = vmatpush.xpose.msra.mxu0 0.0
      %671 = vmatpush.xpose.msra.mxu0 0.0
      %672 = vmatpush.xpose.msra.mxu0 0.0
      %673 = vmatpush.xpose.msra.mxu0 0.0
      %674 = vmatpush.xpose.msra.mxu0 0.0
      %675 = vmatpush.xpose.msra.mxu0 0.0
      %v676 = vand.u32 %v559, 4294901760
      %v677 = vsub.f32 %v559, %v676
      %v678 = vand.u32 %v677, 4294901760
      %679 = vmatpush.xpose.msra.mxu0 %v678
      %v680 = vand.u32 %v557, 4294901760
      %681 = vmatmul.f32.gmra.mxu0 %v680
      %v682 = vpop.f32.mrf.mxu0
      %v683 = vadd.f32 %v659, %v682
      %684 = vdwg.mxu0
      %685 = vmatpush.xpose.msra.mxu0 0.0
      %686 = vmatpush.xpose.msra.mxu0 0.0
      %687 = vmatpush.xpose.msra.mxu0 0.0
      %688 = vmatpush.xpose.msra.mxu0 0.0
      %689 = vmatpush.xpose.msra.mxu0 0.0
      %690 = vmatpush.xpose.msra.mxu0 0.0
      %691 = vmatpush.xpose.msra.mxu0 0.0
      %692 = vmatpush.xpose.msra.mxu0 0.0
      %693 = vmatpush.xpose.msra.mxu0 0.0
      %694 = vmatpush.xpose.msra.mxu0 0.0
      %695 = vmatpush.xpose.msra.mxu0 0.0
      %696 = vmatpush.xpose.msra.mxu0 0.0
      %697 = vmatpush.xpose.msra.mxu0 0.0
      %698 = vmatpush.xpose.msra.mxu0 0.0
      %699 = vmatpush.xpose.msra.mxu0 0.0
      %v700 = vand.u32 %v559, 4294901760
      %701 = vmatpush.xpose.msra.mxu0 %v700
      %v702 = vand.u32 %v557, 4294901760
      %703 = vmatmul.f32.gmra.mxu0 %v702
      %v704 = vpop.f32.mrf.mxu0
      %v705 = vadd.f32 %v683, %v704
      %706 = vdwg.mxu0
      %v707 = vsel %vm388, -1e+09, %v705
      %v708 = vsel %vm232, %v707, -inf
      %709 = vmax.xlane.f32.xlu0 %v708
      %v710 = vpop.xlane.xlu0 %709
      %v711 = vsub.f32 %v707, %v710
      %v712 = vmul.f32 %v711, 1.442695
      %v713 = vpow.pop %v712
      %v714 = vsel %vm232, %v713, 0.0
      %715 = vadd.xlane.f32.xlu0 %v714
      %v716 = vpop.xlane.xlu0 %715
      %v717 = vrcp.pop %v716
      %v718 = vmul.f32 %v713, %v717
      %719 = vrot.lane.b32.xlu0 %v229, 88
      %v720 = vpop.permute.xlu0 %719
      %v723 = vsel %vm232, %v718, 0
      %725 = vmatpush.msra.mxu0 0.0
      %726 = vmatpush.msra.mxu0 0.0
      %727 = vmatpush.msra.mxu0 0.0
      %728 = vmatpush.msra.mxu0 0.0
      %729 = vmatpush.msra.mxu0 0.0
      %730 = vmatpush.msra.mxu0 0.0
      %731 = vmatpush.msra.mxu0 0.0
      %732 = vmatpush.msra.mxu0 0.0
      %733 = vmatpush.msra.mxu0 0.0
      %734 = vmatpush.msra.mxu0 0.0
      %735 = vmatpush.msra.mxu0 0.0
      %736 = vmatpush.msra.mxu0 0.0
      %737 = vmatpush.msra.mxu0 0.0
      %738 = vmatpush.msra.mxu0 0.0
      %739 = vmatpush.msra.mxu0 0.0
      %v740 = vand.u32 %v720, 4294901760
      %741 = vmatpush.msra.mxu0 %v740
      %v742 = vand.u32 %v723, 4294901760
      %v743 = vsub.f32 %v723, %v742
      %v744 = vand.u32 %v743, 4294901760
      %v745 = vsub.f32 %v743, %v744
      %v746 = vand.u32 %v745, 4294901760
      %747 = vmatmul.f32.gmra.mxu0 %v746
      %v748 = vpop.f32.mrf.mxu0
      %v749 = vadd.f32 0.0, %v748
      %750 = vdwg.mxu0
      %751 = vmatpush.msra.mxu0 0.0
      %752 = vmatpush.msra.mxu0 0.0
      %753 = vmatpush.msra.mxu0 0.0
      %754 = vmatpush.msra.mxu0 0.0
      %755 = vmatpush.msra.mxu0 0.0
      %756 = vmatpush.msra.mxu0 0.0
      %757 = vmatpush.msra.mxu0 0.0
      %758 = vmatpush.msra.mxu0 0.0
      %759 = vmatpush.msra.mxu0 0.0
      %760 = vmatpush.msra.mxu0 0.0
      %761 = vmatpush.msra.mxu0 0.0
      %762 = vmatpush.msra.mxu0 0.0
      %763 = vmatpush.msra.mxu0 0.0
      %764 = vmatpush.msra.mxu0 0.0
      %765 = vmatpush.msra.mxu0 0.0
      %v766 = vand.u32 %v720, 4294901760
      %v767 = vsub.f32 %v720, %v766
      %v768 = vand.u32 %v767, 4294901760
      %v769 = vsub.f32 %v767, %v768
      %v770 = vand.u32 %v769, 4294901760
      %771 = vmatpush.msra.mxu0 %v770
      %v772 = vand.u32 %v723, 4294901760
      %773 = vmatmul.f32.gmra.mxu0 %v772
      %v774 = vpop.f32.mrf.mxu0
      %v775 = vadd.f32 %v749, %v774
      %776 = vdwg.mxu0
      %777 = vmatpush.msra.mxu0 0.0
      %778 = vmatpush.msra.mxu0 0.0
      %779 = vmatpush.msra.mxu0 0.0
      %780 = vmatpush.msra.mxu0 0.0
      %781 = vmatpush.msra.mxu0 0.0
      %782 = vmatpush.msra.mxu0 0.0
      %783 = vmatpush.msra.mxu0 0.0
      %784 = vmatpush.msra.mxu0 0.0
      %785 = vmatpush.msra.mxu0 0.0
      %786 = vmatpush.msra.mxu0 0.0
      %787 = vmatpush.msra.mxu0 0.0
      %788 = vmatpush.msra.mxu0 0.0
      %789 = vmatpush.msra.mxu0 0.0
      %790 = vmatpush.msra.mxu0 0.0
      %791 = vmatpush.msra.mxu0 0.0
      %v792 = vand.u32 %v720, 4294901760
      %v793 = vsub.f32 %v720, %v792
      %794 = vmatpush.msra.mxu0 %v793
      %v795 = vand.u32 %v723, 4294901760
      %v796 = vsub.f32 %v723, %v795
      %797 = vmatmul.f32.gmra.mxu0 %v796
      %v798 = vpop.f32.mrf.mxu0
      %v799 = vadd.f32 %v775, %v798
      %800 = vdwg.mxu0
      %801 = vmatpush.msra.mxu0 0.0
      %802 = vmatpush.msra.mxu0 0.0
      %803 = vmatpush.msra.mxu0 0.0
      %804 = vmatpush.msra.mxu0 0.0
      %805 = vmatpush.msra.mxu0 0.0
      %806 = vmatpush.msra.mxu0 0.0
      %807 = vmatpush.msra.mxu0 0.0
      %808 = vmatpush.msra.mxu0 0.0
      %809 = vmatpush.msra.mxu0 0.0
      %810 = vmatpush.msra.mxu0 0.0
      %811 = vmatpush.msra.mxu0 0.0
      %812 = vmatpush.msra.mxu0 0.0
      %813 = vmatpush.msra.mxu0 0.0
      %814 = vmatpush.msra.mxu0 0.0
      %815 = vmatpush.msra.mxu0 0.0
      %v816 = vand.u32 %v720, 4294901760
      %817 = vmatpush.msra.mxu0 %v816
      %v818 = vand.u32 %v723, 4294901760
      %v819 = vsub.f32 %v723, %v818
      %v820 = vand.u32 %v819, 4294901760
      %821 = vmatmul.f32.gmra.mxu0 %v820
      %v822 = vpop.f32.mrf.mxu0
      %v823 = vadd.f32 %v799, %v822
      %824 = vdwg.mxu0
      %825 = vmatpush.msra.mxu0 0.0
      %826 = vmatpush.msra.mxu0 0.0
      %827 = vmatpush.msra.mxu0 0.0
      %828 = vmatpush.msra.mxu0 0.0
      %829 = vmatpush.msra.mxu0 0.0
      %830 = vmatpush.msra.mxu0 0.0
      %831 = vmatpush.msra.mxu0 0.0
      %832 = vmatpush.msra.mxu0 0.0
      %833 = vmatpush.msra.mxu0 0.0
      %834 = vmatpush.msra.mxu0 0.0
      %835 = vmatpush.msra.mxu0 0.0
      %836 = vmatpush.msra.mxu0 0.0
      %837 = vmatpush.msra.mxu0 0.0
      %838 = vmatpush.msra.mxu0 0.0
      %839 = vmatpush.msra.mxu0 0.0
      %v840 = vand.u32 %v720, 4294901760
      %v841 = vsub.f32 %v720, %v840
      %v842 = vand.u32 %v841, 4294901760
      %843 = vmatpush.msra.mxu0 %v842
      %v844 = vand.u32 %v723, 4294901760
      %845 = vmatmul.f32.gmra.mxu0 %v844
      %v846 = vpop.f32.mrf.mxu0
      %v847 = vadd.f32 %v823, %v846
      %848 = vdwg.mxu0
      %849 = vmatpush.msra.mxu0 0.0
      %850 = vmatpush.msra.mxu0 0.0
      %851 = vmatpush.msra.mxu0 0.0
      %852 = vmatpush.msra.mxu0 0.0
      %853 = vmatpush.msra.mxu0 0.0
      %854 = vmatpush.msra.mxu0 0.0
      %855 = vmatpush.msra.mxu0 0.0
      %856 = vmatpush.msra.mxu0 0.0
      %857 = vmatpush.msra.mxu0 0.0
      %858 = vmatpush.msra.mxu0 0.0
      %859 = vmatpush.msra.mxu0 0.0
      %860 = vmatpush.msra.mxu0 0.0
      %861 = vmatpush.msra.mxu0 0.0
      %862 = vmatpush.msra.mxu0 0.0
      %863 = vmatpush.msra.mxu0 0.0
      %v864 = vand.u32 %v720, 4294901760
      %865 = vmatpush.msra.mxu0 %v864
      %v866 = vand.u32 %v723, 4294901760
      %867 = vmatmul.f32.gmra.mxu0 %v866
      %v868 = vpop.f32.mrf.mxu0
      %v869 = vadd.f32 %v847, %v868
      %870 = vdwg.mxu0
      %871 = vrot.lane.b32.xlu0 %v231, 112
      %v872 = vpop.permute.xlu0 %871
      %873 = vrot.lane.b32.xlu0 %v229, 112
      %v874 = vpop.permute.xlu0 %873
      %v875 = vsel %vm232, %v872, 0
      %v877 = vsel %vm232, %v874, 0
      %879 = vmatpush.xpose.msra.mxu0 0.0
      %880 = vmatpush.xpose.msra.mxu0 0.0
      %881 = vmatpush.xpose.msra.mxu0 0.0
      %882 = vmatpush.xpose.msra.mxu0 0.0
      %883 = vmatpush.xpose.msra.mxu0 0.0
      %884 = vmatpush.xpose.msra.mxu0 0.0
      %885 = vmatpush.xpose.msra.mxu0 0.0
      %886 = vmatpush.xpose.msra.mxu0 0.0
      %887 = vmatpush.xpose.msra.mxu0 0.0
      %888 = vmatpush.xpose.msra.mxu0 0.0
      %889 = vmatpush.xpose.msra.mxu0 0.0
      %890 = vmatpush.xpose.msra.mxu0 0.0
      %891 = vmatpush.xpose.msra.mxu0 0.0
      %892 = vmatpush.xpose.msra.mxu0 0.0
      %893 = vmatpush.xpose.msra.mxu0 0.0
      %v894 = vand.u32 %v877, 4294901760
      %895 = vmatpush.xpose.msra.mxu0 %v894
      %v896 = vand.u32 %v875, 4294901760
      %v897 = vsub.f32 %v875, %v896
      %v898 = vand.u32 %v897, 4294901760
      %v899 = vsub.f32 %v897, %v898
      %v900 = vand.u32 %v899, 4294901760
      %901 = vmatmul.f32.gmra.mxu0 %v900
      %v902 = vpop.f32.mrf.mxu0
      %v903 = vadd.f32 0.0, %v902
      %904 = vdwg.mxu0
      %905 = vmatpush.xpose.msra.mxu0 0.0
      %906 = vmatpush.xpose.msra.mxu0 0.0
      %907 = vmatpush.xpose.msra.mxu0 0.0
      %908 = vmatpush.xpose.msra.mxu0 0.0
      %909 = vmatpush.xpose.msra.mxu0 0.0
      %910 = vmatpush.xpose.msra.mxu0 0.0
      %911 = vmatpush.xpose.msra.mxu0 0.0
      %912 = vmatpush.xpose.msra.mxu0 0.0
      %913 = vmatpush.xpose.msra.mxu0 0.0
      %914 = vmatpush.xpose.msra.mxu0 0.0
      %915 = vmatpush.xpose.msra.mxu0 0.0
      %916 = vmatpush.xpose.msra.mxu0 0.0
      %917 = vmatpush.xpose.msra.mxu0 0.0
      %918 = vmatpush.xpose.msra.mxu0 0.0
      %919 = vmatpush.xpose.msra.mxu0 0.0
      %v920 = vand.u32 %v877, 4294901760
      %v921 = vsub.f32 %v877, %v920
      %v922 = vand.u32 %v921, 4294901760
      %v923 = vsub.f32 %v921, %v922
      %v924 = vand.u32 %v923, 4294901760
      %925 = vmatpush.xpose.msra.mxu0 %v924
      %v926 = vand.u32 %v875, 4294901760
      %927 = vmatmul.f32.gmra.mxu0 %v926
      %v928 = vpop.f32.mrf.mxu0
      %v929 = vadd.f32 %v903, %v928
      %930 = vdwg.mxu0
      %931 = vmatpush.xpose.msra.mxu0 0.0
      %932 = vmatpush.xpose.msra.mxu0 0.0
      %933 = vmatpush.xpose.msra.mxu0 0.0
      %934 = vmatpush.xpose.msra.mxu0 0.0
      %935 = vmatpush.xpose.msra.mxu0 0.0
      %936 = vmatpush.xpose.msra.mxu0 0.0
      %937 = vmatpush.xpose.msra.mxu0 0.0
      %938 = vmatpush.xpose.msra.mxu0 0.0
      %939 = vmatpush.xpose.msra.mxu0 0.0
      %940 = vmatpush.xpose.msra.mxu0 0.0
      %941 = vmatpush.xpose.msra.mxu0 0.0
      %942 = vmatpush.xpose.msra.mxu0 0.0
      %943 = vmatpush.xpose.msra.mxu0 0.0
      %944 = vmatpush.xpose.msra.mxu0 0.0
      %945 = vmatpush.xpose.msra.mxu0 0.0
      %v946 = vand.u32 %v877, 4294901760
      %v947 = vsub.f32 %v877, %v946
      %948 = vmatpush.xpose.msra.mxu0 %v947
      %v949 = vand.u32 %v875, 4294901760
      %v950 = vsub.f32 %v875, %v949
      %951 = vmatmul.f32.gmra.mxu0 %v950
      %v952 = vpop.f32.mrf.mxu0
      %v953 = vadd.f32 %v929, %v952
      %954 = vdwg.mxu0
      %955 = vmatpush.xpose.msra.mxu0 0.0
      %956 = vmatpush.xpose.msra.mxu0 0.0
      %957 = vmatpush.xpose.msra.mxu0 0.0
      %958 = vmatpush.xpose.msra.mxu0 0.0
      %959 = vmatpush.xpose.msra.mxu0 0.0
      %960 = vmatpush.xpose.msra.mxu0 0.0
      %961 = vmatpush.xpose.msra.mxu0 0.0
      %962 = vmatpush.xpose.msra.mxu0 0.0
      %963 = vmatpush.xpose.msra.mxu0 0.0
      %964 = vmatpush.xpose.msra.mxu0 0.0
      %965 = vmatpush.xpose.msra.mxu0 0.0
      %966 = vmatpush.xpose.msra.mxu0 0.0
      %967 = vmatpush.xpose.msra.mxu0 0.0
      %968 = vmatpush.xpose.msra.mxu0 0.0
      %969 = vmatpush.xpose.msra.mxu0 0.0
      %v970 = vand.u32 %v877, 4294901760
      %971 = vmatpush.xpose.msra.mxu0 %v970
      %v972 = vand.u32 %v875, 4294901760
      %v973 = vsub.f32 %v875, %v972
      %v974 = vand.u32 %v973, 4294901760
      %975 = vmatmul.f32.gmra.mxu0 %v974
      %v976 = vpop.f32.mrf.mxu0
      %v977 = vadd.f32 %v953, %v976
      %978 = vdwg.mxu0
      %979 = vmatpush.xpose.msra.mxu0 0.0
      %980 = vmatpush.xpose.msra.mxu0 0.0
      %981 = vmatpush.xpose.msra.mxu0 0.0
      %982 = vmatpush.xpose.msra.mxu0 0.0
      %983 = vmatpush.xpose.msra.mxu0 0.0
      %984 = vmatpush.xpose.msra.mxu0 0.0
      %985 = vmatpush.xpose.msra.mxu0 0.0
      %986 = vmatpush.xpose.msra.mxu0 0.0
      %987 = vmatpush.xpose.msra.mxu0 0.0
      %988 = vmatpush.xpose.msra.mxu0 0.0
      %989 = vmatpush.xpose.msra.mxu0 0.0
      %990 = vmatpush.xpose.msra.mxu0 0.0
      %991 = vmatpush.xpose.msra.mxu0 0.0
      %992 = vmatpush.xpose.msra.mxu0 0.0
      %993 = vmatpush.xpose.msra.mxu0 0.0
      %v994 = vand.u32 %v877, 4294901760
      %v995 = vsub.f32 %v877, %v994
      %v996 = vand.u32 %v995, 4294901760
      %997 = vmatpush.xpose.msra.mxu0 %v996
      %v998 = vand.u32 %v875, 4294901760
      %999 = vmatmul.f32.gmra.mxu0 %v998
      %v1000 = vpop.f32.mrf.mxu0
      %v1001 = vadd.f32 %v977, %v1000
      %1002 = vdwg.mxu0
      %1003 = vmatpush.xpose.msra.mxu0 0.0
      %1004 = vmatpush.xpose.msra.mxu0 0.0
      %1005 = vmatpush.xpose.msra.mxu0 0.0
      %1006 = vmatpush.xpose.msra.mxu0 0.0
      %1007 = vmatpush.xpose.msra.mxu0 0.0
      %1008 = vmatpush.xpose.msra.mxu0 0.0
      %1009 = vmatpush.xpose.msra.mxu0 0.0
      %1010 = vmatpush.xpose.msra.mxu0 0.0
      %1011 = vmatpush.xpose.msra.mxu0 0.0
      %1012 = vmatpush.xpose.msra.mxu0 0.0
      %1013 = vmatpush.xpose.msra.mxu0 0.0
      %1014 = vmatpush.xpose.msra.mxu0 0.0
      %1015 = vmatpush.xpose.msra.mxu0 0.0
      %1016 = vmatpush.xpose.msra.mxu0 0.0
      %1017 = vmatpush.xpose.msra.mxu0 0.0
      %v1018 = vand.u32 %v877, 4294901760
      %1019 = vmatpush.xpose.msra.mxu0 %v1018
      %v1020 = vand.u32 %v875, 4294901760
      %1021 = vmatmul.f32.gmra.mxu0 %v1020
      %v1022 = vpop.f32.mrf.mxu0
      %v1023 = vadd.f32 %v1001, %v1022
      %1024 = vdwg.mxu0
      %v1025 = vsel %vm388, -1e+09, %v1023
      %v1026 = vsel %vm232, %v1025, -inf
      %1027 = vmax.xlane.f32.xlu0 %v1026
      %v1028 = vpop.xlane.xlu0 %1027
      %v1029 = vsub.f32 %v1025, %v1028
      %v1030 = vmul.f32 %v1029, 1.442695
      %v1031 = vpow.pop %v1030
      %v1032 = vsel %vm232, %v1031, 0.0
      %1033 = vadd.xlane.f32.xlu0 %v1032
      %v1034 = vpop.xlane.xlu0 %1033
      %v1035 = vrcp.pop %v1034
      %v1036 = vmul.f32 %v1031, %v1035
      %1037 = vrot.lane.b32.xlu0 %v229, 80
      %v1038 = vpop.permute.xlu0 %1037
      %v1041 = vsel %vm232, %v1036, 0
      %1043 = vmatpush.msra.mxu0 0.0
      %1044 = vmatpush.msra.mxu0 0.0
      %1045 = vmatpush.msra.mxu0 0.0
      %1046 = vmatpush.msra.mxu0 0.0
      %1047 = vmatpush.msra.mxu0 0.0
      %1048 = vmatpush.msra.mxu0 0.0
      %1049 = vmatpush.msra.mxu0 0.0
      %1050 = vmatpush.msra.mxu0 0.0
      %1051 = vmatpush.msra.mxu0 0.0
      %1052 = vmatpush.msra.mxu0 0.0
      %1053 = vmatpush.msra.mxu0 0.0
      %1054 = vmatpush.msra.mxu0 0.0
      %1055 = vmatpush.msra.mxu0 0.0
      %1056 = vmatpush.msra.mxu0 0.0
      %1057 = vmatpush.msra.mxu0 0.0
      %v1058 = vand.u32 %v1038, 4294901760
      %1059 = vmatpush.msra.mxu0 %v1058
      %v1060 = vand.u32 %v1041, 4294901760
      %v1061 = vsub.f32 %v1041, %v1060
      %v1062 = vand.u32 %v1061, 4294901760
      %v1063 = vsub.f32 %v1061, %v1062
      %v1064 = vand.u32 %v1063, 4294901760
      %1065 = vmatmul.f32.gmra.mxu0 %v1064
      %v1066 = vpop.f32.mrf.mxu0
      %v1067 = vadd.f32 0.0, %v1066
      %1068 = vdwg.mxu0
      %1069 = vmatpush.msra.mxu0 0.0
      %1070 = vmatpush.msra.mxu0 0.0
      %1071 = vmatpush.msra.mxu0 0.0
      %1072 = vmatpush.msra.mxu0 0.0
      %1073 = vmatpush.msra.mxu0 0.0
      %1074 = vmatpush.msra.mxu0 0.0
      %1075 = vmatpush.msra.mxu0 0.0
      %1076 = vmatpush.msra.mxu0 0.0
      %1077 = vmatpush.msra.mxu0 0.0
      %1078 = vmatpush.msra.mxu0 0.0
      %1079 = vmatpush.msra.mxu0 0.0
      %1080 = vmatpush.msra.mxu0 0.0
      %1081 = vmatpush.msra.mxu0 0.0
      %1082 = vmatpush.msra.mxu0 0.0
      %1083 = vmatpush.msra.mxu0 0.0
      %v1084 = vand.u32 %v1038, 4294901760
      %v1085 = vsub.f32 %v1038, %v1084
      %v1086 = vand.u32 %v1085, 4294901760
      %v1087 = vsub.f32 %v1085, %v1086
      %v1088 = vand.u32 %v1087, 4294901760
      %1089 = vmatpush.msra.mxu0 %v1088
      %v1090 = vand.u32 %v1041, 4294901760
      %1091 = vmatmul.f32.gmra.mxu0 %v1090
      %v1092 = vpop.f32.mrf.mxu0
      %v1093 = vadd.f32 %v1067, %v1092
      %1094 = vdwg.mxu0
      %1095 = vmatpush.msra.mxu0 0.0
      %1096 = vmatpush.msra.mxu0 0.0
      %1097 = vmatpush.msra.mxu0 0.0
      %1098 = vmatpush.msra.mxu0 0.0
      %1099 = vmatpush.msra.mxu0 0.0
      %1100 = vmatpush.msra.mxu0 0.0
      %1101 = vmatpush.msra.mxu0 0.0
      %1102 = vmatpush.msra.mxu0 0.0
      %1103 = vmatpush.msra.mxu0 0.0
      %1104 = vmatpush.msra.mxu0 0.0
      %1105 = vmatpush.msra.mxu0 0.0
      %1106 = vmatpush.msra.mxu0 0.0
      %1107 = vmatpush.msra.mxu0 0.0
      %1108 = vmatpush.msra.mxu0 0.0
      %1109 = vmatpush.msra.mxu0 0.0
      %v1110 = vand.u32 %v1038, 4294901760
      %v1111 = vsub.f32 %v1038, %v1110
      %1112 = vmatpush.msra.mxu0 %v1111
      %v1113 = vand.u32 %v1041, 4294901760
      %v1114 = vsub.f32 %v1041, %v1113
      %1115 = vmatmul.f32.gmra.mxu0 %v1114
      %v1116 = vpop.f32.mrf.mxu0
      %v1117 = vadd.f32 %v1093, %v1116
      %1118 = vdwg.mxu0
      %1119 = vmatpush.msra.mxu0 0.0
      %1120 = vmatpush.msra.mxu0 0.0
      %1121 = vmatpush.msra.mxu0 0.0
      %1122 = vmatpush.msra.mxu0 0.0
      %1123 = vmatpush.msra.mxu0 0.0
      %1124 = vmatpush.msra.mxu0 0.0
      %1125 = vmatpush.msra.mxu0 0.0
      %1126 = vmatpush.msra.mxu0 0.0
      %1127 = vmatpush.msra.mxu0 0.0
      %1128 = vmatpush.msra.mxu0 0.0
      %1129 = vmatpush.msra.mxu0 0.0
      %1130 = vmatpush.msra.mxu0 0.0
      %1131 = vmatpush.msra.mxu0 0.0
      %1132 = vmatpush.msra.mxu0 0.0
      %1133 = vmatpush.msra.mxu0 0.0
      %v1134 = vand.u32 %v1038, 4294901760
      %1135 = vmatpush.msra.mxu0 %v1134
      %v1136 = vand.u32 %v1041, 4294901760
      %v1137 = vsub.f32 %v1041, %v1136
      %v1138 = vand.u32 %v1137, 4294901760
      %1139 = vmatmul.f32.gmra.mxu0 %v1138
      %v1140 = vpop.f32.mrf.mxu0
      %v1141 = vadd.f32 %v1117, %v1140
      %1142 = vdwg.mxu0
      %1143 = vmatpush.msra.mxu0 0.0
      %1144 = vmatpush.msra.mxu0 0.0
      %1145 = vmatpush.msra.mxu0 0.0
      %1146 = vmatpush.msra.mxu0 0.0
      %1147 = vmatpush.msra.mxu0 0.0
      %1148 = vmatpush.msra.mxu0 0.0
      %1149 = vmatpush.msra.mxu0 0.0
      %1150 = vmatpush.msra.mxu0 0.0
      %1151 = vmatpush.msra.mxu0 0.0
      %1152 = vmatpush.msra.mxu0 0.0
      %1153 = vmatpush.msra.mxu0 0.0
      %1154 = vmatpush.msra.mxu0 0.0
      %1155 = vmatpush.msra.mxu0 0.0
      %1156 = vmatpush.msra.mxu0 0.0
      %1157 = vmatpush.msra.mxu0 0.0
      %v1158 = vand.u32 %v1038, 4294901760
      %v1159 = vsub.f32 %v1038, %v1158
      %v1160 = vand.u32 %v1159, 4294901760
      %1161 = vmatpush.msra.mxu0 %v1160
      %v1162 = vand.u32 %v1041, 4294901760
      %1163 = vmatmul.f32.gmra.mxu0 %v1162
      %v1164 = vpop.f32.mrf.mxu0
      %v1165 = vadd.f32 %v1141, %v1164
      %1166 = vdwg.mxu0
      %1167 = vmatpush.msra.mxu0 0.0
      %1168 = vmatpush.msra.mxu0 0.0
      %1169 = vmatpush.msra.mxu0 0.0
      %1170 = vmatpush.msra.mxu0 0.0
      %1171 = vmatpush.msra.mxu0 0.0
      %1172 = vmatpush.msra.mxu0 0.0
      %1173 = vmatpush.msra.mxu0 0.0
      %1174 = vmatpush.msra.mxu0 0.0
      %1175 = vmatpush.msra.mxu0 0.0
      %1176 = vmatpush.msra.mxu0 0.0
      %1177 = vmatpush.msra.mxu0 0.0
      %1178 = vmatpush.msra.mxu0 0.0
      %1179 = vmatpush.msra.mxu0 0.0
      %1180 = vmatpush.msra.mxu0 0.0
      %1181 = vmatpush.msra.mxu0 0.0
      %v1182 = vand.u32 %v1038, 4294901760
      %1183 = vmatpush.msra.mxu0 %v1182
      %v1184 = vand.u32 %v1041, 4294901760
      %1185 = vmatmul.f32.gmra.mxu0 %v1184
      %v1186 = vpop.f32.mrf.mxu0
      %v1187 = vadd.f32 %v1165, %v1186
      %1188 = vdwg.mxu0
      %1189 = vrot.lane.b32.xlu0 %v231, 104
      %v1190 = vpop.permute.xlu0 %1189
      %1191 = vrot.lane.b32.xlu0 %v229, 104
      %v1192 = vpop.permute.xlu0 %1191
      %v1193 = vsel %vm232, %v1190, 0
      %v1195 = vsel %vm232, %v1192, 0
      %1197 = vmatpush.xpose.msra.mxu0 0.0
      %1198 = vmatpush.xpose.msra.mxu0 0.0
      %1199 = vmatpush.xpose.msra.mxu0 0.0
      %1200 = vmatpush.xpose.msra.mxu0 0.0
      %1201 = vmatpush.xpose.msra.mxu0 0.0
      %1202 = vmatpush.xpose.msra.mxu0 0.0
      %1203 = vmatpush.xpose.msra.mxu0 0.0
      %1204 = vmatpush.xpose.msra.mxu0 0.0
      %1205 = vmatpush.xpose.msra.mxu0 0.0
      %1206 = vmatpush.xpose.msra.mxu0 0.0
      %1207 = vmatpush.xpose.msra.mxu0 0.0
      %1208 = vmatpush.xpose.msra.mxu0 0.0
      %1209 = vmatpush.xpose.msra.mxu0 0.0
      %1210 = vmatpush.xpose.msra.mxu0 0.0
      %1211 = vmatpush.xpose.msra.mxu0 0.0
      %v1212 = vand.u32 %v1195, 4294901760
      %1213 = vmatpush.xpose.msra.mxu0 %v1212
      %v1214 = vand.u32 %v1193, 4294901760
      %v1215 = vsub.f32 %v1193, %v1214
      %v1216 = vand.u32 %v1215, 4294901760
      %v1217 = vsub.f32 %v1215, %v1216
      %v1218 = vand.u32 %v1217, 4294901760
      %1219 = vmatmul.f32.gmra.mxu0 %v1218
      %v1220 = vpop.f32.mrf.mxu0
      %v1221 = vadd.f32 0.0, %v1220
      %1222 = vdwg.mxu0
      %1223 = vmatpush.xpose.msra.mxu0 0.0
      %1224 = vmatpush.xpose.msra.mxu0 0.0
      %1225 = vmatpush.xpose.msra.mxu0 0.0
      %1226 = vmatpush.xpose.msra.mxu0 0.0
      %1227 = vmatpush.xpose.msra.mxu0 0.0
      %1228 = vmatpush.xpose.msra.mxu0 0.0
      %1229 = vmatpush.xpose.msra.mxu0 0.0
      %1230 = vmatpush.xpose.msra.mxu0 0.0
      %1231 = vmatpush.xpose.msra.mxu0 0.0
      %1232 = vmatpush.xpose.msra.mxu0 0.0
      %1233 = vmatpush.xpose.msra.mxu0 0.0
      %1234 = vmatpush.xpose.msra.mxu0 0.0
      %1235 = vmatpush.xpose.msra.mxu0 0.0
      %1236 = vmatpush.xpose.msra.mxu0 0.0
      %1237 = vmatpush.xpose.msra.mxu0 0.0
      %v1238 = vand.u32 %v1195, 4294901760
      %v1239 = vsub.f32 %v1195, %v1238
      %v1240 = vand.u32 %v1239, 4294901760
      %v1241 = vsub.f32 %v1239, %v1240
      %v1242 = vand.u32 %v1241, 4294901760
      %1243 = vmatpush.xpose.msra.mxu0 %v1242
      %v1244 = vand.u32 %v1193, 4294901760
      %1245 = vmatmul.f32.gmra.mxu0 %v1244
      %v1246 = vpop.f32.mrf.mxu0
      %v1247 = vadd.f32 %v1221, %v1246
      %1248 = vdwg.mxu0
      %1249 = vmatpush.xpose.msra.mxu0 0.0
      %1250 = vmatpush.xpose.msra.mxu0 0.0
      %1251 = vmatpush.xpose.msra.mxu0 0.0
      %1252 = vmatpush.xpose.msra.mxu0 0.0
      %1253 = vmatpush.xpose.msra.mxu0 0.0
      %1254 = vmatpush.xpose.msra.mxu0 0.0
      %1255 = vmatpush.xpose.msra.mxu0 0.0
      %1256 = vmatpush.xpose.msra.mxu0 0.0
      %1257 = vmatpush.xpose.msra.mxu0 0.0
      %1258 = vmatpush.xpose.msra.mxu0 0.0
      %1259 = vmatpush.xpose.msra.mxu0 0.0
      %1260 = vmatpush.xpose.msra.mxu0 0.0
      %1261 = vmatpush.xpose.msra.mxu0 0.0
      %1262 = vmatpush.xpose.msra.mxu0 0.0
      %1263 = vmatpush.xpose.msra.mxu0 0.0
      %v1264 = vand.u32 %v1195, 4294901760
      %v1265 = vsub.f32 %v1195, %v1264
      %1266 = vmatpush.xpose.msra.mxu0 %v1265
      %v1267 = vand.u32 %v1193, 4294901760
      %v1268 = vsub.f32 %v1193, %v1267
      %1269 = vmatmul.f32.gmra.mxu0 %v1268
      %v1270 = vpop.f32.mrf.mxu0
      %v1271 = vadd.f32 %v1247, %v1270
      %1272 = vdwg.mxu0
      %1273 = vmatpush.xpose.msra.mxu0 0.0
      %1274 = vmatpush.xpose.msra.mxu0 0.0
      %1275 = vmatpush.xpose.msra.mxu0 0.0
      %1276 = vmatpush.xpose.msra.mxu0 0.0
      %1277 = vmatpush.xpose.msra.mxu0 0.0
      %1278 = vmatpush.xpose.msra.mxu0 0.0
      %1279 = vmatpush.xpose.msra.mxu0 0.0
      %1280 = vmatpush.xpose.msra.mxu0 0.0
      %1281 = vmatpush.xpose.msra.mxu0 0.0
      %1282 = vmatpush.xpose.msra.mxu0 0.0
      %1283 = vmatpush.xpose.msra.mxu0 0.0
      %1284 = vmatpush.xpose.msra.mxu0 0.0
      %1285 = vmatpush.xpose.msra.mxu0 0.0
      %1286 = vmatpush.xpose.msra.mxu0 0.0
      %1287 = vmatpush.xpose.msra.mxu0 0.0
      %v1288 = vand.u32 %v1195, 4294901760
      %1289 = vmatpush.xpose.msra.mxu0 %v1288
      %v1290 = vand.u32 %v1193, 4294901760
      %v1291 = vsub.f32 %v1193, %v1290
      %v1292 = vand.u32 %v1291, 4294901760
      %1293 = vmatmul.f32.gmra.mxu0 %v1292
      %v1294 = vpop.f32.mrf.mxu0
      %v1295 = vadd.f32 %v1271, %v1294
      %1296 = vdwg.mxu0
      %1297 = vmatpush.xpose.msra.mxu0 0.0
      %1298 = vmatpush.xpose.msra.mxu0 0.0
      %1299 = vmatpush.xpose.msra.mxu0 0.0
      %1300 = vmatpush.xpose.msra.mxu0 0.0
      %1301 = vmatpush.xpose.msra.mxu0 0.0
      %1302 = vmatpush.xpose.msra.mxu0 0.0
      %1303 = vmatpush.xpose.msra.mxu0 0.0
      %1304 = vmatpush.xpose.msra.mxu0 0.0
      %1305 = vmatpush.xpose.msra.mxu0 0.0
      %1306 = vmatpush.xpose.msra.mxu0 0.0
      %1307 = vmatpush.xpose.msra.mxu0 0.0
      %1308 = vmatpush.xpose.msra.mxu0 0.0
      %1309 = vmatpush.xpose.msra.mxu0 0.0
      %1310 = vmatpush.xpose.msra.mxu0 0.0
      %1311 = vmatpush.xpose.msra.mxu0 0.0
      %v1312 = vand.u32 %v1195, 4294901760
      %v1313 = vsub.f32 %v1195, %v1312
      %v1314 = vand.u32 %v1313, 4294901760
      %1315 = vmatpush.xpose.msra.mxu0 %v1314
      %v1316 = vand.u32 %v1193, 4294901760
      %1317 = vmatmul.f32.gmra.mxu0 %v1316
      %v1318 = vpop.f32.mrf.mxu0
      %v1319 = vadd.f32 %v1295, %v1318
      %1320 = vdwg.mxu0
      %1321 = vmatpush.xpose.msra.mxu0 0.0
      %1322 = vmatpush.xpose.msra.mxu0 0.0
      %1323 = vmatpush.xpose.msra.mxu0 0.0
      %1324 = vmatpush.xpose.msra.mxu0 0.0
      %1325 = vmatpush.xpose.msra.mxu0 0.0
      %1326 = vmatpush.xpose.msra.mxu0 0.0
      %1327 = vmatpush.xpose.msra.mxu0 0.0
      %1328 = vmatpush.xpose.msra.mxu0 0.0
      %1329 = vmatpush.xpose.msra.mxu0 0.0
      %1330 = vmatpush.xpose.msra.mxu0 0.0
      %1331 = vmatpush.xpose.msra.mxu0 0.0
      %1332 = vmatpush.xpose.msra.mxu0 0.0
      %1333 = vmatpush.xpose.msra.mxu0 0.0
      %1334 = vmatpush.xpose.msra.mxu0 0.0
      %1335 = vmatpush.xpose.msra.mxu0 0.0
      %v1336 = vand.u32 %v1195, 4294901760
      %1337 = vmatpush.xpose.msra.mxu0 %v1336
      %v1338 = vand.u32 %v1193, 4294901760
      %1339 = vmatmul.f32.gmra.mxu0 %v1338
      %v1340 = vpop.f32.mrf.mxu0
      %v1341 = vadd.f32 %v1319, %v1340
      %1342 = vdwg.mxu0
      %v1343 = vsel %vm388, -1e+09, %v1341
      %v1344 = vsel %vm232, %v1343, -inf
      %1345 = vmax.xlane.f32.xlu0 %v1344
      %v1346 = vpop.xlane.xlu0 %1345
      %v1347 = vsub.f32 %v1343, %v1346
      %v1348 = vmul.f32 %v1347, 1.442695
      %v1349 = vpow.pop %v1348
      %v1350 = vsel %vm232, %v1349, 0.0
      %1351 = vadd.xlane.f32.xlu0 %v1350
      %v1352 = vpop.xlane.xlu0 %1351
      %v1353 = vrcp.pop %v1352
      %v1354 = vmul.f32 %v1349, %v1353
      %1355 = vrot.lane.b32.xlu0 %v229, 72
      %v1356 = vpop.permute.xlu0 %1355
      %v1359 = vsel %vm232, %v1354, 0
      %1361 = vmatpush.msra.mxu0 0.0
      %1362 = vmatpush.msra.mxu0 0.0
      %1363 = vmatpush.msra.mxu0 0.0
      %1364 = vmatpush.msra.mxu0 0.0
      %1365 = vmatpush.msra.mxu0 0.0
      %1366 = vmatpush.msra.mxu0 0.0
      %1367 = vmatpush.msra.mxu0 0.0
      %1368 = vmatpush.msra.mxu0 0.0
      %1369 = vmatpush.msra.mxu0 0.0
      %1370 = vmatpush.msra.mxu0 0.0
      %1371 = vmatpush.msra.mxu0 0.0
      %1372 = vmatpush.msra.mxu0 0.0
      %1373 = vmatpush.msra.mxu0 0.0
      %1374 = vmatpush.msra.mxu0 0.0
      %1375 = vmatpush.msra.mxu0 0.0
      %v1376 = vand.u32 %v1356, 4294901760
      %1377 = vmatpush.msra.mxu0 %v1376
      %v1378 = vand.u32 %v1359, 4294901760
      %v1379 = vsub.f32 %v1359, %v1378
      %v1380 = vand.u32 %v1379, 4294901760
      %v1381 = vsub.f32 %v1379, %v1380
      %v1382 = vand.u32 %v1381, 4294901760
      %1383 = vmatmul.f32.gmra.mxu0 %v1382
      %v1384 = vpop.f32.mrf.mxu0
      %v1385 = vadd.f32 0.0, %v1384
      %1386 = vdwg.mxu0
      %1387 = vmatpush.msra.mxu0 0.0
      %1388 = vmatpush.msra.mxu0 0.0
      %1389 = vmatpush.msra.mxu0 0.0
      %1390 = vmatpush.msra.mxu0 0.0
      %1391 = vmatpush.msra.mxu0 0.0
      %1392 = vmatpush.msra.mxu0 0.0
      %1393 = vmatpush.msra.mxu0 0.0
      %1394 = vmatpush.msra.mxu0 0.0
      %1395 = vmatpush.msra.mxu0 0.0
      %1396 = vmatpush.msra.mxu0 0.0
      %1397 = vmatpush.msra.mxu0 0.0
      %1398 = vmatpush.msra.mxu0 0.0
      %1399 = vmatpush.msra.mxu0 0.0
      %1400 = vmatpush.msra.mxu0 0.0
      %1401 = vmatpush.msra.mxu0 0.0
      %v1402 = vand.u32 %v1356, 4294901760
      %v1403 = vsub.f32 %v1356, %v1402
      %v1404 = vand.u32 %v1403, 4294901760
      %v1405 = vsub.f32 %v1403, %v1404
      %v1406 = vand.u32 %v1405, 4294901760
      %1407 = vmatpush.msra.mxu0 %v1406
      %v1408 = vand.u32 %v1359, 4294901760
      %1409 = vmatmul.f32.gmra.mxu0 %v1408
      %v1410 = vpop.f32.mrf.mxu0
      %v1411 = vadd.f32 %v1385, %v1410
      %1412 = vdwg.mxu0
      %1413 = vmatpush.msra.mxu0 0.0
      %1414 = vmatpush.msra.mxu0 0.0
      %1415 = vmatpush.msra.mxu0 0.0
      %1416 = vmatpush.msra.mxu0 0.0
      %1417 = vmatpush.msra.mxu0 0.0
      %1418 = vmatpush.msra.mxu0 0.0
      %1419 = vmatpush.msra.mxu0 0.0
      %1420 = vmatpush.msra.mxu0 0.0
      %1421 = vmatpush.msra.mxu0 0.0
      %1422 = vmatpush.msra.mxu0 0.0
      %1423 = vmatpush.msra.mxu0 0.0
      %1424 = vmatpush.msra.mxu0 0.0
      %1425 = vmatpush.msra.mxu0 0.0
      %1426 = vmatpush.msra.mxu0 0.0
      %1427 = vmatpush.msra.mxu0 0.0
      %v1428 = vand.u32 %v1356, 4294901760
      %v1429 = vsub.f32 %v1356, %v1428
      %1430 = vmatpush.msra.mxu0 %v1429
      %v1431 = vand.u32 %v1359, 4294901760
      %v1432 = vsub.f32 %v1359, %v1431
      %1433 = vmatmul.f32.gmra.mxu0 %v1432
      %v1434 = vpop.f32.mrf.mxu0
      %v1435 = vadd.f32 %v1411, %v1434
      %1436 = vdwg.mxu0
      %1437 = vmatpush.msra.mxu0 0.0
      %1438 = vmatpush.msra.mxu0 0.0
      %1439 = vmatpush.msra.mxu0 0.0
      %1440 = vmatpush.msra.mxu0 0.0
      %1441 = vmatpush.msra.mxu0 0.0
      %1442 = vmatpush.msra.mxu0 0.0
      %1443 = vmatpush.msra.mxu0 0.0
      %1444 = vmatpush.msra.mxu0 0.0
      %1445 = vmatpush.msra.mxu0 0.0
      %1446 = vmatpush.msra.mxu0 0.0
      %1447 = vmatpush.msra.mxu0 0.0
      %1448 = vmatpush.msra.mxu0 0.0
      %1449 = vmatpush.msra.mxu0 0.0
      %1450 = vmatpush.msra.mxu0 0.0
      %1451 = vmatpush.msra.mxu0 0.0
      %v1452 = vand.u32 %v1356, 4294901760
      %1453 = vmatpush.msra.mxu0 %v1452
      %v1454 = vand.u32 %v1359, 4294901760
      %v1455 = vsub.f32 %v1359, %v1454
      %v1456 = vand.u32 %v1455, 4294901760
      %1457 = vmatmul.f32.gmra.mxu0 %v1456
      %v1458 = vpop.f32.mrf.mxu0
      %v1459 = vadd.f32 %v1435, %v1458
      %1460 = vdwg.mxu0
      %1461 = vmatpush.msra.mxu0 0.0
      %1462 = vmatpush.msra.mxu0 0.0
      %1463 = vmatpush.msra.mxu0 0.0
      %1464 = vmatpush.msra.mxu0 0.0
      %1465 = vmatpush.msra.mxu0 0.0
      %1466 = vmatpush.msra.mxu0 0.0
      %1467 = vmatpush.msra.mxu0 0.0
      %1468 = vmatpush.msra.mxu0 0.0
      %1469 = vmatpush.msra.mxu0 0.0
      %1470 = vmatpush.msra.mxu0 0.0
      %1471 = vmatpush.msra.mxu0 0.0
      %1472 = vmatpush.msra.mxu0 0.0
      %1473 = vmatpush.msra.mxu0 0.0
      %1474 = vmatpush.msra.mxu0 0.0
      %1475 = vmatpush.msra.mxu0 0.0
      %v1476 = vand.u32 %v1356, 4294901760
      %v1477 = vsub.f32 %v1356, %v1476
      %v1478 = vand.u32 %v1477, 4294901760
      %1479 = vmatpush.msra.mxu0 %v1478
      %v1480 = vand.u32 %v1359, 4294901760
      %1481 = vmatmul.f32.gmra.mxu0 %v1480
      %v1482 = vpop.f32.mrf.mxu0
      %v1483 = vadd.f32 %v1459, %v1482
      %1484 = vdwg.mxu0
      %1485 = vmatpush.msra.mxu0 0.0
      %1486 = vmatpush.msra.mxu0 0.0
      %1487 = vmatpush.msra.mxu0 0.0
      %1488 = vmatpush.msra.mxu0 0.0
      %1489 = vmatpush.msra.mxu0 0.0
      %1490 = vmatpush.msra.mxu0 0.0
      %1491 = vmatpush.msra.mxu0 0.0
      %1492 = vmatpush.msra.mxu0 0.0
      %1493 = vmatpush.msra.mxu0 0.0
      %1494 = vmatpush.msra.mxu0 0.0
      %1495 = vmatpush.msra.mxu0 0.0
      %1496 = vmatpush.msra.mxu0 0.0
      %1497 = vmatpush.msra.mxu0 0.0
      %1498 = vmatpush.msra.mxu0 0.0
      %1499 = vmatpush.msra.mxu0 0.0
      %v1500 = vand.u32 %v1356, 4294901760
      %1501 = vmatpush.msra.mxu0 %v1500
      %v1502 = vand.u32 %v1359, 4294901760
      %1503 = vmatmul.f32.gmra.mxu0 %v1502
      %v1504 = vpop.f32.mrf.mxu0
      %v1505 = vadd.f32 %v1483, %v1504
      %1506 = vdwg.mxu0
      %1508 = vrot.lane.b32.xlu0 %v869, 8
      %v1509 = vpop.permute.xlu0 %1508
      %1512 = vrot.lane.b32.xlu0 %v1187, 16
      %v1513 = vpop.permute.xlu0 %1512
      %1516 = vrot.lane.b32.xlu0 %v1505, 24
      %v1517 = vpop.permute.xlu0 %1516
      %v1519 = vsel %vm232, %v551, %v1509
      %vm1520 = vcmask 130048
      %v1521 = vsel %vm1520, %v1519, %v1513
      %vm1522 = vcmask 195584
      %v1523 = vsel %vm1522, %v1521, %v1517
      %vm1524 = vcmask 261120
      %1525 = vst.msk [vmem:[%s227] sm:$0xff] %vm1524, %v1523
      %p1526 = scmp.lt.s32.totalorder %s18, 1
      %s1527 = scalar_select %p1526, %s18, 1
      %p1528 = scmp.lt.s32.totalorder %s19, 0
      %s1529 = scalar_select %p1528, %s19, 0
      %s1530 = sadd.s32 %s1529, %s1527
      %s1531 = smul.addr %s1530, 8
      %s1532 = scalar_lea.vmem %s3, %s1531
      // Predicated region
      $region33: #{decoder_block_forward.14} parent=31 // pred_check
        %p1533 = pneg %p126
      $region34: #{decoder_block_forward.14} parent=31 // pred_check_branch
        %1535 = sbr.rel (%p1533) target = $region36
      $region35: #{decoder_block_forward.14} parent=31 // pred_region
        _
      $region36: #{decoder_block_forward.14} parent=31 // pred_fallthru
        _
    $region32: #{decoder_block_forward.14} parent=5 // pred_fallthru
      _
    %p1536 = scmp.le.s32.totalorder 2, %s9
    // Predicated region
    $region37: #{decoder_block_forward.14} parent=5 // pred_check
      %p1537 = pneg %p1536
    $region38: #{decoder_block_forward.14} parent=5 // pred_check_branch
      %1539 = sbr.rel (%p1537) target = $region40
    $region39: #{decoder_block_forward.14} parent=5 // pred_region
      %s1540 = ssub.s32 %s9, 2
      // Predicated region
      $region41: #{decoder_block_forward.14} parent=39 // pred_check
        %p1541 = pneg %p132
      $region42: #{decoder_block_forward.14} parent=39 // pred_check_branch
        %1543 = sbr.rel (%p1541) target = $region44
      $region43: #{decoder_block_forward.14} parent=39 // pred_region
        %p1544 = scmp.lt.s32.totalorder %s20, 1
        %s1545 = scalar_select %p1544, %s20, 1
        %p1546 = scmp.lt.s32.totalorder %s21, 0
        %s1547 = scalar_select %p1546, %s21, 0
        %s1548 = sadd.s32 %s1547, %s1545
        %s1549 = smul.addr %s1548, 8
        %s1550 = scalar_lea.vmem %s3, %s1549
      $region44: #{decoder_block_forward.14} parent=39 // pred_fallthru
        _
    $region40: #{decoder_block_forward.14} parent=5 // pred_fallthru
      _
  $region6: #{decoder_block_forward.14} parent=0 // loop_footer
    %s13 = sadd.s32 1, %s9
  $region7: #{decoder_block_forward.14} parent=0 // loop_footer_branch
    %8 = sbr.rel target = $region3
  $region8: #{decoder_block_forward.14} parent=0 // loop_exit
    _

// kernel: decoder_block_forward.17
$region0: #{decoder_block_forward.17}
  #allocation0 [shape = 'u32[]', space=smem, size = 0x4, offset = 0x4, fixed_abs, tag = 'smem constant byte address 0x4 - core index']
  #allocation1 [shape = 'u32[72,128]{1,0:T(1,128)}', space=vmem, size = 0x9000, scoped, tag = 'internal scratch']
  %s0 = inlined_call_operand.vmem [shape: f32[16,64], index: 0, kind: input, shape index: {}]
  %s1 = inlined_call_operand.vmem [shape: f32[64,32], index: 1, kind: input, shape index: {}]
  %s2 = inlined_call_operand.vmem [shape: f32[1,32], index: 2, kind: input, shape index: {}]
  %s3 = inlined_call_operand.vmem [shape: f32[16,32], index: 3, kind: input, shape index: {}]
  %s4 = inlined_call_operand.hbm [shape: f32[16,32], index: 4, kind: output, shape index: {}]
  %s5 = sld [smem:[#allocation0]]
  $region34: #{decoder_block_forward.17} parent=0
    _
  %s7 = ssub.s32 1, %s5
  %s8 = scalar_select 0, %s7, %s5
  $region1: #{decoder_block_forward.17} parent=0
    #allocation2 [shape = 'u8[8192]{0}', space=vmem, size = 0x2000, scoped, tag = 'output window, operand 0, single buffered']
    #allocation3 [shape = 's32[1]{0}', space=sflag, size = 0x4, scoped, tag = 'scoped memory for decoder_block_forward.17']
    %9 = vsyncpa [#allocation3], 0
    // Predicated region
    $region2: #{decoder_block_forward.17} parent=1 // pred_check
      _
    $region3: #{decoder_block_forward.17} parent=1 // pred_check_branch
      %11 = sbr.rel (0) target = $region5
    $region4: #{decoder_block_forward.17} parent=1 // pred_region
      _
    $region5: #{decoder_block_forward.17} parent=1 // pred_fallthru
      _
    // Predicated region
    $region6: #{decoder_block_forward.17} parent=1 // pred_check
      _
    $region7: #{decoder_block_forward.17} parent=1 // pred_check_branch
      %13 = sbr.rel (0) target = $region9
    $region8: #{decoder_block_forward.17} parent=1 // pred_region
      _
    $region9: #{decoder_block_forward.17} parent=1 // pred_fallthru
      _
    // Predicated region
    $region10: #{decoder_block_forward.17} parent=1 // pred_check
      _
    $region11: #{decoder_block_forward.17} parent=1 // pred_check_branch
      %15 = sbr.rel (0) target = $region13
    $region12: #{decoder_block_forward.17} parent=1 // pred_region
      _
    $region13: #{decoder_block_forward.17} parent=1 // pred_fallthru
      _
    // Predicated region
    $region14: #{decoder_block_forward.17} parent=1 // pred_check
      _
    $region15: #{decoder_block_forward.17} parent=1 // pred_check_branch
      %17 = sbr.rel (0) target = $region17
    $region16: #{decoder_block_forward.17} parent=1 // pred_region
      _
    $region17: #{decoder_block_forward.17} parent=1 // pred_fallthru
      _
    %p18 = scmp.eq.s32.totalorder 0, 0
    // Predicated region
    $region18: #{decoder_block_forward.17} parent=1 // pred_check
      %p19 = pneg %p18
    $region19: #{decoder_block_forward.17} parent=1 // pred_check_branch
      %21 = sbr.rel (%p19) target = $region21
    $region20: #{decoder_block_forward.17} parent=1 // pred_region
      %vm22 = vcmask 261120
      %23 = vst.msk [vmem:[#allocation2] sm:$0xff] %vm22, 0.0
      %24 = vst.msk [vmem:[#allocation2 + $0x8] sm:$0xff] %vm22, 0.0
    $region21: #{decoder_block_forward.17} parent=1 // pred_fallthru
      _
    %v25 = vld [vmem:[#allocation2] sm:$0xff]
    %v26 = vld [vmem:[#allocation2 + $0x8] sm:$0xff]
    %v27 = vld [vmem:[%s0] sm:$0xff]
    %v28 = vld [vmem:[%s0 + $0x8] sm:$0xff]
    %v29 = vld [vmem:[%s1] sm:$0xff]
    %v30 = vld [vmem:[%s1 + $0x8] sm:$0xff]
    %v31 = vld [vmem:[%s1 + $0x10] sm:$0xff]
    %v32 = vld [vmem:[%s1 + $0x18] sm:$0xff]
    %v33 = vld [vmem:[%s1 + $0x20] sm:$0xff]
    %v34 = vld [vmem:[%s1 + $0x28] sm:$0xff]
    %v35 = vld [vmem:[%s1 + $0x30] sm:$0xff]
    %v36 = vld [vmem:[%s1 + $0x38] sm:$0xff]
    %vm37 = vcmask 523264
    %v39 = vsel %vm37, %v27, 0
    %v42 = vsel %vm37, %v28, 0
    %44 = vmatpush.msra.mxu0 0.0
    %45 = vmatpush.msra.mxu0 0.0
    %46 = vmatpush.msra.mxu0 0.0
    %47 = vmatpush.msra.mxu0 0.0
    %48 = vmatpush.msra.mxu0 0.0
    %49 = vmatpush.msra.mxu0 0.0
    %50 = vmatpush.msra.mxu0 0.0
    %51 = vmatpush.msra.mxu0 0.0
    %v52 = vand.u32 %v36, 4294901760
    %53 = vmatpush.msra.mxu0 %v52
    %v54 = vand.u32 %v35, 4294901760
    %55 = vmatpush.msra.mxu0 %v54
    %v56 = vand.u32 %v34, 4294901760
    %57 = vmatpush.msra.mxu0 %v56
    %v58 = vand.u32 %v33, 4294901760
    %59 = vmatpush.msra.mxu0 %v58
    %v60 = vand.u32 %v32, 4294901760
    %61 = vmatpush.msra.mxu0 %v60
    %v62 = vand.u32 %v31, 4294901760
    %63 = vmatpush.msra.mxu0 %v62
    %v64 = vand.u32 %v30, 4294901760
    %65 = vmatpush.msra.mxu0 %v64
    %v66 = vand.u32 %v29, 4294901760
    %67 = vmatpush.msra.mxu0 %v66
    %v68 = vand.u32 %v39, 4294901760
    %v69 = vsub.f32 %v39, %v68
    %v70 = vand.u32 %v69, 4294901760
    %v71 = vsub.f32 %v69, %v70
    %v72 = vand.u32 %v71, 4294901760
    %73 = vmatmul.f32.gmra.mxu0 %v72
    %v74 = vpop.f32.mrf.mxu0
    %v75 = vadd.f32 0.0, %v74
    %v76 = vand.u32 %v42, 4294901760
    %v77 = vsub.f32 %v42, %v76
    %v78 = vand.u32 %v77, 4294901760
    %v79 = vsub.f32 %v77, %v78
    %v80 = vand.u32 %v79, 4294901760
    %81 = vmatmul.f32.gmra.mxu0 %v80
    %v82 = vpop.f32.mrf.mxu0
    %v83 = vadd.f32 0.0, %v82
    %84 = vdwg.mxu0
    %85 = vmatpush.msra.mxu0 0.0
    %86 = vmatpush.msra.mxu0 0.0
    %87 = vmatpush.msra.mxu0 0.0
    %88 = vmatpush.msra.mxu0 0.0
    %89 = vmatpush.msra.mxu0 0.0
    %90 = vmatpush.msra.mxu0 0.0
    %91 = vmatpush.msra.mxu0 0.0
    %92 = vmatpush.msra.mxu0 0.0
    %v93 = vand.u32 %v36, 4294901760
    %v94 = vsub.f32 %v36, %v93
    %v95 = vand.u32 %v94, 4294901760
    %v96 = vsub.f32 %v94, %v95
    %v97 = vand.u32 %v96, 4294901760
    %98 = vmatpush.msra.mxu0 %v97
    %v99 = vand.u32 %v35, 4294901760
    %v100 = vsub.f32 %v35, %v99
    %v101 = vand.u32 %v100, 4294901760
    %v102 = vsub.f32 %v100, %v101
    %v103 = vand.u32 %v102, 4294901760
    %104 = vmatpush.msra.mxu0 %v103
    %v105 = vand.u32 %v34, 4294901760
    %v106 = vsub.f32 %v34, %v105
    %v107 = vand.u32 %v106, 4294901760
    %v108 = vsub.f32 %v106, %v107
    %v109 = vand.u32 %v108, 4294901760
    %110 = vmatpush.msra.mxu0 %v109
    %v111 = vand.u32 %v33, 4294901760
    %v112 = vsub.f32 %v33, %v111
    %v113 = vand.u32 %v112, 4294901760
    %v114 = vsub.f32 %v112, %v113
    %v115 = vand.u32 %v114, 4294901760
    %116 = vmatpush.msra.mxu0 %v115
    %v117 = vand.u32 %v32, 4294901760
    %v118 = vsub.f32 %v32, %v117
    %v119 = vand.u32 %v118, 4294901760
    %v120 = vsub.f32 %v118, %v119
    %v121 = vand.u32 %v120, 4294901760
    %122 = vmatpush.msra.mxu0 %v121
    %v123 = vand.u32 %v31, 4294901760
    %v124 = vsub.f32 %v31, %v123
    %v125 = vand.u32 %v124, 4294901760
    %v126 = vsub.f32 %v124, %v125
    %v127 = vand.u32 %v126, 4294901760
    %128 = vmatpush.msra.mxu0 %v127
    %v129 = vand.u32 %v30, 4294901760
    %v130 = vsub.f32 %v30, %v129
    %v131 = vand.u32 %v130, 4294901760
    %v132 = vsub.f32 %v130, %v131
    %v133 = vand.u32 %v132, 4294901760
    %134 = vmatpush.msra.mxu0 %v133
    %v135 = vand.u32 %v29, 4294901760
    %v136 = vsub.f32 %v29, %v135
    %v137 = vand.u32 %v136, 4294901760
    %v138 = vsub.f32 %v136, %v137
    %v139 = vand.u32 %v138, 4294901760
    %140 = vmatpush.msra.mxu0 %v139
    %v141 = vand.u32 %v39, 4294901760
    %142 = vmatmul.f32.gmra.mxu0 %v141
    %v143 = vpop.f32.mrf.mxu0
    %v144 = vadd.f32 %v75, %v143
    %v145 = vand.u32 %v42, 4294901760
    %146 = vmatmul.f32.gmra.mxu0 %v145
    %v147 = vpop.f32.mrf.mxu0
    %v148 = vadd.f32 %v83, %v147
    %149 = vdwg.mxu0
    %150 = vmatpush.msra.mxu0 0.0
    %151 = vmatpush.msra.mxu0 0.0
    %152 = vmatpush.msra.mxu0 0.0
    %153 = vmatpush.msra.mxu0 0.0
    %154 = vmatpush.msra.mxu0 0.0
    %155 = vmatpush.msra.mxu0 0.0
    %156 = vmatpush.msra.mxu0 0.0
    %157 = vmatpush.msra.mxu0 0.0
    %v158 = vand.u32 %v36, 4294901760
    %v159 = vsub.f32 %v36, %v158
    %160 = vmatpush.msra.mxu0 %v159
    %v161 = vand.u32 %v35, 4294901760
    %v162 = vsub.f32 %v35, %v161
    %163 = vmatpush.msra.mxu0 %v162
    %v164 = vand.u32 %v34, 4294901760
    %v165 = vsub.f32 %v34, %v164
    %166 = vmatpush.msra.mxu0 %v165
    %v167 = vand.u32 %v33, 4294901760
    %v168 = vsub.f32 %v33, %v167
    %169 = vmatpush.msra.mxu0 %v168
    %v170 = vand.u32 %v32, 4294901760
    %v171 = vsub.f32 %v32, %v170
    %172 = vmatpush.msra.mxu0 %v171
    %v173 = vand.u32 %v31, 4294901760
    %v174 = vsub.f32 %v31, %v173
    %175 = vmatpush.msra.mxu0 %v174
    %v176 = vand.u32 %v30, 4294901760
    %v177 = vsub.f32 %v30, %v176
    %178 = vmatpush.msra.mxu0 %v177
    %v179 = vand.u32 %v29, 4294901760
    %v180 = vsub.f32 %v29, %v179
    %181 = vmatpush.msra.mxu0 %v180
    %v182 = vand.u32 %v39, 4294901760
    %v183 = vsub.f32 %v39, %v182
    %184 = vmatmul.f32.gmra.mxu0 %v183
    %v185 = vpop.f32.mrf.mxu0
    %v186 = vadd.f32 %v144, %v185
    %v187 = vand.u32 %v42, 4294901760
    %v188 = vsub.f32 %v42, %v187
    %189 = vmatmul.f32.gmra.mxu0 %v188
    %v190 = vpop.f32.mrf.mxu0
    %v191 = vadd.f32 %v148, %v190
    %192 = vdwg.mxu0
    %193 = vmatpush.msra.mxu0 0.0
    %194 = vmatpush.msra.mxu0 0.0
    %195 = vmatpush.msra.mxu0 0.0
    %196 = vmatpush.msra.mxu0 0.0
    %197 = vmatpush.msra.mxu0 0.0
    %198 = vmatpush.msra.mxu0 0.0
    %199 = vmatpush.msra.mxu0 0.0
    %200 = vmatpush.msra.mxu0 0.0
    %v201 = vand.u32 %v36, 4294901760
    %202 = vmatpush.msra.mxu0 %v201
    %v203 = vand.u32 %v35, 4294901760
    %204 = vmatpush.msra.mxu0 %v203
    %v205 = vand.u32 %v34, 4294901760
    %206 = vmatpush.msra.mxu0 %v205
    %v207 = vand.u32 %v33, 4294901760
    %208 = vmatpush.msra.mxu0 %v207
    %v209 = vand.u32 %v32, 4294901760
    %210 = vmatpush.msra.mxu0 %v209
    %v211 = vand.u32 %v31, 4294901760
    %212 = vmatpush.msra.mxu0 %v211
    %v213 = vand.u32 %v30, 4294901760
    %214 = vmatpush.msra.mxu0 %v213
    %v215 = vand.u32 %v29, 4294901760
    %216 = vmatpush.msra.mxu0 %v215
    %v217 = vand.u32 %v39, 4294901760
    %v218 = vsub.f32 %v39, %v217
    %v219 = vand.u32 %v218, 4294901760
    %220 = vmatmul.f32.gmra.mxu0 %v219
    %v221 = vpop.f32.mrf.mxu0
    %v222 = vadd.f32 %v186, %v221
    %v223 = vand.u32 %v42, 4294901760
    %v224 = vsub.f32 %v42, %v223
    %v225 = vand.u32 %v224, 4294901760
    %226 = vmatmul.f32.gmra.mxu0 %v225
    %v227 = vpop.f32.mrf.mxu0
    %v228 = vadd.f32 %v191, %v227
    %229 = vdwg.mxu0
    %230 = vmatpush.msra.mxu0 0.0
    %231 = vmatpush.msra.mxu0 0.0
    %232 = vmatpush.msra.mxu0 0.0
    %233 = vmatpush.msra.mxu0 0.0
    %234 = vmatpush.msra.mxu0 0.0
    %235 = vmatpush.msra.mxu0 0.0
    %236 = vmatpush.msra.mxu0 0.0
    %237 = vmatpush.msra.mxu0 0.0
    %v238 = vand.u32 %v36, 4294901760
    %v239 = vsub.f32 %v36, %v238
    %v240 = vand.u32 %v239, 4294901760
    %241 = vmatpush.msra.mxu0 %v240
    %v242 = vand.u32 %v35, 4294901760
    %v243 = vsub.f32 %v35, %v242
    %v244 = vand.u32 %v243, 4294901760
    %245 = vmatpush.msra.mxu0 %v244
    %v246 = vand.u32 %v34, 4294901760
    %v247 = vsub.f32 %v34, %v246
    %v248 = vand.u32 %v247, 4294901760
    %249 = vmatpush.msra.mxu0 %v248
    %v250 = vand.u32 %v33, 4294901760
    %v251 = vsub.f32 %v33, %v250
    %v252 = vand.u32 %v251, 4294901760
    %253 = vmatpush.msra.mxu0 %v252
    %v254 = vand.u32 %v32, 4294901760
    %v255 = vsub.f32 %v32, %v254
    %v256 = vand.u32 %v255, 4294901760
    %257 = vmatpush.msra.mxu0 %v256
    %v258 = vand.u32 %v31, 4294901760
    %v259 = vsub.f32 %v31, %v258
    %v260 = vand.u32 %v259, 4294901760
    %261 = vmatpush.msra.mxu0 %v260
    %v262 = vand.u32 %v30, 4294901760
    %v263 = vsub.f32 %v30, %v262
    %v264 = vand.u32 %v263, 4294901760
    %265 = vmatpush.msra.mxu0 %v264
    %v266 = vand.u32 %v29, 4294901760
    %v267 = vsub.f32 %v29, %v266
    %v268 = vand.u32 %v267, 4294901760
    %269 = vmatpush.msra.mxu0 %v268
    %v270 = vand.u32 %v39, 4294901760
    %271 = vmatmul.f32.gmra.mxu0 %v270
    %v272 = vpop.f32.mrf.mxu0
    %v273 = vadd.f32 %v222, %v272
    %v274 = vand.u32 %v42, 4294901760
    %275 = vmatmul.f32.gmra.mxu0 %v274
    %v276 = vpop.f32.mrf.mxu0
    %v277 = vadd.f32 %v228, %v276
    %278 = vdwg.mxu0
    %279 = vmatpush.msra.mxu0 0.0
    %280 = vmatpush.msra.mxu0 0.0
    %281 = vmatpush.msra.mxu0 0.0
    %282 = vmatpush.msra.mxu0 0.0
    %283 = vmatpush.msra.mxu0 0.0
    %284 = vmatpush.msra.mxu0 0.0
    %285 = vmatpush.msra.mxu0 0.0
    %286 = vmatpush.msra.mxu0 0.0
    %v287 = vand.u32 %v36, 4294901760
    %288 = vmatpush.msra.mxu0 %v287
    %v289 = vand.u32 %v35, 4294901760
    %290 = vmatpush.msra.mxu0 %v289
    %v291 = vand.u32 %v34, 4294901760
    %292 = vmatpush.msra.mxu0 %v291
    %v293 = vand.u32 %v33, 4294901760
    %294 = vmatpush.msra.mxu0 %v293
    %v295 = vand.u32 %v32, 4294901760
    %296 = vmatpush.msra.mxu0 %v295
    %v297 = vand.u32 %v31, 4294901760
    %298 = vmatpush.msra.mxu0 %v297
    %v299 = vand.u32 %v30, 4294901760
    %300 = vmatpush.msra.mxu0 %v299
    %v301 = vand.u32 %v29, 4294901760
    %302 = vmatpush.msra.mxu0 %v301
    %v303 = vand.u32 %v39, 4294901760
    %304 = vmatmul.f32.gmra.mxu0 %v303
    %v305 = vpop.f32.mrf.mxu0
    %v306 = vadd.f32 %v273, %v305
    %v307 = vand.u32 %v42, 4294901760
    %308 = vmatmul.f32.gmra.mxu0 %v307
    %v309 = vpop.f32.mrf.mxu0
    %v310 = vadd.f32 %v277, %v309
    %311 = vdwg.mxu0
    %v312 = vadd.f32 %v25, %v306
    %v313 = vadd.f32 %v26, %v310
    %vm314 = vcmask 261120
    %315 = vst.msk [vmem:[#allocation2] sm:$0xff] %vm314, %v312
    %316 = vst.msk [vmem:[#allocation2 + $0x8] sm:$0xff] %vm314, %v313
    // Predicated region
    $region22: #{decoder_block_forward.17} parent=1 // pred_check
      %p317 = pneg %p18
    $region23: #{decoder_block_forward.17} parent=1 // pred_check_branch
      %319 = sbr.rel (%p317) target = $region25
    $region24: #{decoder_block_forward.17} parent=1 // pred_region
      %v320 = vld [vmem:[#allocation2] sm:$0xff]
      %v321 = vld [vmem:[#allocation2 + $0x8] sm:$0xff]
      %v322 = vld [vmem:[%s2] sm:$0x1]
      %v324 = vperm.slane %v322, 0
      %v326 = vadd.f32 %v320, %v324
      %v327 = vadd.f32 %v321, %v324
      %v328 = vld [vmem:[%s3] sm:$0xff]
      %v329 = vld [vmem:[%s3 + $0x8] sm:$0xff]
      %v330 = vadd.f32 %v326, %v328
      %v331 = vadd.f32 %v327, %v329
      %332 = vst.msk [vmem:[#allocation2] sm:$0xff] %vm314, %v330
      %333 = vst.msk [vmem:[#allocation2 + $0x8] sm:$0xff] %vm314, %v331
    $region25: #{decoder_block_forward.17} parent=1 // pred_fallthru
      _
    // Predicated region
    $region26: #{decoder_block_forward.17} parent=1 // pred_check
      _
    $region27: #{decoder_block_forward.17} parent=1 // pred_check_branch
      %335 = sbr.rel (0) target = $region29
    $region28: #{decoder_block_forward.17} parent=1 // pred_region
      %337 = vsyncadd [#allocation3], 0
      %s338 = sshll.u32 [#allocation2], 4
      %s339 = int_to_ptr.vmem [resolvable:$true] %s338
      %s340 = sshll.u32 %s4, 4
      %s341 = int_to_ptr.hbm [resolvable:$true] %s340
      %346 = dma.vmem_to_hbm [thread:$0]  %s339, 256, %s341, [#allocation3], 128, 128, 8
    $region29: #{decoder_block_forward.17} parent=1 // pred_fallthru
      _
    // Predicated region
    $region30: #{decoder_block_forward.17} parent=1 // pred_check
      _
    $region31: #{decoder_block_forward.17} parent=1 // pred_check_branch
      %348 = sbr.rel (0) target = $region33
    $region32: #{decoder_block_forward.17} parent=1 // pred_region
      %350 = dma.done [#allocation3], 256
    $region33: #{decoder_block_forward.17} parent=1 // pred_fallthru
      _
    %351 = vsyncpa [#allocation3], 1

</llo_original>
